<compile_context>
chip_gen: v6e
topology: v6e:2x2x1
jax: 0.10.0
libtpu: 0.0.40
codegen_flags: <defaults>
</compile_context>

<pallas_src>
import functools

import jax
import jax.numpy as jnp
from jax.experimental import pallas as pl
from jax.experimental.pallas import tpu as pltpu

# ----------------------------- "config" -------------------------------------
W = 32                 # cfg.network.kilonerf.W
D = 2                  # cfg.network.kilonerf.D
MULTIRES_XYZ = 4       # xyz frequency encoder levels
MULTIRES_DIR = 2       # dir frequency encoder levels
INPUT_CH = 3 * (1 + 2 * MULTIRES_XYZ)        # 27
INPUT_CH_VIEWS = 3 * (1 + 2 * MULTIRES_DIR)  # 15
IN_TOTAL = INPUT_CH + INPUT_CH_VIEWS         # 42
GRID_RES = (2, 2, 2)                         # cfg.task_arg.grid_resolution
NUM_MODELS = GRID_RES[0] * GRID_RES[1] * GRID_RES[2]   # 8
HID = NUM_MODELS * W                         # 256  expanded hidden width
OUT4 = 4 * NUM_MODELS                        # 32   expanded [rgb, sigma] width
AABB_MIN = jnp.array([-1.0, -1.0, -1.0], jnp.float32)
AABB_MAX = jnp.array([1.0, 1.0, 1.0], jnp.float32)
TILE = 1024            # points per Pallas grid step (sweep 1024-2048)


# ----------------------------- Pallas kernel --------------------------------
def kilonerf_kernel(x_ref, idx_ref,
                    w0_ref, b0_ref, w1_ref, b1_ref, wf_ref, bf_ref,
                    wv_ref, bv_ref, wsig_ref, wrgb_ref, bfin_ref, sel_ref,
                    out_ref):
    t = x_ref.shape[0]
    xb = x_ref[...].astype(jnp.bfloat16)                           # (T, 42)

    # pts layer 0: every model's 32 outputs side by side -> (T, 256).
    # (de rows of w0 are zero, so the merged [pe, de] input can be used as-is.)
    h = jnp.dot(xb, w0_ref[...], preferred_element_type=jnp.float32) + b0_ref[...]
    h = jnp.maximum(h, 0.0)
    hb = h.astype(jnp.bfloat16)

    # pts layer 1: block-diagonal 256x256 -> model slabs stay independent.
    h = jnp.dot(hb, w1_ref[...], preferred_element_type=jnp.float32) + b1_ref[...]
    h = jnp.maximum(h, 0.0)
    h1b = h.astype(jnp.bfloat16)

    # feature head (block-diagonal, no activation)
    feat = jnp.dot(h1b, wf_ref[...], preferred_element_type=jnp.float32) + bf_ref[...]

    # view layer: input = [feature(256), pe+de(42)]; pe rows of wv are zero.
    hv_in = jnp.concatenate([feat.astype(jnp.bfloat16), xb], axis=-1)  # (T, 298)
    hv = jnp.dot(hv_in, wv_ref[...], preferred_element_type=jnp.float32) + bv_ref[...]
    hv = jnp.maximum(hv, 0.0)
    hvb = hv.astype(jnp.bfloat16)

    # fused per-model [rgb(3), sigma(1)] head -> (T, 32)
    out_all = (jnp.dot(hvb, wrgb_ref[...], preferred_element_type=jnp.float32)
               + jnp.dot(h1b, wsig_ref[...], preferred_element_type=jnp.float32)
               + bfin_ref[...])

    # single data-dependent select: keep only the 4 lanes of the point's model
    idx4 = idx_ref[...] * 4                                        # (T, 1) int32
    lane = jax.lax.broadcasted_iota(jnp.int32, (t, OUT4), 1)
    mask = ((lane >= idx4) & (lane < idx4 + 4)).astype(jnp.float32)
    masked = (out_all * mask).astype(jnp.bfloat16)                 # (T, 32)

    # lane-dense transposed store: out(4, T) = sel(4,32) . masked(T,32)^T
    out_ref[...] = jax.lax.dot_general(
        sel_ref[...], masked, (((1,), (1,)), ((), ())),
        preferred_element_type=jnp.float32)


# ----------------------------- weight packing --------------------------------
def _block_diag(w):
    """(M, out, in) per-model weights -> (M*in, M*out) block-diagonal of w[m].T."""
    m, out, inn = w.shape
    eye = jnp.eye(m, dtype=w.dtype)
    full = jnp.einsum("ij,jba->iajb", eye, w)          # (m, in, m, out)
    return full.reshape(m * inn, m * out)


def _stack_cols(w):
    """(M, out, in) -> (in, M*out): column slab m = w[m].T (shared input rows)."""
    m, out, inn = w.shape
    return jnp.transpose(w, (2, 0, 1)).reshape(inn, m * out)


def pack_params(params):
    """Pack per-model torch-layout weights into MXU-friendly shared matrices.

    Run ONCE (outside the jitted forward)."""
    f32, bf16 = jnp.float32, jnp.bfloat16
    m = NUM_MODELS

    # layer 0 acts on pe only; zero rows for the de part of the merged input
    w0p = jnp.concatenate(
        [_stack_cols(params["w0"]), jnp.zeros((INPUT_CH_VIEWS, HID), f32)], axis=0)
    b0r = params["b0"].reshape(1, HID)

    w1p = _block_diag(params["w1"])
    b1r = params["b1"].reshape(1, HID)

    wfp = _block_diag(params["wfeat"])
    bfr = params["bfeat"].reshape(1, HID)

    # view layer rows = [feature(256) block-diag, pe(27)=0, de(15) per-slab]
    wv = params["wview"]                               # (M, 32, 47)
    wvp = jnp.concatenate(
        [_block_diag(wv[:, :, :W]),
         jnp.zeros((INPUT_CH, HID), f32),
         _stack_cols(wv[:, :, W:])], axis=0)           # (298, 256)
    bvr = params["bview"].reshape(1, HID)

    # fused [rgb(3), sigma(1)] head on 4-wide column slabs per model
    wsig_p = jnp.zeros((HID, OUT4), f32)
    wrgb_p = jnp.zeros((HID, OUT4), f32)
    bfin = jnp.zeros((1, OUT4), f32)
    for i in range(m):
        wsig_p = wsig_p.at[i * W:(i + 1) * W, i * 4 + 3].set(params["wsig"][i, 0, :])
        wrgb_p = wrgb_p.at[i * W:(i + 1) * W, i * 4:i * 4 + 3].set(params["wrgb"][i].T)
        bfin = bfin.at[0, i * 4:i * 4 + 3].set(params["brgb"][i])
        bfin = bfin.at[0, i * 4 + 3].set(params["bsig"][i, 0])

    # constant 0/1 selector: sel[c, i] = 1 iff i % 4 == c   -> (4, 32)
    sel = jnp.tile(jnp.eye(4, dtype=f32), (1, m))

    return [w0p.astype(bf16), b0r,
            w1p.astype(bf16), b1r,
            wfp.astype(bf16), bfr,
            wvp.astype(bf16), bvr,
            wsig_p.astype(bf16), wrgb_p.astype(bf16), bfin,
            sel.astype(bf16)]


# ----------------------------- pallas_call wrapper ---------------------------
def run_kilonerf(x_embed, flat_idx, packed, tile=TILE):
    """x_embed: (N, 42) f32 [pe, de]; flat_idx: (N,) int32. Returns (4, N) f32."""
    n = x_embed.shape[0]
    n_pad = pl.cdiv(n, tile) * tile
    pad = n_pad - n
    if pad:
        x_embed = jnp.pad(x_embed, ((0, pad), (0, 0)))
        flat_idx = jnp.pad(flat_idx, ((0, pad),))
    idx2 = flat_idx.astype(jnp.int32).reshape(-1, 1)

    in_specs = [pl.BlockSpec((tile, IN_TOTAL), lambda i: (i, 0)),
                pl.BlockSpec((tile, 1), lambda i: (i, 0))]
    # packed weights: full-array blocks, constant index -> VMEM-resident, read once
    in_specs += [pl.BlockSpec(p.shape, lambda i: (0, 0)) for p in packed]

    out = pl.pallas_call(
        kilonerf_kernel,
        out_shape=jax.ShapeDtypeStruct((4, n_pad), jnp.float32),
        grid=(n_pad // tile,),
        in_specs=in_specs,
        out_specs=pl.BlockSpec((4, tile), lambda i: (0, i)),
        compiler_params=pltpu.CompilerParams(
            dimension_semantics=("parallel",),
            vmem_limit_bytes=32 * 1024 * 1024),
    )(x_embed, idx2, *packed)
    return out[:, :n]


# ----------------------------- JAX glue --------------------------------------
def embed_freq(x, num_freqs):
    outs = [x]
    for i in range(num_freqs):
        f = 2.0 ** i
        outs.append(jnp.sin(x * f))
        outs.append(jnp.cos(x * f))
    return jnp.concatenate(outs, axis=-1)


def get_flat_index(pts_flat):
    """Network._get_index + flattening to a single model index."""
    grid_res_f = jnp.array(GRID_RES, jnp.float32)
    normalized = (pts_flat - AABB_MIN) / (AABB_MAX - AABB_MIN)
    scaled = normalized * grid_res_f
    clamped = jnp.minimum(jnp.maximum(scaled, 0.0), grid_res_f - 1.0)
    idx = clamped.astype(jnp.int32)
    return idx[:, 0] * (GRID_RES[1] * GRID_RES[2]) + idx[:, 1] * GRID_RES[2] + idx[:, 2]


@jax.jit
def network_forward(packed, pts, viewdirs):
    """Mirrors Network.forward: returns (rgb (R,S,3), sigma (R,S,1))."""
    if pts.ndim == 2:
        pts = pts[:, None, :]
    n_rays, n_samples, _ = pts.shape
    pts_flat = pts.reshape(-1, 3)
    dirs_flat = jnp.broadcast_to(viewdirs[:, None, :],
                                 (n_rays, n_samples, 3)).reshape(-1, 3)
    flat_idx = get_flat_index(pts_flat)
    x_embed = jnp.concatenate([embed_freq(pts_flat, MULTIRES_XYZ),
                               embed_freq(dirs_flat, MULTIRES_DIR)], axis=-1)
    out_t = run_kilonerf(x_embed, flat_idx, packed)      # (4, N) lane-dense
    out = out_t.T.reshape(n_rays, n_samples, 4)
    return out[..., :3], out[..., 3:4]


def init_params(key):
    """Deterministic kaiming-uniform-ish init (bound = 1/sqrt(fan_in))."""
    names = ("w0", "b0", "w1", "b1", "wsig", "bsig",
             "wfeat", "bfeat", "wview", "bview", "wrgb", "brgb")
    ks = jax.random.split(key, len(names))

    def ku(k, shape, fan_in):
        bound = 1.0 / float(fan_in) ** 0.5
        return jax.random.uniform(k, shape, jnp.float32, -bound, bound)

    p = {}
    p["w0"] = ku(ks[0], (NUM_MODELS, W, INPUT_CH), INPUT_CH)
    p["b0"] = ku(ks[1], (NUM_MODELS, W), W)
    p["w1"] = ku(ks[2], (NUM_MODELS, W, W), W)
    p["b1"] = ku(ks[3], (NUM_MODELS, W), W)
    p["wsig"] = ku(ks[4], (NUM_MODELS, 1, W), W)
    p["bsig"] = ku(ks[5], (NUM_MODELS, 1), 1)
    p["wfeat"] = ku(ks[6], (NUM_MODELS, W, W), W)
    p["bfeat"] = ku(ks[7], (NUM_MODELS, W), W)
    p["wview"] = ku(ks[8], (NUM_MODELS, W, W + INPUT_CH_VIEWS), W + INPUT_CH_VIEWS)
    p["bview"] = ku(ks[9], (NUM_MODELS, W), W)
    p["wrgb"] = ku(ks[10], (NUM_MODELS, 3, W), W)
    p["brgb"] = ku(ks[11], (NUM_MODELS, 3), 3)
    return p


def reference_forward(params, pts, viewdirs):
    """Pure-JAX f32/HIGHEST reference matching the torch semantics."""
    n_rays, n_samples, _ = pts.shape
    pts_flat = pts.reshape(-1, 3)
    vd = jnp.broadcast_to(viewdirs[:, None, :], (n_rays, n_samples, 3)).reshape(-1, 3)
    flat_idx = get_flat_index(pts_flat)
    pe = embed_freq(pts_flat, MULTIRES_XYZ)
    de = embed_freq(vd, MULTIRES_DIR)
    g = {k: jnp.take(v, flat_idx, axis=0) for k, v in params.items()}

    def lin(h, w, b):
        return jnp.einsum("nc,noc->no", h, w,
                          precision=jax.lax.Precision.HIGHEST) + b

    h = jax.nn.relu(lin(pe, g["w0"], g["b0"]))
    h = jax.nn.relu(lin(h, g["w1"], g["b1"]))
    sigma = lin(h, g["wsig"], g["bsig"])
    feat = lin(h, g["wfeat"], g["bfeat"])
    hc = jnp.concatenate([feat, de], axis=-1)
    hv = jax.nn.relu(lin(hc, g["wview"], g["bview"]))
    rgb = lin(hv, g["wrgb"], g["brgb"])
    out = jnp.concatenate([rgb, sigma], axis=-1).reshape(n_rays, n_samples, 4)
    return out[..., :3], out[..., 3:4]


if __name__ == "__main__":
    key = jax.random.PRNGKey(0)
    pk, xk, vk = jax.random.split(key, 3)
    params = init_params(pk)
    packed = pack_params(params)          # packed once, outside the forward

    N_rays, N_samples = 48, 32            # 1536 points -> padded to 2048 (2 steps)
    pts = jax.random.uniform(xk, (N_rays, N_samples, 3), jnp.float32, -1.0, 1.0)
    viewdirs = jax.random.normal(vk, (N_rays, 3), jnp.float32)
    viewdirs = viewdirs / jnp.linalg.norm(viewdirs, axis=-1, keepdims=True)

    rgb, sigma = network_forward(packed, pts, viewdirs)
    jax.block_until_ready((rgb, sigma))

    rgb_ref, sigma_ref = reference_forward(params, pts, viewdirs)
    assert rgb.shape == (N_rays, N_samples, 3) and sigma.shape == (N_rays, N_samples, 1)
    # bf16 MXU inputs vs f32 HIGHEST reference -> slightly relaxed tolerance
    assert jnp.allclose(rgb, rgb_ref, atol=2e-2, rtol=2e-2), "rgb mismatch"
    assert jnp.allclose(sigma, sigma_ref, atol=2e-2, rtol=2e-2), "sigma mismatch"
    print("KERNEL_OK")
</pallas_src>

<mosaic_0001>
module attributes {stable_mosaic.version = 11 : i64} {
  func.func @kilonerf_kernel(%arg0: i32, %arg1: memref<1024x42xf32, #tpu.memory_space<vmem>>, %arg2: memref<1024x1xi32, #tpu.memory_space<vmem>>, %arg3: memref<42x256xbf16, #tpu.memory_space<vmem>>, %arg4: memref<1x256xf32, #tpu.memory_space<vmem>>, %arg5: memref<256x256xbf16, #tpu.memory_space<vmem>>, %arg6: memref<1x256xf32, #tpu.memory_space<vmem>>, %arg7: memref<256x256xbf16, #tpu.memory_space<vmem>>, %arg8: memref<1x256xf32, #tpu.memory_space<vmem>>, %arg9: memref<298x256xbf16, #tpu.memory_space<vmem>>, %arg10: memref<1x256xf32, #tpu.memory_space<vmem>>, %arg11: memref<256x32xbf16, #tpu.memory_space<vmem>>, %arg12: memref<256x32xbf16, #tpu.memory_space<vmem>>, %arg13: memref<1x32xf32, #tpu.memory_space<vmem>>, %arg14: memref<4x32xbf16, #tpu.memory_space<vmem>>, %arg15: memref<4x1024xf32, #tpu.memory_space<vmem>>) attributes {dimension_semantics = [#tpu.dimension_semantics<parallel>], iteration_bounds = array<i64: 2>, scalar_prefetch = 0 : i64, scratch_operands = 0 : i64, tpu.core_type = #tpu.core_type<tc>, window_params = [{transform_indices = @transform_0, window_bounds = array<i64: 1024, 42>}, {transform_indices = @transform_1, window_bounds = array<i64: 1024, 1>}, {pipeline_mode = #tpu.pipeline_mode<synchronous>, transform_indices = @transform_2, window_bounds = array<i64: 42, 256>}, {pipeline_mode = #tpu.pipeline_mode<synchronous>, transform_indices = @transform_3, window_bounds = array<i64: 1, 256>}, {pipeline_mode = #tpu.pipeline_mode<synchronous>, transform_indices = @transform_4, window_bounds = array<i64: 256, 256>}, {pipeline_mode = #tpu.pipeline_mode<synchronous>, transform_indices = @transform_5, window_bounds = array<i64: 1, 256>}, {pipeline_mode = #tpu.pipeline_mode<synchronous>, transform_indices = @transform_6, window_bounds = array<i64: 256, 256>}, {pipeline_mode = #tpu.pipeline_mode<synchronous>, transform_indices = @transform_7, window_bounds = array<i64: 1, 256>}, {pipeline_mode = #tpu.pipeline_mode<synchronous>, transform_indices = @transform_8, window_bounds = array<i64: 298, 256>}, {pipeline_mode = #tpu.pipeline_mode<synchronous>, transform_indices = @transform_9, window_bounds = array<i64: 1, 256>}, {pipeline_mode = #tpu.pipeline_mode<synchronous>, transform_indices = @transform_10, window_bounds = array<i64: 256, 32>}, {pipeline_mode = #tpu.pipeline_mode<synchronous>, transform_indices = @transform_11, window_bounds = array<i64: 256, 32>}, {pipeline_mode = #tpu.pipeline_mode<synchronous>, transform_indices = @transform_12, window_bounds = array<i64: 1, 32>}, {pipeline_mode = #tpu.pipeline_mode<synchronous>, transform_indices = @transform_13, window_bounds = array<i64: 4, 32>}, {transform_indices = @transform_14, window_bounds = array<i64: 4, 1024>}]} {
    %c0 = arith.constant 0 : index
    %c0_0 = arith.constant 0 : index
    %0 = vector.load %arg1[%c0, %c0_0] : memref<1024x42xf32, #tpu.memory_space<vmem>>, vector<1024x42xf32>
    %1 = arith.truncf %0 : vector<1024x42xf32> to vector<1024x42xbf16>
    %c0_1 = arith.constant 0 : index
    %c0_2 = arith.constant 0 : index
    %2 = vector.load %arg3[%c0_1, %c0_2] : memref<42x256xbf16, #tpu.memory_space<vmem>>, vector<42x256xbf16>
    %cst = arith.constant dense<0.000000e+00> : vector<1024x256xf32>
    %3 = tpu.matmul %1, %2, %cst {dimension_numbers = #tpu.dot_dimension_numbers<[1], [0], [0], [1], [0, 0, 1, 1], [], []>} : vector<1024x42xbf16>, vector<42x256xbf16>, vector<1024x256xf32> -> vector<1024x256xf32>
    %c0_3 = arith.constant 0 : index
    %c0_4 = arith.constant 0 : index
    %4 = vector.load %arg4[%c0_3, %c0_4] : memref<1x256xf32, #tpu.memory_space<vmem>>, vector<1x256xf32>
    %5 = vector.broadcast %4 : vector<1x256xf32> to vector<1024x256xf32>
    %6 = arith.addf %3, %5 : vector<1024x256xf32>
    %cst_5 = arith.constant 0.000000e+00 : f32
    %7 = vector.broadcast %cst_5 : f32 to vector<1024x256xf32>
    %8 = arith.maximumf %6, %7 : vector<1024x256xf32>
    %9 = arith.truncf %8 : vector<1024x256xf32> to vector<1024x256xbf16>
    %c0_6 = arith.constant 0 : index
    %c0_7 = arith.constant 0 : index
    %10 = vector.load %arg5[%c0_6, %c0_7] : memref<256x256xbf16, #tpu.memory_space<vmem>>, vector<256x256xbf16>
    %cst_8 = arith.constant dense<0.000000e+00> : vector<1024x256xf32>
    %11 = tpu.matmul %9, %10, %cst_8 {dimension_numbers = #tpu.dot_dimension_numbers<[1], [0], [0], [1], [0, 0, 1, 1], [], []>} : vector<1024x256xbf16>, vector<256x256xbf16>, vector<1024x256xf32> -> vector<1024x256xf32>
    %c0_9 = arith.constant 0 : index
    %c0_10 = arith.constant 0 : index
    %12 = vector.load %arg6[%c0_9, %c0_10] : memref<1x256xf32, #tpu.memory_space<vmem>>, vector<1x256xf32>
    %13 = vector.broadcast %12 : vector<1x256xf32> to vector<1024x256xf32>
    %14 = arith.addf %11, %13 : vector<1024x256xf32>
    %cst_11 = arith.constant 0.000000e+00 : f32
    %15 = vector.broadcast %cst_11 : f32 to vector<1024x256xf32>
    %16 = arith.maximumf %14, %15 : vector<1024x256xf32>
    %17 = arith.truncf %16 : vector<1024x256xf32> to vector<1024x256xbf16>
    %c0_12 = arith.constant 0 : index
    %c0_13 = arith.constant 0 : index
    %18 = vector.load %arg7[%c0_12, %c0_13] : memref<256x256xbf16, #tpu.memory_space<vmem>>, vector<256x256xbf16>
    %cst_14 = arith.constant dense<0.000000e+00> : vector<1024x256xf32>
    %19 = tpu.matmul %17, %18, %cst_14 {dimension_numbers = #tpu.dot_dimension_numbers<[1], [0], [0], [1], [0, 0, 1, 1], [], []>} : vector<1024x256xbf16>, vector<256x256xbf16>, vector<1024x256xf32> -> vector<1024x256xf32>
    %c0_15 = arith.constant 0 : index
    %c0_16 = arith.constant 0 : index
    %20 = vector.load %arg8[%c0_15, %c0_16] : memref<1x256xf32, #tpu.memory_space<vmem>>, vector<1x256xf32>
    %21 = vector.broadcast %20 : vector<1x256xf32> to vector<1024x256xf32>
    %22 = arith.addf %19, %21 : vector<1024x256xf32>
    %23 = arith.truncf %22 : vector<1024x256xf32> to vector<1024x256xbf16>
    %24 = tpu.concatenate %23, %1 in 1 : vector<1024x256xbf16>, vector<1024x42xbf16> -> vector<1024x298xbf16>
    %c0_17 = arith.constant 0 : index
    %c0_18 = arith.constant 0 : index
    %25 = vector.load %arg9[%c0_17, %c0_18] : memref<298x256xbf16, #tpu.memory_space<vmem>>, vector<298x256xbf16>
    %cst_19 = arith.constant dense<0.000000e+00> : vector<1024x256xf32>
    %26 = tpu.matmul %24, %25, %cst_19 {dimension_numbers = #tpu.dot_dimension_numbers<[1], [0], [0], [1], [0, 0, 1, 1], [], []>} : vector<1024x298xbf16>, vector<298x256xbf16>, vector<1024x256xf32> -> vector<1024x256xf32>
    %c0_20 = arith.constant 0 : index
    %c0_21 = arith.constant 0 : index
    %27 = vector.load %arg10[%c0_20, %c0_21] : memref<1x256xf32, #tpu.memory_space<vmem>>, vector<1x256xf32>
    %28 = vector.broadcast %27 : vector<1x256xf32> to vector<1024x256xf32>
    %29 = arith.addf %26, %28 : vector<1024x256xf32>
    %cst_22 = arith.constant 0.000000e+00 : f32
    %30 = vector.broadcast %cst_22 : f32 to vector<1024x256xf32>
    %31 = arith.maximumf %29, %30 : vector<1024x256xf32>
    %32 = arith.truncf %31 : vector<1024x256xf32> to vector<1024x256xbf16>
    %c0_23 = arith.constant 0 : index
    %c0_24 = arith.constant 0 : index
    %33 = vector.load %arg12[%c0_23, %c0_24] : memref<256x32xbf16, #tpu.memory_space<vmem>>, vector<256x32xbf16>
    %cst_25 = arith.constant dense<0.000000e+00> : vector<1024x32xf32>
    %34 = tpu.matmul %32, %33, %cst_25 {dimension_numbers = #tpu.dot_dimension_numbers<[1], [0], [0], [1], [0, 0, 1, 1], [], []>} : vector<1024x256xbf16>, vector<256x32xbf16>, vector<1024x32xf32> -> vector<1024x32xf32>
    %c0_26 = arith.constant 0 : index
    %c0_27 = arith.constant 0 : index
    %35 = vector.load %arg11[%c0_26, %c0_27] : memref<256x32xbf16, #tpu.memory_space<vmem>>, vector<256x32xbf16>
    %cst_28 = arith.constant dense<0.000000e+00> : vector<1024x32xf32>
    %36 = tpu.matmul %17, %35, %cst_28 {dimension_numbers = #tpu.dot_dimension_numbers<[1], [0], [0], [1], [0, 0, 1, 1], [], []>} : vector<1024x256xbf16>, vector<256x32xbf16>, vector<1024x32xf32> -> vector<1024x32xf32>
    %37 = arith.addf %34, %36 : vector<1024x32xf32>
    %c0_29 = arith.constant 0 : index
    %c0_30 = arith.constant 0 : index
    %38 = vector.load %arg13[%c0_29, %c0_30] : memref<1x32xf32, #tpu.memory_space<vmem>>, vector<1x32xf32>
    %39 = vector.broadcast %38 : vector<1x32xf32> to vector<1024x32xf32>
    %40 = arith.addf %37, %39 : vector<1024x32xf32>
    %c0_31 = arith.constant 0 : index
    %c0_32 = arith.constant 0 : index
    %41 = vector.load %arg2[%c0_31, %c0_32] : memref<1024x1xi32, #tpu.memory_space<vmem>>, vector<1024x1xi32>
    %c4_i32 = arith.constant 4 : i32
    %42 = vector.broadcast %c4_i32 : i32 to vector<1024x1xi32>
    %43 = arith.muli %41, %42 : vector<1024x1xi32>
    %44 = tpu.iota {dimensions = array<i32: 1>} : vector<1024x32xi32>
    %45 = vector.broadcast %43 : vector<1024x1xi32> to vector<1024x32xi32>
    %46 = arith.cmpi sge, %44, %45 : vector<1024x32xi32>
    %c4_i32_33 = arith.constant 4 : i32
    %47 = vector.broadcast %c4_i32_33 : i32 to vector<1024x1xi32>
    %48 = arith.addi %43, %47 : vector<1024x1xi32>
    %49 = vector.broadcast %48 : vector<1024x1xi32> to vector<1024x32xi32>
    %50 = arith.cmpi slt, %44, %49 : vector<1024x32xi32>
    %51 = arith.andi %46, %50 : vector<1024x32xi1>
    %52 = arith.extui %51 : vector<1024x32xi1> to vector<1024x32xi32>
    %53 = arith.sitofp %52 : vector<1024x32xi32> to vector<1024x32xf32>
    %54 = arith.mulf %40, %53 : vector<1024x32xf32>
    %55 = arith.truncf %54 : vector<1024x32xf32> to vector<1024x32xbf16>
    %c0_34 = arith.constant 0 : index
    %c0_35 = arith.constant 0 : index
    %56 = vector.load %arg14[%c0_34, %c0_35] : memref<4x32xbf16, #tpu.memory_space<vmem>>, vector<4x32xbf16>
    %cst_36 = arith.constant dense<0.000000e+00> : vector<4x1024xf32>
    %57 = tpu.matmul %56, %55, %cst_36 {dimension_numbers = #tpu.dot_dimension_numbers<[1], [1], [0], [0], [0, 0, 1, 0], [], []>} : vector<4x32xbf16>, vector<1024x32xbf16>, vector<4x1024xf32> -> vector<4x1024xf32>
    %c0_37 = arith.constant 0 : index
    %c0_38 = arith.constant 0 : index
    %58 = vector.load %arg15[%c0_37, %c0_38] : memref<4x1024xf32, #tpu.memory_space<vmem>>, vector<4x1024xf32>
    tpu.vector_store %arg15[%c0_37, %c0_38], %57 {strides = array<i32>} : memref<4x1024xf32, #tpu.memory_space<vmem>>, vector<4x1024xf32>,
    return
  }
  func.func @transform_0(%arg0: i32) -> (i32, i32) {
    %c0_i32 = arith.constant 0 : i32
    %c0_i32_0 = arith.constant 0 : i32
    return %arg0, %c0_i32 : i32, i32
  }
  func.func @transform_1(%arg0: i32) -> (i32, i32) {
    %c0_i32 = arith.constant 0 : i32
    %c0_i32_0 = arith.constant 0 : i32
    return %arg0, %c0_i32 : i32, i32
  }
  func.func @transform_2(%arg0: i32) -> (i32, i32) {
    %c0_i32 = arith.constant 0 : i32
    %c0_i32_0 = arith.constant 0 : i32
    %c0_i32_1 = arith.constant 0 : i32
    return %c0_i32, %c0_i32_0 : i32, i32
  }
  func.func @transform_3(%arg0: i32) -> (i32, i32) {
    %c0_i32 = arith.constant 0 : i32
    %c0_i32_0 = arith.constant 0 : i32
    %c0_i32_1 = arith.constant 0 : i32
    return %c0_i32, %c0_i32_0 : i32, i32
  }
  func.func @transform_4(%arg0: i32) -> (i32, i32) {
    %c0_i32 = arith.constant 0 : i32
    %c0_i32_0 = arith.constant 0 : i32
    %c0_i32_1 = arith.constant 0 : i32
    return %c0_i32, %c0_i32_0 : i32, i32
  }
  func.func @transform_5(%arg0: i32) -> (i32, i32) {
    %c0_i32 = arith.constant 0 : i32
    %c0_i32_0 = arith.constant 0 : i32
    %c0_i32_1 = arith.constant 0 : i32
    return %c0_i32, %c0_i32_0 : i32, i32
  }
  func.func @transform_6(%arg0: i32) -> (i32, i32) {
    %c0_i32 = arith.constant 0 : i32
    %c0_i32_0 = arith.constant 0 : i32
    %c0_i32_1 = arith.constant 0 : i32
    return %c0_i32, %c0_i32_0 : i32, i32
  }
  func.func @transform_7(%arg0: i32) -> (i32, i32) {
    %c0_i32 = arith.constant 0 : i32
    %c0_i32_0 = arith.constant 0 : i32
    %c0_i32_1 = arith.constant 0 : i32
    return %c0_i32, %c0_i32_0 : i32, i32
  }
  func.func @transform_8(%arg0: i32) -> (i32, i32) {
    %c0_i32 = arith.constant 0 : i32
    %c0_i32_0 = arith.constant 0 : i32
    %c0_i32_1 = arith.constant 0 : i32
    return %c0_i32, %c0_i32_0 : i32, i32
  }
  func.func @transform_9(%arg0: i32) -> (i32, i32) {
    %c0_i32 = arith.constant 0 : i32
    %c0_i32_0 = arith.constant 0 : i32
    %c0_i32_1 = arith.constant 0 : i32
    return %c0_i32, %c0_i32_0 : i32, i32
  }
  func.func @transform_10(%arg0: i32) -> (i32, i32) {
    %c0_i32 = arith.constant 0 : i32
    %c0_i32_0 = arith.constant 0 : i32
    %c0_i32_1 = arith.constant 0 : i32
    return %c0_i32, %c0_i32_0 : i32, i32
  }
  func.func @transform_11(%arg0: i32) -> (i32, i32) {
    %c0_i32 = arith.constant 0 : i32
    %c0_i32_0 = arith.constant 0 : i32
    %c0_i32_1 = arith.constant 0 : i32
    return %c0_i32, %c0_i32_0 : i32, i32
  }
  func.func @transform_12(%arg0: i32) -> (i32, i32) {
    %c0_i32 = arith.constant 0 : i32
    %c0_i32_0 = arith.constant 0 : i32
    %c0_i32_1 = arith.constant 0 : i32
    return %c0_i32, %c0_i32_0 : i32, i32
  }
  func.func @transform_13(%arg0: i32) -> (i32, i32) {
    %c0_i32 = arith.constant 0 : i32
    %c0_i32_0 = arith.constant 0 : i32
    %c0_i32_1 = arith.constant 0 : i32
    return %c0_i32, %c0_i32_0 : i32, i32
  }
  func.func @transform_14(%arg0: i32) -> (i32, i32) {
    %c0_i32 = arith.constant 0 : i32
    %c0_i32_0 = arith.constant 0 : i32
    return %c0_i32, %arg0 : i32, i32
  }
}

</mosaic_0001>

<llo_original>
// kernel: network_forward.1
$region0: #{network_forward.1}
  #allocation0 [shape = 'u32[]', space=smem, size = 0x4, offset = 0x4, fixed_abs, tag = 'smem constant byte address 0x4 - core index']
  #allocation1 [shape = 'u32[144,128]{1,0:T(1,128)}', space=vmem, size = 0x12000, scoped, tag = 'internal scratch']
  %s0 = inlined_call_operand.vmem [shape: f32[2048,42], index: 0, kind: input, shape index: {}]
  %s1 = inlined_call_operand.vmem [shape: s32[2048,1], index: 1, kind: input, shape index: {}]
  %s2 = inlined_call_operand.vmem [shape: bf16[42,256], index: 2, kind: input, shape index: {}]
  %s3 = inlined_call_operand.vmem [shape: f32[1,256], index: 3, kind: input, shape index: {}]
  %s4 = inlined_call_operand.vmem [shape: bf16[256,256], index: 4, kind: input, shape index: {}]
  %s5 = inlined_call_operand.vmem [shape: f32[1,256], index: 5, kind: input, shape index: {}]
  %s6 = inlined_call_operand.vmem [shape: bf16[256,256], index: 6, kind: input, shape index: {}]
  %s7 = inlined_call_operand.vmem [shape: f32[1,256], index: 7, kind: input, shape index: {}]
  %s8 = inlined_call_operand.vmem [shape: bf16[298,256], index: 8, kind: input, shape index: {}]
  %s9 = inlined_call_operand.vmem [shape: f32[1,256], index: 9, kind: input, shape index: {}]
  %s10 = inlined_call_operand.vmem [shape: bf16[256,32], index: 10, kind: input, shape index: {}]
  %s11 = inlined_call_operand.vmem [shape: bf16[256,32], index: 11, kind: input, shape index: {}]
  %s12 = inlined_call_operand.vmem [shape: f32[1,32], index: 12, kind: input, shape index: {}]
  %s13 = inlined_call_operand.vmem [shape: bf16[4,32], index: 13, kind: input, shape index: {}]
  %s14 = inlined_call_operand.vmem [shape: f32[4,2048], index: 14, kind: output, shape index: {}]
  %s15 = sld [smem:[#allocation0]]
  $region89: #{network_forward.1} parent=0
    _
  %s17 = ssub.s32 1, %s15
  %s18 = scalar_select 0, %s17, %s15
  loop: start=0, step=1, limit=4
  $region2: #{network_forward.1} parent=0 // loop_pre_header
    _
  $region3: #{network_forward.1} parent=0 // loop_header
    %s20 = sphi 0, %s24
    %p21 = scmp.ge.s32.totalorder %s20, 4
    %s30 = sphi 0, %s32
    %s33 = sphi 0, %s30
    %s34 = sphi 0, %s33
    %s50 = sphi 0, %s34
    %s56 = sphi 0, %s58
    %s59 = sphi 0, %s56
    %s60 = sphi 0, %s59
    %s76 = sphi 0, %s60
    %s80 = sphi 0, %s80
    %s82 = sphi 0, %s80
    %s83 = sphi 0, %s82
    %s97 = sphi 0, %s83
    %s101 = sphi 0, %s101
    %s103 = sphi 0, %s101
    %s104 = sphi 0, %s103
    %s118 = sphi 0, %s104
    %s122 = sphi 0, %s122
    %s124 = sphi 0, %s122
    %s125 = sphi 0, %s124
    %s139 = sphi 0, %s125
    %s143 = sphi 0, %s143
    %s145 = sphi 0, %s143
    %s146 = sphi 0, %s145
    %s160 = sphi 0, %s146
    %s164 = sphi 0, %s164
    %s166 = sphi 0, %s164
    %s167 = sphi 0, %s166
    %s181 = sphi 0, %s167
    %s185 = sphi 0, %s185
    %s187 = sphi 0, %s185
    %s188 = sphi 0, %s187
    %s202 = sphi 0, %s188
    %s206 = sphi 0, %s206
    %s208 = sphi 0, %s206
    %s209 = sphi 0, %s208
    %s223 = sphi 0, %s209
    %s227 = sphi 0, %s227
    %s229 = sphi 0, %s227
    %s230 = sphi 0, %s229
    %s244 = sphi 0, %s230
    %s248 = sphi 0, %s248
    %s250 = sphi 0, %s248
    %s251 = sphi 0, %s250
    %s265 = sphi 0, %s251
    %s269 = sphi 0, %s269
    %s271 = sphi 0, %s269
    %s272 = sphi 0, %s271
    %s286 = sphi 0, %s272
    %s290 = sphi 0, %s290
    %s292 = sphi 0, %s290
    %s293 = sphi 0, %s292
    %s307 = sphi 0, %s293
    %s311 = sphi 0, %s311
    %s313 = sphi 0, %s311
    %s314 = sphi 0, %s313
    %s328 = sphi 0, %s314
    %s334 = sphi 0, %s336
    %s337 = sphi 0, %s334
    %s338 = sphi 0, %s337
    %s354 = sphi 0, %s338
  $region4: #{network_forward.1} parent=0 // loop_header_branch
    %23 = sbr.rel (%p21) target = $region8
  $region5: #{network_forward.1} parent=0 // loop_body
    %s25 = ssub.s32 %s20, 1
    %s26 = ssub.s32 %s20, 2
    %s27 = sadd.s32 %s20, 1
    %s28 = ssub.s32 %s20, %s27
    %p29 = scmp.eq.s32.totalorder %s28, 0
    %s31 = sadd.s32 %s30, 1
    %s32 = scalar_select %p29, %s30, %s31
    %p35 = pneg %p29
    %p36 = scmp.eq.s32.totalorder %s20, 1
    %p37 = por %p35, %p36
    %p38 = scmp.ne.s32.totalorder %s30, %s33
    %p39 = scmp.eq.s32.totalorder %s20, 0
    %p40 = por %p38, %p39
    %p41 = scmp.ne.s32.totalorder %s30, %s33
    %p42 = scmp.eq.s32.totalorder %s25, 1
    %p43 = por %p41, %p42
    %p44 = scmp.ne.s32.totalorder %s33, %s34
    %p45 = scmp.eq.s32.totalorder %s25, 0
    %p46 = por %p44, %p45
    %p47 = scmp.ne.s32.totalorder %s33, %s34
    %p48 = scmp.eq.s32.totalorder %s26, 1
    %p49 = por %p47, %p48
    %p51 = scmp.ne.s32.totalorder %s34, %s50
    %p52 = scmp.eq.s32.totalorder %s26, 0
    %p53 = por %p51, %p52
    %s54 = ssub.s32 %s20, %s27
    %p55 = scmp.eq.s32.totalorder %s54, 0
    %s57 = sadd.s32 %s56, 1
    %s58 = scalar_select %p55, %s56, %s57
    %p61 = pneg %p55
    %p62 = scmp.eq.s32.totalorder %s20, 1
    %p63 = por %p61, %p62
    %p64 = scmp.ne.s32.totalorder %s56, %s59
    %p65 = scmp.eq.s32.totalorder %s20, 0
    %p66 = por %p64, %p65
    %p67 = scmp.ne.s32.totalorder %s56, %s59
    %p68 = scmp.eq.s32.totalorder %s25, 1
    %p69 = por %p67, %p68
    %p70 = scmp.ne.s32.totalorder %s59, %s60
    %p71 = scmp.eq.s32.totalorder %s25, 0
    %p72 = por %p70, %p71
    %p73 = scmp.ne.s32.totalorder %s59, %s60
    %p74 = scmp.eq.s32.totalorder %s26, 1
    %p75 = por %p73, %p74
    %p77 = scmp.ne.s32.totalorder %s60, %s76
    %p78 = scmp.eq.s32.totalorder %s26, 0
    %p79 = por %p77, %p78
    %s81 = sadd.s32 %s80, 1
    %p84 = scmp.eq.s32.totalorder %s20, 1
    %p85 = scmp.ne.s32.totalorder %s80, %s82
    %p86 = scmp.eq.s32.totalorder %s20, 0
    %p87 = por %p85, %p86
    %p88 = scmp.ne.s32.totalorder %s80, %s82
    %p89 = scmp.eq.s32.totalorder %s25, 1
    %p90 = por %p88, %p89
    %p91 = scmp.ne.s32.totalorder %s82, %s83
    %p92 = scmp.eq.s32.totalorder %s25, 0
    %p93 = por %p91, %p92
    %p94 = scmp.ne.s32.totalorder %s82, %s83
    %p95 = scmp.eq.s32.totalorder %s26, 1
    %p96 = por %p94, %p95
    %p98 = scmp.ne.s32.totalorder %s83, %s97
    %p99 = scmp.eq.s32.totalorder %s26, 0
    %p100 = por %p98, %p99
    %s102 = sadd.s32 %s101, 1
    %p105 = scmp.eq.s32.totalorder %s20, 1
    %p106 = scmp.ne.s32.totalorder %s101, %s103
    %p107 = scmp.eq.s32.totalorder %s20, 0
    %p108 = por %p106, %p107
    %p109 = scmp.ne.s32.totalorder %s101, %s103
    %p110 = scmp.eq.s32.totalorder %s25, 1
    %p111 = por %p109, %p110
    %p112 = scmp.ne.s32.totalorder %s103, %s104
    %p113 = scmp.eq.s32.totalorder %s25, 0
    %p114 = por %p112, %p113
    %p115 = scmp.ne.s32.totalorder %s103, %s104
    %p116 = scmp.eq.s32.totalorder %s26, 1
    %p117 = por %p115, %p116
    %p119 = scmp.ne.s32.totalorder %s104, %s118
    %p120 = scmp.eq.s32.totalorder %s26, 0
    %p121 = por %p119, %p120
    %s123 = sadd.s32 %s122, 1
    %p126 = scmp.eq.s32.totalorder %s20, 1
    %p127 = scmp.ne.s32.totalorder %s122, %s124
    %p128 = scmp.eq.s32.totalorder %s20, 0
    %p129 = por %p127, %p128
    %p130 = scmp.ne.s32.totalorder %s122, %s124
    %p131 = scmp.eq.s32.totalorder %s25, 1
    %p132 = por %p130, %p131
    %p133 = scmp.ne.s32.totalorder %s124, %s125
    %p134 = scmp.eq.s32.totalorder %s25, 0
    %p135 = por %p133, %p134
    %p136 = scmp.ne.s32.totalorder %s124, %s125
    %p137 = scmp.eq.s32.totalorder %s26, 1
    %p138 = por %p136, %p137
    %p140 = scmp.ne.s32.totalorder %s125, %s139
    %p141 = scmp.eq.s32.totalorder %s26, 0
    %p142 = por %p140, %p141
    %s144 = sadd.s32 %s143, 1
    %p147 = scmp.eq.s32.totalorder %s20, 1
    %p148 = scmp.ne.s32.totalorder %s143, %s145
    %p149 = scmp.eq.s32.totalorder %s20, 0
    %p150 = por %p148, %p149
    %p151 = scmp.ne.s32.totalorder %s143, %s145
    %p152 = scmp.eq.s32.totalorder %s25, 1
    %p153 = por %p151, %p152
    %p154 = scmp.ne.s32.totalorder %s145, %s146
    %p155 = scmp.eq.s32.totalorder %s25, 0
    %p156 = por %p154, %p155
    %p157 = scmp.ne.s32.totalorder %s145, %s146
    %p158 = scmp.eq.s32.totalorder %s26, 1
    %p159 = por %p157, %p158
    %p161 = scmp.ne.s32.totalorder %s146, %s160
    %p162 = scmp.eq.s32.totalorder %s26, 0
    %p163 = por %p161, %p162
    %s165 = sadd.s32 %s164, 1
    %p168 = scmp.eq.s32.totalorder %s20, 1
    %p169 = scmp.ne.s32.totalorder %s164, %s166
    %p170 = scmp.eq.s32.totalorder %s20, 0
    %p171 = por %p169, %p170
    %p172 = scmp.ne.s32.totalorder %s164, %s166
    %p173 = scmp.eq.s32.totalorder %s25, 1
    %p174 = por %p172, %p173
    %p175 = scmp.ne.s32.totalorder %s166, %s167
    %p176 = scmp.eq.s32.totalorder %s25, 0
    %p177 = por %p175, %p176
    %p178 = scmp.ne.s32.totalorder %s166, %s167
    %p179 = scmp.eq.s32.totalorder %s26, 1
    %p180 = por %p178, %p179
    %p182 = scmp.ne.s32.totalorder %s167, %s181
    %p183 = scmp.eq.s32.totalorder %s26, 0
    %p184 = por %p182, %p183
    %s186 = sadd.s32 %s185, 1
    %p189 = scmp.eq.s32.totalorder %s20, 1
    %p190 = scmp.ne.s32.totalorder %s185, %s187
    %p191 = scmp.eq.s32.totalorder %s20, 0
    %p192 = por %p190, %p191
    %p193 = scmp.ne.s32.totalorder %s185, %s187
    %p194 = scmp.eq.s32.totalorder %s25, 1
    %p195 = por %p193, %p194
    %p196 = scmp.ne.s32.totalorder %s187, %s188
    %p197 = scmp.eq.s32.totalorder %s25, 0
    %p198 = por %p196, %p197
    %p199 = scmp.ne.s32.totalorder %s187, %s188
    %p200 = scmp.eq.s32.totalorder %s26, 1
    %p201 = por %p199, %p200
    %p203 = scmp.ne.s32.totalorder %s188, %s202
    %p204 = scmp.eq.s32.totalorder %s26, 0
    %p205 = por %p203, %p204
    %s207 = sadd.s32 %s206, 1
    %p210 = scmp.eq.s32.totalorder %s20, 1
    %p211 = scmp.ne.s32.totalorder %s206, %s208
    %p212 = scmp.eq.s32.totalorder %s20, 0
    %p213 = por %p211, %p212
    %p214 = scmp.ne.s32.totalorder %s206, %s208
    %p215 = scmp.eq.s32.totalorder %s25, 1
    %p216 = por %p214, %p215
    %p217 = scmp.ne.s32.totalorder %s208, %s209
    %p218 = scmp.eq.s32.totalorder %s25, 0
    %p219 = por %p217, %p218
    %p220 = scmp.ne.s32.totalorder %s208, %s209
    %p221 = scmp.eq.s32.totalorder %s26, 1
    %p222 = por %p220, %p221
    %p224 = scmp.ne.s32.totalorder %s209, %s223
    %p225 = scmp.eq.s32.totalorder %s26, 0
    %p226 = por %p224, %p225
    %s228 = sadd.s32 %s227, 1
    %p231 = scmp.eq.s32.totalorder %s20, 1
    %p232 = scmp.ne.s32.totalorder %s227, %s229
    %p233 = scmp.eq.s32.totalorder %s20, 0
    %p234 = por %p232, %p233
    %p235 = scmp.ne.s32.totalorder %s227, %s229
    %p236 = scmp.eq.s32.totalorder %s25, 1
    %p237 = por %p235, %p236
    %p238 = scmp.ne.s32.totalorder %s229, %s230
    %p239 = scmp.eq.s32.totalorder %s25, 0
    %p240 = por %p238, %p239
    %p241 = scmp.ne.s32.totalorder %s229, %s230
    %p242 = scmp.eq.s32.totalorder %s26, 1
    %p243 = por %p241, %p242
    %p245 = scmp.ne.s32.totalorder %s230, %s244
    %p246 = scmp.eq.s32.totalorder %s26, 0
    %p247 = por %p245, %p246
    %s249 = sadd.s32 %s248, 1
    %p252 = scmp.eq.s32.totalorder %s20, 1
    %p253 = scmp.ne.s32.totalorder %s248, %s250
    %p254 = scmp.eq.s32.totalorder %s20, 0
    %p255 = por %p253, %p254
    %p256 = scmp.ne.s32.totalorder %s248, %s250
    %p257 = scmp.eq.s32.totalorder %s25, 1
    %p258 = por %p256, %p257
    %p259 = scmp.ne.s32.totalorder %s250, %s251
    %p260 = scmp.eq.s32.totalorder %s25, 0
    %p261 = por %p259, %p260
    %p262 = scmp.ne.s32.totalorder %s250, %s251
    %p263 = scmp.eq.s32.totalorder %s26, 1
    %p264 = por %p262, %p263
    %p266 = scmp.ne.s32.totalorder %s251, %s265
    %p267 = scmp.eq.s32.totalorder %s26, 0
    %p268 = por %p266, %p267
    %s270 = sadd.s32 %s269, 1
    %p273 = scmp.eq.s32.totalorder %s20, 1
    %p274 = scmp.ne.s32.totalorder %s269, %s271
    %p275 = scmp.eq.s32.totalorder %s20, 0
    %p276 = por %p274, %p275
    %p277 = scmp.ne.s32.totalorder %s269, %s271
    %p278 = scmp.eq.s32.totalorder %s25, 1
    %p279 = por %p277, %p278
    %p280 = scmp.ne.s32.totalorder %s271, %s272
    %p281 = scmp.eq.s32.totalorder %s25, 0
    %p282 = por %p280, %p281
    %p283 = scmp.ne.s32.totalorder %s271, %s272
    %p284 = scmp.eq.s32.totalorder %s26, 1
    %p285 = por %p283, %p284
    %p287 = scmp.ne.s32.totalorder %s272, %s286
    %p288 = scmp.eq.s32.totalorder %s26, 0
    %p289 = por %p287, %p288
    %s291 = sadd.s32 %s290, 1
    %p294 = scmp.eq.s32.totalorder %s20, 1
    %p295 = scmp.ne.s32.totalorder %s290, %s292
    %p296 = scmp.eq.s32.totalorder %s20, 0
    %p297 = por %p295, %p296
    %p298 = scmp.ne.s32.totalorder %s290, %s292
    %p299 = scmp.eq.s32.totalorder %s25, 1
    %p300 = por %p298, %p299
    %p301 = scmp.ne.s32.totalorder %s292, %s293
    %p302 = scmp.eq.s32.totalorder %s25, 0
    %p303 = por %p301, %p302
    %p304 = scmp.ne.s32.totalorder %s292, %s293
    %p305 = scmp.eq.s32.totalorder %s26, 1
    %p306 = por %p304, %p305
    %p308 = scmp.ne.s32.totalorder %s293, %s307
    %p309 = scmp.eq.s32.totalorder %s26, 0
    %p310 = por %p308, %p309
    %s312 = sadd.s32 %s311, 1
    %p315 = scmp.eq.s32.totalorder %s20, 1
    %p316 = scmp.ne.s32.totalorder %s311, %s313
    %p317 = scmp.eq.s32.totalorder %s20, 0
    %p318 = por %p316, %p317
    %p319 = scmp.ne.s32.totalorder %s311, %s313
    %p320 = scmp.eq.s32.totalorder %s25, 1
    %p321 = por %p319, %p320
    %p322 = scmp.ne.s32.totalorder %s313, %s314
    %p323 = scmp.eq.s32.totalorder %s25, 0
    %p324 = por %p322, %p323
    %p325 = scmp.ne.s32.totalorder %s313, %s314
    %p326 = scmp.eq.s32.totalorder %s26, 1
    %p327 = por %p325, %p326
    %p329 = scmp.ne.s32.totalorder %s314, %s328
    %p330 = scmp.eq.s32.totalorder %s26, 0
    %p331 = por %p329, %p330
    %s332 = ssub.s32 %s20, %s27
    %p333 = scmp.eq.s32.totalorder %s332, 0
    %s335 = sadd.s32 %s334, 1
    %s336 = scalar_select %p333, %s334, %s335
    %p339 = pneg %p333
    %p340 = scmp.eq.s32.totalorder %s20, 1
    %p341 = por %p339, %p340
    %p342 = scmp.ne.s32.totalorder %s334, %s337
    %p343 = scmp.eq.s32.totalorder %s20, 0
    %p344 = por %p342, %p343
    %p345 = scmp.ne.s32.totalorder %s334, %s337
    %p346 = scmp.eq.s32.totalorder %s25, 1
    %p347 = por %p345, %p346
    %p348 = scmp.ne.s32.totalorder %s337, %s338
    %p349 = scmp.eq.s32.totalorder %s25, 0
    %p350 = por %p348, %p349
    %p351 = scmp.ne.s32.totalorder %s337, %s338
    %p352 = scmp.eq.s32.totalorder %s26, 1
    %p353 = por %p351, %p352
    %p355 = scmp.ne.s32.totalorder %s338, %s354
    %p356 = scmp.eq.s32.totalorder %s26, 0
    %p357 = por %p355, %p356
    %p358 = scmp.le.s32.totalorder 1, %s20
    %p359 = scmp.lt.s32.totalorder %s20, 3
    %p360 = pnand %p358, %p359
    %p361 = pneg %p360
    // Predicated region
    $region9: #{network_forward.1} parent=5 // pred_check
      _
    $region10: #{network_forward.1} parent=5 // pred_check_branch
      %363 = sbr.rel (%p360) target = $region12
    $region11: #{network_forward.1} parent=5 // pred_region
      %s364 = ssub.s32 %s20, 1
      // Predicated region
      $region13: #{network_forward.1} parent=11 // pred_check
        %p365 = pneg %p93
      $region14: #{network_forward.1} parent=11 // pred_check_branch
        %367 = sbr.rel (%p365) target = $region16
      $region15: #{network_forward.1} parent=11 // pred_region
        _
      $region16: #{network_forward.1} parent=11 // pred_fallthru
        _
      // Predicated region
      $region17: #{network_forward.1} parent=11 // pred_check
        %p368 = pneg %p114
      $region18: #{network_forward.1} parent=11 // pred_check_branch
        %370 = sbr.rel (%p368) target = $region20
      $region19: #{network_forward.1} parent=11 // pred_region
        _
      $region20: #{network_forward.1} parent=11 // pred_fallthru
        _
      // Predicated region
      $region21: #{network_forward.1} parent=11 // pred_check
        %p371 = pneg %p135
      $region22: #{network_forward.1} parent=11 // pred_check_branch
        %373 = sbr.rel (%p371) target = $region24
      $region23: #{network_forward.1} parent=11 // pred_region
        _
      $region24: #{network_forward.1} parent=11 // pred_fallthru
        _
      // Predicated region
      $region25: #{network_forward.1} parent=11 // pred_check
        %p374 = pneg %p156
      $region26: #{network_forward.1} parent=11 // pred_check_branch
        %376 = sbr.rel (%p374) target = $region28
      $region27: #{network_forward.1} parent=11 // pred_region
        _
      $region28: #{network_forward.1} parent=11 // pred_fallthru
        _
      // Predicated region
      $region29: #{network_forward.1} parent=11 // pred_check
        %p377 = pneg %p177
      $region30: #{network_forward.1} parent=11 // pred_check_branch
        %379 = sbr.rel (%p377) target = $region32
      $region31: #{network_forward.1} parent=11 // pred_region
        _
      $region32: #{network_forward.1} parent=11 // pred_fallthru
        _
      // Predicated region
      $region33: #{network_forward.1} parent=11 // pred_check
        %p380 = pneg %p198
      $region34: #{network_forward.1} parent=11 // pred_check_branch
        %382 = sbr.rel (%p380) target = $region36
      $region35: #{network_forward.1} parent=11 // pred_region
        _
      $region36: #{network_forward.1} parent=11 // pred_fallthru
        _
      // Predicated region
      $region37: #{network_forward.1} parent=11 // pred_check
        %p383 = pneg %p219
      $region38: #{network_forward.1} parent=11 // pred_check_branch
        %385 = sbr.rel (%p383) target = $region40
      $region39: #{network_forward.1} parent=11 // pred_region
        _
      $region40: #{network_forward.1} parent=11 // pred_fallthru
        _
      // Predicated region
      $region41: #{network_forward.1} parent=11 // pred_check
        %p386 = pneg %p240
      $region42: #{network_forward.1} parent=11 // pred_check_branch
        %388 = sbr.rel (%p386) target = $region44
      $region43: #{network_forward.1} parent=11 // pred_region
        _
      $region44: #{network_forward.1} parent=11 // pred_fallthru
        _
      // Predicated region
      $region45: #{network_forward.1} parent=11 // pred_check
        %p389 = pneg %p261
      $region46: #{network_forward.1} parent=11 // pred_check_branch
        %391 = sbr.rel (%p389) target = $region48
      $region47: #{network_forward.1} parent=11 // pred_region
        _
      $region48: #{network_forward.1} parent=11 // pred_fallthru
        _
      // Predicated region
      $region49: #{network_forward.1} parent=11 // pred_check
        %p392 = pneg %p282
      $region50: #{network_forward.1} parent=11 // pred_check_branch
        %394 = sbr.rel (%p392) target = $region52
      $region51: #{network_forward.1} parent=11 // pred_region
        _
      $region52: #{network_forward.1} parent=11 // pred_fallthru
        _
      // Predicated region
      $region53: #{network_forward.1} parent=11 // pred_check
        %p395 = pneg %p303
      $region54: #{network_forward.1} parent=11 // pred_check_branch
        %397 = sbr.rel (%p395) target = $region56
      $region55: #{network_forward.1} parent=11 // pred_region
        _
      $region56: #{network_forward.1} parent=11 // pred_fallthru
        _
      // Predicated region
      $region57: #{network_forward.1} parent=11 // pred_check
        %p398 = pneg %p324
      $region58: #{network_forward.1} parent=11 // pred_check_branch
        %400 = sbr.rel (%p398) target = $region60
      $region59: #{network_forward.1} parent=11 // pred_region
        _
      $region60: #{network_forward.1} parent=11 // pred_fallthru
        _
    $region12: #{network_forward.1} parent=5 // pred_fallthru
      _
    %p401 = scmp.lt.s32.totalorder %s20, 2
    // Predicated region
    $region61: #{network_forward.1} parent=5 // pred_check
      %p402 = pneg %p401
    $region62: #{network_forward.1} parent=5 // pred_check_branch
      %404 = sbr.rel (%p402) target = $region64
    $region63: #{network_forward.1} parent=5 // pred_region
      // Predicated region
      $region65: #{network_forward.1} parent=63 // pred_check
        %p405 = pneg %p40
      $region66: #{network_forward.1} parent=63 // pred_check_branch
        %407 = sbr.rel (%p405) target = $region68
      $region67: #{network_forward.1} parent=63 // pred_region
        %s408 = smul.u32 128, %s20
        %p409 = scmp.lt.s32.totalorder %s408, 255
        %s410 = scalar_select %p409, %s408, 255
        %s411 = smul.addr %s410, 8
        %s412 = scalar_lea.vmem %s0, %s411
        %s413 = smul.u32 128, %s20
      $region68: #{network_forward.1} parent=63 // pred_fallthru
        _
      // Predicated region
      $region69: #{network_forward.1} parent=63 // pred_check
        %p414 = pneg %p66
      $region70: #{network_forward.1} parent=63 // pred_check_branch
        %416 = sbr.rel (%p414) target = $region72
      $region71: #{network_forward.1} parent=63 // pred_region
        %s417 = smul.u32 128, %s20
        %p418 = scmp.lt.s32.totalorder %s417, 255
        %s419 = scalar_select %p418, %s417, 255
        %s420 = smul.addr %s419, 8
        %s421 = scalar_lea.vmem %s1, %s420
        %s422 = smul.u32 128, %s20
      $region72: #{network_forward.1} parent=63 // pred_fallthru
        _
    $region64: #{network_forward.1} parent=5 // pred_fallthru
      _
    %p423 = scmp.le.s32.totalorder 1, %s20
    %p424 = scmp.lt.s32.totalorder %s20, 3
    %p425 = pnand %p423, %p424
    %p426 = pneg %p425
    // Predicated region
    $region73: #{network_forward.1} parent=5 // pred_check
      _
    $region74: #{network_forward.1} parent=5 // pred_check_branch
      %428 = sbr.rel (%p425) target = $region76
    $region75: #{network_forward.1} parent=5 // pred_region
      %s429 = ssub.s32 %s20, 1
      %s430 = smul.u32 128, %s25
      %p431 = scmp.lt.s32.totalorder %s430, 255
      %s432 = scalar_select %p431, %s430, 255
      %s433 = smul.addr %s432, 8
      %s434 = scalar_lea.vmem %s0, %s433
      %p435 = pneg %p46
      %p436 = pneg %p43
      %s437 = smul.u32 128, %s25
      %p438 = scmp.lt.s32.totalorder %s437, 255
      %s439 = scalar_select %p438, %s437, 255
      %s440 = smul.addr %s439, 8
      %s441 = scalar_lea.vmem %s1, %s440
      %p442 = pneg %p72
      %p443 = pneg %p69
      %p444 = pneg %p93
      %p445 = pneg %p90
      %p446 = pneg %p114
      %p447 = pneg %p111
      %p448 = pneg %p135
      %p449 = pneg %p132
      %p450 = pneg %p156
      %p451 = pneg %p153
      %p452 = pneg %p177
      %p453 = pneg %p174
      %p454 = pneg %p198
      %p455 = pneg %p195
      %p456 = pneg %p219
      %p457 = pneg %p216
      %p458 = pneg %p240
      %p459 = pneg %p237
      %p460 = pneg %p261
      %p461 = pneg %p258
      %p462 = pneg %p282
      %p463 = pneg %p279
      %p464 = pneg %p303
      %p465 = pneg %p300
      %p466 = pneg %p324
      %p467 = pneg %p321
      %p468 = pneg %p350
      %p469 = pneg %p347
      %s470 = smul.u32 8, %s25
      %p471 = scmp.lt.s32.totalorder %s470, 15
      %s472 = scalar_select %p471, %s470, 15
      %s473 = smul.addr %s472, 4
      %s474 = scalar_lea.vmem %s14, %s473
      %s475 = smul.u32 128, %s25
      %p476 = scmp.lt.s32.totalorder %s475, 255
      %s477 = scalar_select %p476, %s475, 255
      %s478 = smul.addr %s477, 8
      %s479 = scalar_lea.vmem %s0, %s478
      %s480 = smul.u32 128, %s25
      %s481 = smul.u32 128, %s25
      %p482 = scmp.lt.s32.totalorder %s481, 255
      %s483 = scalar_select %p482, %s481, 255
      %s484 = smul.addr %s483, 8
      %s485 = scalar_lea.vmem %s1, %s484
      %s486 = smul.u32 128, %s25
      %s487 = smul.u32 8, %s25
      %p488 = scmp.lt.s32.totalorder %s487, 15
      %s489 = scalar_select %p488, %s487, 15
      %s490 = smul.addr %s489, 4
      %s491 = scalar_lea.vmem %s14, %s490
      %s492 = smul.u32 8, %s25
      %v494 = vld [vmem:[%s479] sm:$0xff]
      %v495 = vld [vmem:[%s479 + $0x8] sm:$0xff]
      %v496 = vld [vmem:[%s479 + $0x10] sm:$0xff]
      %v497 = vld [vmem:[%s479 + $0x18] sm:$0xff]
      %v498 = vld [vmem:[%s479 + $0x20] sm:$0xff]
      %v499 = vld [vmem:[%s479 + $0x28] sm:$0xff]
      %v500 = vld [vmem:[%s479 + $0x30] sm:$0xff]
      %v501 = vld [vmem:[%s479 + $0x38] sm:$0xff]
      %v502 = vld [vmem:[%s479 + $0x40] sm:$0xff]
      %v503 = vld [vmem:[%s479 + $0x48] sm:$0xff]
      %v504 = vld [vmem:[%s479 + $0x50] sm:$0xff]
      %v505 = vld [vmem:[%s479 + $0x58] sm:$0xff]
      %v506 = vld [vmem:[%s479 + $0x60] sm:$0xff]
      %v507 = vld [vmem:[%s479 + $0x68] sm:$0xff]
      %v508 = vld [vmem:[%s479 + $0x70] sm:$0xff]
      %v509 = vld [vmem:[%s479 + $0x78] sm:$0xff]
      %v510 = vld [vmem:[%s479 + $0x80] sm:$0xff]
      %v511 = vld [vmem:[%s479 + $0x88] sm:$0xff]
      %v512 = vld [vmem:[%s479 + $0x90] sm:$0xff]
      %v513 = vld [vmem:[%s479 + $0x98] sm:$0xff]
      %v514 = vld [vmem:[%s479 + $0xa0] sm:$0xff]
      %v515 = vld [vmem:[%s479 + $0xa8] sm:$0xff]
      %v516 = vld [vmem:[%s479 + $0xb0] sm:$0xff]
      %v517 = vld [vmem:[%s479 + $0xb8] sm:$0xff]
      %v518 = vld [vmem:[%s479 + $0xc0] sm:$0xff]
      %v519 = vld [vmem:[%s479 + $0xc8] sm:$0xff]
      %v520 = vld [vmem:[%s479 + $0xd0] sm:$0xff]
      %v521 = vld [vmem:[%s479 + $0xd8] sm:$0xff]
      %v522 = vld [vmem:[%s479 + $0xe0] sm:$0xff]
      %v523 = vld [vmem:[%s479 + $0xe8] sm:$0xff]
      %v524 = vld [vmem:[%s479 + $0xf0] sm:$0xff]
      %v525 = vld [vmem:[%s479 + $0xf8] sm:$0xff]
      %v526 = vld [vmem:[%s479 + $0x100] sm:$0xff]
      %v527 = vld [vmem:[%s479 + $0x108] sm:$0xff]
      %v528 = vld [vmem:[%s479 + $0x110] sm:$0xff]
      %v529 = vld [vmem:[%s479 + $0x118] sm:$0xff]
      %v530 = vld [vmem:[%s479 + $0x120] sm:$0xff]
      %v531 = vld [vmem:[%s479 + $0x128] sm:$0xff]
      %v532 = vld [vmem:[%s479 + $0x130] sm:$0xff]
      %v533 = vld [vmem:[%s479 + $0x138] sm:$0xff]
      %v534 = vld [vmem:[%s479 + $0x140] sm:$0xff]
      %v535 = vld [vmem:[%s479 + $0x148] sm:$0xff]
      %v536 = vld [vmem:[%s479 + $0x150] sm:$0xff]
      %v537 = vld [vmem:[%s479 + $0x158] sm:$0xff]
      %v538 = vld [vmem:[%s479 + $0x160] sm:$0xff]
      %v539 = vld [vmem:[%s479 + $0x168] sm:$0xff]
      %v540 = vld [vmem:[%s479 + $0x170] sm:$0xff]
      %v541 = vld [vmem:[%s479 + $0x178] sm:$0xff]
      %v542 = vld [vmem:[%s479 + $0x180] sm:$0xff]
      %v543 = vld [vmem:[%s479 + $0x188] sm:$0xff]
      %v544 = vld [vmem:[%s479 + $0x190] sm:$0xff]
      %v545 = vld [vmem:[%s479 + $0x198] sm:$0xff]
      %v546 = vld [vmem:[%s479 + $0x1a0] sm:$0xff]
      %v547 = vld [vmem:[%s479 + $0x1a8] sm:$0xff]
      %v548 = vld [vmem:[%s479 + $0x1b0] sm:$0xff]
      %v549 = vld [vmem:[%s479 + $0x1b8] sm:$0xff]
      %v550 = vld [vmem:[%s479 + $0x1c0] sm:$0xff]
      %v551 = vld [vmem:[%s479 + $0x1c8] sm:$0xff]
      %v552 = vld [vmem:[%s479 + $0x1d0] sm:$0xff]
      %v553 = vld [vmem:[%s479 + $0x1d8] sm:$0xff]
      %v554 = vld [vmem:[%s479 + $0x1e0] sm:$0xff]
      %v555 = vld [vmem:[%s479 + $0x1e8] sm:$0xff]
      %v556 = vld [vmem:[%s479 + $0x1f0] sm:$0xff]
      %v557 = vld [vmem:[%s479 + $0x1f8] sm:$0xff]
      %v558 = vld [vmem:[%s479 + $0x200] sm:$0xff]
      %v559 = vld [vmem:[%s479 + $0x208] sm:$0xff]
      %v560 = vld [vmem:[%s479 + $0x210] sm:$0xff]
      %v561 = vld [vmem:[%s479 + $0x218] sm:$0xff]
      %v562 = vld [vmem:[%s479 + $0x220] sm:$0xff]
      %v563 = vld [vmem:[%s479 + $0x228] sm:$0xff]
      %v564 = vld [vmem:[%s479 + $0x230] sm:$0xff]
      %v565 = vld [vmem:[%s479 + $0x238] sm:$0xff]
      %v566 = vld [vmem:[%s479 + $0x240] sm:$0xff]
      %v567 = vld [vmem:[%s479 + $0x248] sm:$0xff]
      %v568 = vld [vmem:[%s479 + $0x250] sm:$0xff]
      %v569 = vld [vmem:[%s479 + $0x258] sm:$0xff]
      %v570 = vld [vmem:[%s479 + $0x260] sm:$0xff]
      %v571 = vld [vmem:[%s479 + $0x268] sm:$0xff]
      %v572 = vld [vmem:[%s479 + $0x270] sm:$0xff]
      %v573 = vld [vmem:[%s479 + $0x278] sm:$0xff]
      %v574 = vld [vmem:[%s479 + $0x280] sm:$0xff]
      %v575 = vld [vmem:[%s479 + $0x288] sm:$0xff]
      %v576 = vld [vmem:[%s479 + $0x290] sm:$0xff]
      %v577 = vld [vmem:[%s479 + $0x298] sm:$0xff]
      %v578 = vld [vmem:[%s479 + $0x2a0] sm:$0xff]
      %v579 = vld [vmem:[%s479 + $0x2a8] sm:$0xff]
      %v580 = vld [vmem:[%s479 + $0x2b0] sm:$0xff]
      %v581 = vld [vmem:[%s479 + $0x2b8] sm:$0xff]
      %v582 = vld [vmem:[%s479 + $0x2c0] sm:$0xff]
      %v583 = vld [vmem:[%s479 + $0x2c8] sm:$0xff]
      %v584 = vld [vmem:[%s479 + $0x2d0] sm:$0xff]
      %v585 = vld [vmem:[%s479 + $0x2d8] sm:$0xff]
      %v586 = vld [vmem:[%s479 + $0x2e0] sm:$0xff]
      %v587 = vld [vmem:[%s479 + $0x2e8] sm:$0xff]
      %v588 = vld [vmem:[%s479 + $0x2f0] sm:$0xff]
      %v589 = vld [vmem:[%s479 + $0x2f8] sm:$0xff]
      %v590 = vld [vmem:[%s479 + $0x300] sm:$0xff]
      %v591 = vld [vmem:[%s479 + $0x308] sm:$0xff]
      %v592 = vld [vmem:[%s479 + $0x310] sm:$0xff]
      %v593 = vld [vmem:[%s479 + $0x318] sm:$0xff]
      %v594 = vld [vmem:[%s479 + $0x320] sm:$0xff]
      %v595 = vld [vmem:[%s479 + $0x328] sm:$0xff]
      %v596 = vld [vmem:[%s479 + $0x330] sm:$0xff]
      %v597 = vld [vmem:[%s479 + $0x338] sm:$0xff]
      %v598 = vld [vmem:[%s479 + $0x340] sm:$0xff]
      %v599 = vld [vmem:[%s479 + $0x348] sm:$0xff]
      %v600 = vld [vmem:[%s479 + $0x350] sm:$0xff]
      %v601 = vld [vmem:[%s479 + $0x358] sm:$0xff]
      %v602 = vld [vmem:[%s479 + $0x360] sm:$0xff]
      %v603 = vld [vmem:[%s479 + $0x368] sm:$0xff]
      %v604 = vld [vmem:[%s479 + $0x370] sm:$0xff]
      %v605 = vld [vmem:[%s479 + $0x378] sm:$0xff]
      %v606 = vld [vmem:[%s479 + $0x380] sm:$0xff]
      %v607 = vld [vmem:[%s479 + $0x388] sm:$0xff]
      %v608 = vld [vmem:[%s479 + $0x390] sm:$0xff]
      %v609 = vld [vmem:[%s479 + $0x398] sm:$0xff]
      %v610 = vld [vmem:[%s479 + $0x3a0] sm:$0xff]
      %v611 = vld [vmem:[%s479 + $0x3a8] sm:$0xff]
      %v612 = vld [vmem:[%s479 + $0x3b0] sm:$0xff]
      %v613 = vld [vmem:[%s479 + $0x3b8] sm:$0xff]
      %v614 = vld [vmem:[%s479 + $0x3c0] sm:$0xff]
      %v615 = vld [vmem:[%s479 + $0x3c8] sm:$0xff]
      %v616 = vld [vmem:[%s479 + $0x3d0] sm:$0xff]
      %v617 = vld [vmem:[%s479 + $0x3d8] sm:$0xff]
      %v618 = vld [vmem:[%s479 + $0x3e0] sm:$0xff]
      %v619 = vld [vmem:[%s479 + $0x3e8] sm:$0xff]
      %v620 = vld [vmem:[%s479 + $0x3f0] sm:$0xff]
      %v621 = vld [vmem:[%s479 + $0x3f8] sm:$0xff]
      %v622 = vpack.c.bf16 %v495, %v494
      %v623 = vpack.c.bf16 %v497, %v496
      %v624 = vpack.c.bf16 %v499, %v498
      %v625 = vpack.c.bf16 %v501, %v500
      %v626 = vpack.c.bf16 %v503, %v502
      %v627 = vpack.c.bf16 %v505, %v504
      %v628 = vpack.c.bf16 %v507, %v506
      %v629 = vpack.c.bf16 %v509, %v508
      %v630 = vpack.c.bf16 %v511, %v510
      %v631 = vpack.c.bf16 %v513, %v512
      %v632 = vpack.c.bf16 %v515, %v514
      %v633 = vpack.c.bf16 %v517, %v516
      %v634 = vpack.c.bf16 %v519, %v518
      %v635 = vpack.c.bf16 %v521, %v520
      %v636 = vpack.c.bf16 %v523, %v522
      %v637 = vpack.c.bf16 %v525, %v524
      %v638 = vpack.c.bf16 %v527, %v526
      %v639 = vpack.c.bf16 %v529, %v528
      %v640 = vpack.c.bf16 %v531, %v530
      %v641 = vpack.c.bf16 %v533, %v532
      %v642 = vpack.c.bf16 %v535, %v534
      %v643 = vpack.c.bf16 %v537, %v536
      %v644 = vpack.c.bf16 %v539, %v538
      %v645 = vpack.c.bf16 %v541, %v540
      %v646 = vpack.c.bf16 %v543, %v542
      %v647 = vpack.c.bf16 %v545, %v544
      %v648 = vpack.c.bf16 %v547, %v546
      %v649 = vpack.c.bf16 %v549, %v548
      %v650 = vpack.c.bf16 %v551, %v550
      %v651 = vpack.c.bf16 %v553, %v552
      %v652 = vpack.c.bf16 %v555, %v554
      %v653 = vpack.c.bf16 %v557, %v556
      %v654 = vpack.c.bf16 %v559, %v558
      %v655 = vpack.c.bf16 %v561, %v560
      %v656 = vpack.c.bf16 %v563, %v562
      %v657 = vpack.c.bf16 %v565, %v564
      %v658 = vpack.c.bf16 %v567, %v566
      %v659 = vpack.c.bf16 %v569, %v568
      %v660 = vpack.c.bf16 %v571, %v570
      %v661 = vpack.c.bf16 %v573, %v572
      %v662 = vpack.c.bf16 %v575, %v574
      %v663 = vpack.c.bf16 %v577, %v576
      %v664 = vpack.c.bf16 %v579, %v578
      %v665 = vpack.c.bf16 %v581, %v580
      %v666 = vpack.c.bf16 %v583, %v582
      %v667 = vpack.c.bf16 %v585, %v584
      %v668 = vpack.c.bf16 %v587, %v586
      %v669 = vpack.c.bf16 %v589, %v588
      %v670 = vpack.c.bf16 %v591, %v590
      %v671 = vpack.c.bf16 %v593, %v592
      %v672 = vpack.c.bf16 %v595, %v594
      %v673 = vpack.c.bf16 %v597, %v596
      %v674 = vpack.c.bf16 %v599, %v598
      %v675 = vpack.c.bf16 %v601, %v600
      %v676 = vpack.c.bf16 %v603, %v602
      %v677 = vpack.c.bf16 %v605, %v604
      %v678 = vpack.c.bf16 %v607, %v606
      %v679 = vpack.c.bf16 %v609, %v608
      %v680 = vpack.c.bf16 %v611, %v610
      %v681 = vpack.c.bf16 %v613, %v612
      %v682 = vpack.c.bf16 %v615, %v614
      %v683 = vpack.c.bf16 %v617, %v616
      %v684 = vpack.c.bf16 %v619, %v618
      %v685 = vpack.c.bf16 %v621, %v620
      %v686 = vld [vmem:[%s2] sm:$0xff]
      %v687 = vld [vmem:[%s2 + $0x8] sm:$0xff]
      %v688 = vld [vmem:[%s2 + $0x10] sm:$0xff]
      %v689 = vld [vmem:[%s2 + $0x18] sm:$0xff]
      %v690 = vld [vmem:[%s2 + $0x20] sm:$0xff]
      %v691 = vld [vmem:[%s2 + $0x28] sm:$0x11]
      %v692 = vld [vmem:[%s3] sm:$0x3]
      %v694 = vlaneseq
      %v695 = vshrl.u32 %v694, 7
      %v696 = vsub.s32 0, %v695
      %v697 = vrot.slane %v692, %v696
      %v698 = vlaneseq
      %v699 = vshrl.u32 %v698, 7
      %v700 = vsub.s32 1, %v699
      %v701 = vrot.slane %v692, %v700
      %v710 = vunpack.c.l.b16 %v686
      %v711 = vunpack.c.h.b16 %v686
      %v712 = vunpack.c.l.b16 %v687
      %v713 = vunpack.c.h.b16 %v687
      %v714 = vunpack.c.l.b16 %v688
      %v715 = vunpack.c.h.b16 %v688
      %v716 = vunpack.c.l.b16 %v689
      %v717 = vunpack.c.h.b16 %v689
      %v718 = vunpack.c.l.b16 %v690
      %v719 = vunpack.c.h.b16 %v690
      %v720 = vunpack.c.l.b16 %v691
      %v721 = vunpack.c.h.b16 %v691
      %v722 = vpack.c.b16 %v712, %v710
      %v723 = vpack.c.b16 %v713, %v711
      %v724 = vpack.c.b16 %v716, %v714
      %v725 = vpack.c.b16 %v717, %v715
      %v726 = vpack.c.b16 %v720, %v718
      %v727 = vpack.c.b16 %v721, %v719
      %vm732 = vcmask 343040
      %v734 = vsel %vm732, %v622, 0
      %v737 = vsel %vm732, %v623, 0
      %v740 = vsel %vm732, %v624, 0
      %v743 = vsel %vm732, %v625, 0
      %v746 = vsel %vm732, %v626, 0
      %v749 = vsel %vm732, %v627, 0
      %v752 = vsel %vm732, %v628, 0
      %v755 = vsel %vm732, %v629, 0
      %v758 = vsel %vm732, %v630, 0
      %v761 = vsel %vm732, %v631, 0
      %v764 = vsel %vm732, %v632, 0
      %v767 = vsel %vm732, %v633, 0
      %v770 = vsel %vm732, %v634, 0
      %v773 = vsel %vm732, %v635, 0
      %v776 = vsel %vm732, %v636, 0
      %v779 = vsel %vm732, %v637, 0
      %v782 = vsel %vm732, %v638, 0
      %v785 = vsel %vm732, %v639, 0
      %v788 = vsel %vm732, %v640, 0
      %v791 = vsel %vm732, %v641, 0
      %v794 = vsel %vm732, %v642, 0
      %v797 = vsel %vm732, %v643, 0
      %v800 = vsel %vm732, %v644, 0
      %v803 = vsel %vm732, %v645, 0
      %v806 = vsel %vm732, %v646, 0
      %v809 = vsel %vm732, %v647, 0
      %v812 = vsel %vm732, %v648, 0
      %v815 = vsel %vm732, %v649, 0
      %v818 = vsel %vm732, %v650, 0
      %v821 = vsel %vm732, %v651, 0
      %v824 = vsel %vm732, %v652, 0
      %v827 = vsel %vm732, %v653, 0
      %v830 = vsel %vm732, %v654, 0
      %v833 = vsel %vm732, %v655, 0
      %v836 = vsel %vm732, %v656, 0
      %v839 = vsel %vm732, %v657, 0
      %v842 = vsel %vm732, %v658, 0
      %v845 = vsel %vm732, %v659, 0
      %v848 = vsel %vm732, %v660, 0
      %v851 = vsel %vm732, %v661, 0
      %v854 = vsel %vm732, %v662, 0
      %v857 = vsel %vm732, %v663, 0
      %v860 = vsel %vm732, %v664, 0
      %v863 = vsel %vm732, %v665, 0
      %v866 = vsel %vm732, %v666, 0
      %v869 = vsel %vm732, %v667, 0
      %v872 = vsel %vm732, %v668, 0
      %v875 = vsel %vm732, %v669, 0
      %v878 = vsel %vm732, %v670, 0
      %v881 = vsel %vm732, %v671, 0
      %v884 = vsel %vm732, %v672, 0
      %v887 = vsel %vm732, %v673, 0
      %v890 = vsel %vm732, %v674, 0
      %v893 = vsel %vm732, %v675, 0
      %v896 = vsel %vm732, %v676, 0
      %v899 = vsel %vm732, %v677, 0
      %v902 = vsel %vm732, %v678, 0
      %v905 = vsel %vm732, %v679, 0
      %v908 = vsel %vm732, %v680, 0
      %v911 = vsel %vm732, %v681, 0
      %v914 = vsel %vm732, %v682, 0
      %v917 = vsel %vm732, %v683, 0
      %v920 = vsel %vm732, %v684, 0
      %v923 = vsel %vm732, %v685, 0
      %vm925 = vcmask 1044480
      %v927 = vsel %vm925, %v726, 0
      %v930 = vsel %vm925, %v727, 0
      %932 = vmatprep.subr.bf16.mxu0 0
      %933 = vmatpush1.bf16.msra.mxu0 0
      %934 = vmatprep.subr.bf16.mxu0 0
      %935 = vmatpush1.bf16.msra.mxu0 0
      %936 = vmatprep.subr.bf16.mxu0 0
      %937 = vmatpush1.bf16.msra.mxu0 0
      %938 = vmatprep.subr.bf16.mxu0 0
      %939 = vmatpush1.bf16.msra.mxu0 0
      %940 = vmatprep.subr.bf16.mxu0 0
      %941 = vmatpush1.bf16.msra.mxu0 0
      %942 = vmatprep.subr.bf16.mxu0 %v930
      %943 = vmatpush1.bf16.msra.mxu0 %v927
      %944 = vmatprep.subr.bf16.mxu0 %v725
      %945 = vmatpush1.bf16.msra.mxu0 %v724
      %946 = vmatprep.subr.bf16.mxu0 %v723
      %947 = vmatpush1.bf16.msra.mxu0 %v722
      %948 = vmatprep.subr.bf16.mxu0 0
      %949 = vmatpush2.bf16.msra.mxu0 0
      %950 = vmatprep.subr.bf16.mxu0 0
      %951 = vmatpush2.bf16.msra.mxu0 0
      %952 = vmatprep.subr.bf16.mxu0 0
      %953 = vmatpush2.bf16.msra.mxu0 0
      %954 = vmatprep.subr.bf16.mxu0 0
      %955 = vmatpush2.bf16.msra.mxu0 0
      %956 = vmatprep.subr.bf16.mxu0 0
      %957 = vmatpush2.bf16.msra.mxu0 0
      %958 = vmatprep.subr.bf16.mxu0 0
      %959 = vmatpush2.bf16.msra.mxu0 0
      %960 = vmatprep.subr.bf16.mxu0 0
      %961 = vmatpush2.bf16.msra.mxu0 0
      %962 = vmatprep.subr.bf16.mxu0 0
      %963 = vmatpush2.bf16.msra.mxu0 0
      %964 = vmatprep.mubr.bf16.mxu0 0
      %965 = vmatmul.mubr.bf16.gmra.mxu0 %v734
      %v966 = vpop.f32.mrf.mxu0
      %v967 = vadd.f32 %v697, %v966
      %v968 = vpop.f32.mrf.mxu0
      %v969 = vadd.f32 %v701, %v968
      %v970 = vpop.f32.mrf.mxu0
      %v971 = vadd.f32 %v697, %v970
      %v972 = vpop.f32.mrf.mxu0
      %v973 = vadd.f32 %v701, %v972
      %974 = vmatprep.mubr.bf16.mxu0 0
      %975 = vmatmul.mubr.bf16.gmra.mxu0 %v737
      %v976 = vpop.f32.mrf.mxu0
      %v977 = vadd.f32 %v697, %v976
      %v978 = vpop.f32.mrf.mxu0
      %v979 = vadd.f32 %v701, %v978
      %v980 = vpop.f32.mrf.mxu0
      %v981 = vadd.f32 %v697, %v980
      %v982 = vpop.f32.mrf.mxu0
      %v983 = vadd.f32 %v701, %v982
      %984 = vmatprep.mubr.bf16.mxu0 0
      %985 = vmatmul.mubr.bf16.gmra.mxu0 %v740
      %v986 = vpop.f32.mrf.mxu0
      %v987 = vadd.f32 %v697, %v986
      %v988 = vpop.f32.mrf.mxu0
      %v989 = vadd.f32 %v701, %v988
      %v990 = vpop.f32.mrf.mxu0
      %v991 = vadd.f32 %v697, %v990
      %v992 = vpop.f32.mrf.mxu0
      %v993 = vadd.f32 %v701, %v992
      %994 = vmatprep.mubr.bf16.mxu0 0
      %995 = vmatmul.mubr.bf16.gmra.mxu0 %v743
      %v996 = vpop.f32.mrf.mxu0
      %v997 = vadd.f32 %v697, %v996
      %v998 = vpop.f32.mrf.mxu0
      %v999 = vadd.f32 %v701, %v998
      %v1000 = vpop.f32.mrf.mxu0
      %v1001 = vadd.f32 %v697, %v1000
      %v1002 = vpop.f32.mrf.mxu0
      %v1003 = vadd.f32 %v701, %v1002
      %1004 = vmatprep.mubr.bf16.mxu0 0
      %1005 = vmatmul.mubr.bf16.gmra.mxu0 %v746
      %v1006 = vpop.f32.mrf.mxu0
      %v1007 = vadd.f32 %v697, %v1006
      %v1008 = vpop.f32.mrf.mxu0
      %v1009 = vadd.f32 %v701, %v1008
      %v1010 = vpop.f32.mrf.mxu0
      %v1011 = vadd.f32 %v697, %v1010
      %v1012 = vpop.f32.mrf.mxu0
      %v1013 = vadd.f32 %v701, %v1012
      %1014 = vmatprep.mubr.bf16.mxu0 0
      %1015 = vmatmul.mubr.bf16.gmra.mxu0 %v749
      %v1016 = vpop.f32.mrf.mxu0
      %v1017 = vadd.f32 %v697, %v1016
      %v1018 = vpop.f32.mrf.mxu0
      %v1019 = vadd.f32 %v701, %v1018
      %v1020 = vpop.f32.mrf.mxu0
      %v1021 = vadd.f32 %v697, %v1020
      %v1022 = vpop.f32.mrf.mxu0
      %v1023 = vadd.f32 %v701, %v1022
      %1024 = vmatprep.mubr.bf16.mxu0 0
      %1025 = vmatmul.mubr.bf16.gmra.mxu0 %v752
      %v1026 = vpop.f32.mrf.mxu0
      %v1027 = vadd.f32 %v697, %v1026
      %v1028 = vpop.f32.mrf.mxu0
      %v1029 = vadd.f32 %v701, %v1028
      %v1030 = vpop.f32.mrf.mxu0
      %v1031 = vadd.f32 %v697, %v1030
      %v1032 = vpop.f32.mrf.mxu0
      %v1033 = vadd.f32 %v701, %v1032
      %1034 = vmatprep.mubr.bf16.mxu0 0
      %1035 = vmatmul.mubr.bf16.gmra.mxu0 %v755
      %v1036 = vpop.f32.mrf.mxu0
      %v1037 = vadd.f32 %v697, %v1036
      %v1038 = vpop.f32.mrf.mxu0
      %v1039 = vadd.f32 %v701, %v1038
      %v1040 = vpop.f32.mrf.mxu0
      %v1041 = vadd.f32 %v697, %v1040
      %v1042 = vpop.f32.mrf.mxu0
      %v1043 = vadd.f32 %v701, %v1042
      %1044 = vmatprep.mubr.bf16.mxu0 0
      %1045 = vmatmul.mubr.bf16.gmra.mxu0 %v758
      %v1046 = vpop.f32.mrf.mxu0
      %v1047 = vadd.f32 %v697, %v1046
      %v1048 = vpop.f32.mrf.mxu0
      %v1049 = vadd.f32 %v701, %v1048
      %v1050 = vpop.f32.mrf.mxu0
      %v1051 = vadd.f32 %v697, %v1050
      %v1052 = vpop.f32.mrf.mxu0
      %v1053 = vadd.f32 %v701, %v1052
      %1054 = vmatprep.mubr.bf16.mxu0 0
      %1055 = vmatmul.mubr.bf16.gmra.mxu0 %v761
      %v1056 = vpop.f32.mrf.mxu0
      %v1057 = vadd.f32 %v697, %v1056
      %v1058 = vpop.f32.mrf.mxu0
      %v1059 = vadd.f32 %v701, %v1058
      %v1060 = vpop.f32.mrf.mxu0
      %v1061 = vadd.f32 %v697, %v1060
      %v1062 = vpop.f32.mrf.mxu0
      %v1063 = vadd.f32 %v701, %v1062
      %1064 = vmatprep.mubr.bf16.mxu0 0
      %1065 = vmatmul.mubr.bf16.gmra.mxu0 %v764
      %v1066 = vpop.f32.mrf.mxu0
      %v1067 = vadd.f32 %v697, %v1066
      %v1068 = vpop.f32.mrf.mxu0
      %v1069 = vadd.f32 %v701, %v1068
      %v1070 = vpop.f32.mrf.mxu0
      %v1071 = vadd.f32 %v697, %v1070
      %v1072 = vpop.f32.mrf.mxu0
      %v1073 = vadd.f32 %v701, %v1072
      %1074 = vmatprep.mubr.bf16.mxu0 0
      %1075 = vmatmul.mubr.bf16.gmra.mxu0 %v767
      %v1076 = vpop.f32.mrf.mxu0
      %v1077 = vadd.f32 %v697, %v1076
      %v1078 = vpop.f32.mrf.mxu0
      %v1079 = vadd.f32 %v701, %v1078
      %v1080 = vpop.f32.mrf.mxu0
      %v1081 = vadd.f32 %v697, %v1080
      %v1082 = vpop.f32.mrf.mxu0
      %v1083 = vadd.f32 %v701, %v1082
      %1084 = vmatprep.mubr.bf16.mxu0 0
      %1085 = vmatmul.mubr.bf16.gmra.mxu0 %v770
      %v1086 = vpop.f32.mrf.mxu0
      %v1087 = vadd.f32 %v697, %v1086
      %v1088 = vpop.f32.mrf.mxu0
      %v1089 = vadd.f32 %v701, %v1088
      %v1090 = vpop.f32.mrf.mxu0
      %v1091 = vadd.f32 %v697, %v1090
      %v1092 = vpop.f32.mrf.mxu0
      %v1093 = vadd.f32 %v701, %v1092
      %1094 = vmatprep.mubr.bf16.mxu0 0
      %1095 = vmatmul.mubr.bf16.gmra.mxu0 %v773
      %v1096 = vpop.f32.mrf.mxu0
      %v1097 = vadd.f32 %v697, %v1096
      %v1098 = vpop.f32.mrf.mxu0
      %v1099 = vadd.f32 %v701, %v1098
      %v1100 = vpop.f32.mrf.mxu0
      %v1101 = vadd.f32 %v697, %v1100
      %v1102 = vpop.f32.mrf.mxu0
      %v1103 = vadd.f32 %v701, %v1102
      %1104 = vmatprep.mubr.bf16.mxu0 0
      %1105 = vmatmul.mubr.bf16.gmra.mxu0 %v776
      %v1106 = vpop.f32.mrf.mxu0
      %v1107 = vadd.f32 %v697, %v1106
      %v1108 = vpop.f32.mrf.mxu0
      %v1109 = vadd.f32 %v701, %v1108
      %v1110 = vpop.f32.mrf.mxu0
      %v1111 = vadd.f32 %v697, %v1110
      %v1112 = vpop.f32.mrf.mxu0
      %v1113 = vadd.f32 %v701, %v1112
      %1114 = vmatprep.mubr.bf16.mxu0 0
      %1115 = vmatmul.mubr.bf16.gmra.mxu0 %v779
      %v1116 = vpop.f32.mrf.mxu0
      %v1117 = vadd.f32 %v697, %v1116
      %v1118 = vpop.f32.mrf.mxu0
      %v1119 = vadd.f32 %v701, %v1118
      %v1120 = vpop.f32.mrf.mxu0
      %v1121 = vadd.f32 %v697, %v1120
      %v1122 = vpop.f32.mrf.mxu0
      %v1123 = vadd.f32 %v701, %v1122
      %1124 = vmatprep.mubr.bf16.mxu0 0
      %1125 = vmatmul.mubr.bf16.gmra.mxu0 %v782
      %v1126 = vpop.f32.mrf.mxu0
      %v1127 = vadd.f32 %v697, %v1126
      %v1128 = vpop.f32.mrf.mxu0
      %v1129 = vadd.f32 %v701, %v1128
      %v1130 = vpop.f32.mrf.mxu0
      %v1131 = vadd.f32 %v697, %v1130
      %v1132 = vpop.f32.mrf.mxu0
      %v1133 = vadd.f32 %v701, %v1132
      %1134 = vmatprep.mubr.bf16.mxu0 0
      %1135 = vmatmul.mubr.bf16.gmra.mxu0 %v785
      %v1136 = vpop.f32.mrf.mxu0
      %v1137 = vadd.f32 %v697, %v1136
      %v1138 = vpop.f32.mrf.mxu0
      %v1139 = vadd.f32 %v701, %v1138
      %v1140 = vpop.f32.mrf.mxu0
      %v1141 = vadd.f32 %v697, %v1140
      %v1142 = vpop.f32.mrf.mxu0
      %v1143 = vadd.f32 %v701, %v1142
      %1144 = vmatprep.mubr.bf16.mxu0 0
      %1145 = vmatmul.mubr.bf16.gmra.mxu0 %v788
      %v1146 = vpop.f32.mrf.mxu0
      %v1147 = vadd.f32 %v697, %v1146
      %v1148 = vpop.f32.mrf.mxu0
      %v1149 = vadd.f32 %v701, %v1148
      %v1150 = vpop.f32.mrf.mxu0
      %v1151 = vadd.f32 %v697, %v1150
      %v1152 = vpop.f32.mrf.mxu0
      %v1153 = vadd.f32 %v701, %v1152
      %1154 = vmatprep.mubr.bf16.mxu0 0
      %1155 = vmatmul.mubr.bf16.gmra.mxu0 %v791
      %v1156 = vpop.f32.mrf.mxu0
      %v1157 = vadd.f32 %v697, %v1156
      %v1158 = vpop.f32.mrf.mxu0
      %v1159 = vadd.f32 %v701, %v1158
      %v1160 = vpop.f32.mrf.mxu0
      %v1161 = vadd.f32 %v697, %v1160
      %v1162 = vpop.f32.mrf.mxu0
      %v1163 = vadd.f32 %v701, %v1162
      %1164 = vmatprep.mubr.bf16.mxu0 0
      %1165 = vmatmul.mubr.bf16.gmra.mxu0 %v794
      %v1166 = vpop.f32.mrf.mxu0
      %v1167 = vadd.f32 %v697, %v1166
      %v1168 = vpop.f32.mrf.mxu0
      %v1169 = vadd.f32 %v701, %v1168
      %v1170 = vpop.f32.mrf.mxu0
      %v1171 = vadd.f32 %v697, %v1170
      %v1172 = vpop.f32.mrf.mxu0
      %v1173 = vadd.f32 %v701, %v1172
      %1174 = vmatprep.mubr.bf16.mxu0 0
      %1175 = vmatmul.mubr.bf16.gmra.mxu0 %v797
      %v1176 = vpop.f32.mrf.mxu0
      %v1177 = vadd.f32 %v697, %v1176
      %v1178 = vpop.f32.mrf.mxu0
      %v1179 = vadd.f32 %v701, %v1178
      %v1180 = vpop.f32.mrf.mxu0
      %v1181 = vadd.f32 %v697, %v1180
      %v1182 = vpop.f32.mrf.mxu0
      %v1183 = vadd.f32 %v701, %v1182
      %1184 = vmatprep.mubr.bf16.mxu0 0
      %1185 = vmatmul.mubr.bf16.gmra.mxu0 %v800
      %v1186 = vpop.f32.mrf.mxu0
      %v1187 = vadd.f32 %v697, %v1186
      %v1188 = vpop.f32.mrf.mxu0
      %v1189 = vadd.f32 %v701, %v1188
      %v1190 = vpop.f32.mrf.mxu0
      %v1191 = vadd.f32 %v697, %v1190
      %v1192 = vpop.f32.mrf.mxu0
      %v1193 = vadd.f32 %v701, %v1192
      %1194 = vmatprep.mubr.bf16.mxu0 0
      %1195 = vmatmul.mubr.bf16.gmra.mxu0 %v803
      %v1196 = vpop.f32.mrf.mxu0
      %v1197 = vadd.f32 %v697, %v1196
      %v1198 = vpop.f32.mrf.mxu0
      %v1199 = vadd.f32 %v701, %v1198
      %v1200 = vpop.f32.mrf.mxu0
      %v1201 = vadd.f32 %v697, %v1200
      %v1202 = vpop.f32.mrf.mxu0
      %v1203 = vadd.f32 %v701, %v1202
      %1204 = vmatprep.mubr.bf16.mxu0 0
      %1205 = vmatmul.mubr.bf16.gmra.mxu0 %v806
      %v1206 = vpop.f32.mrf.mxu0
      %v1207 = vadd.f32 %v697, %v1206
      %v1208 = vpop.f32.mrf.mxu0
      %v1209 = vadd.f32 %v701, %v1208
      %v1210 = vpop.f32.mrf.mxu0
      %v1211 = vadd.f32 %v697, %v1210
      %v1212 = vpop.f32.mrf.mxu0
      %v1213 = vadd.f32 %v701, %v1212
      %1214 = vmatprep.mubr.bf16.mxu0 0
      %1215 = vmatmul.mubr.bf16.gmra.mxu0 %v809
      %v1216 = vpop.f32.mrf.mxu0
      %v1217 = vadd.f32 %v697, %v1216
      %v1218 = vpop.f32.mrf.mxu0
      %v1219 = vadd.f32 %v701, %v1218
      %v1220 = vpop.f32.mrf.mxu0
      %v1221 = vadd.f32 %v697, %v1220
      %v1222 = vpop.f32.mrf.mxu0
      %v1223 = vadd.f32 %v701, %v1222
      %1224 = vmatprep.mubr.bf16.mxu0 0
      %1225 = vmatmul.mubr.bf16.gmra.mxu0 %v812
      %v1226 = vpop.f32.mrf.mxu0
      %v1227 = vadd.f32 %v697, %v1226
      %v1228 = vpop.f32.mrf.mxu0
      %v1229 = vadd.f32 %v701, %v1228
      %v1230 = vpop.f32.mrf.mxu0
      %v1231 = vadd.f32 %v697, %v1230
      %v1232 = vpop.f32.mrf.mxu0
      %v1233 = vadd.f32 %v701, %v1232
      %1234 = vmatprep.mubr.bf16.mxu0 0
      %1235 = vmatmul.mubr.bf16.gmra.mxu0 %v815
      %v1236 = vpop.f32.mrf.mxu0
      %v1237 = vadd.f32 %v697, %v1236
      %v1238 = vpop.f32.mrf.mxu0
      %v1239 = vadd.f32 %v701, %v1238
      %v1240 = vpop.f32.mrf.mxu0
      %v1241 = vadd.f32 %v697, %v1240
      %v1242 = vpop.f32.mrf.mxu0
      %v1243 = vadd.f32 %v701, %v1242
      %1244 = vmatprep.mubr.bf16.mxu0 0
      %1245 = vmatmul.mubr.bf16.gmra.mxu0 %v818
      %v1246 = vpop.f32.mrf.mxu0
      %v1247 = vadd.f32 %v697, %v1246
      %v1248 = vpop.f32.mrf.mxu0
      %v1249 = vadd.f32 %v701, %v1248
      %v1250 = vpop.f32.mrf.mxu0
      %v1251 = vadd.f32 %v697, %v1250
      %v1252 = vpop.f32.mrf.mxu0
      %v1253 = vadd.f32 %v701, %v1252
      %1254 = vmatprep.mubr.bf16.mxu0 0
      %1255 = vmatmul.mubr.bf16.gmra.mxu0 %v821
      %v1256 = vpop.f32.mrf.mxu0
      %v1257 = vadd.f32 %v697, %v1256
      %v1258 = vpop.f32.mrf.mxu0
      %v1259 = vadd.f32 %v701, %v1258
      %v1260 = vpop.f32.mrf.mxu0
      %v1261 = vadd.f32 %v697, %v1260
      %v1262 = vpop.f32.mrf.mxu0
      %v1263 = vadd.f32 %v701, %v1262
      %1264 = vmatprep.mubr.bf16.mxu0 0
      %1265 = vmatmul.mubr.bf16.gmra.mxu0 %v824
      %v1266 = vpop.f32.mrf.mxu0
      %v1267 = vadd.f32 %v697, %v1266
      %v1268 = vpop.f32.mrf.mxu0
      %v1269 = vadd.f32 %v701, %v1268
      %v1270 = vpop.f32.mrf.mxu0
      %v1271 = vadd.f32 %v697, %v1270
      %v1272 = vpop.f32.mrf.mxu0
      %v1273 = vadd.f32 %v701, %v1272
      %1274 = vmatprep.mubr.bf16.mxu0 0
      %1275 = vmatmul.mubr.bf16.gmra.mxu0 %v827
      %v1276 = vpop.f32.mrf.mxu0
      %v1277 = vadd.f32 %v697, %v1276
      %v1278 = vpop.f32.mrf.mxu0
      %v1279 = vadd.f32 %v701, %v1278
      %v1280 = vpop.f32.mrf.mxu0
      %v1281 = vadd.f32 %v697, %v1280
      %v1282 = vpop.f32.mrf.mxu0
      %v1283 = vadd.f32 %v701, %v1282
      %1284 = vmatprep.mubr.bf16.mxu0 0
      %1285 = vmatmul.mubr.bf16.gmra.mxu0 %v830
      %v1286 = vpop.f32.mrf.mxu0
      %v1287 = vadd.f32 %v697, %v1286
      %v1288 = vpop.f32.mrf.mxu0
      %v1289 = vadd.f32 %v701, %v1288
      %v1290 = vpop.f32.mrf.mxu0
      %v1291 = vadd.f32 %v697, %v1290
      %v1292 = vpop.f32.mrf.mxu0
      %v1293 = vadd.f32 %v701, %v1292
      %1294 = vmatprep.mubr.bf16.mxu0 0
      %1295 = vmatmul.mubr.bf16.gmra.mxu0 %v833
      %v1296 = vpop.f32.mrf.mxu0
      %v1297 = vadd.f32 %v697, %v1296
      %v1298 = vpop.f32.mrf.mxu0
      %v1299 = vadd.f32 %v701, %v1298
      %v1300 = vpop.f32.mrf.mxu0
      %v1301 = vadd.f32 %v697, %v1300
      %v1302 = vpop.f32.mrf.mxu0
      %v1303 = vadd.f32 %v701, %v1302
      %1304 = vmatprep.mubr.bf16.mxu0 0
      %1305 = vmatmul.mubr.bf16.gmra.mxu0 %v836
      %v1306 = vpop.f32.mrf.mxu0
      %v1307 = vadd.f32 %v697, %v1306
      %v1308 = vpop.f32.mrf.mxu0
      %v1309 = vadd.f32 %v701, %v1308
      %v1310 = vpop.f32.mrf.mxu0
      %v1311 = vadd.f32 %v697, %v1310
      %v1312 = vpop.f32.mrf.mxu0
      %v1313 = vadd.f32 %v701, %v1312
      %1314 = vmatprep.mubr.bf16.mxu0 0
      %1315 = vmatmul.mubr.bf16.gmra.mxu0 %v839
      %v1316 = vpop.f32.mrf.mxu0
      %v1317 = vadd.f32 %v697, %v1316
      %v1318 = vpop.f32.mrf.mxu0
      %v1319 = vadd.f32 %v701, %v1318
      %v1320 = vpop.f32.mrf.mxu0
      %v1321 = vadd.f32 %v697, %v1320
      %v1322 = vpop.f32.mrf.mxu0
      %v1323 = vadd.f32 %v701, %v1322
      %1324 = vmatprep.mubr.bf16.mxu0 0
      %1325 = vmatmul.mubr.bf16.gmra.mxu0 %v842
      %v1326 = vpop.f32.mrf.mxu0
      %v1327 = vadd.f32 %v697, %v1326
      %v1328 = vpop.f32.mrf.mxu0
      %v1329 = vadd.f32 %v701, %v1328
      %v1330 = vpop.f32.mrf.mxu0
      %v1331 = vadd.f32 %v697, %v1330
      %v1332 = vpop.f32.mrf.mxu0
      %v1333 = vadd.f32 %v701, %v1332
      %1334 = vmatprep.mubr.bf16.mxu0 0
      %1335 = vmatmul.mubr.bf16.gmra.mxu0 %v845
      %v1336 = vpop.f32.mrf.mxu0
      %v1337 = vadd.f32 %v697, %v1336
      %v1338 = vpop.f32.mrf.mxu0
      %v1339 = vadd.f32 %v701, %v1338
      %v1340 = vpop.f32.mrf.mxu0
      %v1341 = vadd.f32 %v697, %v1340
      %v1342 = vpop.f32.mrf.mxu0
      %v1343 = vadd.f32 %v701, %v1342
      %1344 = vmatprep.mubr.bf16.mxu0 0
      %1345 = vmatmul.mubr.bf16.gmra.mxu0 %v848
      %v1346 = vpop.f32.mrf.mxu0
      %v1347 = vadd.f32 %v697, %v1346
      %v1348 = vpop.f32.mrf.mxu0
      %v1349 = vadd.f32 %v701, %v1348
      %v1350 = vpop.f32.mrf.mxu0
      %v1351 = vadd.f32 %v697, %v1350
      %v1352 = vpop.f32.mrf.mxu0
      %v1353 = vadd.f32 %v701, %v1352
      %1354 = vmatprep.mubr.bf16.mxu0 0
      %1355 = vmatmul.mubr.bf16.gmra.mxu0 %v851
      %v1356 = vpop.f32.mrf.mxu0
      %v1357 = vadd.f32 %v697, %v1356
      %v1358 = vpop.f32.mrf.mxu0
      %v1359 = vadd.f32 %v701, %v1358
      %v1360 = vpop.f32.mrf.mxu0
      %v1361 = vadd.f32 %v697, %v1360
      %v1362 = vpop.f32.mrf.mxu0
      %v1363 = vadd.f32 %v701, %v1362
      %1364 = vmatprep.mubr.bf16.mxu0 0
      %1365 = vmatmul.mubr.bf16.gmra.mxu0 %v854
      %v1366 = vpop.f32.mrf.mxu0
      %v1367 = vadd.f32 %v697, %v1366
      %v1368 = vpop.f32.mrf.mxu0
      %v1369 = vadd.f32 %v701, %v1368
      %v1370 = vpop.f32.mrf.mxu0
      %v1371 = vadd.f32 %v697, %v1370
      %v1372 = vpop.f32.mrf.mxu0
      %v1373 = vadd.f32 %v701, %v1372
      %1374 = vmatprep.mubr.bf16.mxu0 0
      %1375 = vmatmul.mubr.bf16.gmra.mxu0 %v857
      %v1376 = vpop.f32.mrf.mxu0
      %v1377 = vadd.f32 %v697, %v1376
      %v1378 = vpop.f32.mrf.mxu0
      %v1379 = vadd.f32 %v701, %v1378
      %v1380 = vpop.f32.mrf.mxu0
      %v1381 = vadd.f32 %v697, %v1380
      %v1382 = vpop.f32.mrf.mxu0
      %v1383 = vadd.f32 %v701, %v1382
      %1384 = vmatprep.mubr.bf16.mxu0 0
      %1385 = vmatmul.mubr.bf16.gmra.mxu0 %v860
      %v1386 = vpop.f32.mrf.mxu0
      %v1387 = vadd.f32 %v697, %v1386
      %v1388 = vpop.f32.mrf.mxu0
      %v1389 = vadd.f32 %v701, %v1388
      %v1390 = vpop.f32.mrf.mxu0
      %v1391 = vadd.f32 %v697, %v1390
      %v1392 = vpop.f32.mrf.mxu0
      %v1393 = vadd.f32 %v701, %v1392
      %1394 = vmatprep.mubr.bf16.mxu0 0
      %1395 = vmatmul.mubr.bf16.gmra.mxu0 %v863
      %v1396 = vpop.f32.mrf.mxu0
      %v1397 = vadd.f32 %v697, %v1396
      %v1398 = vpop.f32.mrf.mxu0
      %v1399 = vadd.f32 %v701, %v1398
      %v1400 = vpop.f32.mrf.mxu0
      %v1401 = vadd.f32 %v697, %v1400
      %v1402 = vpop.f32.mrf.mxu0
      %v1403 = vadd.f32 %v701, %v1402
      %1404 = vmatprep.mubr.bf16.mxu0 0
      %1405 = vmatmul.mubr.bf16.gmra.mxu0 %v866
      %v1406 = vpop.f32.mrf.mxu0
      %v1407 = vadd.f32 %v697, %v1406
      %v1408 = vpop.f32.mrf.mxu0
      %v1409 = vadd.f32 %v701, %v1408
      %v1410 = vpop.f32.mrf.mxu0
      %v1411 = vadd.f32 %v697, %v1410
      %v1412 = vpop.f32.mrf.mxu0
      %v1413 = vadd.f32 %v701, %v1412
      %1414 = vmatprep.mubr.bf16.mxu0 0
      %1415 = vmatmul.mubr.bf16.gmra.mxu0 %v869
      %v1416 = vpop.f32.mrf.mxu0
      %v1417 = vadd.f32 %v697, %v1416
      %v1418 = vpop.f32.mrf.mxu0
      %v1419 = vadd.f32 %v701, %v1418
      %v1420 = vpop.f32.mrf.mxu0
      %v1421 = vadd.f32 %v697, %v1420
      %v1422 = vpop.f32.mrf.mxu0
      %v1423 = vadd.f32 %v701, %v1422
      %1424 = vmatprep.mubr.bf16.mxu0 0
      %1425 = vmatmul.mubr.bf16.gmra.mxu0 %v872
      %v1426 = vpop.f32.mrf.mxu0
      %v1427 = vadd.f32 %v697, %v1426
      %v1428 = vpop.f32.mrf.mxu0
      %v1429 = vadd.f32 %v701, %v1428
      %v1430 = vpop.f32.mrf.mxu0
      %v1431 = vadd.f32 %v697, %v1430
      %v1432 = vpop.f32.mrf.mxu0
      %v1433 = vadd.f32 %v701, %v1432
      %1434 = vmatprep.mubr.bf16.mxu0 0
      %1435 = vmatmul.mubr.bf16.gmra.mxu0 %v875
      %v1436 = vpop.f32.mrf.mxu0
      %v1437 = vadd.f32 %v697, %v1436
      %v1438 = vpop.f32.mrf.mxu0
      %v1439 = vadd.f32 %v701, %v1438
      %v1440 = vpop.f32.mrf.mxu0
      %v1441 = vadd.f32 %v697, %v1440
      %v1442 = vpop.f32.mrf.mxu0
      %v1443 = vadd.f32 %v701, %v1442
      %1444 = vmatprep.mubr.bf16.mxu0 0
      %1445 = vmatmul.mubr.bf16.gmra.mxu0 %v878
      %v1446 = vpop.f32.mrf.mxu0
      %v1447 = vadd.f32 %v697, %v1446
      %v1448 = vpop.f32.mrf.mxu0
      %v1449 = vadd.f32 %v701, %v1448
      %v1450 = vpop.f32.mrf.mxu0
      %v1451 = vadd.f32 %v697, %v1450
      %v1452 = vpop.f32.mrf.mxu0
      %v1453 = vadd.f32 %v701, %v1452
      %1454 = vmatprep.mubr.bf16.mxu0 0
      %1455 = vmatmul.mubr.bf16.gmra.mxu0 %v881
      %v1456 = vpop.f32.mrf.mxu0
      %v1457 = vadd.f32 %v697, %v1456
      %v1458 = vpop.f32.mrf.mxu0
      %v1459 = vadd.f32 %v701, %v1458
      %v1460 = vpop.f32.mrf.mxu0
      %v1461 = vadd.f32 %v697, %v1460
      %v1462 = vpop.f32.mrf.mxu0
      %v1463 = vadd.f32 %v701, %v1462
      %1464 = vmatprep.mubr.bf16.mxu0 0
      %1465 = vmatmul.mubr.bf16.gmra.mxu0 %v884
      %v1466 = vpop.f32.mrf.mxu0
      %v1467 = vadd.f32 %v697, %v1466
      %v1468 = vpop.f32.mrf.mxu0
      %v1469 = vadd.f32 %v701, %v1468
      %v1470 = vpop.f32.mrf.mxu0
      %v1471 = vadd.f32 %v697, %v1470
      %v1472 = vpop.f32.mrf.mxu0
      %v1473 = vadd.f32 %v701, %v1472
      %1474 = vmatprep.mubr.bf16.mxu0 0
      %1475 = vmatmul.mubr.bf16.gmra.mxu0 %v887
      %v1476 = vpop.f32.mrf.mxu0
      %v1477 = vadd.f32 %v697, %v1476
      %v1478 = vpop.f32.mrf.mxu0
      %v1479 = vadd.f32 %v701, %v1478
      %v1480 = vpop.f32.mrf.mxu0
      %v1481 = vadd.f32 %v697, %v1480
      %v1482 = vpop.f32.mrf.mxu0
      %v1483 = vadd.f32 %v701, %v1482
      %1484 = vmatprep.mubr.bf16.mxu0 0
      %1485 = vmatmul.mubr.bf16.gmra.mxu0 %v890
      %v1486 = vpop.f32.mrf.mxu0
      %v1487 = vadd.f32 %v697, %v1486
      %v1488 = vpop.f32.mrf.mxu0
      %v1489 = vadd.f32 %v701, %v1488
      %v1490 = vpop.f32.mrf.mxu0
      %v1491 = vadd.f32 %v697, %v1490
      %v1492 = vpop.f32.mrf.mxu0
      %v1493 = vadd.f32 %v701, %v1492
      %1494 = vmatprep.mubr.bf16.mxu0 0
      %1495 = vmatmul.mubr.bf16.gmra.mxu0 %v893
      %v1496 = vpop.f32.mrf.mxu0
      %v1497 = vadd.f32 %v697, %v1496
      %v1498 = vpop.f32.mrf.mxu0
      %v1499 = vadd.f32 %v701, %v1498
      %v1500 = vpop.f32.mrf.mxu0
      %v1501 = vadd.f32 %v697, %v1500
      %v1502 = vpop.f32.mrf.mxu0
      %v1503 = vadd.f32 %v701, %v1502
      %1504 = vmatprep.mubr.bf16.mxu0 0
      %1505 = vmatmul.mubr.bf16.gmra.mxu0 %v896
      %v1506 = vpop.f32.mrf.mxu0
      %v1507 = vadd.f32 %v697, %v1506
      %v1508 = vpop.f32.mrf.mxu0
      %v1509 = vadd.f32 %v701, %v1508
      %v1510 = vpop.f32.mrf.mxu0
      %v1511 = vadd.f32 %v697, %v1510
      %v1512 = vpop.f32.mrf.mxu0
      %v1513 = vadd.f32 %v701, %v1512
      %1514 = vmatprep.mubr.bf16.mxu0 0
      %1515 = vmatmul.mubr.bf16.gmra.mxu0 %v899
      %v1516 = vpop.f32.mrf.mxu0
      %v1517 = vadd.f32 %v697, %v1516
      %v1518 = vpop.f32.mrf.mxu0
      %v1519 = vadd.f32 %v701, %v1518
      %v1520 = vpop.f32.mrf.mxu0
      %v1521 = vadd.f32 %v697, %v1520
      %v1522 = vpop.f32.mrf.mxu0
      %v1523 = vadd.f32 %v701, %v1522
      %1524 = vmatprep.mubr.bf16.mxu0 0
      %1525 = vmatmul.mubr.bf16.gmra.mxu0 %v902
      %v1526 = vpop.f32.mrf.mxu0
      %v1527 = vadd.f32 %v697, %v1526
      %v1528 = vpop.f32.mrf.mxu0
      %v1529 = vadd.f32 %v701, %v1528
      %v1530 = vpop.f32.mrf.mxu0
      %v1531 = vadd.f32 %v697, %v1530
      %v1532 = vpop.f32.mrf.mxu0
      %v1533 = vadd.f32 %v701, %v1532
      %1534 = vmatprep.mubr.bf16.mxu0 0
      %1535 = vmatmul.mubr.bf16.gmra.mxu0 %v905
      %v1536 = vpop.f32.mrf.mxu0
      %v1537 = vadd.f32 %v697, %v1536
      %v1538 = vpop.f32.mrf.mxu0
      %v1539 = vadd.f32 %v701, %v1538
      %v1540 = vpop.f32.mrf.mxu0
      %v1541 = vadd.f32 %v697, %v1540
      %v1542 = vpop.f32.mrf.mxu0
      %v1543 = vadd.f32 %v701, %v1542
      %1544 = vmatprep.mubr.bf16.mxu0 0
      %1545 = vmatmul.mubr.bf16.gmra.mxu0 %v908
      %v1546 = vpop.f32.mrf.mxu0
      %v1547 = vadd.f32 %v697, %v1546
      %v1548 = vpop.f32.mrf.mxu0
      %v1549 = vadd.f32 %v701, %v1548
      %v1550 = vpop.f32.mrf.mxu0
      %v1551 = vadd.f32 %v697, %v1550
      %v1552 = vpop.f32.mrf.mxu0
      %v1553 = vadd.f32 %v701, %v1552
      %1554 = vmatprep.mubr.bf16.mxu0 0
      %1555 = vmatmul.mubr.bf16.gmra.mxu0 %v911
      %v1556 = vpop.f32.mrf.mxu0
      %v1557 = vadd.f32 %v697, %v1556
      %v1558 = vpop.f32.mrf.mxu0
      %v1559 = vadd.f32 %v701, %v1558
      %v1560 = vpop.f32.mrf.mxu0
      %v1561 = vadd.f32 %v697, %v1560
      %v1562 = vpop.f32.mrf.mxu0
      %v1563 = vadd.f32 %v701, %v1562
      %1564 = vmatprep.mubr.bf16.mxu0 0
      %1565 = vmatmul.mubr.bf16.gmra.mxu0 %v914
      %v1566 = vpop.f32.mrf.mxu0
      %v1567 = vadd.f32 %v697, %v1566
      %v1568 = vpop.f32.mrf.mxu0
      %v1569 = vadd.f32 %v701, %v1568
      %v1570 = vpop.f32.mrf.mxu0
      %v1571 = vadd.f32 %v697, %v1570
      %v1572 = vpop.f32.mrf.mxu0
      %v1573 = vadd.f32 %v701, %v1572
      %1574 = vmatprep.mubr.bf16.mxu0 0
      %1575 = vmatmul.mubr.bf16.gmra.mxu0 %v917
      %v1576 = vpop.f32.mrf.mxu0
      %v1577 = vadd.f32 %v697, %v1576
      %v1578 = vpop.f32.mrf.mxu0
      %v1579 = vadd.f32 %v701, %v1578
      %v1580 = vpop.f32.mrf.mxu0
      %v1581 = vadd.f32 %v697, %v1580
      %v1582 = vpop.f32.mrf.mxu0
      %v1583 = vadd.f32 %v701, %v1582
      %1584 = vmatprep.mubr.bf16.mxu0 0
      %1585 = vmatmul.mubr.bf16.gmra.mxu0 %v920
      %v1586 = vpop.f32.mrf.mxu0
      %v1587 = vadd.f32 %v697, %v1586
      %v1588 = vpop.f32.mrf.mxu0
      %v1589 = vadd.f32 %v701, %v1588
      %v1590 = vpop.f32.mrf.mxu0
      %v1591 = vadd.f32 %v697, %v1590
      %v1592 = vpop.f32.mrf.mxu0
      %v1593 = vadd.f32 %v701, %v1592
      %1594 = vmatprep.mubr.bf16.mxu0 0
      %1595 = vmatmul.mubr.bf16.gmra.mxu0 %v923
      %v1596 = vpop.f32.mrf.mxu0
      %v1597 = vadd.f32 %v697, %v1596
      %v1598 = vpop.f32.mrf.mxu0
      %v1599 = vadd.f32 %v701, %v1598
      %v1600 = vpop.f32.mrf.mxu0
      %v1601 = vadd.f32 %v697, %v1600
      %v1602 = vpop.f32.mrf.mxu0
      %v1603 = vadd.f32 %v701, %v1602
      %1604 = vdwg.mxu0
      %v1605 = vmax.f32 %v967, 0.0
      %v1606 = vmax.f32 %v969, 0.0
      %v1607 = vmax.f32 %v971, 0.0
      %v1608 = vmax.f32 %v973, 0.0
      %v1609 = vmax.f32 %v977, 0.0
      %v1610 = vmax.f32 %v979, 0.0
      %v1611 = vmax.f32 %v981, 0.0
      %v1612 = vmax.f32 %v983, 0.0
      %v1613 = vmax.f32 %v987, 0.0
      %v1614 = vmax.f32 %v989, 0.0
      %v1615 = vmax.f32 %v991, 0.0
      %v1616 = vmax.f32 %v993, 0.0
      %v1617 = vmax.f32 %v997, 0.0
      %v1618 = vmax.f32 %v999, 0.0
      %v1619 = vmax.f32 %v1001, 0.0
      %v1620 = vmax.f32 %v1003, 0.0
      %v1621 = vmax.f32 %v1007, 0.0
      %v1622 = vmax.f32 %v1009, 0.0
      %v1623 = vmax.f32 %v1011, 0.0
      %v1624 = vmax.f32 %v1013, 0.0
      %v1625 = vmax.f32 %v1017, 0.0
      %v1626 = vmax.f32 %v1019, 0.0
      %v1627 = vmax.f32 %v1021, 0.0
      %v1628 = vmax.f32 %v1023, 0.0
      %v1629 = vmax.f32 %v1027, 0.0
      %v1630 = vmax.f32 %v1029, 0.0
      %v1631 = vmax.f32 %v1031, 0.0
      %v1632 = vmax.f32 %v1033, 0.0
      %v1633 = vmax.f32 %v1037, 0.0
      %v1634 = vmax.f32 %v1039, 0.0
      %v1635 = vmax.f32 %v1041, 0.0
      %v1636 = vmax.f32 %v1043, 0.0
      %v1637 = vmax.f32 %v1047, 0.0
      %v1638 = vmax.f32 %v1049, 0.0
      %v1639 = vmax.f32 %v1051, 0.0
      %v1640 = vmax.f32 %v1053, 0.0
      %v1641 = vmax.f32 %v1057, 0.0
      %v1642 = vmax.f32 %v1059, 0.0
      %v1643 = vmax.f32 %v1061, 0.0
      %v1644 = vmax.f32 %v1063, 0.0
      %v1645 = vmax.f32 %v1067, 0.0
      %v1646 = vmax.f32 %v1069, 0.0
      %v1647 = vmax.f32 %v1071, 0.0
      %v1648 = vmax.f32 %v1073, 0.0
      %v1649 = vmax.f32 %v1077, 0.0
      %v1650 = vmax.f32 %v1079, 0.0
      %v1651 = vmax.f32 %v1081, 0.0
      %v1652 = vmax.f32 %v1083, 0.0
      %v1653 = vmax.f32 %v1087, 0.0
      %v1654 = vmax.f32 %v1089, 0.0
      %v1655 = vmax.f32 %v1091, 0.0
      %v1656 = vmax.f32 %v1093, 0.0
      %v1657 = vmax.f32 %v1097, 0.0
      %v1658 = vmax.f32 %v1099, 0.0
      %v1659 = vmax.f32 %v1101, 0.0
      %v1660 = vmax.f32 %v1103, 0.0
      %v1661 = vmax.f32 %v1107, 0.0
      %v1662 = vmax.f32 %v1109, 0.0
      %v1663 = vmax.f32 %v1111, 0.0
      %v1664 = vmax.f32 %v1113, 0.0
      %v1665 = vmax.f32 %v1117, 0.0
      %v1666 = vmax.f32 %v1119, 0.0
      %v1667 = vmax.f32 %v1121, 0.0
      %v1668 = vmax.f32 %v1123, 0.0
      %v1669 = vmax.f32 %v1127, 0.0
      %v1670 = vmax.f32 %v1129, 0.0
      %v1671 = vmax.f32 %v1131, 0.0
      %v1672 = vmax.f32 %v1133, 0.0
      %v1673 = vmax.f32 %v1137, 0.0
      %v1674 = vmax.f32 %v1139, 0.0
      %v1675 = vmax.f32 %v1141, 0.0
      %v1676 = vmax.f32 %v1143, 0.0
      %v1677 = vmax.f32 %v1147, 0.0
      %v1678 = vmax.f32 %v1149, 0.0
      %v1679 = vmax.f32 %v1151, 0.0
      %v1680 = vmax.f32 %v1153, 0.0
      %v1681 = vmax.f32 %v1157, 0.0
      %v1682 = vmax.f32 %v1159, 0.0
      %v1683 = vmax.f32 %v1161, 0.0
      %v1684 = vmax.f32 %v1163, 0.0
      %v1685 = vmax.f32 %v1167, 0.0
      %v1686 = vmax.f32 %v1169, 0.0
      %v1687 = vmax.f32 %v1171, 0.0
      %v1688 = vmax.f32 %v1173, 0.0
      %v1689 = vmax.f32 %v1177, 0.0
      %v1690 = vmax.f32 %v1179, 0.0
      %v1691 = vmax.f32 %v1181, 0.0
      %v1692 = vmax.f32 %v1183, 0.0
      %v1693 = vmax.f32 %v1187, 0.0
      %v1694 = vmax.f32 %v1189, 0.0
      %v1695 = vmax.f32 %v1191, 0.0
      %v1696 = vmax.f32 %v1193, 0.0
      %v1697 = vmax.f32 %v1197, 0.0
      %v1698 = vmax.f32 %v1199, 0.0
      %v1699 = vmax.f32 %v1201, 0.0
      %v1700 = vmax.f32 %v1203, 0.0
      %v1701 = vmax.f32 %v1207, 0.0
      %v1702 = vmax.f32 %v1209, 0.0
      %v1703 = vmax.f32 %v1211, 0.0
      %v1704 = vmax.f32 %v1213, 0.0
      %v1705 = vmax.f32 %v1217, 0.0
      %v1706 = vmax.f32 %v1219, 0.0
      %v1707 = vmax.f32 %v1221, 0.0
      %v1708 = vmax.f32 %v1223, 0.0
      %v1709 = vmax.f32 %v1227, 0.0
      %v1710 = vmax.f32 %v1229, 0.0
      %v1711 = vmax.f32 %v1231, 0.0
      %v1712 = vmax.f32 %v1233, 0.0
      %v1713 = vmax.f32 %v1237, 0.0
      %v1714 = vmax.f32 %v1239, 0.0
      %v1715 = vmax.f32 %v1241, 0.0
      %v1716 = vmax.f32 %v1243, 0.0
      %v1717 = vmax.f32 %v1247, 0.0
      %v1718 = vmax.f32 %v1249, 0.0
      %v1719 = vmax.f32 %v1251, 0.0
      %v1720 = vmax.f32 %v1253, 0.0
      %v1721 = vmax.f32 %v1257, 0.0
      %v1722 = vmax.f32 %v1259, 0.0
      %v1723 = vmax.f32 %v1261, 0.0
      %v1724 = vmax.f32 %v1263, 0.0
      %v1725 = vmax.f32 %v1267, 0.0
      %v1726 = vmax.f32 %v1269, 0.0
      %v1727 = vmax.f32 %v1271, 0.0
      %v1728 = vmax.f32 %v1273, 0.0
      %v1729 = vmax.f32 %v1277, 0.0
      %v1730 = vmax.f32 %v1279, 0.0
      %v1731 = vmax.f32 %v1281, 0.0
      %v1732 = vmax.f32 %v1283, 0.0
      %v1733 = vmax.f32 %v1287, 0.0
      %v1734 = vmax.f32 %v1289, 0.0
      %v1735 = vmax.f32 %v1291, 0.0
      %v1736 = vmax.f32 %v1293, 0.0
      %v1737 = vmax.f32 %v1297, 0.0
      %v1738 = vmax.f32 %v1299, 0.0
      %v1739 = vmax.f32 %v1301, 0.0
      %v1740 = vmax.f32 %v1303, 0.0
      %v1741 = vmax.f32 %v1307, 0.0
      %v1742 = vmax.f32 %v1309, 0.0
      %v1743 = vmax.f32 %v1311, 0.0
      %v1744 = vmax.f32 %v1313, 0.0
      %v1745 = vmax.f32 %v1317, 0.0
      %v1746 = vmax.f32 %v1319, 0.0
      %v1747 = vmax.f32 %v1321, 0.0
      %v1748 = vmax.f32 %v1323, 0.0
      %v1749 = vmax.f32 %v1327, 0.0
      %v1750 = vmax.f32 %v1329, 0.0
      %v1751 = vmax.f32 %v1331, 0.0
      %v1752 = vmax.f32 %v1333, 0.0
      %v1753 = vmax.f32 %v1337, 0.0
      %v1754 = vmax.f32 %v1339, 0.0
      %v1755 = vmax.f32 %v1341, 0.0
      %v1756 = vmax.f32 %v1343, 0.0
      %v1757 = vmax.f32 %v1347, 0.0
      %v1758 = vmax.f32 %v1349, 0.0
      %v1759 = vmax.f32 %v1351, 0.0
      %v1760 = vmax.f32 %v1353, 0.0
      %v1761 = vmax.f32 %v1357, 0.0
      %v1762 = vmax.f32 %v1359, 0.0
      %v1763 = vmax.f32 %v1361, 0.0
      %v1764 = vmax.f32 %v1363, 0.0
      %v1765 = vmax.f32 %v1367, 0.0
      %v1766 = vmax.f32 %v1369, 0.0
      %v1767 = vmax.f32 %v1371, 0.0
      %v1768 = vmax.f32 %v1373, 0.0
      %v1769 = vmax.f32 %v1377, 0.0
      %v1770 = vmax.f32 %v1379, 0.0
      %v1771 = vmax.f32 %v1381, 0.0
      %v1772 = vmax.f32 %v1383, 0.0
      %v1773 = vmax.f32 %v1387, 0.0
      %v1774 = vmax.f32 %v1389, 0.0
      %v1775 = vmax.f32 %v1391, 0.0
      %v1776 = vmax.f32 %v1393, 0.0
      %v1777 = vmax.f32 %v1397, 0.0
      %v1778 = vmax.f32 %v1399, 0.0
      %v1779 = vmax.f32 %v1401, 0.0
      %v1780 = vmax.f32 %v1403, 0.0
      %v1781 = vmax.f32 %v1407, 0.0
      %v1782 = vmax.f32 %v1409, 0.0
      %v1783 = vmax.f32 %v1411, 0.0
      %v1784 = vmax.f32 %v1413, 0.0
      %v1785 = vmax.f32 %v1417, 0.0
      %v1786 = vmax.f32 %v1419, 0.0
      %v1787 = vmax.f32 %v1421, 0.0
      %v1788 = vmax.f32 %v1423, 0.0
      %v1789 = vmax.f32 %v1427, 0.0
      %v1790 = vmax.f32 %v1429, 0.0
      %v1791 = vmax.f32 %v1431, 0.0
      %v1792 = vmax.f32 %v1433, 0.0
      %v1793 = vmax.f32 %v1437, 0.0
      %v1794 = vmax.f32 %v1439, 0.0
      %v1795 = vmax.f32 %v1441, 0.0
      %v1796 = vmax.f32 %v1443, 0.0
      %v1797 = vmax.f32 %v1447, 0.0
      %v1798 = vmax.f32 %v1449, 0.0
      %v1799 = vmax.f32 %v1451, 0.0
      %v1800 = vmax.f32 %v1453, 0.0
      %v1801 = vmax.f32 %v1457, 0.0
      %v1802 = vmax.f32 %v1459, 0.0
      %v1803 = vmax.f32 %v1461, 0.0
      %v1804 = vmax.f32 %v1463, 0.0
      %v1805 = vmax.f32 %v1467, 0.0
      %v1806 = vmax.f32 %v1469, 0.0
      %v1807 = vmax.f32 %v1471, 0.0
      %v1808 = vmax.f32 %v1473, 0.0
      %v1809 = vmax.f32 %v1477, 0.0
      %v1810 = vmax.f32 %v1479, 0.0
      %v1811 = vmax.f32 %v1481, 0.0
      %v1812 = vmax.f32 %v1483, 0.0
      %v1813 = vmax.f32 %v1487, 0.0
      %v1814 = vmax.f32 %v1489, 0.0
      %v1815 = vmax.f32 %v1491, 0.0
      %v1816 = vmax.f32 %v1493, 0.0
      %v1817 = vmax.f32 %v1497, 0.0
      %v1818 = vmax.f32 %v1499, 0.0
      %v1819 = vmax.f32 %v1501, 0.0
      %v1820 = vmax.f32 %v1503, 0.0
      %v1821 = vmax.f32 %v1507, 0.0
      %v1822 = vmax.f32 %v1509, 0.0
      %v1823 = vmax.f32 %v1511, 0.0
      %v1824 = vmax.f32 %v1513, 0.0
      %v1825 = vmax.f32 %v1517, 0.0
      %v1826 = vmax.f32 %v1519, 0.0
      %v1827 = vmax.f32 %v1521, 0.0
      %v1828 = vmax.f32 %v1523, 0.0
      %v1829 = vmax.f32 %v1527, 0.0
      %v1830 = vmax.f32 %v1529, 0.0
      %v1831 = vmax.f32 %v1531, 0.0
      %v1832 = vmax.f32 %v1533, 0.0
      %v1833 = vmax.f32 %v1537, 0.0
      %v1834 = vmax.f32 %v1539, 0.0
      %v1835 = vmax.f32 %v1541, 0.0
      %v1836 = vmax.f32 %v1543, 0.0
      %v1837 = vmax.f32 %v1547, 0.0
      %v1838 = vmax.f32 %v1549, 0.0
      %v1839 = vmax.f32 %v1551, 0.0
      %v1840 = vmax.f32 %v1553, 0.0
      %v1841 = vmax.f32 %v1557, 0.0
      %v1842 = vmax.f32 %v1559, 0.0
      %v1843 = vmax.f32 %v1561, 0.0
      %v1844 = vmax.f32 %v1563, 0.0
      %v1845 = vmax.f32 %v1567, 0.0
      %v1846 = vmax.f32 %v1569, 0.0
      %v1847 = vmax.f32 %v1571, 0.0
      %v1848 = vmax.f32 %v1573, 0.0
      %v1849 = vmax.f32 %v1577, 0.0
      %v1850 = vmax.f32 %v1579, 0.0
      %v1851 = vmax.f32 %v1581, 0.0
      %v1852 = vmax.f32 %v1583, 0.0
      %v1853 = vmax.f32 %v1587, 0.0
      %v1854 = vmax.f32 %v1589, 0.0
      %v1855 = vmax.f32 %v1591, 0.0
      %v1856 = vmax.f32 %v1593, 0.0
      %v1857 = vmax.f32 %v1597, 0.0
      %v1858 = vmax.f32 %v1599, 0.0
      %v1859 = vmax.f32 %v1601, 0.0
      %v1860 = vmax.f32 %v1603, 0.0
      %v1861 = vpack.c.bf16 %v1607, %v1605
      %v1862 = vpack.c.bf16 %v1608, %v1606
      %v1863 = vpack.c.bf16 %v1611, %v1609
      %v1864 = vpack.c.bf16 %v1612, %v1610
      %v1865 = vpack.c.bf16 %v1615, %v1613
      %v1866 = vpack.c.bf16 %v1616, %v1614
      %v1867 = vpack.c.bf16 %v1619, %v1617
      %v1868 = vpack.c.bf16 %v1620, %v1618
      %v1869 = vpack.c.bf16 %v1623, %v1621
      %v1870 = vpack.c.bf16 %v1624, %v1622
      %v1871 = vpack.c.bf16 %v1627, %v1625
      %v1872 = vpack.c.bf16 %v1628, %v1626
      %v1873 = vpack.c.bf16 %v1631, %v1629
      %v1874 = vpack.c.bf16 %v1632, %v1630
      %v1875 = vpack.c.bf16 %v1635, %v1633
      %v1876 = vpack.c.bf16 %v1636, %v1634
      %v1877 = vpack.c.bf16 %v1639, %v1637
      %v1878 = vpack.c.bf16 %v1640, %v1638
      %v1879 = vpack.c.bf16 %v1643, %v1641
      %v1880 = vpack.c.bf16 %v1644, %v1642
      %v1881 = vpack.c.bf16 %v1647, %v1645
      %v1882 = vpack.c.bf16 %v1648, %v1646
      %v1883 = vpack.c.bf16 %v1651, %v1649
      %v1884 = vpack.c.bf16 %v1652, %v1650
      %v1885 = vpack.c.bf16 %v1655, %v1653
      %v1886 = vpack.c.bf16 %v1656, %v1654
      %v1887 = vpack.c.bf16 %v1659, %v1657
      %v1888 = vpack.c.bf16 %v1660, %v1658
      %v1889 = vpack.c.bf16 %v1663, %v1661
      %v1890 = vpack.c.bf16 %v1664, %v1662
      %v1891 = vpack.c.bf16 %v1667, %v1665
      %v1892 = vpack.c.bf16 %v1668, %v1666
      %v1893 = vpack.c.bf16 %v1671, %v1669
      %v1894 = vpack.c.bf16 %v1672, %v1670
      %v1895 = vpack.c.bf16 %v1675, %v1673
      %v1896 = vpack.c.bf16 %v1676, %v1674
      %v1897 = vpack.c.bf16 %v1679, %v1677
      %v1898 = vpack.c.bf16 %v1680, %v1678
      %v1899 = vpack.c.bf16 %v1683, %v1681
      %v1900 = vpack.c.bf16 %v1684, %v1682
      %v1901 = vpack.c.bf16 %v1687, %v1685
      %v1902 = vpack.c.bf16 %v1688, %v1686
      %v1903 = vpack.c.bf16 %v1691, %v1689
      %v1904 = vpack.c.bf16 %v1692, %v1690
      %v1905 = vpack.c.bf16 %v1695, %v1693
      %v1906 = vpack.c.bf16 %v1696, %v1694
      %v1907 = vpack.c.bf16 %v1699, %v1697
      %v1908 = vpack.c.bf16 %v1700, %v1698
      %v1909 = vpack.c.bf16 %v1703, %v1701
      %v1910 = vpack.c.bf16 %v1704, %v1702
      %v1911 = vpack.c.bf16 %v1707, %v1705
      %v1912 = vpack.c.bf16 %v1708, %v1706
      %v1913 = vpack.c.bf16 %v1711, %v1709
      %v1914 = vpack.c.bf16 %v1712, %v1710
      %v1915 = vpack.c.bf16 %v1715, %v1713
      %v1916 = vpack.c.bf16 %v1716, %v1714
      %v1917 = vpack.c.bf16 %v1719, %v1717
      %v1918 = vpack.c.bf16 %v1720, %v1718
      %v1919 = vpack.c.bf16 %v1723, %v1721
      %v1920 = vpack.c.bf16 %v1724, %v1722
      %v1921 = vpack.c.bf16 %v1727, %v1725
      %v1922 = vpack.c.bf16 %v1728, %v1726
      %v1923 = vpack.c.bf16 %v1731, %v1729
      %v1924 = vpack.c.bf16 %v1732, %v1730
      %v1925 = vpack.c.bf16 %v1735, %v1733
      %v1926 = vpack.c.bf16 %v1736, %v1734
      %v1927 = vpack.c.bf16 %v1739, %v1737
      %v1928 = vpack.c.bf16 %v1740, %v1738
      %v1929 = vpack.c.bf16 %v1743, %v1741
      %v1930 = vpack.c.bf16 %v1744, %v1742
      %v1931 = vpack.c.bf16 %v1747, %v1745
      %v1932 = vpack.c.bf16 %v1748, %v1746
      %v1933 = vpack.c.bf16 %v1751, %v1749
      %v1934 = vpack.c.bf16 %v1752, %v1750
      %v1935 = vpack.c.bf16 %v1755, %v1753
      %v1936 = vpack.c.bf16 %v1756, %v1754
      %v1937 = vpack.c.bf16 %v1759, %v1757
      %v1938 = vpack.c.bf16 %v1760, %v1758
      %v1939 = vpack.c.bf16 %v1763, %v1761
      %v1940 = vpack.c.bf16 %v1764, %v1762
      %v1941 = vpack.c.bf16 %v1767, %v1765
      %v1942 = vpack.c.bf16 %v1768, %v1766
      %v1943 = vpack.c.bf16 %v1771, %v1769
      %v1944 = vpack.c.bf16 %v1772, %v1770
      %v1945 = vpack.c.bf16 %v1775, %v1773
      %v1946 = vpack.c.bf16 %v1776, %v1774
      %v1947 = vpack.c.bf16 %v1779, %v1777
      %v1948 = vpack.c.bf16 %v1780, %v1778
      %v1949 = vpack.c.bf16 %v1783, %v1781
      %v1950 = vpack.c.bf16 %v1784, %v1782
      %v1951 = vpack.c.bf16 %v1787, %v1785
      %v1952 = vpack.c.bf16 %v1788, %v1786
      %v1953 = vpack.c.bf16 %v1791, %v1789
      %v1954 = vpack.c.bf16 %v1792, %v1790
      %v1955 = vpack.c.bf16 %v1795, %v1793
      %v1956 = vpack.c.bf16 %v1796, %v1794
      %v1957 = vpack.c.bf16 %v1799, %v1797
      %v1958 = vpack.c.bf16 %v1800, %v1798
      %v1959 = vpack.c.bf16 %v1803, %v1801
      %v1960 = vpack.c.bf16 %v1804, %v1802
      %v1961 = vpack.c.bf16 %v1807, %v1805
      %v1962 = vpack.c.bf16 %v1808, %v1806
      %v1963 = vpack.c.bf16 %v1811, %v1809
      %v1964 = vpack.c.bf16 %v1812, %v1810
      %v1965 = vpack.c.bf16 %v1815, %v1813
      %v1966 = vpack.c.bf16 %v1816, %v1814
      %v1967 = vpack.c.bf16 %v1819, %v1817
      %v1968 = vpack.c.bf16 %v1820, %v1818
      %v1969 = vpack.c.bf16 %v1823, %v1821
      %v1970 = vpack.c.bf16 %v1824, %v1822
      %v1971 = vpack.c.bf16 %v1827, %v1825
      %v1972 = vpack.c.bf16 %v1828, %v1826
      %v1973 = vpack.c.bf16 %v1831, %v1829
      %v1974 = vpack.c.bf16 %v1832, %v1830
      %v1975 = vpack.c.bf16 %v1835, %v1833
      %v1976 = vpack.c.bf16 %v1836, %v1834
      %v1977 = vpack.c.bf16 %v1839, %v1837
      %v1978 = vpack.c.bf16 %v1840, %v1838
      %v1979 = vpack.c.bf16 %v1843, %v1841
      %v1980 = vpack.c.bf16 %v1844, %v1842
      %v1981 = vpack.c.bf16 %v1847, %v1845
      %v1982 = vpack.c.bf16 %v1848, %v1846
      %v1983 = vpack.c.bf16 %v1851, %v1849
      %v1984 = vpack.c.bf16 %v1852, %v1850
      %v1985 = vpack.c.bf16 %v1855, %v1853
      %v1986 = vpack.c.bf16 %v1856, %v1854
      %v1987 = vpack.c.bf16 %v1859, %v1857
      %v1988 = vpack.c.bf16 %v1860, %v1858
      %v1989 = vld [vmem:[%s4] sm:$0xff]
      %v1990 = vld [vmem:[%s4 + $0x8] sm:$0xff]
      %v1991 = vld [vmem:[%s4 + $0x10] sm:$0xff]
      %v1992 = vld [vmem:[%s4 + $0x18] sm:$0xff]
      %v1993 = vld [vmem:[%s4 + $0x20] sm:$0xff]
      %v1994 = vld [vmem:[%s4 + $0x28] sm:$0xff]
      %v1995 = vld [vmem:[%s4 + $0x30] sm:$0xff]
      %v1996 = vld [vmem:[%s4 + $0x38] sm:$0xff]
      %v1997 = vld [vmem:[%s4 + $0x40] sm:$0xff]
      %v1998 = vld [vmem:[%s4 + $0x48] sm:$0xff]
      %v1999 = vld [vmem:[%s4 + $0x50] sm:$0xff]
      %v2000 = vld [vmem:[%s4 + $0x58] sm:$0xff]
      %v2001 = vld [vmem:[%s4 + $0x60] sm:$0xff]
      %v2002 = vld [vmem:[%s4 + $0x68] sm:$0xff]
      %v2003 = vld [vmem:[%s4 + $0x70] sm:$0xff]
      %v2004 = vld [vmem:[%s4 + $0x78] sm:$0xff]
      %v2005 = vld [vmem:[%s4 + $0x80] sm:$0xff]
      %v2006 = vld [vmem:[%s4 + $0x88] sm:$0xff]
      %v2007 = vld [vmem:[%s4 + $0x90] sm:$0xff]
      %v2008 = vld [vmem:[%s4 + $0x98] sm:$0xff]
      %v2009 = vld [vmem:[%s4 + $0xa0] sm:$0xff]
      %v2010 = vld [vmem:[%s4 + $0xa8] sm:$0xff]
      %v2011 = vld [vmem:[%s4 + $0xb0] sm:$0xff]
      %v2012 = vld [vmem:[%s4 + $0xb8] sm:$0xff]
      %v2013 = vld [vmem:[%s4 + $0xc0] sm:$0xff]
      %v2014 = vld [vmem:[%s4 + $0xc8] sm:$0xff]
      %v2015 = vld [vmem:[%s4 + $0xd0] sm:$0xff]
      %v2016 = vld [vmem:[%s4 + $0xd8] sm:$0xff]
      %v2017 = vld [vmem:[%s4 + $0xe0] sm:$0xff]
      %v2018 = vld [vmem:[%s4 + $0xe8] sm:$0xff]
      %v2019 = vld [vmem:[%s4 + $0xf0] sm:$0xff]
      %v2020 = vld [vmem:[%s4 + $0xf8] sm:$0xff]
      %v2021 = vld [vmem:[%s5] sm:$0x3]
      %v2023 = vlaneseq
      %v2024 = vshrl.u32 %v2023, 7
      %v2025 = vsub.s32 0, %v2024
      %v2026 = vrot.slane %v2021, %v2025
      %v2027 = vlaneseq
      %v2028 = vshrl.u32 %v2027, 7
      %v2029 = vsub.s32 1, %v2028
      %v2030 = vrot.slane %v2021, %v2029
      %v2065 = vunpack.c.l.b16 %v1989
      %v2066 = vunpack.c.h.b16 %v1989
      %v2067 = vunpack.c.l.b16 %v1990
      %v2068 = vunpack.c.h.b16 %v1990
      %v2069 = vunpack.c.l.b16 %v1991
      %v2070 = vunpack.c.h.b16 %v1991
      %v2071 = vunpack.c.l.b16 %v1992
      %v2072 = vunpack.c.h.b16 %v1992
      %v2073 = vunpack.c.l.b16 %v1993
      %v2074 = vunpack.c.h.b16 %v1993
      %v2075 = vunpack.c.l.b16 %v1994
      %v2076 = vunpack.c.h.b16 %v1994
      %v2077 = vunpack.c.l.b16 %v1995
      %v2078 = vunpack.c.h.b16 %v1995
      %v2079 = vunpack.c.l.b16 %v1996
      %v2080 = vunpack.c.h.b16 %v1996
      %v2081 = vunpack.c.l.b16 %v1997
      %v2082 = vunpack.c.h.b16 %v1997
      %v2083 = vunpack.c.l.b16 %v1998
      %v2084 = vunpack.c.h.b16 %v1998
      %v2085 = vunpack.c.l.b16 %v1999
      %v2086 = vunpack.c.h.b16 %v1999
      %v2087 = vunpack.c.l.b16 %v2000
      %v2088 = vunpack.c.h.b16 %v2000
      %v2089 = vunpack.c.l.b16 %v2001
      %v2090 = vunpack.c.h.b16 %v2001
      %v2091 = vunpack.c.l.b16 %v2002
      %v2092 = vunpack.c.h.b16 %v2002
      %v2093 = vunpack.c.l.b16 %v2003
      %v2094 = vunpack.c.h.b16 %v2003
      %v2095 = vunpack.c.l.b16 %v2004
      %v2096 = vunpack.c.h.b16 %v2004
      %v2097 = vunpack.c.l.b16 %v2005
      %v2098 = vunpack.c.h.b16 %v2005
      %v2099 = vunpack.c.l.b16 %v2006
      %v2100 = vunpack.c.h.b16 %v2006
      %v2101 = vunpack.c.l.b16 %v2007
      %v2102 = vunpack.c.h.b16 %v2007
      %v2103 = vunpack.c.l.b16 %v2008
      %v2104 = vunpack.c.h.b16 %v2008
      %v2105 = vunpack.c.l.b16 %v2009
      %v2106 = vunpack.c.h.b16 %v2009
      %v2107 = vunpack.c.l.b16 %v2010
      %v2108 = vunpack.c.h.b16 %v2010
      %v2109 = vunpack.c.l.b16 %v2011
      %v2110 = vunpack.c.h.b16 %v2011
      %v2111 = vunpack.c.l.b16 %v2012
      %v2112 = vunpack.c.h.b16 %v2012
      %v2113 = vunpack.c.l.b16 %v2013
      %v2114 = vunpack.c.h.b16 %v2013
      %v2115 = vunpack.c.l.b16 %v2014
      %v2116 = vunpack.c.h.b16 %v2014
      %v2117 = vunpack.c.l.b16 %v2015
      %v2118 = vunpack.c.h.b16 %v2015
      %v2119 = vunpack.c.l.b16 %v2016
      %v2120 = vunpack.c.h.b16 %v2016
      %v2121 = vunpack.c.l.b16 %v2017
      %v2122 = vunpack.c.h.b16 %v2017
      %v2123 = vunpack.c.l.b16 %v2018
      %v2124 = vunpack.c.h.b16 %v2018
      %v2125 = vunpack.c.l.b16 %v2019
      %v2126 = vunpack.c.h.b16 %v2019
      %v2127 = vunpack.c.l.b16 %v2020
      %v2128 = vunpack.c.h.b16 %v2020
      %v2129 = vpack.c.b16 %v2067, %v2065
      %v2130 = vpack.c.b16 %v2068, %v2066
      %v2131 = vpack.c.b16 %v2071, %v2069
      %v2132 = vpack.c.b16 %v2072, %v2070
      %v2133 = vpack.c.b16 %v2075, %v2073
      %v2134 = vpack.c.b16 %v2076, %v2074
      %v2135 = vpack.c.b16 %v2079, %v2077
      %v2136 = vpack.c.b16 %v2080, %v2078
      %v2137 = vpack.c.b16 %v2083, %v2081
      %v2138 = vpack.c.b16 %v2084, %v2082
      %v2139 = vpack.c.b16 %v2087, %v2085
      %v2140 = vpack.c.b16 %v2088, %v2086
      %v2141 = vpack.c.b16 %v2091, %v2089
      %v2142 = vpack.c.b16 %v2092, %v2090
      %v2143 = vpack.c.b16 %v2095, %v2093
      %v2144 = vpack.c.b16 %v2096, %v2094
      %v2145 = vpack.c.b16 %v2099, %v2097
      %v2146 = vpack.c.b16 %v2100, %v2098
      %v2147 = vpack.c.b16 %v2103, %v2101
      %v2148 = vpack.c.b16 %v2104, %v2102
      %v2149 = vpack.c.b16 %v2107, %v2105
      %v2150 = vpack.c.b16 %v2108, %v2106
      %v2151 = vpack.c.b16 %v2111, %v2109
      %v2152 = vpack.c.b16 %v2112, %v2110
      %v2153 = vpack.c.b16 %v2115, %v2113
      %v2154 = vpack.c.b16 %v2116, %v2114
      %v2155 = vpack.c.b16 %v2119, %v2117
      %v2156 = vpack.c.b16 %v2120, %v2118
      %v2157 = vpack.c.b16 %v2123, %v2121
      %v2158 = vpack.c.b16 %v2124, %v2122
      %v2159 = vpack.c.b16 %v2127, %v2125
      %v2160 = vpack.c.b16 %v2128, %v2126
      %2193 = vmatprep.subr.bf16.mxu0 %v2144
      %2194 = vmatpush1.bf16.msra.mxu0 %v2143
      %2195 = vmatprep.subr.bf16.mxu0 %v2142
      %2196 = vmatpush1.bf16.msra.mxu0 %v2141
      %2197 = vmatprep.subr.bf16.mxu0 %v2140
      %2198 = vmatpush1.bf16.msra.mxu0 %v2139
      %2199 = vmatprep.subr.bf16.mxu0 %v2138
      %2200 = vmatpush1.bf16.msra.mxu0 %v2137
      %2201 = vmatprep.subr.bf16.mxu0 %v2136
      %2202 = vmatpush1.bf16.msra.mxu0 %v2135
      %2203 = vmatprep.subr.bf16.mxu0 %v2134
      %2204 = vmatpush1.bf16.msra.mxu0 %v2133
      %2205 = vmatprep.subr.bf16.mxu0 %v2132
      %2206 = vmatpush1.bf16.msra.mxu0 %v2131
      %2207 = vmatprep.subr.bf16.mxu0 %v2130
      %2208 = vmatpush1.bf16.msra.mxu0 %v2129
      %2209 = vmatprep.subr.bf16.mxu0 %v2160
      %2210 = vmatpush2.bf16.msra.mxu0 %v2159
      %2211 = vmatprep.subr.bf16.mxu0 %v2158
      %2212 = vmatpush2.bf16.msra.mxu0 %v2157
      %2213 = vmatprep.subr.bf16.mxu0 %v2156
      %2214 = vmatpush2.bf16.msra.mxu0 %v2155
      %2215 = vmatprep.subr.bf16.mxu0 %v2154
      %2216 = vmatpush2.bf16.msra.mxu0 %v2153
      %2217 = vmatprep.subr.bf16.mxu0 %v2152
      %2218 = vmatpush2.bf16.msra.mxu0 %v2151
      %2219 = vmatprep.subr.bf16.mxu0 %v2150
      %2220 = vmatpush2.bf16.msra.mxu0 %v2149
      %2221 = vmatprep.subr.bf16.mxu0 %v2148
      %2222 = vmatpush2.bf16.msra.mxu0 %v2147
      %2223 = vmatprep.subr.bf16.mxu0 %v2146
      %2224 = vmatpush2.bf16.msra.mxu0 %v2145
      %2225 = vmatprep.mubr.bf16.mxu0 %v1862
      %2226 = vmatmul.mubr.bf16.gmra.mxu0 %v1861
      %v2227 = vpop.f32.mrf.mxu0
      %v2228 = vadd.f32 %v2026, %v2227
      %v2229 = vpop.f32.mrf.mxu0
      %v2230 = vadd.f32 %v2030, %v2229
      %v2231 = vpop.f32.mrf.mxu0
      %v2232 = vadd.f32 %v2026, %v2231
      %v2233 = vpop.f32.mrf.mxu0
      %v2234 = vadd.f32 %v2030, %v2233
      %2235 = vmatprep.mubr.bf16.mxu0 %v1864
      %2236 = vmatmul.mubr.bf16.gmra.mxu0 %v1863
      %v2237 = vpop.f32.mrf.mxu0
      %v2238 = vadd.f32 %v2026, %v2237
      %v2239 = vpop.f32.mrf.mxu0
      %v2240 = vadd.f32 %v2030, %v2239
      %v2241 = vpop.f32.mrf.mxu0
      %v2242 = vadd.f32 %v2026, %v2241
      %v2243 = vpop.f32.mrf.mxu0
      %v2244 = vadd.f32 %v2030, %v2243
      %2245 = vmatprep.mubr.bf16.mxu0 %v1866
      %2246 = vmatmul.mubr.bf16.gmra.mxu0 %v1865
      %v2247 = vpop.f32.mrf.mxu0
      %v2248 = vadd.f32 %v2026, %v2247
      %v2249 = vpop.f32.mrf.mxu0
      %v2250 = vadd.f32 %v2030, %v2249
      %v2251 = vpop.f32.mrf.mxu0
      %v2252 = vadd.f32 %v2026, %v2251
      %v2253 = vpop.f32.mrf.mxu0
      %v2254 = vadd.f32 %v2030, %v2253
      %2255 = vmatprep.mubr.bf16.mxu0 %v1868
      %2256 = vmatmul.mubr.bf16.gmra.mxu0 %v1867
      %v2257 = vpop.f32.mrf.mxu0
      %v2258 = vadd.f32 %v2026, %v2257
      %v2259 = vpop.f32.mrf.mxu0
      %v2260 = vadd.f32 %v2030, %v2259
      %v2261 = vpop.f32.mrf.mxu0
      %v2262 = vadd.f32 %v2026, %v2261
      %v2263 = vpop.f32.mrf.mxu0
      %v2264 = vadd.f32 %v2030, %v2263
      %2265 = vmatprep.mubr.bf16.mxu0 %v1870
      %2266 = vmatmul.mubr.bf16.gmra.mxu0 %v1869
      %v2267 = vpop.f32.mrf.mxu0
      %v2268 = vadd.f32 %v2026, %v2267
      %v2269 = vpop.f32.mrf.mxu0
      %v2270 = vadd.f32 %v2030, %v2269
      %v2271 = vpop.f32.mrf.mxu0
      %v2272 = vadd.f32 %v2026, %v2271
      %v2273 = vpop.f32.mrf.mxu0
      %v2274 = vadd.f32 %v2030, %v2273
      %2275 = vmatprep.mubr.bf16.mxu0 %v1872
      %2276 = vmatmul.mubr.bf16.gmra.mxu0 %v1871
      %v2277 = vpop.f32.mrf.mxu0
      %v2278 = vadd.f32 %v2026, %v2277
      %v2279 = vpop.f32.mrf.mxu0
      %v2280 = vadd.f32 %v2030, %v2279
      %v2281 = vpop.f32.mrf.mxu0
      %v2282 = vadd.f32 %v2026, %v2281
      %v2283 = vpop.f32.mrf.mxu0
      %v2284 = vadd.f32 %v2030, %v2283
      %2285 = vmatprep.mubr.bf16.mxu0 %v1874
      %2286 = vmatmul.mubr.bf16.gmra.mxu0 %v1873
      %v2287 = vpop.f32.mrf.mxu0
      %v2288 = vadd.f32 %v2026, %v2287
      %v2289 = vpop.f32.mrf.mxu0
      %v2290 = vadd.f32 %v2030, %v2289
      %v2291 = vpop.f32.mrf.mxu0
      %v2292 = vadd.f32 %v2026, %v2291
      %v2293 = vpop.f32.mrf.mxu0
      %v2294 = vadd.f32 %v2030, %v2293
      %2295 = vmatprep.mubr.bf16.mxu0 %v1876
      %2296 = vmatmul.mubr.bf16.gmra.mxu0 %v1875
      %v2297 = vpop.f32.mrf.mxu0
      %v2298 = vadd.f32 %v2026, %v2297
      %v2299 = vpop.f32.mrf.mxu0
      %v2300 = vadd.f32 %v2030, %v2299
      %v2301 = vpop.f32.mrf.mxu0
      %v2302 = vadd.f32 %v2026, %v2301
      %v2303 = vpop.f32.mrf.mxu0
      %v2304 = vadd.f32 %v2030, %v2303
      %2305 = vmatprep.mubr.bf16.mxu0 %v1878
      %2306 = vmatmul.mubr.bf16.gmra.mxu0 %v1877
      %v2307 = vpop.f32.mrf.mxu0
      %v2308 = vadd.f32 %v2026, %v2307
      %v2309 = vpop.f32.mrf.mxu0
      %v2310 = vadd.f32 %v2030, %v2309
      %v2311 = vpop.f32.mrf.mxu0
      %v2312 = vadd.f32 %v2026, %v2311
      %v2313 = vpop.f32.mrf.mxu0
      %v2314 = vadd.f32 %v2030, %v2313
      %2315 = vmatprep.mubr.bf16.mxu0 %v1880
      %2316 = vmatmul.mubr.bf16.gmra.mxu0 %v1879
      %v2317 = vpop.f32.mrf.mxu0
      %v2318 = vadd.f32 %v2026, %v2317
      %v2319 = vpop.f32.mrf.mxu0
      %v2320 = vadd.f32 %v2030, %v2319
      %v2321 = vpop.f32.mrf.mxu0
      %v2322 = vadd.f32 %v2026, %v2321
      %v2323 = vpop.f32.mrf.mxu0
      %v2324 = vadd.f32 %v2030, %v2323
      %2325 = vmatprep.mubr.bf16.mxu0 %v1882
      %2326 = vmatmul.mubr.bf16.gmra.mxu0 %v1881
      %v2327 = vpop.f32.mrf.mxu0
      %v2328 = vadd.f32 %v2026, %v2327
      %v2329 = vpop.f32.mrf.mxu0
      %v2330 = vadd.f32 %v2030, %v2329
      %v2331 = vpop.f32.mrf.mxu0
      %v2332 = vadd.f32 %v2026, %v2331
      %v2333 = vpop.f32.mrf.mxu0
      %v2334 = vadd.f32 %v2030, %v2333
      %2335 = vmatprep.mubr.bf16.mxu0 %v1884
      %2336 = vmatmul.mubr.bf16.gmra.mxu0 %v1883
      %v2337 = vpop.f32.mrf.mxu0
      %v2338 = vadd.f32 %v2026, %v2337
      %v2339 = vpop.f32.mrf.mxu0
      %v2340 = vadd.f32 %v2030, %v2339
      %v2341 = vpop.f32.mrf.mxu0
      %v2342 = vadd.f32 %v2026, %v2341
      %v2343 = vpop.f32.mrf.mxu0
      %v2344 = vadd.f32 %v2030, %v2343
      %2345 = vmatprep.mubr.bf16.mxu0 %v1886
      %2346 = vmatmul.mubr.bf16.gmra.mxu0 %v1885
      %v2347 = vpop.f32.mrf.mxu0
      %v2348 = vadd.f32 %v2026, %v2347
      %v2349 = vpop.f32.mrf.mxu0
      %v2350 = vadd.f32 %v2030, %v2349
      %v2351 = vpop.f32.mrf.mxu0
      %v2352 = vadd.f32 %v2026, %v2351
      %v2353 = vpop.f32.mrf.mxu0
      %v2354 = vadd.f32 %v2030, %v2353
      %2355 = vmatprep.mubr.bf16.mxu0 %v1888
      %2356 = vmatmul.mubr.bf16.gmra.mxu0 %v1887
      %v2357 = vpop.f32.mrf.mxu0
      %v2358 = vadd.f32 %v2026, %v2357
      %v2359 = vpop.f32.mrf.mxu0
      %v2360 = vadd.f32 %v2030, %v2359
      %v2361 = vpop.f32.mrf.mxu0
      %v2362 = vadd.f32 %v2026, %v2361
      %v2363 = vpop.f32.mrf.mxu0
      %v2364 = vadd.f32 %v2030, %v2363
      %2365 = vmatprep.mubr.bf16.mxu0 %v1890
      %2366 = vmatmul.mubr.bf16.gmra.mxu0 %v1889
      %v2367 = vpop.f32.mrf.mxu0
      %v2368 = vadd.f32 %v2026, %v2367
      %v2369 = vpop.f32.mrf.mxu0
      %v2370 = vadd.f32 %v2030, %v2369
      %v2371 = vpop.f32.mrf.mxu0
      %v2372 = vadd.f32 %v2026, %v2371
      %v2373 = vpop.f32.mrf.mxu0
      %v2374 = vadd.f32 %v2030, %v2373
      %2375 = vmatprep.mubr.bf16.mxu0 %v1892
      %2376 = vmatmul.mubr.bf16.gmra.mxu0 %v1891
      %v2377 = vpop.f32.mrf.mxu0
      %v2378 = vadd.f32 %v2026, %v2377
      %v2379 = vpop.f32.mrf.mxu0
      %v2380 = vadd.f32 %v2030, %v2379
      %v2381 = vpop.f32.mrf.mxu0
      %v2382 = vadd.f32 %v2026, %v2381
      %v2383 = vpop.f32.mrf.mxu0
      %v2384 = vadd.f32 %v2030, %v2383
      %2385 = vmatprep.mubr.bf16.mxu0 %v1894
      %2386 = vmatmul.mubr.bf16.gmra.mxu0 %v1893
      %v2387 = vpop.f32.mrf.mxu0
      %v2388 = vadd.f32 %v2026, %v2387
      %v2389 = vpop.f32.mrf.mxu0
      %v2390 = vadd.f32 %v2030, %v2389
      %v2391 = vpop.f32.mrf.mxu0
      %v2392 = vadd.f32 %v2026, %v2391
      %v2393 = vpop.f32.mrf.mxu0
      %v2394 = vadd.f32 %v2030, %v2393
      %2395 = vmatprep.mubr.bf16.mxu0 %v1896
      %2396 = vmatmul.mubr.bf16.gmra.mxu0 %v1895
      %v2397 = vpop.f32.mrf.mxu0
      %v2398 = vadd.f32 %v2026, %v2397
      %v2399 = vpop.f32.mrf.mxu0
      %v2400 = vadd.f32 %v2030, %v2399
      %v2401 = vpop.f32.mrf.mxu0
      %v2402 = vadd.f32 %v2026, %v2401
      %v2403 = vpop.f32.mrf.mxu0
      %v2404 = vadd.f32 %v2030, %v2403
      %2405 = vmatprep.mubr.bf16.mxu0 %v1898
      %2406 = vmatmul.mubr.bf16.gmra.mxu0 %v1897
      %v2407 = vpop.f32.mrf.mxu0
      %v2408 = vadd.f32 %v2026, %v2407
      %v2409 = vpop.f32.mrf.mxu0
      %v2410 = vadd.f32 %v2030, %v2409
      %v2411 = vpop.f32.mrf.mxu0
      %v2412 = vadd.f32 %v2026, %v2411
      %v2413 = vpop.f32.mrf.mxu0
      %v2414 = vadd.f32 %v2030, %v2413
      %2415 = vmatprep.mubr.bf16.mxu0 %v1900
      %2416 = vmatmul.mubr.bf16.gmra.mxu0 %v1899
      %v2417 = vpop.f32.mrf.mxu0
      %v2418 = vadd.f32 %v2026, %v2417
      %v2419 = vpop.f32.mrf.mxu0
      %v2420 = vadd.f32 %v2030, %v2419
      %v2421 = vpop.f32.mrf.mxu0
      %v2422 = vadd.f32 %v2026, %v2421
      %v2423 = vpop.f32.mrf.mxu0
      %v2424 = vadd.f32 %v2030, %v2423
      %2425 = vmatprep.mubr.bf16.mxu0 %v1902
      %2426 = vmatmul.mubr.bf16.gmra.mxu0 %v1901
      %v2427 = vpop.f32.mrf.mxu0
      %v2428 = vadd.f32 %v2026, %v2427
      %v2429 = vpop.f32.mrf.mxu0
      %v2430 = vadd.f32 %v2030, %v2429
      %v2431 = vpop.f32.mrf.mxu0
      %v2432 = vadd.f32 %v2026, %v2431
      %v2433 = vpop.f32.mrf.mxu0
      %v2434 = vadd.f32 %v2030, %v2433
      %2435 = vmatprep.mubr.bf16.mxu0 %v1904
      %2436 = vmatmul.mubr.bf16.gmra.mxu0 %v1903
      %v2437 = vpop.f32.mrf.mxu0
      %v2438 = vadd.f32 %v2026, %v2437
      %v2439 = vpop.f32.mrf.mxu0
      %v2440 = vadd.f32 %v2030, %v2439
      %v2441 = vpop.f32.mrf.mxu0
      %v2442 = vadd.f32 %v2026, %v2441
      %v2443 = vpop.f32.mrf.mxu0
      %v2444 = vadd.f32 %v2030, %v2443
      %2445 = vmatprep.mubr.bf16.mxu0 %v1906
      %2446 = vmatmul.mubr.bf16.gmra.mxu0 %v1905
      %v2447 = vpop.f32.mrf.mxu0
      %v2448 = vadd.f32 %v2026, %v2447
      %v2449 = vpop.f32.mrf.mxu0
      %v2450 = vadd.f32 %v2030, %v2449
      %v2451 = vpop.f32.mrf.mxu0
      %v2452 = vadd.f32 %v2026, %v2451
      %v2453 = vpop.f32.mrf.mxu0
      %v2454 = vadd.f32 %v2030, %v2453
      %2455 = vmatprep.mubr.bf16.mxu0 %v1908
      %2456 = vmatmul.mubr.bf16.gmra.mxu0 %v1907
      %v2457 = vpop.f32.mrf.mxu0
      %v2458 = vadd.f32 %v2026, %v2457
      %v2459 = vpop.f32.mrf.mxu0
      %v2460 = vadd.f32 %v2030, %v2459
      %v2461 = vpop.f32.mrf.mxu0
      %v2462 = vadd.f32 %v2026, %v2461
      %v2463 = vpop.f32.mrf.mxu0
      %v2464 = vadd.f32 %v2030, %v2463
      %2465 = vmatprep.mubr.bf16.mxu0 %v1910
      %2466 = vmatmul.mubr.bf16.gmra.mxu0 %v1909
      %v2467 = vpop.f32.mrf.mxu0
      %v2468 = vadd.f32 %v2026, %v2467
      %v2469 = vpop.f32.mrf.mxu0
      %v2470 = vadd.f32 %v2030, %v2469
      %v2471 = vpop.f32.mrf.mxu0
      %v2472 = vadd.f32 %v2026, %v2471
      %v2473 = vpop.f32.mrf.mxu0
      %v2474 = vadd.f32 %v2030, %v2473
      %2475 = vmatprep.mubr.bf16.mxu0 %v1912
      %2476 = vmatmul.mubr.bf16.gmra.mxu0 %v1911
      %v2477 = vpop.f32.mrf.mxu0
      %v2478 = vadd.f32 %v2026, %v2477
      %v2479 = vpop.f32.mrf.mxu0
      %v2480 = vadd.f32 %v2030, %v2479
      %v2481 = vpop.f32.mrf.mxu0
      %v2482 = vadd.f32 %v2026, %v2481
      %v2483 = vpop.f32.mrf.mxu0
      %v2484 = vadd.f32 %v2030, %v2483
      %2485 = vmatprep.mubr.bf16.mxu0 %v1914
      %2486 = vmatmul.mubr.bf16.gmra.mxu0 %v1913
      %v2487 = vpop.f32.mrf.mxu0
      %v2488 = vadd.f32 %v2026, %v2487
      %v2489 = vpop.f32.mrf.mxu0
      %v2490 = vadd.f32 %v2030, %v2489
      %v2491 = vpop.f32.mrf.mxu0
      %v2492 = vadd.f32 %v2026, %v2491
      %v2493 = vpop.f32.mrf.mxu0
      %v2494 = vadd.f32 %v2030, %v2493
      %2495 = vmatprep.mubr.bf16.mxu0 %v1916
      %2496 = vmatmul.mubr.bf16.gmra.mxu0 %v1915
      %v2497 = vpop.f32.mrf.mxu0
      %v2498 = vadd.f32 %v2026, %v2497
      %v2499 = vpop.f32.mrf.mxu0
      %v2500 = vadd.f32 %v2030, %v2499
      %v2501 = vpop.f32.mrf.mxu0
      %v2502 = vadd.f32 %v2026, %v2501
      %v2503 = vpop.f32.mrf.mxu0
      %v2504 = vadd.f32 %v2030, %v2503
      %2505 = vmatprep.mubr.bf16.mxu0 %v1918
      %2506 = vmatmul.mubr.bf16.gmra.mxu0 %v1917
      %v2507 = vpop.f32.mrf.mxu0
      %v2508 = vadd.f32 %v2026, %v2507
      %v2509 = vpop.f32.mrf.mxu0
      %v2510 = vadd.f32 %v2030, %v2509
      %v2511 = vpop.f32.mrf.mxu0
      %v2512 = vadd.f32 %v2026, %v2511
      %v2513 = vpop.f32.mrf.mxu0
      %v2514 = vadd.f32 %v2030, %v2513
      %2515 = vmatprep.mubr.bf16.mxu0 %v1920
      %2516 = vmatmul.mubr.bf16.gmra.mxu0 %v1919
      %v2517 = vpop.f32.mrf.mxu0
      %v2518 = vadd.f32 %v2026, %v2517
      %v2519 = vpop.f32.mrf.mxu0
      %v2520 = vadd.f32 %v2030, %v2519
      %v2521 = vpop.f32.mrf.mxu0
      %v2522 = vadd.f32 %v2026, %v2521
      %v2523 = vpop.f32.mrf.mxu0
      %v2524 = vadd.f32 %v2030, %v2523
      %2525 = vmatprep.mubr.bf16.mxu0 %v1922
      %2526 = vmatmul.mubr.bf16.gmra.mxu0 %v1921
      %v2527 = vpop.f32.mrf.mxu0
      %v2528 = vadd.f32 %v2026, %v2527
      %v2529 = vpop.f32.mrf.mxu0
      %v2530 = vadd.f32 %v2030, %v2529
      %v2531 = vpop.f32.mrf.mxu0
      %v2532 = vadd.f32 %v2026, %v2531
      %v2533 = vpop.f32.mrf.mxu0
      %v2534 = vadd.f32 %v2030, %v2533
      %2535 = vmatprep.mubr.bf16.mxu0 %v1924
      %2536 = vmatmul.mubr.bf16.gmra.mxu0 %v1923
      %v2537 = vpop.f32.mrf.mxu0
      %v2538 = vadd.f32 %v2026, %v2537
      %v2539 = vpop.f32.mrf.mxu0
      %v2540 = vadd.f32 %v2030, %v2539
      %v2541 = vpop.f32.mrf.mxu0
      %v2542 = vadd.f32 %v2026, %v2541
      %v2543 = vpop.f32.mrf.mxu0
      %v2544 = vadd.f32 %v2030, %v2543
      %2545 = vmatprep.mubr.bf16.mxu0 %v1926
      %2546 = vmatmul.mubr.bf16.gmra.mxu0 %v1925
      %v2547 = vpop.f32.mrf.mxu0
      %v2548 = vadd.f32 %v2026, %v2547
      %v2549 = vpop.f32.mrf.mxu0
      %v2550 = vadd.f32 %v2030, %v2549
      %v2551 = vpop.f32.mrf.mxu0
      %v2552 = vadd.f32 %v2026, %v2551
      %v2553 = vpop.f32.mrf.mxu0
      %v2554 = vadd.f32 %v2030, %v2553
      %2555 = vmatprep.mubr.bf16.mxu0 %v1928
      %2556 = vmatmul.mubr.bf16.gmra.mxu0 %v1927
      %v2557 = vpop.f32.mrf.mxu0
      %v2558 = vadd.f32 %v2026, %v2557
      %v2559 = vpop.f32.mrf.mxu0
      %v2560 = vadd.f32 %v2030, %v2559
      %v2561 = vpop.f32.mrf.mxu0
      %v2562 = vadd.f32 %v2026, %v2561
      %v2563 = vpop.f32.mrf.mxu0
      %v2564 = vadd.f32 %v2030, %v2563
      %2565 = vmatprep.mubr.bf16.mxu0 %v1930
      %2566 = vmatmul.mubr.bf16.gmra.mxu0 %v1929
      %v2567 = vpop.f32.mrf.mxu0
      %v2568 = vadd.f32 %v2026, %v2567
      %v2569 = vpop.f32.mrf.mxu0
      %v2570 = vadd.f32 %v2030, %v2569
      %v2571 = vpop.f32.mrf.mxu0
      %v2572 = vadd.f32 %v2026, %v2571
      %v2573 = vpop.f32.mrf.mxu0
      %v2574 = vadd.f32 %v2030, %v2573
      %2575 = vmatprep.mubr.bf16.mxu0 %v1932
      %2576 = vmatmul.mubr.bf16.gmra.mxu0 %v1931
      %v2577 = vpop.f32.mrf.mxu0
      %v2578 = vadd.f32 %v2026, %v2577
      %v2579 = vpop.f32.mrf.mxu0
      %v2580 = vadd.f32 %v2030, %v2579
      %v2581 = vpop.f32.mrf.mxu0
      %v2582 = vadd.f32 %v2026, %v2581
      %v2583 = vpop.f32.mrf.mxu0
      %v2584 = vadd.f32 %v2030, %v2583
      %2585 = vmatprep.mubr.bf16.mxu0 %v1934
      %2586 = vmatmul.mubr.bf16.gmra.mxu0 %v1933
      %v2587 = vpop.f32.mrf.mxu0
      %v2588 = vadd.f32 %v2026, %v2587
      %v2589 = vpop.f32.mrf.mxu0
      %v2590 = vadd.f32 %v2030, %v2589
      %v2591 = vpop.f32.mrf.mxu0
      %v2592 = vadd.f32 %v2026, %v2591
      %v2593 = vpop.f32.mrf.mxu0
      %v2594 = vadd.f32 %v2030, %v2593
      %2595 = vmatprep.mubr.bf16.mxu0 %v1936
      %2596 = vmatmul.mubr.bf16.gmra.mxu0 %v1935
      %v2597 = vpop.f32.mrf.mxu0
      %v2598 = vadd.f32 %v2026, %v2597
      %v2599 = vpop.f32.mrf.mxu0
      %v2600 = vadd.f32 %v2030, %v2599
      %v2601 = vpop.f32.mrf.mxu0
      %v2602 = vadd.f32 %v2026, %v2601
      %v2603 = vpop.f32.mrf.mxu0
      %v2604 = vadd.f32 %v2030, %v2603
      %2605 = vmatprep.mubr.bf16.mxu0 %v1938
      %2606 = vmatmul.mubr.bf16.gmra.mxu0 %v1937
      %v2607 = vpop.f32.mrf.mxu0
      %v2608 = vadd.f32 %v2026, %v2607
      %v2609 = vpop.f32.mrf.mxu0
      %v2610 = vadd.f32 %v2030, %v2609
      %v2611 = vpop.f32.mrf.mxu0
      %v2612 = vadd.f32 %v2026, %v2611
      %v2613 = vpop.f32.mrf.mxu0
      %v2614 = vadd.f32 %v2030, %v2613
      %2615 = vmatprep.mubr.bf16.mxu0 %v1940
      %2616 = vmatmul.mubr.bf16.gmra.mxu0 %v1939
      %v2617 = vpop.f32.mrf.mxu0
      %v2618 = vadd.f32 %v2026, %v2617
      %v2619 = vpop.f32.mrf.mxu0
      %v2620 = vadd.f32 %v2030, %v2619
      %v2621 = vpop.f32.mrf.mxu0
      %v2622 = vadd.f32 %v2026, %v2621
      %v2623 = vpop.f32.mrf.mxu0
      %v2624 = vadd.f32 %v2030, %v2623
      %2625 = vmatprep.mubr.bf16.mxu0 %v1942
      %2626 = vmatmul.mubr.bf16.gmra.mxu0 %v1941
      %v2627 = vpop.f32.mrf.mxu0
      %v2628 = vadd.f32 %v2026, %v2627
      %v2629 = vpop.f32.mrf.mxu0
      %v2630 = vadd.f32 %v2030, %v2629
      %v2631 = vpop.f32.mrf.mxu0
      %v2632 = vadd.f32 %v2026, %v2631
      %v2633 = vpop.f32.mrf.mxu0
      %v2634 = vadd.f32 %v2030, %v2633
      %2635 = vmatprep.mubr.bf16.mxu0 %v1944
      %2636 = vmatmul.mubr.bf16.gmra.mxu0 %v1943
      %v2637 = vpop.f32.mrf.mxu0
      %v2638 = vadd.f32 %v2026, %v2637
      %v2639 = vpop.f32.mrf.mxu0
      %v2640 = vadd.f32 %v2030, %v2639
      %v2641 = vpop.f32.mrf.mxu0
      %v2642 = vadd.f32 %v2026, %v2641
      %v2643 = vpop.f32.mrf.mxu0
      %v2644 = vadd.f32 %v2030, %v2643
      %2645 = vmatprep.mubr.bf16.mxu0 %v1946
      %2646 = vmatmul.mubr.bf16.gmra.mxu0 %v1945
      %v2647 = vpop.f32.mrf.mxu0
      %v2648 = vadd.f32 %v2026, %v2647
      %v2649 = vpop.f32.mrf.mxu0
      %v2650 = vadd.f32 %v2030, %v2649
      %v2651 = vpop.f32.mrf.mxu0
      %v2652 = vadd.f32 %v2026, %v2651
      %v2653 = vpop.f32.mrf.mxu0
      %v2654 = vadd.f32 %v2030, %v2653
      %2655 = vmatprep.mubr.bf16.mxu0 %v1948
      %2656 = vmatmul.mubr.bf16.gmra.mxu0 %v1947
      %v2657 = vpop.f32.mrf.mxu0
      %v2658 = vadd.f32 %v2026, %v2657
      %v2659 = vpop.f32.mrf.mxu0
      %v2660 = vadd.f32 %v2030, %v2659
      %v2661 = vpop.f32.mrf.mxu0
      %v2662 = vadd.f32 %v2026, %v2661
      %v2663 = vpop.f32.mrf.mxu0
      %v2664 = vadd.f32 %v2030, %v2663
      %2665 = vmatprep.mubr.bf16.mxu0 %v1950
      %2666 = vmatmul.mubr.bf16.gmra.mxu0 %v1949
      %v2667 = vpop.f32.mrf.mxu0
      %v2668 = vadd.f32 %v2026, %v2667
      %v2669 = vpop.f32.mrf.mxu0
      %v2670 = vadd.f32 %v2030, %v2669
      %v2671 = vpop.f32.mrf.mxu0
      %v2672 = vadd.f32 %v2026, %v2671
      %v2673 = vpop.f32.mrf.mxu0
      %v2674 = vadd.f32 %v2030, %v2673
      %2675 = vmatprep.mubr.bf16.mxu0 %v1952
      %2676 = vmatmul.mubr.bf16.gmra.mxu0 %v1951
      %v2677 = vpop.f32.mrf.mxu0
      %v2678 = vadd.f32 %v2026, %v2677
      %v2679 = vpop.f32.mrf.mxu0
      %v2680 = vadd.f32 %v2030, %v2679
      %v2681 = vpop.f32.mrf.mxu0
      %v2682 = vadd.f32 %v2026, %v2681
      %v2683 = vpop.f32.mrf.mxu0
      %v2684 = vadd.f32 %v2030, %v2683
      %2685 = vmatprep.mubr.bf16.mxu0 %v1954
      %2686 = vmatmul.mubr.bf16.gmra.mxu0 %v1953
      %v2687 = vpop.f32.mrf.mxu0
      %v2688 = vadd.f32 %v2026, %v2687
      %v2689 = vpop.f32.mrf.mxu0
      %v2690 = vadd.f32 %v2030, %v2689
      %v2691 = vpop.f32.mrf.mxu0
      %v2692 = vadd.f32 %v2026, %v2691
      %v2693 = vpop.f32.mrf.mxu0
      %v2694 = vadd.f32 %v2030, %v2693
      %2695 = vmatprep.mubr.bf16.mxu0 %v1956
      %2696 = vmatmul.mubr.bf16.gmra.mxu0 %v1955
      %v2697 = vpop.f32.mrf.mxu0
      %v2698 = vadd.f32 %v2026, %v2697
      %v2699 = vpop.f32.mrf.mxu0
      %v2700 = vadd.f32 %v2030, %v2699
      %v2701 = vpop.f32.mrf.mxu0
      %v2702 = vadd.f32 %v2026, %v2701
      %v2703 = vpop.f32.mrf.mxu0
      %v2704 = vadd.f32 %v2030, %v2703
      %2705 = vmatprep.mubr.bf16.mxu0 %v1958
      %2706 = vmatmul.mubr.bf16.gmra.mxu0 %v1957
      %v2707 = vpop.f32.mrf.mxu0
      %v2708 = vadd.f32 %v2026, %v2707
      %v2709 = vpop.f32.mrf.mxu0
      %v2710 = vadd.f32 %v2030, %v2709
      %v2711 = vpop.f32.mrf.mxu0
      %v2712 = vadd.f32 %v2026, %v2711
      %v2713 = vpop.f32.mrf.mxu0
      %v2714 = vadd.f32 %v2030, %v2713
      %2715 = vmatprep.mubr.bf16.mxu0 %v1960
      %2716 = vmatmul.mubr.bf16.gmra.mxu0 %v1959
      %v2717 = vpop.f32.mrf.mxu0
      %v2718 = vadd.f32 %v2026, %v2717
      %v2719 = vpop.f32.mrf.mxu0
      %v2720 = vadd.f32 %v2030, %v2719
      %v2721 = vpop.f32.mrf.mxu0
      %v2722 = vadd.f32 %v2026, %v2721
      %v2723 = vpop.f32.mrf.mxu0
      %v2724 = vadd.f32 %v2030, %v2723
      %2725 = vmatprep.mubr.bf16.mxu0 %v1962
      %2726 = vmatmul.mubr.bf16.gmra.mxu0 %v1961
      %v2727 = vpop.f32.mrf.mxu0
      %v2728 = vadd.f32 %v2026, %v2727
      %v2729 = vpop.f32.mrf.mxu0
      %v2730 = vadd.f32 %v2030, %v2729
      %v2731 = vpop.f32.mrf.mxu0
      %v2732 = vadd.f32 %v2026, %v2731
      %v2733 = vpop.f32.mrf.mxu0
      %v2734 = vadd.f32 %v2030, %v2733
      %2735 = vmatprep.mubr.bf16.mxu0 %v1964
      %2736 = vmatmul.mubr.bf16.gmra.mxu0 %v1963
      %v2737 = vpop.f32.mrf.mxu0
      %v2738 = vadd.f32 %v2026, %v2737
      %v2739 = vpop.f32.mrf.mxu0
      %v2740 = vadd.f32 %v2030, %v2739
      %v2741 = vpop.f32.mrf.mxu0
      %v2742 = vadd.f32 %v2026, %v2741
      %v2743 = vpop.f32.mrf.mxu0
      %v2744 = vadd.f32 %v2030, %v2743
      %2745 = vmatprep.mubr.bf16.mxu0 %v1966
      %2746 = vmatmul.mubr.bf16.gmra.mxu0 %v1965
      %v2747 = vpop.f32.mrf.mxu0
      %v2748 = vadd.f32 %v2026, %v2747
      %v2749 = vpop.f32.mrf.mxu0
      %v2750 = vadd.f32 %v2030, %v2749
      %v2751 = vpop.f32.mrf.mxu0
      %v2752 = vadd.f32 %v2026, %v2751
      %v2753 = vpop.f32.mrf.mxu0
      %v2754 = vadd.f32 %v2030, %v2753
      %2755 = vmatprep.mubr.bf16.mxu0 %v1968
      %2756 = vmatmul.mubr.bf16.gmra.mxu0 %v1967
      %v2757 = vpop.f32.mrf.mxu0
      %v2758 = vadd.f32 %v2026, %v2757
      %v2759 = vpop.f32.mrf.mxu0
      %v2760 = vadd.f32 %v2030, %v2759
      %v2761 = vpop.f32.mrf.mxu0
      %v2762 = vadd.f32 %v2026, %v2761
      %v2763 = vpop.f32.mrf.mxu0
      %v2764 = vadd.f32 %v2030, %v2763
      %2765 = vmatprep.mubr.bf16.mxu0 %v1970
      %2766 = vmatmul.mubr.bf16.gmra.mxu0 %v1969
      %v2767 = vpop.f32.mrf.mxu0
      %v2768 = vadd.f32 %v2026, %v2767
      %v2769 = vpop.f32.mrf.mxu0
      %v2770 = vadd.f32 %v2030, %v2769
      %v2771 = vpop.f32.mrf.mxu0
      %v2772 = vadd.f32 %v2026, %v2771
      %v2773 = vpop.f32.mrf.mxu0
      %v2774 = vadd.f32 %v2030, %v2773
      %2775 = vmatprep.mubr.bf16.mxu0 %v1972
      %2776 = vmatmul.mubr.bf16.gmra.mxu0 %v1971
      %v2777 = vpop.f32.mrf.mxu0
      %v2778 = vadd.f32 %v2026, %v2777
      %v2779 = vpop.f32.mrf.mxu0
      %v2780 = vadd.f32 %v2030, %v2779
      %v2781 = vpop.f32.mrf.mxu0
      %v2782 = vadd.f32 %v2026, %v2781
      %v2783 = vpop.f32.mrf.mxu0
      %v2784 = vadd.f32 %v2030, %v2783
      %2785 = vmatprep.mubr.bf16.mxu0 %v1974
      %2786 = vmatmul.mubr.bf16.gmra.mxu0 %v1973
      %v2787 = vpop.f32.mrf.mxu0
      %v2788 = vadd.f32 %v2026, %v2787
      %v2789 = vpop.f32.mrf.mxu0
      %v2790 = vadd.f32 %v2030, %v2789
      %v2791 = vpop.f32.mrf.mxu0
      %v2792 = vadd.f32 %v2026, %v2791
      %v2793 = vpop.f32.mrf.mxu0
      %v2794 = vadd.f32 %v2030, %v2793
      %2795 = vmatprep.mubr.bf16.mxu0 %v1976
      %2796 = vmatmul.mubr.bf16.gmra.mxu0 %v1975
      %v2797 = vpop.f32.mrf.mxu0
      %v2798 = vadd.f32 %v2026, %v2797
      %v2799 = vpop.f32.mrf.mxu0
      %v2800 = vadd.f32 %v2030, %v2799
      %v2801 = vpop.f32.mrf.mxu0
      %v2802 = vadd.f32 %v2026, %v2801
      %v2803 = vpop.f32.mrf.mxu0
      %v2804 = vadd.f32 %v2030, %v2803
      %2805 = vmatprep.mubr.bf16.mxu0 %v1978
      %2806 = vmatmul.mubr.bf16.gmra.mxu0 %v1977
      %v2807 = vpop.f32.mrf.mxu0
      %v2808 = vadd.f32 %v2026, %v2807
      %v2809 = vpop.f32.mrf.mxu0
      %v2810 = vadd.f32 %v2030, %v2809
      %v2811 = vpop.f32.mrf.mxu0
      %v2812 = vadd.f32 %v2026, %v2811
      %v2813 = vpop.f32.mrf.mxu0
      %v2814 = vadd.f32 %v2030, %v2813
      %2815 = vmatprep.mubr.bf16.mxu0 %v1980
      %2816 = vmatmul.mubr.bf16.gmra.mxu0 %v1979
      %v2817 = vpop.f32.mrf.mxu0
      %v2818 = vadd.f32 %v2026, %v2817
      %v2819 = vpop.f32.mrf.mxu0
      %v2820 = vadd.f32 %v2030, %v2819
      %v2821 = vpop.f32.mrf.mxu0
      %v2822 = vadd.f32 %v2026, %v2821
      %v2823 = vpop.f32.mrf.mxu0
      %v2824 = vadd.f32 %v2030, %v2823
      %2825 = vmatprep.mubr.bf16.mxu0 %v1982
      %2826 = vmatmul.mubr.bf16.gmra.mxu0 %v1981
      %v2827 = vpop.f32.mrf.mxu0
      %v2828 = vadd.f32 %v2026, %v2827
      %v2829 = vpop.f32.mrf.mxu0
      %v2830 = vadd.f32 %v2030, %v2829
      %v2831 = vpop.f32.mrf.mxu0
      %v2832 = vadd.f32 %v2026, %v2831
      %v2833 = vpop.f32.mrf.mxu0
      %v2834 = vadd.f32 %v2030, %v2833
      %2835 = vmatprep.mubr.bf16.mxu0 %v1984
      %2836 = vmatmul.mubr.bf16.gmra.mxu0 %v1983
      %v2837 = vpop.f32.mrf.mxu0
      %v2838 = vadd.f32 %v2026, %v2837
      %v2839 = vpop.f32.mrf.mxu0
      %v2840 = vadd.f32 %v2030, %v2839
      %v2841 = vpop.f32.mrf.mxu0
      %v2842 = vadd.f32 %v2026, %v2841
      %v2843 = vpop.f32.mrf.mxu0
      %v2844 = vadd.f32 %v2030, %v2843
      %2845 = vmatprep.mubr.bf16.mxu0 %v1986
      %2846 = vmatmul.mubr.bf16.gmra.mxu0 %v1985
      %v2847 = vpop.f32.mrf.mxu0
      %v2848 = vadd.f32 %v2026, %v2847
      %v2849 = vpop.f32.mrf.mxu0
      %v2850 = vadd.f32 %v2030, %v2849
      %v2851 = vpop.f32.mrf.mxu0
      %v2852 = vadd.f32 %v2026, %v2851
      %v2853 = vpop.f32.mrf.mxu0
      %v2854 = vadd.f32 %v2030, %v2853
      %2855 = vmatprep.mubr.bf16.mxu0 %v1988
      %2856 = vmatmul.mubr.bf16.gmra.mxu0 %v1987
      %v2857 = vpop.f32.mrf.mxu0
      %v2858 = vadd.f32 %v2026, %v2857
      %v2859 = vpop.f32.mrf.mxu0
      %v2860 = vadd.f32 %v2030, %v2859
      %v2861 = vpop.f32.mrf.mxu0
      %v2862 = vadd.f32 %v2026, %v2861
      %v2863 = vpop.f32.mrf.mxu0
      %v2864 = vadd.f32 %v2030, %v2863
      %2865 = vdwg.mxu0
      %v2866 = vmax.f32 %v2228, 0.0
      %v2867 = vmax.f32 %v2230, 0.0
      %v2868 = vmax.f32 %v2232, 0.0
      %v2869 = vmax.f32 %v2234, 0.0
      %v2870 = vmax.f32 %v2238, 0.0
      %v2871 = vmax.f32 %v2240, 0.0
      %v2872 = vmax.f32 %v2242, 0.0
      %v2873 = vmax.f32 %v2244, 0.0
      %v2874 = vmax.f32 %v2248, 0.0
      %v2875 = vmax.f32 %v2250, 0.0
      %v2876 = vmax.f32 %v2252, 0.0
      %v2877 = vmax.f32 %v2254, 0.0
      %v2878 = vmax.f32 %v2258, 0.0
      %v2879 = vmax.f32 %v2260, 0.0
      %v2880 = vmax.f32 %v2262, 0.0
      %v2881 = vmax.f32 %v2264, 0.0
      %v2882 = vmax.f32 %v2268, 0.0
      %v2883 = vmax.f32 %v2270, 0.0
      %v2884 = vmax.f32 %v2272, 0.0
      %v2885 = vmax.f32 %v2274, 0.0
      %v2886 = vmax.f32 %v2278, 0.0
      %v2887 = vmax.f32 %v2280, 0.0
      %v2888 = vmax.f32 %v2282, 0.0
      %v2889 = vmax.f32 %v2284, 0.0
      %v2890 = vmax.f32 %v2288, 0.0
      %v2891 = vmax.f32 %v2290, 0.0
      %v2892 = vmax.f32 %v2292, 0.0
      %v2893 = vmax.f32 %v2294, 0.0
      %v2894 = vmax.f32 %v2298, 0.0
      %v2895 = vmax.f32 %v2300, 0.0
      %v2896 = vmax.f32 %v2302, 0.0
      %v2897 = vmax.f32 %v2304, 0.0
      %v2898 = vmax.f32 %v2308, 0.0
      %v2899 = vmax.f32 %v2310, 0.0
      %v2900 = vmax.f32 %v2312, 0.0
      %v2901 = vmax.f32 %v2314, 0.0
      %v2902 = vmax.f32 %v2318, 0.0
      %v2903 = vmax.f32 %v2320, 0.0
      %v2904 = vmax.f32 %v2322, 0.0
      %v2905 = vmax.f32 %v2324, 0.0
      %v2906 = vmax.f32 %v2328, 0.0
      %v2907 = vmax.f32 %v2330, 0.0
      %v2908 = vmax.f32 %v2332, 0.0
      %v2909 = vmax.f32 %v2334, 0.0
      %v2910 = vmax.f32 %v2338, 0.0
      %v2911 = vmax.f32 %v2340, 0.0
      %v2912 = vmax.f32 %v2342, 0.0
      %v2913 = vmax.f32 %v2344, 0.0
      %v2914 = vmax.f32 %v2348, 0.0
      %v2915 = vmax.f32 %v2350, 0.0
      %v2916 = vmax.f32 %v2352, 0.0
      %v2917 = vmax.f32 %v2354, 0.0
      %v2918 = vmax.f32 %v2358, 0.0
      %v2919 = vmax.f32 %v2360, 0.0
      %v2920 = vmax.f32 %v2362, 0.0
      %v2921 = vmax.f32 %v2364, 0.0
      %v2922 = vmax.f32 %v2368, 0.0
      %v2923 = vmax.f32 %v2370, 0.0
      %v2924 = vmax.f32 %v2372, 0.0
      %v2925 = vmax.f32 %v2374, 0.0
      %v2926 = vmax.f32 %v2378, 0.0
      %v2927 = vmax.f32 %v2380, 0.0
      %v2928 = vmax.f32 %v2382, 0.0
      %v2929 = vmax.f32 %v2384, 0.0
      %v2930 = vmax.f32 %v2388, 0.0
      %v2931 = vmax.f32 %v2390, 0.0
      %v2932 = vmax.f32 %v2392, 0.0
      %v2933 = vmax.f32 %v2394, 0.0
      %v2934 = vmax.f32 %v2398, 0.0
      %v2935 = vmax.f32 %v2400, 0.0
      %v2936 = vmax.f32 %v2402, 0.0
      %v2937 = vmax.f32 %v2404, 0.0
      %v2938 = vmax.f32 %v2408, 0.0
      %v2939 = vmax.f32 %v2410, 0.0
      %v2940 = vmax.f32 %v2412, 0.0
      %v2941 = vmax.f32 %v2414, 0.0
      %v2942 = vmax.f32 %v2418, 0.0
      %v2943 = vmax.f32 %v2420, 0.0
      %v2944 = vmax.f32 %v2422, 0.0
      %v2945 = vmax.f32 %v2424, 0.0
      %v2946 = vmax.f32 %v2428, 0.0
      %v2947 = vmax.f32 %v2430, 0.0
      %v2948 = vmax.f32 %v2432, 0.0
      %v2949 = vmax.f32 %v2434, 0.0
      %v2950 = vmax.f32 %v2438, 0.0
      %v2951 = vmax.f32 %v2440, 0.0
      %v2952 = vmax.f32 %v2442, 0.0
      %v2953 = vmax.f32 %v2444, 0.0
      %v2954 = vmax.f32 %v2448, 0.0
      %v2955 = vmax.f32 %v2450, 0.0
      %v2956 = vmax.f32 %v2452, 0.0
      %v2957 = vmax.f32 %v2454, 0.0
      %v2958 = vmax.f32 %v2458, 0.0
      %v2959 = vmax.f32 %v2460, 0.0
      %v2960 = vmax.f32 %v2462, 0.0
      %v2961 = vmax.f32 %v2464, 0.0
      %v2962 = vmax.f32 %v2468, 0.0
      %v2963 = vmax.f32 %v2470, 0.0
      %v2964 = vmax.f32 %v2472, 0.0
      %v2965 = vmax.f32 %v2474, 0.0
      %v2966 = vmax.f32 %v2478, 0.0
      %v2967 = vmax.f32 %v2480, 0.0
      %v2968 = vmax.f32 %v2482, 0.0
      %v2969 = vmax.f32 %v2484, 0.0
      %v2970 = vmax.f32 %v2488, 0.0
      %v2971 = vmax.f32 %v2490, 0.0
      %v2972 = vmax.f32 %v2492, 0.0
      %v2973 = vmax.f32 %v2494, 0.0
      %v2974 = vmax.f32 %v2498, 0.0
      %v2975 = vmax.f32 %v2500, 0.0
      %v2976 = vmax.f32 %v2502, 0.0
      %v2977 = vmax.f32 %v2504, 0.0
      %v2978 = vmax.f32 %v2508, 0.0
      %v2979 = vmax.f32 %v2510, 0.0
      %v2980 = vmax.f32 %v2512, 0.0
      %v2981 = vmax.f32 %v2514, 0.0
      %v2982 = vmax.f32 %v2518, 0.0
      %v2983 = vmax.f32 %v2520, 0.0
      %v2984 = vmax.f32 %v2522, 0.0
      %v2985 = vmax.f32 %v2524, 0.0
      %v2986 = vmax.f32 %v2528, 0.0
      %v2987 = vmax.f32 %v2530, 0.0
      %v2988 = vmax.f32 %v2532, 0.0
      %v2989 = vmax.f32 %v2534, 0.0
      %v2990 = vmax.f32 %v2538, 0.0
      %v2991 = vmax.f32 %v2540, 0.0
      %v2992 = vmax.f32 %v2542, 0.0
      %v2993 = vmax.f32 %v2544, 0.0
      %v2994 = vmax.f32 %v2548, 0.0
      %v2995 = vmax.f32 %v2550, 0.0
      %v2996 = vmax.f32 %v2552, 0.0
      %v2997 = vmax.f32 %v2554, 0.0
      %v2998 = vmax.f32 %v2558, 0.0
      %v2999 = vmax.f32 %v2560, 0.0
      %v3000 = vmax.f32 %v2562, 0.0
      %v3001 = vmax.f32 %v2564, 0.0
      %v3002 = vmax.f32 %v2568, 0.0
      %v3003 = vmax.f32 %v2570, 0.0
      %v3004 = vmax.f32 %v2572, 0.0
      %v3005 = vmax.f32 %v2574, 0.0
      %v3006 = vmax.f32 %v2578, 0.0
      %v3007 = vmax.f32 %v2580, 0.0
      %v3008 = vmax.f32 %v2582, 0.0
      %v3009 = vmax.f32 %v2584, 0.0
      %v3010 = vmax.f32 %v2588, 0.0
      %v3011 = vmax.f32 %v2590, 0.0
      %v3012 = vmax.f32 %v2592, 0.0
      %v3013 = vmax.f32 %v2594, 0.0
      %v3014 = vmax.f32 %v2598, 0.0
      %v3015 = vmax.f32 %v2600, 0.0
      %v3016 = vmax.f32 %v2602, 0.0
      %v3017 = vmax.f32 %v2604, 0.0
      %v3018 = vmax.f32 %v2608, 0.0
      %v3019 = vmax.f32 %v2610, 0.0
      %v3020 = vmax.f32 %v2612, 0.0
      %v3021 = vmax.f32 %v2614, 0.0
      %v3022 = vmax.f32 %v2618, 0.0
      %v3023 = vmax.f32 %v2620, 0.0
      %v3024 = vmax.f32 %v2622, 0.0
      %v3025 = vmax.f32 %v2624, 0.0
      %v3026 = vmax.f32 %v2628, 0.0
      %v3027 = vmax.f32 %v2630, 0.0
      %v3028 = vmax.f32 %v2632, 0.0
      %v3029 = vmax.f32 %v2634, 0.0
      %v3030 = vmax.f32 %v2638, 0.0
      %v3031 = vmax.f32 %v2640, 0.0
      %v3032 = vmax.f32 %v2642, 0.0
      %v3033 = vmax.f32 %v2644, 0.0
      %v3034 = vmax.f32 %v2648, 0.0
      %v3035 = vmax.f32 %v2650, 0.0
      %v3036 = vmax.f32 %v2652, 0.0
      %v3037 = vmax.f32 %v2654, 0.0
      %v3038 = vmax.f32 %v2658, 0.0
      %v3039 = vmax.f32 %v2660, 0.0
      %v3040 = vmax.f32 %v2662, 0.0
      %v3041 = vmax.f32 %v2664, 0.0
      %v3042 = vmax.f32 %v2668, 0.0
      %v3043 = vmax.f32 %v2670, 0.0
      %v3044 = vmax.f32 %v2672, 0.0
      %v3045 = vmax.f32 %v2674, 0.0
      %v3046 = vmax.f32 %v2678, 0.0
      %v3047 = vmax.f32 %v2680, 0.0
      %v3048 = vmax.f32 %v2682, 0.0
      %v3049 = vmax.f32 %v2684, 0.0
      %v3050 = vmax.f32 %v2688, 0.0
      %v3051 = vmax.f32 %v2690, 0.0
      %v3052 = vmax.f32 %v2692, 0.0
      %v3053 = vmax.f32 %v2694, 0.0
      %v3054 = vmax.f32 %v2698, 0.0
      %v3055 = vmax.f32 %v2700, 0.0
      %v3056 = vmax.f32 %v2702, 0.0
      %v3057 = vmax.f32 %v2704, 0.0
      %v3058 = vmax.f32 %v2708, 0.0
      %v3059 = vmax.f32 %v2710, 0.0
      %v3060 = vmax.f32 %v2712, 0.0
      %v3061 = vmax.f32 %v2714, 0.0
      %v3062 = vmax.f32 %v2718, 0.0
      %v3063 = vmax.f32 %v2720, 0.0
      %v3064 = vmax.f32 %v2722, 0.0
      %v3065 = vmax.f32 %v2724, 0.0
      %v3066 = vmax.f32 %v2728, 0.0
      %v3067 = vmax.f32 %v2730, 0.0
      %v3068 = vmax.f32 %v2732, 0.0
      %v3069 = vmax.f32 %v2734, 0.0
      %v3070 = vmax.f32 %v2738, 0.0
      %v3071 = vmax.f32 %v2740, 0.0
      %v3072 = vmax.f32 %v2742, 0.0
      %v3073 = vmax.f32 %v2744, 0.0
      %v3074 = vmax.f32 %v2748, 0.0
      %v3075 = vmax.f32 %v2750, 0.0
      %v3076 = vmax.f32 %v2752, 0.0
      %v3077 = vmax.f32 %v2754, 0.0
      %v3078 = vmax.f32 %v2758, 0.0
      %v3079 = vmax.f32 %v2760, 0.0
      %v3080 = vmax.f32 %v2762, 0.0
      %v3081 = vmax.f32 %v2764, 0.0
      %v3082 = vmax.f32 %v2768, 0.0
      %v3083 = vmax.f32 %v2770, 0.0
      %v3084 = vmax.f32 %v2772, 0.0
      %v3085 = vmax.f32 %v2774, 0.0
      %v3086 = vmax.f32 %v2778, 0.0
      %v3087 = vmax.f32 %v2780, 0.0
      %v3088 = vmax.f32 %v2782, 0.0
      %v3089 = vmax.f32 %v2784, 0.0
      %v3090 = vmax.f32 %v2788, 0.0
      %v3091 = vmax.f32 %v2790, 0.0
      %v3092 = vmax.f32 %v2792, 0.0
      %v3093 = vmax.f32 %v2794, 0.0
      %v3094 = vmax.f32 %v2798, 0.0
      %v3095 = vmax.f32 %v2800, 0.0
      %v3096 = vmax.f32 %v2802, 0.0
      %v3097 = vmax.f32 %v2804, 0.0
      %v3098 = vmax.f32 %v2808, 0.0
      %v3099 = vmax.f32 %v2810, 0.0
      %v3100 = vmax.f32 %v2812, 0.0
      %v3101 = vmax.f32 %v2814, 0.0
      %v3102 = vmax.f32 %v2818, 0.0
      %v3103 = vmax.f32 %v2820, 0.0
      %v3104 = vmax.f32 %v2822, 0.0
      %v3105 = vmax.f32 %v2824, 0.0
      %v3106 = vmax.f32 %v2828, 0.0
      %v3107 = vmax.f32 %v2830, 0.0
      %v3108 = vmax.f32 %v2832, 0.0
      %v3109 = vmax.f32 %v2834, 0.0
      %v3110 = vmax.f32 %v2838, 0.0
      %v3111 = vmax.f32 %v2840, 0.0
      %v3112 = vmax.f32 %v2842, 0.0
      %v3113 = vmax.f32 %v2844, 0.0
      %v3114 = vmax.f32 %v2848, 0.0
      %v3115 = vmax.f32 %v2850, 0.0
      %v3116 = vmax.f32 %v2852, 0.0
      %v3117 = vmax.f32 %v2854, 0.0
      %v3118 = vmax.f32 %v2858, 0.0
      %v3119 = vmax.f32 %v2860, 0.0
      %v3120 = vmax.f32 %v2862, 0.0
      %v3121 = vmax.f32 %v2864, 0.0
      %v3122 = vpack.c.bf16 %v2868, %v2866
      %v3123 = vpack.c.bf16 %v2869, %v2867
      %v3124 = vpack.c.bf16 %v2872, %v2870
      %v3125 = vpack.c.bf16 %v2873, %v2871
      %v3126 = vpack.c.bf16 %v2876, %v2874
      %v3127 = vpack.c.bf16 %v2877, %v2875
      %v3128 = vpack.c.bf16 %v2880, %v2878
      %v3129 = vpack.c.bf16 %v2881, %v2879
      %v3130 = vpack.c.bf16 %v2884, %v2882
      %v3131 = vpack.c.bf16 %v2885, %v2883
      %v3132 = vpack.c.bf16 %v2888, %v2886
      %v3133 = vpack.c.bf16 %v2889, %v2887
      %v3134 = vpack.c.bf16 %v2892, %v2890
      %v3135 = vpack.c.bf16 %v2893, %v2891
      %v3136 = vpack.c.bf16 %v2896, %v2894
      %v3137 = vpack.c.bf16 %v2897, %v2895
      %v3138 = vpack.c.bf16 %v2900, %v2898
      %v3139 = vpack.c.bf16 %v2901, %v2899
      %v3140 = vpack.c.bf16 %v2904, %v2902
      %v3141 = vpack.c.bf16 %v2905, %v2903
      %v3142 = vpack.c.bf16 %v2908, %v2906
      %v3143 = vpack.c.bf16 %v2909, %v2907
      %v3144 = vpack.c.bf16 %v2912, %v2910
      %v3145 = vpack.c.bf16 %v2913, %v2911
      %v3146 = vpack.c.bf16 %v2916, %v2914
      %v3147 = vpack.c.bf16 %v2917, %v2915
      %v3148 = vpack.c.bf16 %v2920, %v2918
      %v3149 = vpack.c.bf16 %v2921, %v2919
      %v3150 = vpack.c.bf16 %v2924, %v2922
      %v3151 = vpack.c.bf16 %v2925, %v2923
      %v3152 = vpack.c.bf16 %v2928, %v2926
      %v3153 = vpack.c.bf16 %v2929, %v2927
      %v3154 = vpack.c.bf16 %v2932, %v2930
      %v3155 = vpack.c.bf16 %v2933, %v2931
      %v3156 = vpack.c.bf16 %v2936, %v2934
      %v3157 = vpack.c.bf16 %v2937, %v2935
      %v3158 = vpack.c.bf16 %v2940, %v2938
      %v3159 = vpack.c.bf16 %v2941, %v2939
      %v3160 = vpack.c.bf16 %v2944, %v2942
      %v3161 = vpack.c.bf16 %v2945, %v2943
      %v3162 = vpack.c.bf16 %v2948, %v2946
      %v3163 = vpack.c.bf16 %v2949, %v2947
      %v3164 = vpack.c.bf16 %v2952, %v2950
      %v3165 = vpack.c.bf16 %v2953, %v2951
      %v3166 = vpack.c.bf16 %v2956, %v2954
      %v3167 = vpack.c.bf16 %v2957, %v2955
      %v3168 = vpack.c.bf16 %v2960, %v2958
      %v3169 = vpack.c.bf16 %v2961, %v2959
      %v3170 = vpack.c.bf16 %v2964, %v2962
      %v3171 = vpack.c.bf16 %v2965, %v2963
      %v3172 = vpack.c.bf16 %v2968, %v2966
      %v3173 = vpack.c.bf16 %v2969, %v2967
      %v3174 = vpack.c.bf16 %v2972, %v2970
      %v3175 = vpack.c.bf16 %v2973, %v2971
      %v3176 = vpack.c.bf16 %v2976, %v2974
      %v3177 = vpack.c.bf16 %v2977, %v2975
      %v3178 = vpack.c.bf16 %v2980, %v2978
      %v3179 = vpack.c.bf16 %v2981, %v2979
      %v3180 = vpack.c.bf16 %v2984, %v2982
      %v3181 = vpack.c.bf16 %v2985, %v2983
      %v3182 = vpack.c.bf16 %v2988, %v2986
      %v3183 = vpack.c.bf16 %v2989, %v2987
      %v3184 = vpack.c.bf16 %v2992, %v2990
      %v3185 = vpack.c.bf16 %v2993, %v2991
      %v3186 = vpack.c.bf16 %v2996, %v2994
      %v3187 = vpack.c.bf16 %v2997, %v2995
      %v3188 = vpack.c.bf16 %v3000, %v2998
      %v3189 = vpack.c.bf16 %v3001, %v2999
      %v3190 = vpack.c.bf16 %v3004, %v3002
      %v3191 = vpack.c.bf16 %v3005, %v3003
      %v3192 = vpack.c.bf16 %v3008, %v3006
      %v3193 = vpack.c.bf16 %v3009, %v3007
      %v3194 = vpack.c.bf16 %v3012, %v3010
      %v3195 = vpack.c.bf16 %v3013, %v3011
      %v3196 = vpack.c.bf16 %v3016, %v3014
      %v3197 = vpack.c.bf16 %v3017, %v3015
      %v3198 = vpack.c.bf16 %v3020, %v3018
      %v3199 = vpack.c.bf16 %v3021, %v3019
      %v3200 = vpack.c.bf16 %v3024, %v3022
      %v3201 = vpack.c.bf16 %v3025, %v3023
      %v3202 = vpack.c.bf16 %v3028, %v3026
      %v3203 = vpack.c.bf16 %v3029, %v3027
      %v3204 = vpack.c.bf16 %v3032, %v3030
      %v3205 = vpack.c.bf16 %v3033, %v3031
      %v3206 = vpack.c.bf16 %v3036, %v3034
      %v3207 = vpack.c.bf16 %v3037, %v3035
      %v3208 = vpack.c.bf16 %v3040, %v3038
      %v3209 = vpack.c.bf16 %v3041, %v3039
      %v3210 = vpack.c.bf16 %v3044, %v3042
      %v3211 = vpack.c.bf16 %v3045, %v3043
      %v3212 = vpack.c.bf16 %v3048, %v3046
      %v3213 = vpack.c.bf16 %v3049, %v3047
      %v3214 = vpack.c.bf16 %v3052, %v3050
      %v3215 = vpack.c.bf16 %v3053, %v3051
      %v3216 = vpack.c.bf16 %v3056, %v3054
      %v3217 = vpack.c.bf16 %v3057, %v3055
      %v3218 = vpack.c.bf16 %v3060, %v3058
      %v3219 = vpack.c.bf16 %v3061, %v3059
      %v3220 = vpack.c.bf16 %v3064, %v3062
      %v3221 = vpack.c.bf16 %v3065, %v3063
      %v3222 = vpack.c.bf16 %v3068, %v3066
      %v3223 = vpack.c.bf16 %v3069, %v3067
      %v3224 = vpack.c.bf16 %v3072, %v3070
      %v3225 = vpack.c.bf16 %v3073, %v3071
      %v3226 = vpack.c.bf16 %v3076, %v3074
      %v3227 = vpack.c.bf16 %v3077, %v3075
      %v3228 = vpack.c.bf16 %v3080, %v3078
      %v3229 = vpack.c.bf16 %v3081, %v3079
      %v3230 = vpack.c.bf16 %v3084, %v3082
      %v3231 = vpack.c.bf16 %v3085, %v3083
      %v3232 = vpack.c.bf16 %v3088, %v3086
      %v3233 = vpack.c.bf16 %v3089, %v3087
      %v3234 = vpack.c.bf16 %v3092, %v3090
      %v3235 = vpack.c.bf16 %v3093, %v3091
      %v3236 = vpack.c.bf16 %v3096, %v3094
      %v3237 = vpack.c.bf16 %v3097, %v3095
      %v3238 = vpack.c.bf16 %v3100, %v3098
      %v3239 = vpack.c.bf16 %v3101, %v3099
      %v3240 = vpack.c.bf16 %v3104, %v3102
      %v3241 = vpack.c.bf16 %v3105, %v3103
      %v3242 = vpack.c.bf16 %v3108, %v3106
      %v3243 = vpack.c.bf16 %v3109, %v3107
      %v3244 = vpack.c.bf16 %v3112, %v3110
      %v3245 = vpack.c.bf16 %v3113, %v3111
      %v3246 = vpack.c.bf16 %v3116, %v3114
      %v3247 = vpack.c.bf16 %v3117, %v3115
      %v3248 = vpack.c.bf16 %v3120, %v3118
      %v3249 = vpack.c.bf16 %v3121, %v3119
      %v3250 = vld [vmem:[%s6] sm:$0xff]
      %v3251 = vld [vmem:[%s6 + $0x8] sm:$0xff]
      %v3252 = vld [vmem:[%s6 + $0x10] sm:$0xff]
      %v3253 = vld [vmem:[%s6 + $0x18] sm:$0xff]
      %v3254 = vld [vmem:[%s6 + $0x20] sm:$0xff]
      %v3255 = vld [vmem:[%s6 + $0x28] sm:$0xff]
      %v3256 = vld [vmem:[%s6 + $0x30] sm:$0xff]
      %v3257 = vld [vmem:[%s6 + $0x38] sm:$0xff]
      %v3258 = vld [vmem:[%s6 + $0x40] sm:$0xff]
      %v3259 = vld [vmem:[%s6 + $0x48] sm:$0xff]
      %v3260 = vld [vmem:[%s6 + $0x50] sm:$0xff]
      %v3261 = vld [vmem:[%s6 + $0x58] sm:$0xff]
      %v3262 = vld [vmem:[%s6 + $0x60] sm:$0xff]
      %v3263 = vld [vmem:[%s6 + $0x68] sm:$0xff]
      %v3264 = vld [vmem:[%s6 + $0x70] sm:$0xff]
      %v3265 = vld [vmem:[%s6 + $0x78] sm:$0xff]
      %v3266 = vld [vmem:[%s6 + $0x80] sm:$0xff]
      %v3267 = vld [vmem:[%s6 + $0x88] sm:$0xff]
      %v3268 = vld [vmem:[%s6 + $0x90] sm:$0xff]
      %v3269 = vld [vmem:[%s6 + $0x98] sm:$0xff]
      %v3270 = vld [vmem:[%s6 + $0xa0] sm:$0xff]
      %v3271 = vld [vmem:[%s6 + $0xa8] sm:$0xff]
      %v3272 = vld [vmem:[%s6 + $0xb0] sm:$0xff]
      %v3273 = vld [vmem:[%s6 + $0xb8] sm:$0xff]
      %v3274 = vld [vmem:[%s6 + $0xc0] sm:$0xff]
      %v3275 = vld [vmem:[%s6 + $0xc8] sm:$0xff]
      %v3276 = vld [vmem:[%s6 + $0xd0] sm:$0xff]
      %v3277 = vld [vmem:[%s6 + $0xd8] sm:$0xff]
      %v3278 = vld [vmem:[%s6 + $0xe0] sm:$0xff]
      %v3279 = vld [vmem:[%s6 + $0xe8] sm:$0xff]
      %v3280 = vld [vmem:[%s6 + $0xf0] sm:$0xff]
      %v3281 = vld [vmem:[%s6 + $0xf8] sm:$0xff]
      %v3282 = vld [vmem:[%s7] sm:$0x3]
      %v3284 = vlaneseq
      %v3285 = vshrl.u32 %v3284, 7
      %v3286 = vsub.s32 0, %v3285
      %v3287 = vrot.slane %v3282, %v3286
      %v3288 = vlaneseq
      %v3289 = vshrl.u32 %v3288, 7
      %v3290 = vsub.s32 1, %v3289
      %v3291 = vrot.slane %v3282, %v3290
      %v3326 = vunpack.c.l.b16 %v3250
      %v3327 = vunpack.c.h.b16 %v3250
      %v3328 = vunpack.c.l.b16 %v3251
      %v3329 = vunpack.c.h.b16 %v3251
      %v3330 = vunpack.c.l.b16 %v3252
      %v3331 = vunpack.c.h.b16 %v3252
      %v3332 = vunpack.c.l.b16 %v3253
      %v3333 = vunpack.c.h.b16 %v3253
      %v3334 = vunpack.c.l.b16 %v3254
      %v3335 = vunpack.c.h.b16 %v3254
      %v3336 = vunpack.c.l.b16 %v3255
      %v3337 = vunpack.c.h.b16 %v3255
      %v3338 = vunpack.c.l.b16 %v3256
      %v3339 = vunpack.c.h.b16 %v3256
      %v3340 = vunpack.c.l.b16 %v3257
      %v3341 = vunpack.c.h.b16 %v3257
      %v3342 = vunpack.c.l.b16 %v3258
      %v3343 = vunpack.c.h.b16 %v3258
      %v3344 = vunpack.c.l.b16 %v3259
      %v3345 = vunpack.c.h.b16 %v3259
      %v3346 = vunpack.c.l.b16 %v3260
      %v3347 = vunpack.c.h.b16 %v3260
      %v3348 = vunpack.c.l.b16 %v3261
      %v3349 = vunpack.c.h.b16 %v3261
      %v3350 = vunpack.c.l.b16 %v3262
      %v3351 = vunpack.c.h.b16 %v3262
      %v3352 = vunpack.c.l.b16 %v3263
      %v3353 = vunpack.c.h.b16 %v3263
      %v3354 = vunpack.c.l.b16 %v3264
      %v3355 = vunpack.c.h.b16 %v3264
      %v3356 = vunpack.c.l.b16 %v3265
      %v3357 = vunpack.c.h.b16 %v3265
      %v3358 = vunpack.c.l.b16 %v3266
      %v3359 = vunpack.c.h.b16 %v3266
      %v3360 = vunpack.c.l.b16 %v3267
      %v3361 = vunpack.c.h.b16 %v3267
      %v3362 = vunpack.c.l.b16 %v3268
      %v3363 = vunpack.c.h.b16 %v3268
      %v3364 = vunpack.c.l.b16 %v3269
      %v3365 = vunpack.c.h.b16 %v3269
      %v3366 = vunpack.c.l.b16 %v3270
      %v3367 = vunpack.c.h.b16 %v3270
      %v3368 = vunpack.c.l.b16 %v3271
      %v3369 = vunpack.c.h.b16 %v3271
      %v3370 = vunpack.c.l.b16 %v3272
      %v3371 = vunpack.c.h.b16 %v3272
      %v3372 = vunpack.c.l.b16 %v3273
      %v3373 = vunpack.c.h.b16 %v3273
      %v3374 = vunpack.c.l.b16 %v3274
      %v3375 = vunpack.c.h.b16 %v3274
      %v3376 = vunpack.c.l.b16 %v3275
      %v3377 = vunpack.c.h.b16 %v3275
      %v3378 = vunpack.c.l.b16 %v3276
      %v3379 = vunpack.c.h.b16 %v3276
      %v3380 = vunpack.c.l.b16 %v3277
      %v3381 = vunpack.c.h.b16 %v3277
      %v3382 = vunpack.c.l.b16 %v3278
      %v3383 = vunpack.c.h.b16 %v3278
      %v3384 = vunpack.c.l.b16 %v3279
      %v3385 = vunpack.c.h.b16 %v3279
      %v3386 = vunpack.c.l.b16 %v3280
      %v3387 = vunpack.c.h.b16 %v3280
      %v3388 = vunpack.c.l.b16 %v3281
      %v3389 = vunpack.c.h.b16 %v3281
      %v3390 = vpack.c.b16 %v3328, %v3326
      %v3391 = vpack.c.b16 %v3329, %v3327
      %v3392 = vpack.c.b16 %v3332, %v3330
      %v3393 = vpack.c.b16 %v3333, %v3331
      %v3394 = vpack.c.b16 %v3336, %v3334
      %v3395 = vpack.c.b16 %v3337, %v3335
      %v3396 = vpack.c.b16 %v3340, %v3338
      %v3397 = vpack.c.b16 %v3341, %v3339
      %v3398 = vpack.c.b16 %v3344, %v3342
      %v3399 = vpack.c.b16 %v3345, %v3343
      %v3400 = vpack.c.b16 %v3348, %v3346
      %v3401 = vpack.c.b16 %v3349, %v3347
      %v3402 = vpack.c.b16 %v3352, %v3350
      %v3403 = vpack.c.b16 %v3353, %v3351
      %v3404 = vpack.c.b16 %v3356, %v3354
      %v3405 = vpack.c.b16 %v3357, %v3355
      %v3406 = vpack.c.b16 %v3360, %v3358
      %v3407 = vpack.c.b16 %v3361, %v3359
      %v3408 = vpack.c.b16 %v3364, %v3362
      %v3409 = vpack.c.b16 %v3365, %v3363
      %v3410 = vpack.c.b16 %v3368, %v3366
      %v3411 = vpack.c.b16 %v3369, %v3367
      %v3412 = vpack.c.b16 %v3372, %v3370
      %v3413 = vpack.c.b16 %v3373, %v3371
      %v3414 = vpack.c.b16 %v3376, %v3374
      %v3415 = vpack.c.b16 %v3377, %v3375
      %v3416 = vpack.c.b16 %v3380, %v3378
      %v3417 = vpack.c.b16 %v3381, %v3379
      %v3418 = vpack.c.b16 %v3384, %v3382
      %v3419 = vpack.c.b16 %v3385, %v3383
      %v3420 = vpack.c.b16 %v3388, %v3386
      %v3421 = vpack.c.b16 %v3389, %v3387
      %3454 = vmatprep.subr.bf16.mxu0 %v3405
      %3455 = vmatpush1.bf16.msra.mxu0 %v3404
      %3456 = vmatprep.subr.bf16.mxu0 %v3403
      %3457 = vmatpush1.bf16.msra.mxu0 %v3402
      %3458 = vmatprep.subr.bf16.mxu0 %v3401
      %3459 = vmatpush1.bf16.msra.mxu0 %v3400
      %3460 = vmatprep.subr.bf16.mxu0 %v3399
      %3461 = vmatpush1.bf16.msra.mxu0 %v3398
      %3462 = vmatprep.subr.bf16.mxu0 %v3397
      %3463 = vmatpush1.bf16.msra.mxu0 %v3396
      %3464 = vmatprep.subr.bf16.mxu0 %v3395
      %3465 = vmatpush1.bf16.msra.mxu0 %v3394
      %3466 = vmatprep.subr.bf16.mxu0 %v3393
      %3467 = vmatpush1.bf16.msra.mxu0 %v3392
      %3468 = vmatprep.subr.bf16.mxu0 %v3391
      %3469 = vmatpush1.bf16.msra.mxu0 %v3390
      %3470 = vmatprep.subr.bf16.mxu0 %v3421
      %3471 = vmatpush2.bf16.msra.mxu0 %v3420
      %3472 = vmatprep.subr.bf16.mxu0 %v3419
      %3473 = vmatpush2.bf16.msra.mxu0 %v3418
      %3474 = vmatprep.subr.bf16.mxu0 %v3417
      %3475 = vmatpush2.bf16.msra.mxu0 %v3416
      %3476 = vmatprep.subr.bf16.mxu0 %v3415
      %3477 = vmatpush2.bf16.msra.mxu0 %v3414
      %3478 = vmatprep.subr.bf16.mxu0 %v3413
      %3479 = vmatpush2.bf16.msra.mxu0 %v3412
      %3480 = vmatprep.subr.bf16.mxu0 %v3411
      %3481 = vmatpush2.bf16.msra.mxu0 %v3410
      %3482 = vmatprep.subr.bf16.mxu0 %v3409
      %3483 = vmatpush2.bf16.msra.mxu0 %v3408
      %3484 = vmatprep.subr.bf16.mxu0 %v3407
      %3485 = vmatpush2.bf16.msra.mxu0 %v3406
      %3486 = vmatprep.mubr.bf16.mxu0 %v3123
      %3487 = vmatmul.mubr.bf16.gmra.mxu0 %v3122
      %v3488 = vpop.f32.mrf.mxu0
      %v3489 = vadd.f32 %v3287, %v3488
      %v3490 = vpop.f32.mrf.mxu0
      %v3491 = vadd.f32 %v3291, %v3490
      %v3492 = vpop.f32.mrf.mxu0
      %v3493 = vadd.f32 %v3287, %v3492
      %v3494 = vpop.f32.mrf.mxu0
      %v3495 = vadd.f32 %v3291, %v3494
      %3496 = vmatprep.mubr.bf16.mxu0 %v3125
      %3497 = vmatmul.mubr.bf16.gmra.mxu0 %v3124
      %v3498 = vpop.f32.mrf.mxu0
      %v3499 = vadd.f32 %v3287, %v3498
      %v3500 = vpop.f32.mrf.mxu0
      %v3501 = vadd.f32 %v3291, %v3500
      %v3502 = vpop.f32.mrf.mxu0
      %v3503 = vadd.f32 %v3287, %v3502
      %v3504 = vpop.f32.mrf.mxu0
      %v3505 = vadd.f32 %v3291, %v3504
      %3506 = vmatprep.mubr.bf16.mxu0 %v3127
      %3507 = vmatmul.mubr.bf16.gmra.mxu0 %v3126
      %v3508 = vpop.f32.mrf.mxu0
      %v3509 = vadd.f32 %v3287, %v3508
      %v3510 = vpop.f32.mrf.mxu0
      %v3511 = vadd.f32 %v3291, %v3510
      %v3512 = vpop.f32.mrf.mxu0
      %v3513 = vadd.f32 %v3287, %v3512
      %v3514 = vpop.f32.mrf.mxu0
      %v3515 = vadd.f32 %v3291, %v3514
      %3516 = vmatprep.mubr.bf16.mxu0 %v3129
      %3517 = vmatmul.mubr.bf16.gmra.mxu0 %v3128
      %v3518 = vpop.f32.mrf.mxu0
      %v3519 = vadd.f32 %v3287, %v3518
      %v3520 = vpop.f32.mrf.mxu0
      %v3521 = vadd.f32 %v3291, %v3520
      %v3522 = vpop.f32.mrf.mxu0
      %v3523 = vadd.f32 %v3287, %v3522
      %v3524 = vpop.f32.mrf.mxu0
      %v3525 = vadd.f32 %v3291, %v3524
      %3526 = vmatprep.mubr.bf16.mxu0 %v3131
      %3527 = vmatmul.mubr.bf16.gmra.mxu0 %v3130
      %v3528 = vpop.f32.mrf.mxu0
      %v3529 = vadd.f32 %v3287, %v3528
      %v3530 = vpop.f32.mrf.mxu0
      %v3531 = vadd.f32 %v3291, %v3530
      %v3532 = vpop.f32.mrf.mxu0
      %v3533 = vadd.f32 %v3287, %v3532
      %v3534 = vpop.f32.mrf.mxu0
      %v3535 = vadd.f32 %v3291, %v3534
      %3536 = vmatprep.mubr.bf16.mxu0 %v3133
      %3537 = vmatmul.mubr.bf16.gmra.mxu0 %v3132
      %v3538 = vpop.f32.mrf.mxu0
      %v3539 = vadd.f32 %v3287, %v3538
      %v3540 = vpop.f32.mrf.mxu0
      %v3541 = vadd.f32 %v3291, %v3540
      %v3542 = vpop.f32.mrf.mxu0
      %v3543 = vadd.f32 %v3287, %v3542
      %v3544 = vpop.f32.mrf.mxu0
      %v3545 = vadd.f32 %v3291, %v3544
      %3546 = vmatprep.mubr.bf16.mxu0 %v3135
      %3547 = vmatmul.mubr.bf16.gmra.mxu0 %v3134
      %v3548 = vpop.f32.mrf.mxu0
      %v3549 = vadd.f32 %v3287, %v3548
      %v3550 = vpop.f32.mrf.mxu0
      %v3551 = vadd.f32 %v3291, %v3550
      %v3552 = vpop.f32.mrf.mxu0
      %v3553 = vadd.f32 %v3287, %v3552
      %v3554 = vpop.f32.mrf.mxu0
      %v3555 = vadd.f32 %v3291, %v3554
      %3556 = vmatprep.mubr.bf16.mxu0 %v3137
      %3557 = vmatmul.mubr.bf16.gmra.mxu0 %v3136
      %v3558 = vpop.f32.mrf.mxu0
      %v3559 = vadd.f32 %v3287, %v3558
      %v3560 = vpop.f32.mrf.mxu0
      %v3561 = vadd.f32 %v3291, %v3560
      %v3562 = vpop.f32.mrf.mxu0
      %v3563 = vadd.f32 %v3287, %v3562
      %v3564 = vpop.f32.mrf.mxu0
      %v3565 = vadd.f32 %v3291, %v3564
      %3566 = vmatprep.mubr.bf16.mxu0 %v3139
      %3567 = vmatmul.mubr.bf16.gmra.mxu0 %v3138
      %v3568 = vpop.f32.mrf.mxu0
      %v3569 = vadd.f32 %v3287, %v3568
      %v3570 = vpop.f32.mrf.mxu0
      %v3571 = vadd.f32 %v3291, %v3570
      %v3572 = vpop.f32.mrf.mxu0
      %v3573 = vadd.f32 %v3287, %v3572
      %v3574 = vpop.f32.mrf.mxu0
      %v3575 = vadd.f32 %v3291, %v3574
      %3576 = vmatprep.mubr.bf16.mxu0 %v3141
      %3577 = vmatmul.mubr.bf16.gmra.mxu0 %v3140
      %v3578 = vpop.f32.mrf.mxu0
      %v3579 = vadd.f32 %v3287, %v3578
      %v3580 = vpop.f32.mrf.mxu0
      %v3581 = vadd.f32 %v3291, %v3580
      %v3582 = vpop.f32.mrf.mxu0
      %v3583 = vadd.f32 %v3287, %v3582
      %v3584 = vpop.f32.mrf.mxu0
      %v3585 = vadd.f32 %v3291, %v3584
      %3586 = vmatprep.mubr.bf16.mxu0 %v3143
      %3587 = vmatmul.mubr.bf16.gmra.mxu0 %v3142
      %v3588 = vpop.f32.mrf.mxu0
      %v3589 = vadd.f32 %v3287, %v3588
      %v3590 = vpop.f32.mrf.mxu0
      %v3591 = vadd.f32 %v3291, %v3590
      %v3592 = vpop.f32.mrf.mxu0
      %v3593 = vadd.f32 %v3287, %v3592
      %v3594 = vpop.f32.mrf.mxu0
      %v3595 = vadd.f32 %v3291, %v3594
      %3596 = vmatprep.mubr.bf16.mxu0 %v3145
      %3597 = vmatmul.mubr.bf16.gmra.mxu0 %v3144
      %v3598 = vpop.f32.mrf.mxu0
      %v3599 = vadd.f32 %v3287, %v3598
      %v3600 = vpop.f32.mrf.mxu0
      %v3601 = vadd.f32 %v3291, %v3600
      %v3602 = vpop.f32.mrf.mxu0
      %v3603 = vadd.f32 %v3287, %v3602
      %v3604 = vpop.f32.mrf.mxu0
      %v3605 = vadd.f32 %v3291, %v3604
      %3606 = vmatprep.mubr.bf16.mxu0 %v3147
      %3607 = vmatmul.mubr.bf16.gmra.mxu0 %v3146
      %v3608 = vpop.f32.mrf.mxu0
      %v3609 = vadd.f32 %v3287, %v3608
      %v3610 = vpop.f32.mrf.mxu0
      %v3611 = vadd.f32 %v3291, %v3610
      %v3612 = vpop.f32.mrf.mxu0
      %v3613 = vadd.f32 %v3287, %v3612
      %v3614 = vpop.f32.mrf.mxu0
      %v3615 = vadd.f32 %v3291, %v3614
      %3616 = vmatprep.mubr.bf16.mxu0 %v3149
      %3617 = vmatmul.mubr.bf16.gmra.mxu0 %v3148
      %v3618 = vpop.f32.mrf.mxu0
      %v3619 = vadd.f32 %v3287, %v3618
      %v3620 = vpop.f32.mrf.mxu0
      %v3621 = vadd.f32 %v3291, %v3620
      %v3622 = vpop.f32.mrf.mxu0
      %v3623 = vadd.f32 %v3287, %v3622
      %v3624 = vpop.f32.mrf.mxu0
      %v3625 = vadd.f32 %v3291, %v3624
      %3626 = vmatprep.mubr.bf16.mxu0 %v3151
      %3627 = vmatmul.mubr.bf16.gmra.mxu0 %v3150
      %v3628 = vpop.f32.mrf.mxu0
      %v3629 = vadd.f32 %v3287, %v3628
      %v3630 = vpop.f32.mrf.mxu0
      %v3631 = vadd.f32 %v3291, %v3630
      %v3632 = vpop.f32.mrf.mxu0
      %v3633 = vadd.f32 %v3287, %v3632
      %v3634 = vpop.f32.mrf.mxu0
      %v3635 = vadd.f32 %v3291, %v3634
      %3636 = vmatprep.mubr.bf16.mxu0 %v3153
      %3637 = vmatmul.mubr.bf16.gmra.mxu0 %v3152
      %v3638 = vpop.f32.mrf.mxu0
      %v3639 = vadd.f32 %v3287, %v3638
      %v3640 = vpop.f32.mrf.mxu0
      %v3641 = vadd.f32 %v3291, %v3640
      %v3642 = vpop.f32.mrf.mxu0
      %v3643 = vadd.f32 %v3287, %v3642
      %v3644 = vpop.f32.mrf.mxu0
      %v3645 = vadd.f32 %v3291, %v3644
      %3646 = vmatprep.mubr.bf16.mxu0 %v3155
      %3647 = vmatmul.mubr.bf16.gmra.mxu0 %v3154
      %v3648 = vpop.f32.mrf.mxu0
      %v3649 = vadd.f32 %v3287, %v3648
      %v3650 = vpop.f32.mrf.mxu0
      %v3651 = vadd.f32 %v3291, %v3650
      %v3652 = vpop.f32.mrf.mxu0
      %v3653 = vadd.f32 %v3287, %v3652
      %v3654 = vpop.f32.mrf.mxu0
      %v3655 = vadd.f32 %v3291, %v3654
      %3656 = vmatprep.mubr.bf16.mxu0 %v3157
      %3657 = vmatmul.mubr.bf16.gmra.mxu0 %v3156
      %v3658 = vpop.f32.mrf.mxu0
      %v3659 = vadd.f32 %v3287, %v3658
      %v3660 = vpop.f32.mrf.mxu0
      %v3661 = vadd.f32 %v3291, %v3660
      %v3662 = vpop.f32.mrf.mxu0
      %v3663 = vadd.f32 %v3287, %v3662
      %v3664 = vpop.f32.mrf.mxu0
      %v3665 = vadd.f32 %v3291, %v3664
      %3666 = vmatprep.mubr.bf16.mxu0 %v3159
      %3667 = vmatmul.mubr.bf16.gmra.mxu0 %v3158
      %v3668 = vpop.f32.mrf.mxu0
      %v3669 = vadd.f32 %v3287, %v3668
      %v3670 = vpop.f32.mrf.mxu0
      %v3671 = vadd.f32 %v3291, %v3670
      %v3672 = vpop.f32.mrf.mxu0
      %v3673 = vadd.f32 %v3287, %v3672
      %v3674 = vpop.f32.mrf.mxu0
      %v3675 = vadd.f32 %v3291, %v3674
      %3676 = vmatprep.mubr.bf16.mxu0 %v3161
      %3677 = vmatmul.mubr.bf16.gmra.mxu0 %v3160
      %v3678 = vpop.f32.mrf.mxu0
      %v3679 = vadd.f32 %v3287, %v3678
      %v3680 = vpop.f32.mrf.mxu0
      %v3681 = vadd.f32 %v3291, %v3680
      %v3682 = vpop.f32.mrf.mxu0
      %v3683 = vadd.f32 %v3287, %v3682
      %v3684 = vpop.f32.mrf.mxu0
      %v3685 = vadd.f32 %v3291, %v3684
      %3686 = vmatprep.mubr.bf16.mxu0 %v3163
      %3687 = vmatmul.mubr.bf16.gmra.mxu0 %v3162
      %v3688 = vpop.f32.mrf.mxu0
      %v3689 = vadd.f32 %v3287, %v3688
      %v3690 = vpop.f32.mrf.mxu0
      %v3691 = vadd.f32 %v3291, %v3690
      %v3692 = vpop.f32.mrf.mxu0
      %v3693 = vadd.f32 %v3287, %v3692
      %v3694 = vpop.f32.mrf.mxu0
      %v3695 = vadd.f32 %v3291, %v3694
      %3696 = vmatprep.mubr.bf16.mxu0 %v3165
      %3697 = vmatmul.mubr.bf16.gmra.mxu0 %v3164
      %v3698 = vpop.f32.mrf.mxu0
      %v3699 = vadd.f32 %v3287, %v3698
      %v3700 = vpop.f32.mrf.mxu0
      %v3701 = vadd.f32 %v3291, %v3700
      %v3702 = vpop.f32.mrf.mxu0
      %v3703 = vadd.f32 %v3287, %v3702
      %v3704 = vpop.f32.mrf.mxu0
      %v3705 = vadd.f32 %v3291, %v3704
      %3706 = vmatprep.mubr.bf16.mxu0 %v3167
      %3707 = vmatmul.mubr.bf16.gmra.mxu0 %v3166
      %v3708 = vpop.f32.mrf.mxu0
      %v3709 = vadd.f32 %v3287, %v3708
      %v3710 = vpop.f32.mrf.mxu0
      %v3711 = vadd.f32 %v3291, %v3710
      %v3712 = vpop.f32.mrf.mxu0
      %v3713 = vadd.f32 %v3287, %v3712
      %v3714 = vpop.f32.mrf.mxu0
      %v3715 = vadd.f32 %v3291, %v3714
      %3716 = vmatprep.mubr.bf16.mxu0 %v3169
      %3717 = vmatmul.mubr.bf16.gmra.mxu0 %v3168
      %v3718 = vpop.f32.mrf.mxu0
      %v3719 = vadd.f32 %v3287, %v3718
      %v3720 = vpop.f32.mrf.mxu0
      %v3721 = vadd.f32 %v3291, %v3720
      %v3722 = vpop.f32.mrf.mxu0
      %v3723 = vadd.f32 %v3287, %v3722
      %v3724 = vpop.f32.mrf.mxu0
      %v3725 = vadd.f32 %v3291, %v3724
      %3726 = vmatprep.mubr.bf16.mxu0 %v3171
      %3727 = vmatmul.mubr.bf16.gmra.mxu0 %v3170
      %v3728 = vpop.f32.mrf.mxu0
      %v3729 = vadd.f32 %v3287, %v3728
      %v3730 = vpop.f32.mrf.mxu0
      %v3731 = vadd.f32 %v3291, %v3730
      %v3732 = vpop.f32.mrf.mxu0
      %v3733 = vadd.f32 %v3287, %v3732
      %v3734 = vpop.f32.mrf.mxu0
      %v3735 = vadd.f32 %v3291, %v3734
      %3736 = vmatprep.mubr.bf16.mxu0 %v3173
      %3737 = vmatmul.mubr.bf16.gmra.mxu0 %v3172
      %v3738 = vpop.f32.mrf.mxu0
      %v3739 = vadd.f32 %v3287, %v3738
      %v3740 = vpop.f32.mrf.mxu0
      %v3741 = vadd.f32 %v3291, %v3740
      %v3742 = vpop.f32.mrf.mxu0
      %v3743 = vadd.f32 %v3287, %v3742
      %v3744 = vpop.f32.mrf.mxu0
      %v3745 = vadd.f32 %v3291, %v3744
      %3746 = vmatprep.mubr.bf16.mxu0 %v3175
      %3747 = vmatmul.mubr.bf16.gmra.mxu0 %v3174
      %v3748 = vpop.f32.mrf.mxu0
      %v3749 = vadd.f32 %v3287, %v3748
      %v3750 = vpop.f32.mrf.mxu0
      %v3751 = vadd.f32 %v3291, %v3750
      %v3752 = vpop.f32.mrf.mxu0
      %v3753 = vadd.f32 %v3287, %v3752
      %v3754 = vpop.f32.mrf.mxu0
      %v3755 = vadd.f32 %v3291, %v3754
      %3756 = vmatprep.mubr.bf16.mxu0 %v3177
      %3757 = vmatmul.mubr.bf16.gmra.mxu0 %v3176
      %v3758 = vpop.f32.mrf.mxu0
      %v3759 = vadd.f32 %v3287, %v3758
      %v3760 = vpop.f32.mrf.mxu0
      %v3761 = vadd.f32 %v3291, %v3760
      %v3762 = vpop.f32.mrf.mxu0
      %v3763 = vadd.f32 %v3287, %v3762
      %v3764 = vpop.f32.mrf.mxu0
      %v3765 = vadd.f32 %v3291, %v3764
      %3766 = vmatprep.mubr.bf16.mxu0 %v3179
      %3767 = vmatmul.mubr.bf16.gmra.mxu0 %v3178
      %v3768 = vpop.f32.mrf.mxu0
      %v3769 = vadd.f32 %v3287, %v3768
      %v3770 = vpop.f32.mrf.mxu0
      %v3771 = vadd.f32 %v3291, %v3770
      %v3772 = vpop.f32.mrf.mxu0
      %v3773 = vadd.f32 %v3287, %v3772
      %v3774 = vpop.f32.mrf.mxu0
      %v3775 = vadd.f32 %v3291, %v3774
      %3776 = vmatprep.mubr.bf16.mxu0 %v3181
      %3777 = vmatmul.mubr.bf16.gmra.mxu0 %v3180
      %v3778 = vpop.f32.mrf.mxu0
      %v3779 = vadd.f32 %v3287, %v3778
      %v3780 = vpop.f32.mrf.mxu0
      %v3781 = vadd.f32 %v3291, %v3780
      %v3782 = vpop.f32.mrf.mxu0
      %v3783 = vadd.f32 %v3287, %v3782
      %v3784 = vpop.f32.mrf.mxu0
      %v3785 = vadd.f32 %v3291, %v3784
      %3786 = vmatprep.mubr.bf16.mxu0 %v3183
      %3787 = vmatmul.mubr.bf16.gmra.mxu0 %v3182
      %v3788 = vpop.f32.mrf.mxu0
      %v3789 = vadd.f32 %v3287, %v3788
      %v3790 = vpop.f32.mrf.mxu0
      %v3791 = vadd.f32 %v3291, %v3790
      %v3792 = vpop.f32.mrf.mxu0
      %v3793 = vadd.f32 %v3287, %v3792
      %v3794 = vpop.f32.mrf.mxu0
      %v3795 = vadd.f32 %v3291, %v3794
      %3796 = vmatprep.mubr.bf16.mxu0 %v3185
      %3797 = vmatmul.mubr.bf16.gmra.mxu0 %v3184
      %v3798 = vpop.f32.mrf.mxu0
      %v3799 = vadd.f32 %v3287, %v3798
      %v3800 = vpop.f32.mrf.mxu0
      %v3801 = vadd.f32 %v3291, %v3800
      %v3802 = vpop.f32.mrf.mxu0
      %v3803 = vadd.f32 %v3287, %v3802
      %v3804 = vpop.f32.mrf.mxu0
      %v3805 = vadd.f32 %v3291, %v3804
      %3806 = vmatprep.mubr.bf16.mxu0 %v3187
      %3807 = vmatmul.mubr.bf16.gmra.mxu0 %v3186
      %v3808 = vpop.f32.mrf.mxu0
      %v3809 = vadd.f32 %v3287, %v3808
      %v3810 = vpop.f32.mrf.mxu0
      %v3811 = vadd.f32 %v3291, %v3810
      %v3812 = vpop.f32.mrf.mxu0
      %v3813 = vadd.f32 %v3287, %v3812
      %v3814 = vpop.f32.mrf.mxu0
      %v3815 = vadd.f32 %v3291, %v3814
      %3816 = vmatprep.mubr.bf16.mxu0 %v3189
      %3817 = vmatmul.mubr.bf16.gmra.mxu0 %v3188
      %v3818 = vpop.f32.mrf.mxu0
      %v3819 = vadd.f32 %v3287, %v3818
      %v3820 = vpop.f32.mrf.mxu0
      %v3821 = vadd.f32 %v3291, %v3820
      %v3822 = vpop.f32.mrf.mxu0
      %v3823 = vadd.f32 %v3287, %v3822
      %v3824 = vpop.f32.mrf.mxu0
      %v3825 = vadd.f32 %v3291, %v3824
      %3826 = vmatprep.mubr.bf16.mxu0 %v3191
      %3827 = vmatmul.mubr.bf16.gmra.mxu0 %v3190
      %v3828 = vpop.f32.mrf.mxu0
      %v3829 = vadd.f32 %v3287, %v3828
      %v3830 = vpop.f32.mrf.mxu0
      %v3831 = vadd.f32 %v3291, %v3830
      %v3832 = vpop.f32.mrf.mxu0
      %v3833 = vadd.f32 %v3287, %v3832
      %v3834 = vpop.f32.mrf.mxu0
      %v3835 = vadd.f32 %v3291, %v3834
      %3836 = vmatprep.mubr.bf16.mxu0 %v3193
      %3837 = vmatmul.mubr.bf16.gmra.mxu0 %v3192
      %v3838 = vpop.f32.mrf.mxu0
      %v3839 = vadd.f32 %v3287, %v3838
      %v3840 = vpop.f32.mrf.mxu0
      %v3841 = vadd.f32 %v3291, %v3840
      %v3842 = vpop.f32.mrf.mxu0
      %v3843 = vadd.f32 %v3287, %v3842
      %v3844 = vpop.f32.mrf.mxu0
      %v3845 = vadd.f32 %v3291, %v3844
      %3846 = vmatprep.mubr.bf16.mxu0 %v3195
      %3847 = vmatmul.mubr.bf16.gmra.mxu0 %v3194
      %v3848 = vpop.f32.mrf.mxu0
      %v3849 = vadd.f32 %v3287, %v3848
      %v3850 = vpop.f32.mrf.mxu0
      %v3851 = vadd.f32 %v3291, %v3850
      %v3852 = vpop.f32.mrf.mxu0
      %v3853 = vadd.f32 %v3287, %v3852
      %v3854 = vpop.f32.mrf.mxu0
      %v3855 = vadd.f32 %v3291, %v3854
      %3856 = vmatprep.mubr.bf16.mxu0 %v3197
      %3857 = vmatmul.mubr.bf16.gmra.mxu0 %v3196
      %v3858 = vpop.f32.mrf.mxu0
      %v3859 = vadd.f32 %v3287, %v3858
      %v3860 = vpop.f32.mrf.mxu0
      %v3861 = vadd.f32 %v3291, %v3860
      %v3862 = vpop.f32.mrf.mxu0
      %v3863 = vadd.f32 %v3287, %v3862
      %v3864 = vpop.f32.mrf.mxu0
      %v3865 = vadd.f32 %v3291, %v3864
      %3866 = vmatprep.mubr.bf16.mxu0 %v3199
      %3867 = vmatmul.mubr.bf16.gmra.mxu0 %v3198
      %v3868 = vpop.f32.mrf.mxu0
      %v3869 = vadd.f32 %v3287, %v3868
      %v3870 = vpop.f32.mrf.mxu0
      %v3871 = vadd.f32 %v3291, %v3870
      %v3872 = vpop.f32.mrf.mxu0
      %v3873 = vadd.f32 %v3287, %v3872
      %v3874 = vpop.f32.mrf.mxu0
      %v3875 = vadd.f32 %v3291, %v3874
      %3876 = vmatprep.mubr.bf16.mxu0 %v3201
      %3877 = vmatmul.mubr.bf16.gmra.mxu0 %v3200
      %v3878 = vpop.f32.mrf.mxu0
      %v3879 = vadd.f32 %v3287, %v3878
      %v3880 = vpop.f32.mrf.mxu0
      %v3881 = vadd.f32 %v3291, %v3880
      %v3882 = vpop.f32.mrf.mxu0
      %v3883 = vadd.f32 %v3287, %v3882
      %v3884 = vpop.f32.mrf.mxu0
      %v3885 = vadd.f32 %v3291, %v3884
      %3886 = vmatprep.mubr.bf16.mxu0 %v3203
      %3887 = vmatmul.mubr.bf16.gmra.mxu0 %v3202
      %v3888 = vpop.f32.mrf.mxu0
      %v3889 = vadd.f32 %v3287, %v3888
      %v3890 = vpop.f32.mrf.mxu0
      %v3891 = vadd.f32 %v3291, %v3890
      %v3892 = vpop.f32.mrf.mxu0
      %v3893 = vadd.f32 %v3287, %v3892
      %v3894 = vpop.f32.mrf.mxu0
      %v3895 = vadd.f32 %v3291, %v3894
      %3896 = vmatprep.mubr.bf16.mxu0 %v3205
      %3897 = vmatmul.mubr.bf16.gmra.mxu0 %v3204
      %v3898 = vpop.f32.mrf.mxu0
      %v3899 = vadd.f32 %v3287, %v3898
      %v3900 = vpop.f32.mrf.mxu0
      %v3901 = vadd.f32 %v3291, %v3900
      %v3902 = vpop.f32.mrf.mxu0
      %v3903 = vadd.f32 %v3287, %v3902
      %v3904 = vpop.f32.mrf.mxu0
      %v3905 = vadd.f32 %v3291, %v3904
      %3906 = vmatprep.mubr.bf16.mxu0 %v3207
      %3907 = vmatmul.mubr.bf16.gmra.mxu0 %v3206
      %v3908 = vpop.f32.mrf.mxu0
      %v3909 = vadd.f32 %v3287, %v3908
      %v3910 = vpop.f32.mrf.mxu0
      %v3911 = vadd.f32 %v3291, %v3910
      %v3912 = vpop.f32.mrf.mxu0
      %v3913 = vadd.f32 %v3287, %v3912
      %v3914 = vpop.f32.mrf.mxu0
      %v3915 = vadd.f32 %v3291, %v3914
      %3916 = vmatprep.mubr.bf16.mxu0 %v3209
      %3917 = vmatmul.mubr.bf16.gmra.mxu0 %v3208
      %v3918 = vpop.f32.mrf.mxu0
      %v3919 = vadd.f32 %v3287, %v3918
      %v3920 = vpop.f32.mrf.mxu0
      %v3921 = vadd.f32 %v3291, %v3920
      %v3922 = vpop.f32.mrf.mxu0
      %v3923 = vadd.f32 %v3287, %v3922
      %v3924 = vpop.f32.mrf.mxu0
      %v3925 = vadd.f32 %v3291, %v3924
      %3926 = vmatprep.mubr.bf16.mxu0 %v3211
      %3927 = vmatmul.mubr.bf16.gmra.mxu0 %v3210
      %v3928 = vpop.f32.mrf.mxu0
      %v3929 = vadd.f32 %v3287, %v3928
      %v3930 = vpop.f32.mrf.mxu0
      %v3931 = vadd.f32 %v3291, %v3930
      %v3932 = vpop.f32.mrf.mxu0
      %v3933 = vadd.f32 %v3287, %v3932
      %v3934 = vpop.f32.mrf.mxu0
      %v3935 = vadd.f32 %v3291, %v3934
      %3936 = vmatprep.mubr.bf16.mxu0 %v3213
      %3937 = vmatmul.mubr.bf16.gmra.mxu0 %v3212
      %v3938 = vpop.f32.mrf.mxu0
      %v3939 = vadd.f32 %v3287, %v3938
      %v3940 = vpop.f32.mrf.mxu0
      %v3941 = vadd.f32 %v3291, %v3940
      %v3942 = vpop.f32.mrf.mxu0
      %v3943 = vadd.f32 %v3287, %v3942
      %v3944 = vpop.f32.mrf.mxu0
      %v3945 = vadd.f32 %v3291, %v3944
      %3946 = vmatprep.mubr.bf16.mxu0 %v3215
      %3947 = vmatmul.mubr.bf16.gmra.mxu0 %v3214
      %v3948 = vpop.f32.mrf.mxu0
      %v3949 = vadd.f32 %v3287, %v3948
      %v3950 = vpop.f32.mrf.mxu0
      %v3951 = vadd.f32 %v3291, %v3950
      %v3952 = vpop.f32.mrf.mxu0
      %v3953 = vadd.f32 %v3287, %v3952
      %v3954 = vpop.f32.mrf.mxu0
      %v3955 = vadd.f32 %v3291, %v3954
      %3956 = vmatprep.mubr.bf16.mxu0 %v3217
      %3957 = vmatmul.mubr.bf16.gmra.mxu0 %v3216
      %v3958 = vpop.f32.mrf.mxu0
      %v3959 = vadd.f32 %v3287, %v3958
      %v3960 = vpop.f32.mrf.mxu0
      %v3961 = vadd.f32 %v3291, %v3960
      %v3962 = vpop.f32.mrf.mxu0
      %v3963 = vadd.f32 %v3287, %v3962
      %v3964 = vpop.f32.mrf.mxu0
      %v3965 = vadd.f32 %v3291, %v3964
      %3966 = vmatprep.mubr.bf16.mxu0 %v3219
      %3967 = vmatmul.mubr.bf16.gmra.mxu0 %v3218
      %v3968 = vpop.f32.mrf.mxu0
      %v3969 = vadd.f32 %v3287, %v3968
      %v3970 = vpop.f32.mrf.mxu0
      %v3971 = vadd.f32 %v3291, %v3970
      %v3972 = vpop.f32.mrf.mxu0
      %v3973 = vadd.f32 %v3287, %v3972
      %v3974 = vpop.f32.mrf.mxu0
      %v3975 = vadd.f32 %v3291, %v3974
      %3976 = vmatprep.mubr.bf16.mxu0 %v3221
      %3977 = vmatmul.mubr.bf16.gmra.mxu0 %v3220
      %v3978 = vpop.f32.mrf.mxu0
      %v3979 = vadd.f32 %v3287, %v3978
      %v3980 = vpop.f32.mrf.mxu0
      %v3981 = vadd.f32 %v3291, %v3980
      %v3982 = vpop.f32.mrf.mxu0
      %v3983 = vadd.f32 %v3287, %v3982
      %v3984 = vpop.f32.mrf.mxu0
      %v3985 = vadd.f32 %v3291, %v3984
      %3986 = vmatprep.mubr.bf16.mxu0 %v3223
      %3987 = vmatmul.mubr.bf16.gmra.mxu0 %v3222
      %v3988 = vpop.f32.mrf.mxu0
      %v3989 = vadd.f32 %v3287, %v3988
      %v3990 = vpop.f32.mrf.mxu0
      %v3991 = vadd.f32 %v3291, %v3990
      %v3992 = vpop.f32.mrf.mxu0
      %v3993 = vadd.f32 %v3287, %v3992
      %v3994 = vpop.f32.mrf.mxu0
      %v3995 = vadd.f32 %v3291, %v3994
      %3996 = vmatprep.mubr.bf16.mxu0 %v3225
      %3997 = vmatmul.mubr.bf16.gmra.mxu0 %v3224
      %v3998 = vpop.f32.mrf.mxu0
      %v3999 = vadd.f32 %v3287, %v3998
      %v4000 = vpop.f32.mrf.mxu0
      %v4001 = vadd.f32 %v3291, %v4000
      %v4002 = vpop.f32.mrf.mxu0
      %v4003 = vadd.f32 %v3287, %v4002
      %v4004 = vpop.f32.mrf.mxu0
      %v4005 = vadd.f32 %v3291, %v4004
      %4006 = vmatprep.mubr.bf16.mxu0 %v3227
      %4007 = vmatmul.mubr.bf16.gmra.mxu0 %v3226
      %v4008 = vpop.f32.mrf.mxu0
      %v4009 = vadd.f32 %v3287, %v4008
      %v4010 = vpop.f32.mrf.mxu0
      %v4011 = vadd.f32 %v3291, %v4010
      %v4012 = vpop.f32.mrf.mxu0
      %v4013 = vadd.f32 %v3287, %v4012
      %v4014 = vpop.f32.mrf.mxu0
      %v4015 = vadd.f32 %v3291, %v4014
      %4016 = vmatprep.mubr.bf16.mxu0 %v3229
      %4017 = vmatmul.mubr.bf16.gmra.mxu0 %v3228
      %v4018 = vpop.f32.mrf.mxu0
      %v4019 = vadd.f32 %v3287, %v4018
      %v4020 = vpop.f32.mrf.mxu0
      %v4021 = vadd.f32 %v3291, %v4020
      %v4022 = vpop.f32.mrf.mxu0
      %v4023 = vadd.f32 %v3287, %v4022
      %v4024 = vpop.f32.mrf.mxu0
      %v4025 = vadd.f32 %v3291, %v4024
      %4026 = vmatprep.mubr.bf16.mxu0 %v3231
      %4027 = vmatmul.mubr.bf16.gmra.mxu0 %v3230
      %v4028 = vpop.f32.mrf.mxu0
      %v4029 = vadd.f32 %v3287, %v4028
      %v4030 = vpop.f32.mrf.mxu0
      %v4031 = vadd.f32 %v3291, %v4030
      %v4032 = vpop.f32.mrf.mxu0
      %v4033 = vadd.f32 %v3287, %v4032
      %v4034 = vpop.f32.mrf.mxu0
      %v4035 = vadd.f32 %v3291, %v4034
      %4036 = vmatprep.mubr.bf16.mxu0 %v3233
      %4037 = vmatmul.mubr.bf16.gmra.mxu0 %v3232
      %v4038 = vpop.f32.mrf.mxu0
      %v4039 = vadd.f32 %v3287, %v4038
      %v4040 = vpop.f32.mrf.mxu0
      %v4041 = vadd.f32 %v3291, %v4040
      %v4042 = vpop.f32.mrf.mxu0
      %v4043 = vadd.f32 %v3287, %v4042
      %v4044 = vpop.f32.mrf.mxu0
      %v4045 = vadd.f32 %v3291, %v4044
      %4046 = vmatprep.mubr.bf16.mxu0 %v3235
      %4047 = vmatmul.mubr.bf16.gmra.mxu0 %v3234
      %v4048 = vpop.f32.mrf.mxu0
      %v4049 = vadd.f32 %v3287, %v4048
      %v4050 = vpop.f32.mrf.mxu0
      %v4051 = vadd.f32 %v3291, %v4050
      %v4052 = vpop.f32.mrf.mxu0
      %v4053 = vadd.f32 %v3287, %v4052
      %v4054 = vpop.f32.mrf.mxu0
      %v4055 = vadd.f32 %v3291, %v4054
      %4056 = vmatprep.mubr.bf16.mxu0 %v3237
      %4057 = vmatmul.mubr.bf16.gmra.mxu0 %v3236
      %v4058 = vpop.f32.mrf.mxu0
      %v4059 = vadd.f32 %v3287, %v4058
      %v4060 = vpop.f32.mrf.mxu0
      %v4061 = vadd.f32 %v3291, %v4060
      %v4062 = vpop.f32.mrf.mxu0
      %v4063 = vadd.f32 %v3287, %v4062
      %v4064 = vpop.f32.mrf.mxu0
      %v4065 = vadd.f32 %v3291, %v4064
      %4066 = vmatprep.mubr.bf16.mxu0 %v3239
      %4067 = vmatmul.mubr.bf16.gmra.mxu0 %v3238
      %v4068 = vpop.f32.mrf.mxu0
      %v4069 = vadd.f32 %v3287, %v4068
      %v4070 = vpop.f32.mrf.mxu0
      %v4071 = vadd.f32 %v3291, %v4070
      %v4072 = vpop.f32.mrf.mxu0
      %v4073 = vadd.f32 %v3287, %v4072
      %v4074 = vpop.f32.mrf.mxu0
      %v4075 = vadd.f32 %v3291, %v4074
      %4076 = vmatprep.mubr.bf16.mxu0 %v3241
      %4077 = vmatmul.mubr.bf16.gmra.mxu0 %v3240
      %v4078 = vpop.f32.mrf.mxu0
      %v4079 = vadd.f32 %v3287, %v4078
      %v4080 = vpop.f32.mrf.mxu0
      %v4081 = vadd.f32 %v3291, %v4080
      %v4082 = vpop.f32.mrf.mxu0
      %v4083 = vadd.f32 %v3287, %v4082
      %v4084 = vpop.f32.mrf.mxu0
      %v4085 = vadd.f32 %v3291, %v4084
      %4086 = vmatprep.mubr.bf16.mxu0 %v3243
      %4087 = vmatmul.mubr.bf16.gmra.mxu0 %v3242
      %v4088 = vpop.f32.mrf.mxu0
      %v4089 = vadd.f32 %v3287, %v4088
      %v4090 = vpop.f32.mrf.mxu0
      %v4091 = vadd.f32 %v3291, %v4090
      %v4092 = vpop.f32.mrf.mxu0
      %v4093 = vadd.f32 %v3287, %v4092
      %v4094 = vpop.f32.mrf.mxu0
      %v4095 = vadd.f32 %v3291, %v4094
      %4096 = vmatprep.mubr.bf16.mxu0 %v3245
      %4097 = vmatmul.mubr.bf16.gmra.mxu0 %v3244
      %v4098 = vpop.f32.mrf.mxu0
      %v4099 = vadd.f32 %v3287, %v4098
      %v4100 = vpop.f32.mrf.mxu0
      %v4101 = vadd.f32 %v3291, %v4100
      %v4102 = vpop.f32.mrf.mxu0
      %v4103 = vadd.f32 %v3287, %v4102
      %v4104 = vpop.f32.mrf.mxu0
      %v4105 = vadd.f32 %v3291, %v4104
      %4106 = vmatprep.mubr.bf16.mxu0 %v3247
      %4107 = vmatmul.mubr.bf16.gmra.mxu0 %v3246
      %v4108 = vpop.f32.mrf.mxu0
      %v4109 = vadd.f32 %v3287, %v4108
      %v4110 = vpop.f32.mrf.mxu0
      %v4111 = vadd.f32 %v3291, %v4110
      %v4112 = vpop.f32.mrf.mxu0
      %v4113 = vadd.f32 %v3287, %v4112
      %v4114 = vpop.f32.mrf.mxu0
      %v4115 = vadd.f32 %v3291, %v4114
      %4116 = vmatprep.mubr.bf16.mxu0 %v3249
      %4117 = vmatmul.mubr.bf16.gmra.mxu0 %v3248
      %v4118 = vpop.f32.mrf.mxu0
      %v4119 = vadd.f32 %v3287, %v4118
      %v4120 = vpop.f32.mrf.mxu0
      %v4121 = vadd.f32 %v3291, %v4120
      %v4122 = vpop.f32.mrf.mxu0
      %v4123 = vadd.f32 %v3287, %v4122
      %v4124 = vpop.f32.mrf.mxu0
      %v4125 = vadd.f32 %v3291, %v4124
      %4126 = vdwg.mxu0
      %v4127 = vpack.c.bf16 %v3493, %v3489
      %v4128 = vpack.c.bf16 %v3495, %v3491
      %v4129 = vpack.c.bf16 %v3503, %v3499
      %v4130 = vpack.c.bf16 %v3505, %v3501
      %v4131 = vpack.c.bf16 %v3513, %v3509
      %v4132 = vpack.c.bf16 %v3515, %v3511
      %v4133 = vpack.c.bf16 %v3523, %v3519
      %v4134 = vpack.c.bf16 %v3525, %v3521
      %v4135 = vpack.c.bf16 %v3533, %v3529
      %v4136 = vpack.c.bf16 %v3535, %v3531
      %v4137 = vpack.c.bf16 %v3543, %v3539
      %v4138 = vpack.c.bf16 %v3545, %v3541
      %v4139 = vpack.c.bf16 %v3553, %v3549
      %v4140 = vpack.c.bf16 %v3555, %v3551
      %v4141 = vpack.c.bf16 %v3563, %v3559
      %v4142 = vpack.c.bf16 %v3565, %v3561
      %v4143 = vpack.c.bf16 %v3573, %v3569
      %v4144 = vpack.c.bf16 %v3575, %v3571
      %v4145 = vpack.c.bf16 %v3583, %v3579
      %v4146 = vpack.c.bf16 %v3585, %v3581
      %v4147 = vpack.c.bf16 %v3593, %v3589
      %v4148 = vpack.c.bf16 %v3595, %v3591
      %v4149 = vpack.c.bf16 %v3603, %v3599
      %v4150 = vpack.c.bf16 %v3605, %v3601
      %v4151 = vpack.c.bf16 %v3613, %v3609
      %v4152 = vpack.c.bf16 %v3615, %v3611
      %v4153 = vpack.c.bf16 %v3623, %v3619
      %v4154 = vpack.c.bf16 %v3625, %v3621
      %v4155 = vpack.c.bf16 %v3633, %v3629
      %v4156 = vpack.c.bf16 %v3635, %v3631
      %v4157 = vpack.c.bf16 %v3643, %v3639
      %v4158 = vpack.c.bf16 %v3645, %v3641
      %v4159 = vpack.c.bf16 %v3653, %v3649
      %v4160 = vpack.c.bf16 %v3655, %v3651
      %v4161 = vpack.c.bf16 %v3663, %v3659
      %v4162 = vpack.c.bf16 %v3665, %v3661
      %v4163 = vpack.c.bf16 %v3673, %v3669
      %v4164 = vpack.c.bf16 %v3675, %v3671
      %v4165 = vpack.c.bf16 %v3683, %v3679
      %v4166 = vpack.c.bf16 %v3685, %v3681
      %v4167 = vpack.c.bf16 %v3693, %v3689
      %v4168 = vpack.c.bf16 %v3695, %v3691
      %v4169 = vpack.c.bf16 %v3703, %v3699
      %v4170 = vpack.c.bf16 %v3705, %v3701
      %v4171 = vpack.c.bf16 %v3713, %v3709
      %v4172 = vpack.c.bf16 %v3715, %v3711
      %v4173 = vpack.c.bf16 %v3723, %v3719
      %v4174 = vpack.c.bf16 %v3725, %v3721
      %v4175 = vpack.c.bf16 %v3733, %v3729
      %v4176 = vpack.c.bf16 %v3735, %v3731
      %v4177 = vpack.c.bf16 %v3743, %v3739
      %v4178 = vpack.c.bf16 %v3745, %v3741
      %v4179 = vpack.c.bf16 %v3753, %v3749
      %v4180 = vpack.c.bf16 %v3755, %v3751
      %v4181 = vpack.c.bf16 %v3763, %v3759
      %v4182 = vpack.c.bf16 %v3765, %v3761
      %v4183 = vpack.c.bf16 %v3773, %v3769
      %v4184 = vpack.c.bf16 %v3775, %v3771
      %v4185 = vpack.c.bf16 %v3783, %v3779
      %v4186 = vpack.c.bf16 %v3785, %v3781
      %v4187 = vpack.c.bf16 %v3793, %v3789
      %v4188 = vpack.c.bf16 %v3795, %v3791
      %v4189 = vpack.c.bf16 %v3803, %v3799
      %v4190 = vpack.c.bf16 %v3805, %v3801
      %v4191 = vpack.c.bf16 %v3813, %v3809
      %v4192 = vpack.c.bf16 %v3815, %v3811
      %v4193 = vpack.c.bf16 %v3823, %v3819
      %v4194 = vpack.c.bf16 %v3825, %v3821
      %v4195 = vpack.c.bf16 %v3833, %v3829
      %v4196 = vpack.c.bf16 %v3835, %v3831
      %v4197 = vpack.c.bf16 %v3843, %v3839
      %v4198 = vpack.c.bf16 %v3845, %v3841
      %v4199 = vpack.c.bf16 %v3853, %v3849
      %v4200 = vpack.c.bf16 %v3855, %v3851
      %v4201 = vpack.c.bf16 %v3863, %v3859
      %v4202 = vpack.c.bf16 %v3865, %v3861
      %v4203 = vpack.c.bf16 %v3873, %v3869
      %v4204 = vpack.c.bf16 %v3875, %v3871
      %v4205 = vpack.c.bf16 %v3883, %v3879
      %v4206 = vpack.c.bf16 %v3885, %v3881
      %v4207 = vpack.c.bf16 %v3893, %v3889
      %v4208 = vpack.c.bf16 %v3895, %v3891
      %v4209 = vpack.c.bf16 %v3903, %v3899
      %v4210 = vpack.c.bf16 %v3905, %v3901
      %v4211 = vpack.c.bf16 %v3913, %v3909
      %v4212 = vpack.c.bf16 %v3915, %v3911
      %v4213 = vpack.c.bf16 %v3923, %v3919
      %v4214 = vpack.c.bf16 %v3925, %v3921
      %v4215 = vpack.c.bf16 %v3933, %v3929
      %v4216 = vpack.c.bf16 %v3935, %v3931
      %v4217 = vpack.c.bf16 %v3943, %v3939
      %v4218 = vpack.c.bf16 %v3945, %v3941
      %v4219 = vpack.c.bf16 %v3953, %v3949
      %v4220 = vpack.c.bf16 %v3955, %v3951
      %v4221 = vpack.c.bf16 %v3963, %v3959
      %v4222 = vpack.c.bf16 %v3965, %v3961
      %v4223 = vpack.c.bf16 %v3973, %v3969
      %v4224 = vpack.c.bf16 %v3975, %v3971
      %v4225 = vpack.c.bf16 %v3983, %v3979
      %v4226 = vpack.c.bf16 %v3985, %v3981
      %v4227 = vpack.c.bf16 %v3993, %v3989
      %v4228 = vpack.c.bf16 %v3995, %v3991
      %v4229 = vpack.c.bf16 %v4003, %v3999
      %v4230 = vpack.c.bf16 %v4005, %v4001
      %v4231 = vpack.c.bf16 %v4013, %v4009
      %v4232 = vpack.c.bf16 %v4015, %v4011
      %v4233 = vpack.c.bf16 %v4023, %v4019
      %v4234 = vpack.c.bf16 %v4025, %v4021
      %v4235 = vpack.c.bf16 %v4033, %v4029
      %v4236 = vpack.c.bf16 %v4035, %v4031
      %v4237 = vpack.c.bf16 %v4043, %v4039
      %v4238 = vpack.c.bf16 %v4045, %v4041
      %v4239 = vpack.c.bf16 %v4053, %v4049
      %v4240 = vpack.c.bf16 %v4055, %v4051
      %v4241 = vpack.c.bf16 %v4063, %v4059
      %v4242 = vpack.c.bf16 %v4065, %v4061
      %v4243 = vpack.c.bf16 %v4073, %v4069
      %v4244 = vpack.c.bf16 %v4075, %v4071
      %v4245 = vpack.c.bf16 %v4083, %v4079
      %v4246 = vpack.c.bf16 %v4085, %v4081
      %v4247 = vpack.c.bf16 %v4093, %v4089
      %v4248 = vpack.c.bf16 %v4095, %v4091
      %v4249 = vpack.c.bf16 %v4103, %v4099
      %v4250 = vpack.c.bf16 %v4105, %v4101
      %v4251 = vpack.c.bf16 %v4113, %v4109
      %v4252 = vpack.c.bf16 %v4115, %v4111
      %v4253 = vpack.c.bf16 %v4123, %v4119
      %v4254 = vpack.c.bf16 %v4125, %v4121
      %v4255 = vld [vmem:[%s8] sm:$0xff]
      %v4256 = vld [vmem:[%s8 + $0x8] sm:$0xff]
      %v4257 = vld [vmem:[%s8 + $0x10] sm:$0xff]
      %v4258 = vld [vmem:[%s8 + $0x18] sm:$0xff]
      %v4259 = vld [vmem:[%s8 + $0x20] sm:$0xff]
      %v4260 = vld [vmem:[%s8 + $0x28] sm:$0xff]
      %v4261 = vld [vmem:[%s8 + $0x30] sm:$0xff]
      %v4262 = vld [vmem:[%s8 + $0x38] sm:$0xff]
      %v4263 = vld [vmem:[%s8 + $0x40] sm:$0xff]
      %v4264 = vld [vmem:[%s8 + $0x48] sm:$0xff]
      %v4265 = vld [vmem:[%s8 + $0x50] sm:$0xff]
      %v4266 = vld [vmem:[%s8 + $0x58] sm:$0xff]
      %v4267 = vld [vmem:[%s8 + $0x60] sm:$0xff]
      %v4268 = vld [vmem:[%s8 + $0x68] sm:$0xff]
      %v4269 = vld [vmem:[%s8 + $0x70] sm:$0xff]
      %v4270 = vld [vmem:[%s8 + $0x78] sm:$0xff]
      %v4271 = vld [vmem:[%s8 + $0x80] sm:$0xff]
      %v4272 = vld [vmem:[%s8 + $0x88] sm:$0xff]
      %v4273 = vld [vmem:[%s8 + $0x90] sm:$0xff]
      %v4274 = vld [vmem:[%s8 + $0x98] sm:$0xff]
      %v4275 = vld [vmem:[%s8 + $0xa0] sm:$0xff]
      %v4276 = vld [vmem:[%s8 + $0xa8] sm:$0xff]
      %v4277 = vld [vmem:[%s8 + $0xb0] sm:$0xff]
      %v4278 = vld [vmem:[%s8 + $0xb8] sm:$0xff]
      %v4279 = vld [vmem:[%s8 + $0xc0] sm:$0xff]
      %v4280 = vld [vmem:[%s8 + $0xc8] sm:$0xff]
      %v4281 = vld [vmem:[%s8 + $0xd0] sm:$0xff]
      %v4282 = vld [vmem:[%s8 + $0xd8] sm:$0xff]
      %v4283 = vld [vmem:[%s8 + $0xe0] sm:$0xff]
      %v4284 = vld [vmem:[%s8 + $0xe8] sm:$0xff]
      %v4285 = vld [vmem:[%s8 + $0xf0] sm:$0xff]
      %v4286 = vld [vmem:[%s8 + $0xf8] sm:$0xff]
      %v4287 = vld [vmem:[%s8 + $0x100] sm:$0xff]
      %v4288 = vld [vmem:[%s8 + $0x108] sm:$0xff]
      %v4289 = vld [vmem:[%s8 + $0x110] sm:$0xff]
      %v4290 = vld [vmem:[%s8 + $0x118] sm:$0xff]
      %v4291 = vld [vmem:[%s8 + $0x120] sm:$0xff]
      %v4292 = vld [vmem:[%s8 + $0x128] sm:$0x11]
      %v4293 = vld [vmem:[%s9] sm:$0x3]
      %v4295 = vlaneseq
      %v4296 = vshrl.u32 %v4295, 7
      %v4297 = vsub.s32 0, %v4296
      %v4298 = vrot.slane %v4293, %v4297
      %v4299 = vlaneseq
      %v4300 = vshrl.u32 %v4299, 7
      %v4301 = vsub.s32 1, %v4300
      %v4302 = vrot.slane %v4293, %v4301
      %v4343 = vunpack.c.l.b16 %v4255
      %v4344 = vunpack.c.h.b16 %v4255
      %v4345 = vunpack.c.l.b16 %v4256
      %v4346 = vunpack.c.h.b16 %v4256
      %v4347 = vunpack.c.l.b16 %v4257
      %v4348 = vunpack.c.h.b16 %v4257
      %v4349 = vunpack.c.l.b16 %v4258
      %v4350 = vunpack.c.h.b16 %v4258
      %v4351 = vunpack.c.l.b16 %v4259
      %v4352 = vunpack.c.h.b16 %v4259
      %v4353 = vunpack.c.l.b16 %v4260
      %v4354 = vunpack.c.h.b16 %v4260
      %v4355 = vunpack.c.l.b16 %v4261
      %v4356 = vunpack.c.h.b16 %v4261
      %v4357 = vunpack.c.l.b16 %v4262
      %v4358 = vunpack.c.h.b16 %v4262
      %v4359 = vunpack.c.l.b16 %v4263
      %v4360 = vunpack.c.h.b16 %v4263
      %v4361 = vunpack.c.l.b16 %v4264
      %v4362 = vunpack.c.h.b16 %v4264
      %v4363 = vunpack.c.l.b16 %v4265
      %v4364 = vunpack.c.h.b16 %v4265
      %v4365 = vunpack.c.l.b16 %v4266
      %v4366 = vunpack.c.h.b16 %v4266
      %v4367 = vunpack.c.l.b16 %v4267
      %v4368 = vunpack.c.h.b16 %v4267
      %v4369 = vunpack.c.l.b16 %v4268
      %v4370 = vunpack.c.h.b16 %v4268
      %v4371 = vunpack.c.l.b16 %v4269
      %v4372 = vunpack.c.h.b16 %v4269
      %v4373 = vunpack.c.l.b16 %v4270
      %v4374 = vunpack.c.h.b16 %v4270
      %v4375 = vunpack.c.l.b16 %v4271
      %v4376 = vunpack.c.h.b16 %v4271
      %v4377 = vunpack.c.l.b16 %v4272
      %v4378 = vunpack.c.h.b16 %v4272
      %v4379 = vunpack.c.l.b16 %v4273
      %v4380 = vunpack.c.h.b16 %v4273
      %v4381 = vunpack.c.l.b16 %v4274
      %v4382 = vunpack.c.h.b16 %v4274
      %v4383 = vunpack.c.l.b16 %v4275
      %v4384 = vunpack.c.h.b16 %v4275
      %v4385 = vunpack.c.l.b16 %v4276
      %v4386 = vunpack.c.h.b16 %v4276
      %v4387 = vunpack.c.l.b16 %v4277
      %v4388 = vunpack.c.h.b16 %v4277
      %v4389 = vunpack.c.l.b16 %v4278
      %v4390 = vunpack.c.h.b16 %v4278
      %v4391 = vunpack.c.l.b16 %v4279
      %v4392 = vunpack.c.h.b16 %v4279
      %v4393 = vunpack.c.l.b16 %v4280
      %v4394 = vunpack.c.h.b16 %v4280
      %v4395 = vunpack.c.l.b16 %v4281
      %v4396 = vunpack.c.h.b16 %v4281
      %v4397 = vunpack.c.l.b16 %v4282
      %v4398 = vunpack.c.h.b16 %v4282
      %v4399 = vunpack.c.l.b16 %v4283
      %v4400 = vunpack.c.h.b16 %v4283
      %v4401 = vunpack.c.l.b16 %v4284
      %v4402 = vunpack.c.h.b16 %v4284
      %v4403 = vunpack.c.l.b16 %v4285
      %v4404 = vunpack.c.h.b16 %v4285
      %v4405 = vunpack.c.l.b16 %v4286
      %v4406 = vunpack.c.h.b16 %v4286
      %v4407 = vunpack.c.l.b16 %v4287
      %v4408 = vunpack.c.h.b16 %v4287
      %v4409 = vunpack.c.l.b16 %v4288
      %v4410 = vunpack.c.h.b16 %v4288
      %v4411 = vunpack.c.l.b16 %v4289
      %v4412 = vunpack.c.h.b16 %v4289
      %v4413 = vunpack.c.l.b16 %v4290
      %v4414 = vunpack.c.h.b16 %v4290
      %v4415 = vunpack.c.l.b16 %v4291
      %v4416 = vunpack.c.h.b16 %v4291
      %v4417 = vunpack.c.l.b16 %v4292
      %v4418 = vunpack.c.h.b16 %v4292
      %v4419 = vpack.c.b16 %v4345, %v4343
      %v4420 = vpack.c.b16 %v4346, %v4344
      %v4421 = vpack.c.b16 %v4349, %v4347
      %v4422 = vpack.c.b16 %v4350, %v4348
      %v4423 = vpack.c.b16 %v4353, %v4351
      %v4424 = vpack.c.b16 %v4354, %v4352
      %v4425 = vpack.c.b16 %v4357, %v4355
      %v4426 = vpack.c.b16 %v4358, %v4356
      %v4427 = vpack.c.b16 %v4361, %v4359
      %v4428 = vpack.c.b16 %v4362, %v4360
      %v4429 = vpack.c.b16 %v4365, %v4363
      %v4430 = vpack.c.b16 %v4366, %v4364
      %v4431 = vpack.c.b16 %v4369, %v4367
      %v4432 = vpack.c.b16 %v4370, %v4368
      %v4433 = vpack.c.b16 %v4373, %v4371
      %v4434 = vpack.c.b16 %v4374, %v4372
      %v4435 = vpack.c.b16 %v4377, %v4375
      %v4436 = vpack.c.b16 %v4378, %v4376
      %v4437 = vpack.c.b16 %v4381, %v4379
      %v4438 = vpack.c.b16 %v4382, %v4380
      %v4439 = vpack.c.b16 %v4385, %v4383
      %v4440 = vpack.c.b16 %v4386, %v4384
      %v4441 = vpack.c.b16 %v4389, %v4387
      %v4442 = vpack.c.b16 %v4390, %v4388
      %v4443 = vpack.c.b16 %v4393, %v4391
      %v4444 = vpack.c.b16 %v4394, %v4392
      %v4445 = vpack.c.b16 %v4397, %v4395
      %v4446 = vpack.c.b16 %v4398, %v4396
      %v4447 = vpack.c.b16 %v4401, %v4399
      %v4448 = vpack.c.b16 %v4402, %v4400
      %v4449 = vpack.c.b16 %v4405, %v4403
      %v4450 = vpack.c.b16 %v4406, %v4404
      %v4451 = vpack.c.b16 %v4409, %v4407
      %v4452 = vpack.c.b16 %v4410, %v4408
      %v4453 = vpack.c.b16 %v4413, %v4411
      %v4454 = vpack.c.b16 %v4414, %v4412
      %v4455 = vpack.c.b16 %v4417, %v4415
      %v4456 = vpack.c.b16 %v4418, %v4416
      %v4494 = vsel %vm925, %v4455, 0
      %v4497 = vsel %vm925, %v4456, 0
      %4499 = vmatprep.subr.bf16.mxu0 %v4434
      %4500 = vmatpush1.bf16.msra.mxu0 %v4433
      %4501 = vmatprep.subr.bf16.mxu0 %v4432
      %4502 = vmatpush1.bf16.msra.mxu0 %v4431
      %4503 = vmatprep.subr.bf16.mxu0 %v4430
      %4504 = vmatpush1.bf16.msra.mxu0 %v4429
      %4505 = vmatprep.subr.bf16.mxu0 %v4428
      %4506 = vmatpush1.bf16.msra.mxu0 %v4427
      %4507 = vmatprep.subr.bf16.mxu0 %v4426
      %4508 = vmatpush1.bf16.msra.mxu0 %v4425
      %4509 = vmatprep.subr.bf16.mxu0 %v4424
      %4510 = vmatpush1.bf16.msra.mxu0 %v4423
      %4511 = vmatprep.subr.bf16.mxu0 %v4422
      %4512 = vmatpush1.bf16.msra.mxu0 %v4421
      %4513 = vmatprep.subr.bf16.mxu0 %v4420
      %4514 = vmatpush1.bf16.msra.mxu0 %v4419
      %4515 = vmatprep.subr.bf16.mxu0 %v4450
      %4516 = vmatpush2.bf16.msra.mxu0 %v4449
      %4517 = vmatprep.subr.bf16.mxu0 %v4448
      %4518 = vmatpush2.bf16.msra.mxu0 %v4447
      %4519 = vmatprep.subr.bf16.mxu0 %v4446
      %4520 = vmatpush2.bf16.msra.mxu0 %v4445
      %4521 = vmatprep.subr.bf16.mxu0 %v4444
      %4522 = vmatpush2.bf16.msra.mxu0 %v4443
      %4523 = vmatprep.subr.bf16.mxu0 %v4442
      %4524 = vmatpush2.bf16.msra.mxu0 %v4441
      %4525 = vmatprep.subr.bf16.mxu0 %v4440
      %4526 = vmatpush2.bf16.msra.mxu0 %v4439
      %4527 = vmatprep.subr.bf16.mxu0 %v4438
      %4528 = vmatpush2.bf16.msra.mxu0 %v4437
      %4529 = vmatprep.subr.bf16.mxu0 %v4436
      %4530 = vmatpush2.bf16.msra.mxu0 %v4435
      %4531 = vmatprep.mubr.bf16.mxu0 %v4128
      %4532 = vmatmul.mubr.bf16.gmra.mxu0 %v4127
      %v4533 = vpop.f32.mrf.mxu0
      %v4534 = vadd.f32 %v4298, %v4533
      %v4535 = vpop.f32.mrf.mxu0
      %v4536 = vadd.f32 %v4302, %v4535
      %v4537 = vpop.f32.mrf.mxu0
      %v4538 = vadd.f32 %v4298, %v4537
      %v4539 = vpop.f32.mrf.mxu0
      %v4540 = vadd.f32 %v4302, %v4539
      %4541 = vmatprep.mubr.bf16.mxu0 %v4130
      %4542 = vmatmul.mubr.bf16.gmra.mxu0 %v4129
      %v4543 = vpop.f32.mrf.mxu0
      %v4544 = vadd.f32 %v4298, %v4543
      %v4545 = vpop.f32.mrf.mxu0
      %v4546 = vadd.f32 %v4302, %v4545
      %v4547 = vpop.f32.mrf.mxu0
      %v4548 = vadd.f32 %v4298, %v4547
      %v4549 = vpop.f32.mrf.mxu0
      %v4550 = vadd.f32 %v4302, %v4549
      %4551 = vmatprep.mubr.bf16.mxu0 %v4132
      %4552 = vmatmul.mubr.bf16.gmra.mxu0 %v4131
      %v4553 = vpop.f32.mrf.mxu0
      %v4554 = vadd.f32 %v4298, %v4553
      %v4555 = vpop.f32.mrf.mxu0
      %v4556 = vadd.f32 %v4302, %v4555
      %v4557 = vpop.f32.mrf.mxu0
      %v4558 = vadd.f32 %v4298, %v4557
      %v4559 = vpop.f32.mrf.mxu0
      %v4560 = vadd.f32 %v4302, %v4559
      %4561 = vmatprep.mubr.bf16.mxu0 %v4134
      %4562 = vmatmul.mubr.bf16.gmra.mxu0 %v4133
      %v4563 = vpop.f32.mrf.mxu0
      %v4564 = vadd.f32 %v4298, %v4563
      %v4565 = vpop.f32.mrf.mxu0
      %v4566 = vadd.f32 %v4302, %v4565
      %v4567 = vpop.f32.mrf.mxu0
      %v4568 = vadd.f32 %v4298, %v4567
      %v4569 = vpop.f32.mrf.mxu0
      %v4570 = vadd.f32 %v4302, %v4569
      %4571 = vmatprep.mubr.bf16.mxu0 %v4136
      %4572 = vmatmul.mubr.bf16.gmra.mxu0 %v4135
      %v4573 = vpop.f32.mrf.mxu0
      %v4574 = vadd.f32 %v4298, %v4573
      %v4575 = vpop.f32.mrf.mxu0
      %v4576 = vadd.f32 %v4302, %v4575
      %v4577 = vpop.f32.mrf.mxu0
      %v4578 = vadd.f32 %v4298, %v4577
      %v4579 = vpop.f32.mrf.mxu0
      %v4580 = vadd.f32 %v4302, %v4579
      %4581 = vmatprep.mubr.bf16.mxu0 %v4138
      %4582 = vmatmul.mubr.bf16.gmra.mxu0 %v4137
      %v4583 = vpop.f32.mrf.mxu0
      %v4584 = vadd.f32 %v4298, %v4583
      %v4585 = vpop.f32.mrf.mxu0
      %v4586 = vadd.f32 %v4302, %v4585
      %v4587 = vpop.f32.mrf.mxu0
      %v4588 = vadd.f32 %v4298, %v4587
      %v4589 = vpop.f32.mrf.mxu0
      %v4590 = vadd.f32 %v4302, %v4589
      %4591 = vmatprep.mubr.bf16.mxu0 %v4140
      %4592 = vmatmul.mubr.bf16.gmra.mxu0 %v4139
      %v4593 = vpop.f32.mrf.mxu0
      %v4594 = vadd.f32 %v4298, %v4593
      %v4595 = vpop.f32.mrf.mxu0
      %v4596 = vadd.f32 %v4302, %v4595
      %v4597 = vpop.f32.mrf.mxu0
      %v4598 = vadd.f32 %v4298, %v4597
      %v4599 = vpop.f32.mrf.mxu0
      %v4600 = vadd.f32 %v4302, %v4599
      %4601 = vmatprep.mubr.bf16.mxu0 %v4142
      %4602 = vmatmul.mubr.bf16.gmra.mxu0 %v4141
      %v4603 = vpop.f32.mrf.mxu0
      %v4604 = vadd.f32 %v4298, %v4603
      %v4605 = vpop.f32.mrf.mxu0
      %v4606 = vadd.f32 %v4302, %v4605
      %v4607 = vpop.f32.mrf.mxu0
      %v4608 = vadd.f32 %v4298, %v4607
      %v4609 = vpop.f32.mrf.mxu0
      %v4610 = vadd.f32 %v4302, %v4609
      %4611 = vmatprep.mubr.bf16.mxu0 %v4144
      %4612 = vmatmul.mubr.bf16.gmra.mxu0 %v4143
      %v4613 = vpop.f32.mrf.mxu0
      %v4614 = vadd.f32 %v4298, %v4613
      %v4615 = vpop.f32.mrf.mxu0
      %v4616 = vadd.f32 %v4302, %v4615
      %v4617 = vpop.f32.mrf.mxu0
      %v4618 = vadd.f32 %v4298, %v4617
      %v4619 = vpop.f32.mrf.mxu0
      %v4620 = vadd.f32 %v4302, %v4619
      %4621 = vmatprep.mubr.bf16.mxu0 %v4146
      %4622 = vmatmul.mubr.bf16.gmra.mxu0 %v4145
      %v4623 = vpop.f32.mrf.mxu0
      %v4624 = vadd.f32 %v4298, %v4623
      %v4625 = vpop.f32.mrf.mxu0
      %v4626 = vadd.f32 %v4302, %v4625
      %v4627 = vpop.f32.mrf.mxu0
      %v4628 = vadd.f32 %v4298, %v4627
      %v4629 = vpop.f32.mrf.mxu0
      %v4630 = vadd.f32 %v4302, %v4629
      %4631 = vmatprep.mubr.bf16.mxu0 %v4148
      %4632 = vmatmul.mubr.bf16.gmra.mxu0 %v4147
      %v4633 = vpop.f32.mrf.mxu0
      %v4634 = vadd.f32 %v4298, %v4633
      %v4635 = vpop.f32.mrf.mxu0
      %v4636 = vadd.f32 %v4302, %v4635
      %v4637 = vpop.f32.mrf.mxu0
      %v4638 = vadd.f32 %v4298, %v4637
      %v4639 = vpop.f32.mrf.mxu0
      %v4640 = vadd.f32 %v4302, %v4639
      %4641 = vmatprep.mubr.bf16.mxu0 %v4150
      %4642 = vmatmul.mubr.bf16.gmra.mxu0 %v4149
      %v4643 = vpop.f32.mrf.mxu0
      %v4644 = vadd.f32 %v4298, %v4643
      %v4645 = vpop.f32.mrf.mxu0
      %v4646 = vadd.f32 %v4302, %v4645
      %v4647 = vpop.f32.mrf.mxu0
      %v4648 = vadd.f32 %v4298, %v4647
      %v4649 = vpop.f32.mrf.mxu0
      %v4650 = vadd.f32 %v4302, %v4649
      %4651 = vmatprep.mubr.bf16.mxu0 %v4152
      %4652 = vmatmul.mubr.bf16.gmra.mxu0 %v4151
      %v4653 = vpop.f32.mrf.mxu0
      %v4654 = vadd.f32 %v4298, %v4653
      %v4655 = vpop.f32.mrf.mxu0
      %v4656 = vadd.f32 %v4302, %v4655
      %v4657 = vpop.f32.mrf.mxu0
      %v4658 = vadd.f32 %v4298, %v4657
      %v4659 = vpop.f32.mrf.mxu0
      %v4660 = vadd.f32 %v4302, %v4659
      %4661 = vmatprep.mubr.bf16.mxu0 %v4154
      %4662 = vmatmul.mubr.bf16.gmra.mxu0 %v4153
      %v4663 = vpop.f32.mrf.mxu0
      %v4664 = vadd.f32 %v4298, %v4663
      %v4665 = vpop.f32.mrf.mxu0
      %v4666 = vadd.f32 %v4302, %v4665
      %v4667 = vpop.f32.mrf.mxu0
      %v4668 = vadd.f32 %v4298, %v4667
      %v4669 = vpop.f32.mrf.mxu0
      %v4670 = vadd.f32 %v4302, %v4669
      %4671 = vmatprep.mubr.bf16.mxu0 %v4156
      %4672 = vmatmul.mubr.bf16.gmra.mxu0 %v4155
      %v4673 = vpop.f32.mrf.mxu0
      %v4674 = vadd.f32 %v4298, %v4673
      %v4675 = vpop.f32.mrf.mxu0
      %v4676 = vadd.f32 %v4302, %v4675
      %v4677 = vpop.f32.mrf.mxu0
      %v4678 = vadd.f32 %v4298, %v4677
      %v4679 = vpop.f32.mrf.mxu0
      %v4680 = vadd.f32 %v4302, %v4679
      %4681 = vmatprep.mubr.bf16.mxu0 %v4158
      %4682 = vmatmul.mubr.bf16.gmra.mxu0 %v4157
      %v4683 = vpop.f32.mrf.mxu0
      %v4684 = vadd.f32 %v4298, %v4683
      %v4685 = vpop.f32.mrf.mxu0
      %v4686 = vadd.f32 %v4302, %v4685
      %v4687 = vpop.f32.mrf.mxu0
      %v4688 = vadd.f32 %v4298, %v4687
      %v4689 = vpop.f32.mrf.mxu0
      %v4690 = vadd.f32 %v4302, %v4689
      %4691 = vmatprep.mubr.bf16.mxu0 %v4160
      %4692 = vmatmul.mubr.bf16.gmra.mxu0 %v4159
      %v4693 = vpop.f32.mrf.mxu0
      %v4694 = vadd.f32 %v4298, %v4693
      %v4695 = vpop.f32.mrf.mxu0
      %v4696 = vadd.f32 %v4302, %v4695
      %v4697 = vpop.f32.mrf.mxu0
      %v4698 = vadd.f32 %v4298, %v4697
      %v4699 = vpop.f32.mrf.mxu0
      %v4700 = vadd.f32 %v4302, %v4699
      %4701 = vmatprep.mubr.bf16.mxu0 %v4162
      %4702 = vmatmul.mubr.bf16.gmra.mxu0 %v4161
      %v4703 = vpop.f32.mrf.mxu0
      %v4704 = vadd.f32 %v4298, %v4703
      %v4705 = vpop.f32.mrf.mxu0
      %v4706 = vadd.f32 %v4302, %v4705
      %v4707 = vpop.f32.mrf.mxu0
      %v4708 = vadd.f32 %v4298, %v4707
      %v4709 = vpop.f32.mrf.mxu0
      %v4710 = vadd.f32 %v4302, %v4709
      %4711 = vmatprep.mubr.bf16.mxu0 %v4164
      %4712 = vmatmul.mubr.bf16.gmra.mxu0 %v4163
      %v4713 = vpop.f32.mrf.mxu0
      %v4714 = vadd.f32 %v4298, %v4713
      %v4715 = vpop.f32.mrf.mxu0
      %v4716 = vadd.f32 %v4302, %v4715
      %v4717 = vpop.f32.mrf.mxu0
      %v4718 = vadd.f32 %v4298, %v4717
      %v4719 = vpop.f32.mrf.mxu0
      %v4720 = vadd.f32 %v4302, %v4719
      %4721 = vmatprep.mubr.bf16.mxu0 %v4166
      %4722 = vmatmul.mubr.bf16.gmra.mxu0 %v4165
      %v4723 = vpop.f32.mrf.mxu0
      %v4724 = vadd.f32 %v4298, %v4723
      %v4725 = vpop.f32.mrf.mxu0
      %v4726 = vadd.f32 %v4302, %v4725
      %v4727 = vpop.f32.mrf.mxu0
      %v4728 = vadd.f32 %v4298, %v4727
      %v4729 = vpop.f32.mrf.mxu0
      %v4730 = vadd.f32 %v4302, %v4729
      %4731 = vmatprep.mubr.bf16.mxu0 %v4168
      %4732 = vmatmul.mubr.bf16.gmra.mxu0 %v4167
      %v4733 = vpop.f32.mrf.mxu0
      %v4734 = vadd.f32 %v4298, %v4733
      %v4735 = vpop.f32.mrf.mxu0
      %v4736 = vadd.f32 %v4302, %v4735
      %v4737 = vpop.f32.mrf.mxu0
      %v4738 = vadd.f32 %v4298, %v4737
      %v4739 = vpop.f32.mrf.mxu0
      %v4740 = vadd.f32 %v4302, %v4739
      %4741 = vmatprep.mubr.bf16.mxu0 %v4170
      %4742 = vmatmul.mubr.bf16.gmra.mxu0 %v4169
      %v4743 = vpop.f32.mrf.mxu0
      %v4744 = vadd.f32 %v4298, %v4743
      %v4745 = vpop.f32.mrf.mxu0
      %v4746 = vadd.f32 %v4302, %v4745
      %v4747 = vpop.f32.mrf.mxu0
      %v4748 = vadd.f32 %v4298, %v4747
      %v4749 = vpop.f32.mrf.mxu0
      %v4750 = vadd.f32 %v4302, %v4749
      %4751 = vmatprep.mubr.bf16.mxu0 %v4172
      %4752 = vmatmul.mubr.bf16.gmra.mxu0 %v4171
      %v4753 = vpop.f32.mrf.mxu0
      %v4754 = vadd.f32 %v4298, %v4753
      %v4755 = vpop.f32.mrf.mxu0
      %v4756 = vadd.f32 %v4302, %v4755
      %v4757 = vpop.f32.mrf.mxu0
      %v4758 = vadd.f32 %v4298, %v4757
      %v4759 = vpop.f32.mrf.mxu0
      %v4760 = vadd.f32 %v4302, %v4759
      %4761 = vmatprep.mubr.bf16.mxu0 %v4174
      %4762 = vmatmul.mubr.bf16.gmra.mxu0 %v4173
      %v4763 = vpop.f32.mrf.mxu0
      %v4764 = vadd.f32 %v4298, %v4763
      %v4765 = vpop.f32.mrf.mxu0
      %v4766 = vadd.f32 %v4302, %v4765
      %v4767 = vpop.f32.mrf.mxu0
      %v4768 = vadd.f32 %v4298, %v4767
      %v4769 = vpop.f32.mrf.mxu0
      %v4770 = vadd.f32 %v4302, %v4769
      %4771 = vmatprep.mubr.bf16.mxu0 %v4176
      %4772 = vmatmul.mubr.bf16.gmra.mxu0 %v4175
      %v4773 = vpop.f32.mrf.mxu0
      %v4774 = vadd.f32 %v4298, %v4773
      %v4775 = vpop.f32.mrf.mxu0
      %v4776 = vadd.f32 %v4302, %v4775
      %v4777 = vpop.f32.mrf.mxu0
      %v4778 = vadd.f32 %v4298, %v4777
      %v4779 = vpop.f32.mrf.mxu0
      %v4780 = vadd.f32 %v4302, %v4779
      %4781 = vmatprep.mubr.bf16.mxu0 %v4178
      %4782 = vmatmul.mubr.bf16.gmra.mxu0 %v4177
      %v4783 = vpop.f32.mrf.mxu0
      %v4784 = vadd.f32 %v4298, %v4783
      %v4785 = vpop.f32.mrf.mxu0
      %v4786 = vadd.f32 %v4302, %v4785
      %v4787 = vpop.f32.mrf.mxu0
      %v4788 = vadd.f32 %v4298, %v4787
      %v4789 = vpop.f32.mrf.mxu0
      %v4790 = vadd.f32 %v4302, %v4789
      %4791 = vmatprep.mubr.bf16.mxu0 %v4180
      %4792 = vmatmul.mubr.bf16.gmra.mxu0 %v4179
      %v4793 = vpop.f32.mrf.mxu0
      %v4794 = vadd.f32 %v4298, %v4793
      %v4795 = vpop.f32.mrf.mxu0
      %v4796 = vadd.f32 %v4302, %v4795
      %v4797 = vpop.f32.mrf.mxu0
      %v4798 = vadd.f32 %v4298, %v4797
      %v4799 = vpop.f32.mrf.mxu0
      %v4800 = vadd.f32 %v4302, %v4799
      %4801 = vmatprep.mubr.bf16.mxu0 %v4182
      %4802 = vmatmul.mubr.bf16.gmra.mxu0 %v4181
      %v4803 = vpop.f32.mrf.mxu0
      %v4804 = vadd.f32 %v4298, %v4803
      %v4805 = vpop.f32.mrf.mxu0
      %v4806 = vadd.f32 %v4302, %v4805
      %v4807 = vpop.f32.mrf.mxu0
      %v4808 = vadd.f32 %v4298, %v4807
      %v4809 = vpop.f32.mrf.mxu0
      %v4810 = vadd.f32 %v4302, %v4809
      %4811 = vmatprep.mubr.bf16.mxu0 %v4184
      %4812 = vmatmul.mubr.bf16.gmra.mxu0 %v4183
      %v4813 = vpop.f32.mrf.mxu0
      %v4814 = vadd.f32 %v4298, %v4813
      %v4815 = vpop.f32.mrf.mxu0
      %v4816 = vadd.f32 %v4302, %v4815
      %v4817 = vpop.f32.mrf.mxu0
      %v4818 = vadd.f32 %v4298, %v4817
      %v4819 = vpop.f32.mrf.mxu0
      %v4820 = vadd.f32 %v4302, %v4819
      %4821 = vmatprep.mubr.bf16.mxu0 %v4186
      %4822 = vmatmul.mubr.bf16.gmra.mxu0 %v4185
      %v4823 = vpop.f32.mrf.mxu0
      %v4824 = vadd.f32 %v4298, %v4823
      %v4825 = vpop.f32.mrf.mxu0
      %v4826 = vadd.f32 %v4302, %v4825
      %v4827 = vpop.f32.mrf.mxu0
      %v4828 = vadd.f32 %v4298, %v4827
      %v4829 = vpop.f32.mrf.mxu0
      %v4830 = vadd.f32 %v4302, %v4829
      %4831 = vmatprep.mubr.bf16.mxu0 %v4188
      %4832 = vmatmul.mubr.bf16.gmra.mxu0 %v4187
      %v4833 = vpop.f32.mrf.mxu0
      %v4834 = vadd.f32 %v4298, %v4833
      %v4835 = vpop.f32.mrf.mxu0
      %v4836 = vadd.f32 %v4302, %v4835
      %v4837 = vpop.f32.mrf.mxu0
      %v4838 = vadd.f32 %v4298, %v4837
      %v4839 = vpop.f32.mrf.mxu0
      %v4840 = vadd.f32 %v4302, %v4839
      %4841 = vmatprep.mubr.bf16.mxu0 %v4190
      %4842 = vmatmul.mubr.bf16.gmra.mxu0 %v4189
      %v4843 = vpop.f32.mrf.mxu0
      %v4844 = vadd.f32 %v4298, %v4843
      %v4845 = vpop.f32.mrf.mxu0
      %v4846 = vadd.f32 %v4302, %v4845
      %v4847 = vpop.f32.mrf.mxu0
      %v4848 = vadd.f32 %v4298, %v4847
      %v4849 = vpop.f32.mrf.mxu0
      %v4850 = vadd.f32 %v4302, %v4849
      %4851 = vmatprep.mubr.bf16.mxu0 %v4192
      %4852 = vmatmul.mubr.bf16.gmra.mxu0 %v4191
      %v4853 = vpop.f32.mrf.mxu0
      %v4854 = vadd.f32 %v4298, %v4853
      %v4855 = vpop.f32.mrf.mxu0
      %v4856 = vadd.f32 %v4302, %v4855
      %v4857 = vpop.f32.mrf.mxu0
      %v4858 = vadd.f32 %v4298, %v4857
      %v4859 = vpop.f32.mrf.mxu0
      %v4860 = vadd.f32 %v4302, %v4859
      %4861 = vmatprep.mubr.bf16.mxu0 %v4194
      %4862 = vmatmul.mubr.bf16.gmra.mxu0 %v4193
      %v4863 = vpop.f32.mrf.mxu0
      %v4864 = vadd.f32 %v4298, %v4863
      %v4865 = vpop.f32.mrf.mxu0
      %v4866 = vadd.f32 %v4302, %v4865
      %v4867 = vpop.f32.mrf.mxu0
      %v4868 = vadd.f32 %v4298, %v4867
      %v4869 = vpop.f32.mrf.mxu0
      %v4870 = vadd.f32 %v4302, %v4869
      %4871 = vmatprep.mubr.bf16.mxu0 %v4196
      %4872 = vmatmul.mubr.bf16.gmra.mxu0 %v4195
      %v4873 = vpop.f32.mrf.mxu0
      %v4874 = vadd.f32 %v4298, %v4873
      %v4875 = vpop.f32.mrf.mxu0
      %v4876 = vadd.f32 %v4302, %v4875
      %v4877 = vpop.f32.mrf.mxu0
      %v4878 = vadd.f32 %v4298, %v4877
      %v4879 = vpop.f32.mrf.mxu0
      %v4880 = vadd.f32 %v4302, %v4879
      %4881 = vmatprep.mubr.bf16.mxu0 %v4198
      %4882 = vmatmul.mubr.bf16.gmra.mxu0 %v4197
      %v4883 = vpop.f32.mrf.mxu0
      %v4884 = vadd.f32 %v4298, %v4883
      %v4885 = vpop.f32.mrf.mxu0
      %v4886 = vadd.f32 %v4302, %v4885
      %v4887 = vpop.f32.mrf.mxu0
      %v4888 = vadd.f32 %v4298, %v4887
      %v4889 = vpop.f32.mrf.mxu0
      %v4890 = vadd.f32 %v4302, %v4889
      %4891 = vmatprep.mubr.bf16.mxu0 %v4200
      %4892 = vmatmul.mubr.bf16.gmra.mxu0 %v4199
      %v4893 = vpop.f32.mrf.mxu0
      %v4894 = vadd.f32 %v4298, %v4893
      %v4895 = vpop.f32.mrf.mxu0
      %v4896 = vadd.f32 %v4302, %v4895
      %v4897 = vpop.f32.mrf.mxu0
      %v4898 = vadd.f32 %v4298, %v4897
      %v4899 = vpop.f32.mrf.mxu0
      %v4900 = vadd.f32 %v4302, %v4899
      %4901 = vmatprep.mubr.bf16.mxu0 %v4202
      %4902 = vmatmul.mubr.bf16.gmra.mxu0 %v4201
      %v4903 = vpop.f32.mrf.mxu0
      %v4904 = vadd.f32 %v4298, %v4903
      %v4905 = vpop.f32.mrf.mxu0
      %v4906 = vadd.f32 %v4302, %v4905
      %v4907 = vpop.f32.mrf.mxu0
      %v4908 = vadd.f32 %v4298, %v4907
      %v4909 = vpop.f32.mrf.mxu0
      %v4910 = vadd.f32 %v4302, %v4909
      %4911 = vmatprep.mubr.bf16.mxu0 %v4204
      %4912 = vmatmul.mubr.bf16.gmra.mxu0 %v4203
      %v4913 = vpop.f32.mrf.mxu0
      %v4914 = vadd.f32 %v4298, %v4913
      %v4915 = vpop.f32.mrf.mxu0
      %v4916 = vadd.f32 %v4302, %v4915
      %v4917 = vpop.f32.mrf.mxu0
      %v4918 = vadd.f32 %v4298, %v4917
      %v4919 = vpop.f32.mrf.mxu0
      %v4920 = vadd.f32 %v4302, %v4919
      %4921 = vmatprep.mubr.bf16.mxu0 %v4206
      %4922 = vmatmul.mubr.bf16.gmra.mxu0 %v4205
      %v4923 = vpop.f32.mrf.mxu0
      %v4924 = vadd.f32 %v4298, %v4923
      %v4925 = vpop.f32.mrf.mxu0
      %v4926 = vadd.f32 %v4302, %v4925
      %v4927 = vpop.f32.mrf.mxu0
      %v4928 = vadd.f32 %v4298, %v4927
      %v4929 = vpop.f32.mrf.mxu0
      %v4930 = vadd.f32 %v4302, %v4929
      %4931 = vmatprep.mubr.bf16.mxu0 %v4208
      %4932 = vmatmul.mubr.bf16.gmra.mxu0 %v4207
      %v4933 = vpop.f32.mrf.mxu0
      %v4934 = vadd.f32 %v4298, %v4933
      %v4935 = vpop.f32.mrf.mxu0
      %v4936 = vadd.f32 %v4302, %v4935
      %v4937 = vpop.f32.mrf.mxu0
      %v4938 = vadd.f32 %v4298, %v4937
      %v4939 = vpop.f32.mrf.mxu0
      %v4940 = vadd.f32 %v4302, %v4939
      %4941 = vmatprep.mubr.bf16.mxu0 %v4210
      %4942 = vmatmul.mubr.bf16.gmra.mxu0 %v4209
      %v4943 = vpop.f32.mrf.mxu0
      %v4944 = vadd.f32 %v4298, %v4943
      %v4945 = vpop.f32.mrf.mxu0
      %v4946 = vadd.f32 %v4302, %v4945
      %v4947 = vpop.f32.mrf.mxu0
      %v4948 = vadd.f32 %v4298, %v4947
      %v4949 = vpop.f32.mrf.mxu0
      %v4950 = vadd.f32 %v4302, %v4949
      %4951 = vmatprep.mubr.bf16.mxu0 %v4212
      %4952 = vmatmul.mubr.bf16.gmra.mxu0 %v4211
      %v4953 = vpop.f32.mrf.mxu0
      %v4954 = vadd.f32 %v4298, %v4953
      %v4955 = vpop.f32.mrf.mxu0
      %v4956 = vadd.f32 %v4302, %v4955
      %v4957 = vpop.f32.mrf.mxu0
      %v4958 = vadd.f32 %v4298, %v4957
      %v4959 = vpop.f32.mrf.mxu0
      %v4960 = vadd.f32 %v4302, %v4959
      %4961 = vmatprep.mubr.bf16.mxu0 %v4214
      %4962 = vmatmul.mubr.bf16.gmra.mxu0 %v4213
      %v4963 = vpop.f32.mrf.mxu0
      %v4964 = vadd.f32 %v4298, %v4963
      %v4965 = vpop.f32.mrf.mxu0
      %v4966 = vadd.f32 %v4302, %v4965
      %v4967 = vpop.f32.mrf.mxu0
      %v4968 = vadd.f32 %v4298, %v4967
      %v4969 = vpop.f32.mrf.mxu0
      %v4970 = vadd.f32 %v4302, %v4969
      %4971 = vmatprep.mubr.bf16.mxu0 %v4216
      %4972 = vmatmul.mubr.bf16.gmra.mxu0 %v4215
      %v4973 = vpop.f32.mrf.mxu0
      %v4974 = vadd.f32 %v4298, %v4973
      %v4975 = vpop.f32.mrf.mxu0
      %v4976 = vadd.f32 %v4302, %v4975
      %v4977 = vpop.f32.mrf.mxu0
      %v4978 = vadd.f32 %v4298, %v4977
      %v4979 = vpop.f32.mrf.mxu0
      %v4980 = vadd.f32 %v4302, %v4979
      %4981 = vmatprep.mubr.bf16.mxu0 %v4218
      %4982 = vmatmul.mubr.bf16.gmra.mxu0 %v4217
      %v4983 = vpop.f32.mrf.mxu0
      %v4984 = vadd.f32 %v4298, %v4983
      %v4985 = vpop.f32.mrf.mxu0
      %v4986 = vadd.f32 %v4302, %v4985
      %v4987 = vpop.f32.mrf.mxu0
      %v4988 = vadd.f32 %v4298, %v4987
      %v4989 = vpop.f32.mrf.mxu0
      %v4990 = vadd.f32 %v4302, %v4989
      %4991 = vmatprep.mubr.bf16.mxu0 %v4220
      %4992 = vmatmul.mubr.bf16.gmra.mxu0 %v4219
      %v4993 = vpop.f32.mrf.mxu0
      %v4994 = vadd.f32 %v4298, %v4993
      %v4995 = vpop.f32.mrf.mxu0
      %v4996 = vadd.f32 %v4302, %v4995
      %v4997 = vpop.f32.mrf.mxu0
      %v4998 = vadd.f32 %v4298, %v4997
      %v4999 = vpop.f32.mrf.mxu0
      %v5000 = vadd.f32 %v4302, %v4999
      %5001 = vmatprep.mubr.bf16.mxu0 %v4222
      %5002 = vmatmul.mubr.bf16.gmra.mxu0 %v4221
      %v5003 = vpop.f32.mrf.mxu0
      %v5004 = vadd.f32 %v4298, %v5003
      %v5005 = vpop.f32.mrf.mxu0
      %v5006 = vadd.f32 %v4302, %v5005
      %v5007 = vpop.f32.mrf.mxu0
      %v5008 = vadd.f32 %v4298, %v5007
      %v5009 = vpop.f32.mrf.mxu0
      %v5010 = vadd.f32 %v4302, %v5009
      %5011 = vmatprep.mubr.bf16.mxu0 %v4224
      %5012 = vmatmul.mubr.bf16.gmra.mxu0 %v4223
      %v5013 = vpop.f32.mrf.mxu0
      %v5014 = vadd.f32 %v4298, %v5013
      %v5015 = vpop.f32.mrf.mxu0
      %v5016 = vadd.f32 %v4302, %v5015
      %v5017 = vpop.f32.mrf.mxu0
      %v5018 = vadd.f32 %v4298, %v5017
      %v5019 = vpop.f32.mrf.mxu0
      %v5020 = vadd.f32 %v4302, %v5019
      %5021 = vmatprep.mubr.bf16.mxu0 %v4226
      %5022 = vmatmul.mubr.bf16.gmra.mxu0 %v4225
      %v5023 = vpop.f32.mrf.mxu0
      %v5024 = vadd.f32 %v4298, %v5023
      %v5025 = vpop.f32.mrf.mxu0
      %v5026 = vadd.f32 %v4302, %v5025
      %v5027 = vpop.f32.mrf.mxu0
      %v5028 = vadd.f32 %v4298, %v5027
      %v5029 = vpop.f32.mrf.mxu0
      %v5030 = vadd.f32 %v4302, %v5029
      %5031 = vmatprep.mubr.bf16.mxu0 %v4228
      %5032 = vmatmul.mubr.bf16.gmra.mxu0 %v4227
      %v5033 = vpop.f32.mrf.mxu0
      %v5034 = vadd.f32 %v4298, %v5033
      %v5035 = vpop.f32.mrf.mxu0
      %v5036 = vadd.f32 %v4302, %v5035
      %v5037 = vpop.f32.mrf.mxu0
      %v5038 = vadd.f32 %v4298, %v5037
      %v5039 = vpop.f32.mrf.mxu0
      %v5040 = vadd.f32 %v4302, %v5039
      %5041 = vmatprep.mubr.bf16.mxu0 %v4230
      %5042 = vmatmul.mubr.bf16.gmra.mxu0 %v4229
      %v5043 = vpop.f32.mrf.mxu0
      %v5044 = vadd.f32 %v4298, %v5043
      %v5045 = vpop.f32.mrf.mxu0
      %v5046 = vadd.f32 %v4302, %v5045
      %v5047 = vpop.f32.mrf.mxu0
      %v5048 = vadd.f32 %v4298, %v5047
      %v5049 = vpop.f32.mrf.mxu0
      %v5050 = vadd.f32 %v4302, %v5049
      %5051 = vmatprep.mubr.bf16.mxu0 %v4232
      %5052 = vmatmul.mubr.bf16.gmra.mxu0 %v4231
      %v5053 = vpop.f32.mrf.mxu0
      %v5054 = vadd.f32 %v4298, %v5053
      %v5055 = vpop.f32.mrf.mxu0
      %v5056 = vadd.f32 %v4302, %v5055
      %v5057 = vpop.f32.mrf.mxu0
      %v5058 = vadd.f32 %v4298, %v5057
      %v5059 = vpop.f32.mrf.mxu0
      %v5060 = vadd.f32 %v4302, %v5059
      %5061 = vmatprep.mubr.bf16.mxu0 %v4234
      %5062 = vmatmul.mubr.bf16.gmra.mxu0 %v4233
      %v5063 = vpop.f32.mrf.mxu0
      %v5064 = vadd.f32 %v4298, %v5063
      %v5065 = vpop.f32.mrf.mxu0
      %v5066 = vadd.f32 %v4302, %v5065
      %v5067 = vpop.f32.mrf.mxu0
      %v5068 = vadd.f32 %v4298, %v5067
      %v5069 = vpop.f32.mrf.mxu0
      %v5070 = vadd.f32 %v4302, %v5069
      %5071 = vmatprep.mubr.bf16.mxu0 %v4236
      %5072 = vmatmul.mubr.bf16.gmra.mxu0 %v4235
      %v5073 = vpop.f32.mrf.mxu0
      %v5074 = vadd.f32 %v4298, %v5073
      %v5075 = vpop.f32.mrf.mxu0
      %v5076 = vadd.f32 %v4302, %v5075
      %v5077 = vpop.f32.mrf.mxu0
      %v5078 = vadd.f32 %v4298, %v5077
      %v5079 = vpop.f32.mrf.mxu0
      %v5080 = vadd.f32 %v4302, %v5079
      %5081 = vmatprep.mubr.bf16.mxu0 %v4238
      %5082 = vmatmul.mubr.bf16.gmra.mxu0 %v4237
      %v5083 = vpop.f32.mrf.mxu0
      %v5084 = vadd.f32 %v4298, %v5083
      %v5085 = vpop.f32.mrf.mxu0
      %v5086 = vadd.f32 %v4302, %v5085
      %v5087 = vpop.f32.mrf.mxu0
      %v5088 = vadd.f32 %v4298, %v5087
      %v5089 = vpop.f32.mrf.mxu0
      %v5090 = vadd.f32 %v4302, %v5089
      %5091 = vmatprep.mubr.bf16.mxu0 %v4240
      %5092 = vmatmul.mubr.bf16.gmra.mxu0 %v4239
      %v5093 = vpop.f32.mrf.mxu0
      %v5094 = vadd.f32 %v4298, %v5093
      %v5095 = vpop.f32.mrf.mxu0
      %v5096 = vadd.f32 %v4302, %v5095
      %v5097 = vpop.f32.mrf.mxu0
      %v5098 = vadd.f32 %v4298, %v5097
      %v5099 = vpop.f32.mrf.mxu0
      %v5100 = vadd.f32 %v4302, %v5099
      %5101 = vmatprep.mubr.bf16.mxu0 %v4242
      %5102 = vmatmul.mubr.bf16.gmra.mxu0 %v4241
      %v5103 = vpop.f32.mrf.mxu0
      %v5104 = vadd.f32 %v4298, %v5103
      %v5105 = vpop.f32.mrf.mxu0
      %v5106 = vadd.f32 %v4302, %v5105
      %v5107 = vpop.f32.mrf.mxu0
      %v5108 = vadd.f32 %v4298, %v5107
      %v5109 = vpop.f32.mrf.mxu0
      %v5110 = vadd.f32 %v4302, %v5109
      %5111 = vmatprep.mubr.bf16.mxu0 %v4244
      %5112 = vmatmul.mubr.bf16.gmra.mxu0 %v4243
      %v5113 = vpop.f32.mrf.mxu0
      %v5114 = vadd.f32 %v4298, %v5113
      %v5115 = vpop.f32.mrf.mxu0
      %v5116 = vadd.f32 %v4302, %v5115
      %v5117 = vpop.f32.mrf.mxu0
      %v5118 = vadd.f32 %v4298, %v5117
      %v5119 = vpop.f32.mrf.mxu0
      %v5120 = vadd.f32 %v4302, %v5119
      %5121 = vmatprep.mubr.bf16.mxu0 %v4246
      %5122 = vmatmul.mubr.bf16.gmra.mxu0 %v4245
      %v5123 = vpop.f32.mrf.mxu0
      %v5124 = vadd.f32 %v4298, %v5123
      %v5125 = vpop.f32.mrf.mxu0
      %v5126 = vadd.f32 %v4302, %v5125
      %v5127 = vpop.f32.mrf.mxu0
      %v5128 = vadd.f32 %v4298, %v5127
      %v5129 = vpop.f32.mrf.mxu0
      %v5130 = vadd.f32 %v4302, %v5129
      %5131 = vmatprep.mubr.bf16.mxu0 %v4248
      %5132 = vmatmul.mubr.bf16.gmra.mxu0 %v4247
      %v5133 = vpop.f32.mrf.mxu0
      %v5134 = vadd.f32 %v4298, %v5133
      %v5135 = vpop.f32.mrf.mxu0
      %v5136 = vadd.f32 %v4302, %v5135
      %v5137 = vpop.f32.mrf.mxu0
      %v5138 = vadd.f32 %v4298, %v5137
      %v5139 = vpop.f32.mrf.mxu0
      %v5140 = vadd.f32 %v4302, %v5139
      %5141 = vmatprep.mubr.bf16.mxu0 %v4250
      %5142 = vmatmul.mubr.bf16.gmra.mxu0 %v4249
      %v5143 = vpop.f32.mrf.mxu0
      %v5144 = vadd.f32 %v4298, %v5143
      %v5145 = vpop.f32.mrf.mxu0
      %v5146 = vadd.f32 %v4302, %v5145
      %v5147 = vpop.f32.mrf.mxu0
      %v5148 = vadd.f32 %v4298, %v5147
      %v5149 = vpop.f32.mrf.mxu0
      %v5150 = vadd.f32 %v4302, %v5149
      %5151 = vmatprep.mubr.bf16.mxu0 %v4252
      %5152 = vmatmul.mubr.bf16.gmra.mxu0 %v4251
      %v5153 = vpop.f32.mrf.mxu0
      %v5154 = vadd.f32 %v4298, %v5153
      %v5155 = vpop.f32.mrf.mxu0
      %v5156 = vadd.f32 %v4302, %v5155
      %v5157 = vpop.f32.mrf.mxu0
      %v5158 = vadd.f32 %v4298, %v5157
      %v5159 = vpop.f32.mrf.mxu0
      %v5160 = vadd.f32 %v4302, %v5159
      %5161 = vmatprep.mubr.bf16.mxu0 %v4254
      %5162 = vmatmul.mubr.bf16.gmra.mxu0 %v4253
      %v5163 = vpop.f32.mrf.mxu0
      %v5164 = vadd.f32 %v4298, %v5163
      %v5165 = vpop.f32.mrf.mxu0
      %v5166 = vadd.f32 %v4302, %v5165
      %v5167 = vpop.f32.mrf.mxu0
      %v5168 = vadd.f32 %v4298, %v5167
      %v5169 = vpop.f32.mrf.mxu0
      %v5170 = vadd.f32 %v4302, %v5169
      %5171 = vdwg.mxu0
      %5172 = vmatprep.subr.bf16.mxu0 0
      %5173 = vmatpush1.bf16.msra.mxu0 0
      %5174 = vmatprep.subr.bf16.mxu0 0
      %5175 = vmatpush1.bf16.msra.mxu0 0
      %5176 = vmatprep.subr.bf16.mxu0 0
      %5177 = vmatpush1.bf16.msra.mxu0 0
      %5178 = vmatprep.subr.bf16.mxu0 0
      %5179 = vmatpush1.bf16.msra.mxu0 0
      %5180 = vmatprep.subr.bf16.mxu0 0
      %5181 = vmatpush1.bf16.msra.mxu0 0
      %5182 = vmatprep.subr.bf16.mxu0 %v4497
      %5183 = vmatpush1.bf16.msra.mxu0 %v4494
      %5184 = vmatprep.subr.bf16.mxu0 %v4454
      %5185 = vmatpush1.bf16.msra.mxu0 %v4453
      %5186 = vmatprep.subr.bf16.mxu0 %v4452
      %5187 = vmatpush1.bf16.msra.mxu0 %v4451
      %5188 = vmatprep.subr.bf16.mxu0 0
      %5189 = vmatpush2.bf16.msra.mxu0 0
      %5190 = vmatprep.subr.bf16.mxu0 0
      %5191 = vmatpush2.bf16.msra.mxu0 0
      %5192 = vmatprep.subr.bf16.mxu0 0
      %5193 = vmatpush2.bf16.msra.mxu0 0
      %5194 = vmatprep.subr.bf16.mxu0 0
      %5195 = vmatpush2.bf16.msra.mxu0 0
      %5196 = vmatprep.subr.bf16.mxu0 0
      %5197 = vmatpush2.bf16.msra.mxu0 0
      %5198 = vmatprep.subr.bf16.mxu0 0
      %5199 = vmatpush2.bf16.msra.mxu0 0
      %5200 = vmatprep.subr.bf16.mxu0 0
      %5201 = vmatpush2.bf16.msra.mxu0 0
      %5202 = vmatprep.subr.bf16.mxu0 0
      %5203 = vmatpush2.bf16.msra.mxu0 0
      %5204 = vmatprep.mubr.bf16.mxu0 0
      %5205 = vmatmul.mubr.bf16.gmra.mxu0 %v734
      %v5206 = vpop.f32.mrf.mxu0
      %v5207 = vadd.f32 %v4534, %v5206
      %v5208 = vpop.f32.mrf.mxu0
      %v5209 = vadd.f32 %v4536, %v5208
      %v5210 = vpop.f32.mrf.mxu0
      %v5211 = vadd.f32 %v4538, %v5210
      %v5212 = vpop.f32.mrf.mxu0
      %v5213 = vadd.f32 %v4540, %v5212
      %5214 = vmatprep.mubr.bf16.mxu0 0
      %5215 = vmatmul.mubr.bf16.gmra.mxu0 %v737
      %v5216 = vpop.f32.mrf.mxu0
      %v5217 = vadd.f32 %v4544, %v5216
      %v5218 = vpop.f32.mrf.mxu0
      %v5219 = vadd.f32 %v4546, %v5218
      %v5220 = vpop.f32.mrf.mxu0
      %v5221 = vadd.f32 %v4548, %v5220
      %v5222 = vpop.f32.mrf.mxu0
      %v5223 = vadd.f32 %v4550, %v5222
      %5224 = vmatprep.mubr.bf16.mxu0 0
      %5225 = vmatmul.mubr.bf16.gmra.mxu0 %v740
      %v5226 = vpop.f32.mrf.mxu0
      %v5227 = vadd.f32 %v4554, %v5226
      %v5228 = vpop.f32.mrf.mxu0
      %v5229 = vadd.f32 %v4556, %v5228
      %v5230 = vpop.f32.mrf.mxu0
      %v5231 = vadd.f32 %v4558, %v5230
      %v5232 = vpop.f32.mrf.mxu0
      %v5233 = vadd.f32 %v4560, %v5232
      %5234 = vmatprep.mubr.bf16.mxu0 0
      %5235 = vmatmul.mubr.bf16.gmra.mxu0 %v743
      %v5236 = vpop.f32.mrf.mxu0
      %v5237 = vadd.f32 %v4564, %v5236
      %v5238 = vpop.f32.mrf.mxu0
      %v5239 = vadd.f32 %v4566, %v5238
      %v5240 = vpop.f32.mrf.mxu0
      %v5241 = vadd.f32 %v4568, %v5240
      %v5242 = vpop.f32.mrf.mxu0
      %v5243 = vadd.f32 %v4570, %v5242
      %5244 = vmatprep.mubr.bf16.mxu0 0
      %5245 = vmatmul.mubr.bf16.gmra.mxu0 %v746
      %v5246 = vpop.f32.mrf.mxu0
      %v5247 = vadd.f32 %v4574, %v5246
      %v5248 = vpop.f32.mrf.mxu0
      %v5249 = vadd.f32 %v4576, %v5248
      %v5250 = vpop.f32.mrf.mxu0
      %v5251 = vadd.f32 %v4578, %v5250
      %v5252 = vpop.f32.mrf.mxu0
      %v5253 = vadd.f32 %v4580, %v5252
      %5254 = vmatprep.mubr.bf16.mxu0 0
      %5255 = vmatmul.mubr.bf16.gmra.mxu0 %v749
      %v5256 = vpop.f32.mrf.mxu0
      %v5257 = vadd.f32 %v4584, %v5256
      %v5258 = vpop.f32.mrf.mxu0
      %v5259 = vadd.f32 %v4586, %v5258
      %v5260 = vpop.f32.mrf.mxu0
      %v5261 = vadd.f32 %v4588, %v5260
      %v5262 = vpop.f32.mrf.mxu0
      %v5263 = vadd.f32 %v4590, %v5262
      %5264 = vmatprep.mubr.bf16.mxu0 0
      %5265 = vmatmul.mubr.bf16.gmra.mxu0 %v752
      %v5266 = vpop.f32.mrf.mxu0
      %v5267 = vadd.f32 %v4594, %v5266
      %v5268 = vpop.f32.mrf.mxu0
      %v5269 = vadd.f32 %v4596, %v5268
      %v5270 = vpop.f32.mrf.mxu0
      %v5271 = vadd.f32 %v4598, %v5270
      %v5272 = vpop.f32.mrf.mxu0
      %v5273 = vadd.f32 %v4600, %v5272
      %5274 = vmatprep.mubr.bf16.mxu0 0
      %5275 = vmatmul.mubr.bf16.gmra.mxu0 %v755
      %v5276 = vpop.f32.mrf.mxu0
      %v5277 = vadd.f32 %v4604, %v5276
      %v5278 = vpop.f32.mrf.mxu0
      %v5279 = vadd.f32 %v4606, %v5278
      %v5280 = vpop.f32.mrf.mxu0
      %v5281 = vadd.f32 %v4608, %v5280
      %v5282 = vpop.f32.mrf.mxu0
      %v5283 = vadd.f32 %v4610, %v5282
      %5284 = vmatprep.mubr.bf16.mxu0 0
      %5285 = vmatmul.mubr.bf16.gmra.mxu0 %v758
      %v5286 = vpop.f32.mrf.mxu0
      %v5287 = vadd.f32 %v4614, %v5286
      %v5288 = vpop.f32.mrf.mxu0
      %v5289 = vadd.f32 %v4616, %v5288
      %v5290 = vpop.f32.mrf.mxu0
      %v5291 = vadd.f32 %v4618, %v5290
      %v5292 = vpop.f32.mrf.mxu0
      %v5293 = vadd.f32 %v4620, %v5292
      %5294 = vmatprep.mubr.bf16.mxu0 0
      %5295 = vmatmul.mubr.bf16.gmra.mxu0 %v761
      %v5296 = vpop.f32.mrf.mxu0
      %v5297 = vadd.f32 %v4624, %v5296
      %v5298 = vpop.f32.mrf.mxu0
      %v5299 = vadd.f32 %v4626, %v5298
      %v5300 = vpop.f32.mrf.mxu0
      %v5301 = vadd.f32 %v4628, %v5300
      %v5302 = vpop.f32.mrf.mxu0
      %v5303 = vadd.f32 %v4630, %v5302
      %5304 = vmatprep.mubr.bf16.mxu0 0
      %5305 = vmatmul.mubr.bf16.gmra.mxu0 %v764
      %v5306 = vpop.f32.mrf.mxu0
      %v5307 = vadd.f32 %v4634, %v5306
      %v5308 = vpop.f32.mrf.mxu0
      %v5309 = vadd.f32 %v4636, %v5308
      %v5310 = vpop.f32.mrf.mxu0
      %v5311 = vadd.f32 %v4638, %v5310
      %v5312 = vpop.f32.mrf.mxu0
      %v5313 = vadd.f32 %v4640, %v5312
      %5314 = vmatprep.mubr.bf16.mxu0 0
      %5315 = vmatmul.mubr.bf16.gmra.mxu0 %v767
      %v5316 = vpop.f32.mrf.mxu0
      %v5317 = vadd.f32 %v4644, %v5316
      %v5318 = vpop.f32.mrf.mxu0
      %v5319 = vadd.f32 %v4646, %v5318
      %v5320 = vpop.f32.mrf.mxu0
      %v5321 = vadd.f32 %v4648, %v5320
      %v5322 = vpop.f32.mrf.mxu0
      %v5323 = vadd.f32 %v4650, %v5322
      %5324 = vmatprep.mubr.bf16.mxu0 0
      %5325 = vmatmul.mubr.bf16.gmra.mxu0 %v770
      %v5326 = vpop.f32.mrf.mxu0
      %v5327 = vadd.f32 %v4654, %v5326
      %v5328 = vpop.f32.mrf.mxu0
      %v5329 = vadd.f32 %v4656, %v5328
      %v5330 = vpop.f32.mrf.mxu0
      %v5331 = vadd.f32 %v4658, %v5330
      %v5332 = vpop.f32.mrf.mxu0
      %v5333 = vadd.f32 %v4660, %v5332
      %5334 = vmatprep.mubr.bf16.mxu0 0
      %5335 = vmatmul.mubr.bf16.gmra.mxu0 %v773
      %v5336 = vpop.f32.mrf.mxu0
      %v5337 = vadd.f32 %v4664, %v5336
      %v5338 = vpop.f32.mrf.mxu0
      %v5339 = vadd.f32 %v4666, %v5338
      %v5340 = vpop.f32.mrf.mxu0
      %v5341 = vadd.f32 %v4668, %v5340
      %v5342 = vpop.f32.mrf.mxu0
      %v5343 = vadd.f32 %v4670, %v5342
      %5344 = vmatprep.mubr.bf16.mxu0 0
      %5345 = vmatmul.mubr.bf16.gmra.mxu0 %v776
      %v5346 = vpop.f32.mrf.mxu0
      %v5347 = vadd.f32 %v4674, %v5346
      %v5348 = vpop.f32.mrf.mxu0
      %v5349 = vadd.f32 %v4676, %v5348
      %v5350 = vpop.f32.mrf.mxu0
      %v5351 = vadd.f32 %v4678, %v5350
      %v5352 = vpop.f32.mrf.mxu0
      %v5353 = vadd.f32 %v4680, %v5352
      %5354 = vmatprep.mubr.bf16.mxu0 0
      %5355 = vmatmul.mubr.bf16.gmra.mxu0 %v779
      %v5356 = vpop.f32.mrf.mxu0
      %v5357 = vadd.f32 %v4684, %v5356
      %v5358 = vpop.f32.mrf.mxu0
      %v5359 = vadd.f32 %v4686, %v5358
      %v5360 = vpop.f32.mrf.mxu0
      %v5361 = vadd.f32 %v4688, %v5360
      %v5362 = vpop.f32.mrf.mxu0
      %v5363 = vadd.f32 %v4690, %v5362
      %5364 = vmatprep.mubr.bf16.mxu0 0
      %5365 = vmatmul.mubr.bf16.gmra.mxu0 %v782
      %v5366 = vpop.f32.mrf.mxu0
      %v5367 = vadd.f32 %v4694, %v5366
      %v5368 = vpop.f32.mrf.mxu0
      %v5369 = vadd.f32 %v4696, %v5368
      %v5370 = vpop.f32.mrf.mxu0
      %v5371 = vadd.f32 %v4698, %v5370
      %v5372 = vpop.f32.mrf.mxu0
      %v5373 = vadd.f32 %v4700, %v5372
      %5374 = vmatprep.mubr.bf16.mxu0 0
      %5375 = vmatmul.mubr.bf16.gmra.mxu0 %v785
      %v5376 = vpop.f32.mrf.mxu0
      %v5377 = vadd.f32 %v4704, %v5376
      %v5378 = vpop.f32.mrf.mxu0
      %v5379 = vadd.f32 %v4706, %v5378
      %v5380 = vpop.f32.mrf.mxu0
      %v5381 = vadd.f32 %v4708, %v5380
      %v5382 = vpop.f32.mrf.mxu0
      %v5383 = vadd.f32 %v4710, %v5382
      %5384 = vmatprep.mubr.bf16.mxu0 0
      %5385 = vmatmul.mubr.bf16.gmra.mxu0 %v788
      %v5386 = vpop.f32.mrf.mxu0
      %v5387 = vadd.f32 %v4714, %v5386
      %v5388 = vpop.f32.mrf.mxu0
      %v5389 = vadd.f32 %v4716, %v5388
      %v5390 = vpop.f32.mrf.mxu0
      %v5391 = vadd.f32 %v4718, %v5390
      %v5392 = vpop.f32.mrf.mxu0
      %v5393 = vadd.f32 %v4720, %v5392
      %5394 = vmatprep.mubr.bf16.mxu0 0
      %5395 = vmatmul.mubr.bf16.gmra.mxu0 %v791
      %v5396 = vpop.f32.mrf.mxu0
      %v5397 = vadd.f32 %v4724, %v5396
      %v5398 = vpop.f32.mrf.mxu0
      %v5399 = vadd.f32 %v4726, %v5398
      %v5400 = vpop.f32.mrf.mxu0
      %v5401 = vadd.f32 %v4728, %v5400
      %v5402 = vpop.f32.mrf.mxu0
      %v5403 = vadd.f32 %v4730, %v5402
      %5404 = vmatprep.mubr.bf16.mxu0 0
      %5405 = vmatmul.mubr.bf16.gmra.mxu0 %v794
      %v5406 = vpop.f32.mrf.mxu0
      %v5407 = vadd.f32 %v4734, %v5406
      %v5408 = vpop.f32.mrf.mxu0
      %v5409 = vadd.f32 %v4736, %v5408
      %v5410 = vpop.f32.mrf.mxu0
      %v5411 = vadd.f32 %v4738, %v5410
      %v5412 = vpop.f32.mrf.mxu0
      %v5413 = vadd.f32 %v4740, %v5412
      %5414 = vmatprep.mubr.bf16.mxu0 0
      %5415 = vmatmul.mubr.bf16.gmra.mxu0 %v797
      %v5416 = vpop.f32.mrf.mxu0
      %v5417 = vadd.f32 %v4744, %v5416
      %v5418 = vpop.f32.mrf.mxu0
      %v5419 = vadd.f32 %v4746, %v5418
      %v5420 = vpop.f32.mrf.mxu0
      %v5421 = vadd.f32 %v4748, %v5420
      %v5422 = vpop.f32.mrf.mxu0
      %v5423 = vadd.f32 %v4750, %v5422
      %5424 = vmatprep.mubr.bf16.mxu0 0
      %5425 = vmatmul.mubr.bf16.gmra.mxu0 %v800
      %v5426 = vpop.f32.mrf.mxu0
      %v5427 = vadd.f32 %v4754, %v5426
      %v5428 = vpop.f32.mrf.mxu0
      %v5429 = vadd.f32 %v4756, %v5428
      %v5430 = vpop.f32.mrf.mxu0
      %v5431 = vadd.f32 %v4758, %v5430
      %v5432 = vpop.f32.mrf.mxu0
      %v5433 = vadd.f32 %v4760, %v5432
      %5434 = vmatprep.mubr.bf16.mxu0 0
      %5435 = vmatmul.mubr.bf16.gmra.mxu0 %v803
      %v5436 = vpop.f32.mrf.mxu0
      %v5437 = vadd.f32 %v4764, %v5436
      %v5438 = vpop.f32.mrf.mxu0
      %v5439 = vadd.f32 %v4766, %v5438
      %v5440 = vpop.f32.mrf.mxu0
      %v5441 = vadd.f32 %v4768, %v5440
      %v5442 = vpop.f32.mrf.mxu0
      %v5443 = vadd.f32 %v4770, %v5442
      %5444 = vmatprep.mubr.bf16.mxu0 0
      %5445 = vmatmul.mubr.bf16.gmra.mxu0 %v806
      %v5446 = vpop.f32.mrf.mxu0
      %v5447 = vadd.f32 %v4774, %v5446
      %v5448 = vpop.f32.mrf.mxu0
      %v5449 = vadd.f32 %v4776, %v5448
      %v5450 = vpop.f32.mrf.mxu0
      %v5451 = vadd.f32 %v4778, %v5450
      %v5452 = vpop.f32.mrf.mxu0
      %v5453 = vadd.f32 %v4780, %v5452
      %5454 = vmatprep.mubr.bf16.mxu0 0
      %5455 = vmatmul.mubr.bf16.gmra.mxu0 %v809
      %v5456 = vpop.f32.mrf.mxu0
      %v5457 = vadd.f32 %v4784, %v5456
      %v5458 = vpop.f32.mrf.mxu0
      %v5459 = vadd.f32 %v4786, %v5458
      %v5460 = vpop.f32.mrf.mxu0
      %v5461 = vadd.f32 %v4788, %v5460
      %v5462 = vpop.f32.mrf.mxu0
      %v5463 = vadd.f32 %v4790, %v5462
      %5464 = vmatprep.mubr.bf16.mxu0 0
      %5465 = vmatmul.mubr.bf16.gmra.mxu0 %v812
      %v5466 = vpop.f32.mrf.mxu0
      %v5467 = vadd.f32 %v4794, %v5466
      %v5468 = vpop.f32.mrf.mxu0
      %v5469 = vadd.f32 %v4796, %v5468
      %v5470 = vpop.f32.mrf.mxu0
      %v5471 = vadd.f32 %v4798, %v5470
      %v5472 = vpop.f32.mrf.mxu0
      %v5473 = vadd.f32 %v4800, %v5472
      %5474 = vmatprep.mubr.bf16.mxu0 0
      %5475 = vmatmul.mubr.bf16.gmra.mxu0 %v815
      %v5476 = vpop.f32.mrf.mxu0
      %v5477 = vadd.f32 %v4804, %v5476
      %v5478 = vpop.f32.mrf.mxu0
      %v5479 = vadd.f32 %v4806, %v5478
      %v5480 = vpop.f32.mrf.mxu0
      %v5481 = vadd.f32 %v4808, %v5480
      %v5482 = vpop.f32.mrf.mxu0
      %v5483 = vadd.f32 %v4810, %v5482
      %5484 = vmatprep.mubr.bf16.mxu0 0
      %5485 = vmatmul.mubr.bf16.gmra.mxu0 %v818
      %v5486 = vpop.f32.mrf.mxu0
      %v5487 = vadd.f32 %v4814, %v5486
      %v5488 = vpop.f32.mrf.mxu0
      %v5489 = vadd.f32 %v4816, %v5488
      %v5490 = vpop.f32.mrf.mxu0
      %v5491 = vadd.f32 %v4818, %v5490
      %v5492 = vpop.f32.mrf.mxu0
      %v5493 = vadd.f32 %v4820, %v5492
      %5494 = vmatprep.mubr.bf16.mxu0 0
      %5495 = vmatmul.mubr.bf16.gmra.mxu0 %v821
      %v5496 = vpop.f32.mrf.mxu0
      %v5497 = vadd.f32 %v4824, %v5496
      %v5498 = vpop.f32.mrf.mxu0
      %v5499 = vadd.f32 %v4826, %v5498
      %v5500 = vpop.f32.mrf.mxu0
      %v5501 = vadd.f32 %v4828, %v5500
      %v5502 = vpop.f32.mrf.mxu0
      %v5503 = vadd.f32 %v4830, %v5502
      %5504 = vmatprep.mubr.bf16.mxu0 0
      %5505 = vmatmul.mubr.bf16.gmra.mxu0 %v824
      %v5506 = vpop.f32.mrf.mxu0
      %v5507 = vadd.f32 %v4834, %v5506
      %v5508 = vpop.f32.mrf.mxu0
      %v5509 = vadd.f32 %v4836, %v5508
      %v5510 = vpop.f32.mrf.mxu0
      %v5511 = vadd.f32 %v4838, %v5510
      %v5512 = vpop.f32.mrf.mxu0
      %v5513 = vadd.f32 %v4840, %v5512
      %5514 = vmatprep.mubr.bf16.mxu0 0
      %5515 = vmatmul.mubr.bf16.gmra.mxu0 %v827
      %v5516 = vpop.f32.mrf.mxu0
      %v5517 = vadd.f32 %v4844, %v5516
      %v5518 = vpop.f32.mrf.mxu0
      %v5519 = vadd.f32 %v4846, %v5518
      %v5520 = vpop.f32.mrf.mxu0
      %v5521 = vadd.f32 %v4848, %v5520
      %v5522 = vpop.f32.mrf.mxu0
      %v5523 = vadd.f32 %v4850, %v5522
      %5524 = vmatprep.mubr.bf16.mxu0 0
      %5525 = vmatmul.mubr.bf16.gmra.mxu0 %v830
      %v5526 = vpop.f32.mrf.mxu0
      %v5527 = vadd.f32 %v4854, %v5526
      %v5528 = vpop.f32.mrf.mxu0
      %v5529 = vadd.f32 %v4856, %v5528
      %v5530 = vpop.f32.mrf.mxu0
      %v5531 = vadd.f32 %v4858, %v5530
      %v5532 = vpop.f32.mrf.mxu0
      %v5533 = vadd.f32 %v4860, %v5532
      %5534 = vmatprep.mubr.bf16.mxu0 0
      %5535 = vmatmul.mubr.bf16.gmra.mxu0 %v833
      %v5536 = vpop.f32.mrf.mxu0
      %v5537 = vadd.f32 %v4864, %v5536
      %v5538 = vpop.f32.mrf.mxu0
      %v5539 = vadd.f32 %v4866, %v5538
      %v5540 = vpop.f32.mrf.mxu0
      %v5541 = vadd.f32 %v4868, %v5540
      %v5542 = vpop.f32.mrf.mxu0
      %v5543 = vadd.f32 %v4870, %v5542
      %5544 = vmatprep.mubr.bf16.mxu0 0
      %5545 = vmatmul.mubr.bf16.gmra.mxu0 %v836
      %v5546 = vpop.f32.mrf.mxu0
      %v5547 = vadd.f32 %v4874, %v5546
      %v5548 = vpop.f32.mrf.mxu0
      %v5549 = vadd.f32 %v4876, %v5548
      %v5550 = vpop.f32.mrf.mxu0
      %v5551 = vadd.f32 %v4878, %v5550
      %v5552 = vpop.f32.mrf.mxu0
      %v5553 = vadd.f32 %v4880, %v5552
      %5554 = vmatprep.mubr.bf16.mxu0 0
      %5555 = vmatmul.mubr.bf16.gmra.mxu0 %v839
      %v5556 = vpop.f32.mrf.mxu0
      %v5557 = vadd.f32 %v4884, %v5556
      %v5558 = vpop.f32.mrf.mxu0
      %v5559 = vadd.f32 %v4886, %v5558
      %v5560 = vpop.f32.mrf.mxu0
      %v5561 = vadd.f32 %v4888, %v5560
      %v5562 = vpop.f32.mrf.mxu0
      %v5563 = vadd.f32 %v4890, %v5562
      %5564 = vmatprep.mubr.bf16.mxu0 0
      %5565 = vmatmul.mubr.bf16.gmra.mxu0 %v842
      %v5566 = vpop.f32.mrf.mxu0
      %v5567 = vadd.f32 %v4894, %v5566
      %v5568 = vpop.f32.mrf.mxu0
      %v5569 = vadd.f32 %v4896, %v5568
      %v5570 = vpop.f32.mrf.mxu0
      %v5571 = vadd.f32 %v4898, %v5570
      %v5572 = vpop.f32.mrf.mxu0
      %v5573 = vadd.f32 %v4900, %v5572
      %5574 = vmatprep.mubr.bf16.mxu0 0
      %5575 = vmatmul.mubr.bf16.gmra.mxu0 %v845
      %v5576 = vpop.f32.mrf.mxu0
      %v5577 = vadd.f32 %v4904, %v5576
      %v5578 = vpop.f32.mrf.mxu0
      %v5579 = vadd.f32 %v4906, %v5578
      %v5580 = vpop.f32.mrf.mxu0
      %v5581 = vadd.f32 %v4908, %v5580
      %v5582 = vpop.f32.mrf.mxu0
      %v5583 = vadd.f32 %v4910, %v5582
      %5584 = vmatprep.mubr.bf16.mxu0 0
      %5585 = vmatmul.mubr.bf16.gmra.mxu0 %v848
      %v5586 = vpop.f32.mrf.mxu0
      %v5587 = vadd.f32 %v4914, %v5586
      %v5588 = vpop.f32.mrf.mxu0
      %v5589 = vadd.f32 %v4916, %v5588
      %v5590 = vpop.f32.mrf.mxu0
      %v5591 = vadd.f32 %v4918, %v5590
      %v5592 = vpop.f32.mrf.mxu0
      %v5593 = vadd.f32 %v4920, %v5592
      %5594 = vmatprep.mubr.bf16.mxu0 0
      %5595 = vmatmul.mubr.bf16.gmra.mxu0 %v851
      %v5596 = vpop.f32.mrf.mxu0
      %v5597 = vadd.f32 %v4924, %v5596
      %v5598 = vpop.f32.mrf.mxu0
      %v5599 = vadd.f32 %v4926, %v5598
      %v5600 = vpop.f32.mrf.mxu0
      %v5601 = vadd.f32 %v4928, %v5600
      %v5602 = vpop.f32.mrf.mxu0
      %v5603 = vadd.f32 %v4930, %v5602
      %5604 = vmatprep.mubr.bf16.mxu0 0
      %5605 = vmatmul.mubr.bf16.gmra.mxu0 %v854
      %v5606 = vpop.f32.mrf.mxu0
      %v5607 = vadd.f32 %v4934, %v5606
      %v5608 = vpop.f32.mrf.mxu0
      %v5609 = vadd.f32 %v4936, %v5608
      %v5610 = vpop.f32.mrf.mxu0
      %v5611 = vadd.f32 %v4938, %v5610
      %v5612 = vpop.f32.mrf.mxu0
      %v5613 = vadd.f32 %v4940, %v5612
      %5614 = vmatprep.mubr.bf16.mxu0 0
      %5615 = vmatmul.mubr.bf16.gmra.mxu0 %v857
      %v5616 = vpop.f32.mrf.mxu0
      %v5617 = vadd.f32 %v4944, %v5616
      %v5618 = vpop.f32.mrf.mxu0
      %v5619 = vadd.f32 %v4946, %v5618
      %v5620 = vpop.f32.mrf.mxu0
      %v5621 = vadd.f32 %v4948, %v5620
      %v5622 = vpop.f32.mrf.mxu0
      %v5623 = vadd.f32 %v4950, %v5622
      %5624 = vmatprep.mubr.bf16.mxu0 0
      %5625 = vmatmul.mubr.bf16.gmra.mxu0 %v860
      %v5626 = vpop.f32.mrf.mxu0
      %v5627 = vadd.f32 %v4954, %v5626
      %v5628 = vpop.f32.mrf.mxu0
      %v5629 = vadd.f32 %v4956, %v5628
      %v5630 = vpop.f32.mrf.mxu0
      %v5631 = vadd.f32 %v4958, %v5630
      %v5632 = vpop.f32.mrf.mxu0
      %v5633 = vadd.f32 %v4960, %v5632
      %5634 = vmatprep.mubr.bf16.mxu0 0
      %5635 = vmatmul.mubr.bf16.gmra.mxu0 %v863
      %v5636 = vpop.f32.mrf.mxu0
      %v5637 = vadd.f32 %v4964, %v5636
      %v5638 = vpop.f32.mrf.mxu0
      %v5639 = vadd.f32 %v4966, %v5638
      %v5640 = vpop.f32.mrf.mxu0
      %v5641 = vadd.f32 %v4968, %v5640
      %v5642 = vpop.f32.mrf.mxu0
      %v5643 = vadd.f32 %v4970, %v5642
      %5644 = vmatprep.mubr.bf16.mxu0 0
      %5645 = vmatmul.mubr.bf16.gmra.mxu0 %v866
      %v5646 = vpop.f32.mrf.mxu0
      %v5647 = vadd.f32 %v4974, %v5646
      %v5648 = vpop.f32.mrf.mxu0
      %v5649 = vadd.f32 %v4976, %v5648
      %v5650 = vpop.f32.mrf.mxu0
      %v5651 = vadd.f32 %v4978, %v5650
      %v5652 = vpop.f32.mrf.mxu0
      %v5653 = vadd.f32 %v4980, %v5652
      %5654 = vmatprep.mubr.bf16.mxu0 0
      %5655 = vmatmul.mubr.bf16.gmra.mxu0 %v869
      %v5656 = vpop.f32.mrf.mxu0
      %v5657 = vadd.f32 %v4984, %v5656
      %v5658 = vpop.f32.mrf.mxu0
      %v5659 = vadd.f32 %v4986, %v5658
      %v5660 = vpop.f32.mrf.mxu0
      %v5661 = vadd.f32 %v4988, %v5660
      %v5662 = vpop.f32.mrf.mxu0
      %v5663 = vadd.f32 %v4990, %v5662
      %5664 = vmatprep.mubr.bf16.mxu0 0
      %5665 = vmatmul.mubr.bf16.gmra.mxu0 %v872
      %v5666 = vpop.f32.mrf.mxu0
      %v5667 = vadd.f32 %v4994, %v5666
      %v5668 = vpop.f32.mrf.mxu0
      %v5669 = vadd.f32 %v4996, %v5668
      %v5670 = vpop.f32.mrf.mxu0
      %v5671 = vadd.f32 %v4998, %v5670
      %v5672 = vpop.f32.mrf.mxu0
      %v5673 = vadd.f32 %v5000, %v5672
      %5674 = vmatprep.mubr.bf16.mxu0 0
      %5675 = vmatmul.mubr.bf16.gmra.mxu0 %v875
      %v5676 = vpop.f32.mrf.mxu0
      %v5677 = vadd.f32 %v5004, %v5676
      %v5678 = vpop.f32.mrf.mxu0
      %v5679 = vadd.f32 %v5006, %v5678
      %v5680 = vpop.f32.mrf.mxu0
      %v5681 = vadd.f32 %v5008, %v5680
      %v5682 = vpop.f32.mrf.mxu0
      %v5683 = vadd.f32 %v5010, %v5682
      %5684 = vmatprep.mubr.bf16.mxu0 0
      %5685 = vmatmul.mubr.bf16.gmra.mxu0 %v878
      %v5686 = vpop.f32.mrf.mxu0
      %v5687 = vadd.f32 %v5014, %v5686
      %v5688 = vpop.f32.mrf.mxu0
      %v5689 = vadd.f32 %v5016, %v5688
      %v5690 = vpop.f32.mrf.mxu0
      %v5691 = vadd.f32 %v5018, %v5690
      %v5692 = vpop.f32.mrf.mxu0
      %v5693 = vadd.f32 %v5020, %v5692
      %5694 = vmatprep.mubr.bf16.mxu0 0
      %5695 = vmatmul.mubr.bf16.gmra.mxu0 %v881
      %v5696 = vpop.f32.mrf.mxu0
      %v5697 = vadd.f32 %v5024, %v5696
      %v5698 = vpop.f32.mrf.mxu0
      %v5699 = vadd.f32 %v5026, %v5698
      %v5700 = vpop.f32.mrf.mxu0
      %v5701 = vadd.f32 %v5028, %v5700
      %v5702 = vpop.f32.mrf.mxu0
      %v5703 = vadd.f32 %v5030, %v5702
      %5704 = vmatprep.mubr.bf16.mxu0 0
      %5705 = vmatmul.mubr.bf16.gmra.mxu0 %v884
      %v5706 = vpop.f32.mrf.mxu0
      %v5707 = vadd.f32 %v5034, %v5706
      %v5708 = vpop.f32.mrf.mxu0
      %v5709 = vadd.f32 %v5036, %v5708
      %v5710 = vpop.f32.mrf.mxu0
      %v5711 = vadd.f32 %v5038, %v5710
      %v5712 = vpop.f32.mrf.mxu0
      %v5713 = vadd.f32 %v5040, %v5712
      %5714 = vmatprep.mubr.bf16.mxu0 0
      %5715 = vmatmul.mubr.bf16.gmra.mxu0 %v887
      %v5716 = vpop.f32.mrf.mxu0
      %v5717 = vadd.f32 %v5044, %v5716
      %v5718 = vpop.f32.mrf.mxu0
      %v5719 = vadd.f32 %v5046, %v5718
      %v5720 = vpop.f32.mrf.mxu0
      %v5721 = vadd.f32 %v5048, %v5720
      %v5722 = vpop.f32.mrf.mxu0
      %v5723 = vadd.f32 %v5050, %v5722
      %5724 = vmatprep.mubr.bf16.mxu0 0
      %5725 = vmatmul.mubr.bf16.gmra.mxu0 %v890
      %v5726 = vpop.f32.mrf.mxu0
      %v5727 = vadd.f32 %v5054, %v5726
      %v5728 = vpop.f32.mrf.mxu0
      %v5729 = vadd.f32 %v5056, %v5728
      %v5730 = vpop.f32.mrf.mxu0
      %v5731 = vadd.f32 %v5058, %v5730
      %v5732 = vpop.f32.mrf.mxu0
      %v5733 = vadd.f32 %v5060, %v5732
      %5734 = vmatprep.mubr.bf16.mxu0 0
      %5735 = vmatmul.mubr.bf16.gmra.mxu0 %v893
      %v5736 = vpop.f32.mrf.mxu0
      %v5737 = vadd.f32 %v5064, %v5736
      %v5738 = vpop.f32.mrf.mxu0
      %v5739 = vadd.f32 %v5066, %v5738
      %v5740 = vpop.f32.mrf.mxu0
      %v5741 = vadd.f32 %v5068, %v5740
      %v5742 = vpop.f32.mrf.mxu0
      %v5743 = vadd.f32 %v5070, %v5742
      %5744 = vmatprep.mubr.bf16.mxu0 0
      %5745 = vmatmul.mubr.bf16.gmra.mxu0 %v896
      %v5746 = vpop.f32.mrf.mxu0
      %v5747 = vadd.f32 %v5074, %v5746
      %v5748 = vpop.f32.mrf.mxu0
      %v5749 = vadd.f32 %v5076, %v5748
      %v5750 = vpop.f32.mrf.mxu0
      %v5751 = vadd.f32 %v5078, %v5750
      %v5752 = vpop.f32.mrf.mxu0
      %v5753 = vadd.f32 %v5080, %v5752
      %5754 = vmatprep.mubr.bf16.mxu0 0
      %5755 = vmatmul.mubr.bf16.gmra.mxu0 %v899
      %v5756 = vpop.f32.mrf.mxu0
      %v5757 = vadd.f32 %v5084, %v5756
      %v5758 = vpop.f32.mrf.mxu0
      %v5759 = vadd.f32 %v5086, %v5758
      %v5760 = vpop.f32.mrf.mxu0
      %v5761 = vadd.f32 %v5088, %v5760
      %v5762 = vpop.f32.mrf.mxu0
      %v5763 = vadd.f32 %v5090, %v5762
      %5764 = vmatprep.mubr.bf16.mxu0 0
      %5765 = vmatmul.mubr.bf16.gmra.mxu0 %v902
      %v5766 = vpop.f32.mrf.mxu0
      %v5767 = vadd.f32 %v5094, %v5766
      %v5768 = vpop.f32.mrf.mxu0
      %v5769 = vadd.f32 %v5096, %v5768
      %v5770 = vpop.f32.mrf.mxu0
      %v5771 = vadd.f32 %v5098, %v5770
      %v5772 = vpop.f32.mrf.mxu0
      %v5773 = vadd.f32 %v5100, %v5772
      %5774 = vmatprep.mubr.bf16.mxu0 0
      %5775 = vmatmul.mubr.bf16.gmra.mxu0 %v905
      %v5776 = vpop.f32.mrf.mxu0
      %v5777 = vadd.f32 %v5104, %v5776
      %v5778 = vpop.f32.mrf.mxu0
      %v5779 = vadd.f32 %v5106, %v5778
      %v5780 = vpop.f32.mrf.mxu0
      %v5781 = vadd.f32 %v5108, %v5780
      %v5782 = vpop.f32.mrf.mxu0
      %v5783 = vadd.f32 %v5110, %v5782
      %5784 = vmatprep.mubr.bf16.mxu0 0
      %5785 = vmatmul.mubr.bf16.gmra.mxu0 %v908
      %v5786 = vpop.f32.mrf.mxu0
      %v5787 = vadd.f32 %v5114, %v5786
      %v5788 = vpop.f32.mrf.mxu0
      %v5789 = vadd.f32 %v5116, %v5788
      %v5790 = vpop.f32.mrf.mxu0
      %v5791 = vadd.f32 %v5118, %v5790
      %v5792 = vpop.f32.mrf.mxu0
      %v5793 = vadd.f32 %v5120, %v5792
      %5794 = vmatprep.mubr.bf16.mxu0 0
      %5795 = vmatmul.mubr.bf16.gmra.mxu0 %v911
      %v5796 = vpop.f32.mrf.mxu0
      %v5797 = vadd.f32 %v5124, %v5796
      %v5798 = vpop.f32.mrf.mxu0
      %v5799 = vadd.f32 %v5126, %v5798
      %v5800 = vpop.f32.mrf.mxu0
      %v5801 = vadd.f32 %v5128, %v5800
      %v5802 = vpop.f32.mrf.mxu0
      %v5803 = vadd.f32 %v5130, %v5802
      %5804 = vmatprep.mubr.bf16.mxu0 0
      %5805 = vmatmul.mubr.bf16.gmra.mxu0 %v914
      %v5806 = vpop.f32.mrf.mxu0
      %v5807 = vadd.f32 %v5134, %v5806
      %v5808 = vpop.f32.mrf.mxu0
      %v5809 = vadd.f32 %v5136, %v5808
      %v5810 = vpop.f32.mrf.mxu0
      %v5811 = vadd.f32 %v5138, %v5810
      %v5812 = vpop.f32.mrf.mxu0
      %v5813 = vadd.f32 %v5140, %v5812
      %5814 = vmatprep.mubr.bf16.mxu0 0
      %5815 = vmatmul.mubr.bf16.gmra.mxu0 %v917
      %v5816 = vpop.f32.mrf.mxu0
      %v5817 = vadd.f32 %v5144, %v5816
      %v5818 = vpop.f32.mrf.mxu0
      %v5819 = vadd.f32 %v5146, %v5818
      %v5820 = vpop.f32.mrf.mxu0
      %v5821 = vadd.f32 %v5148, %v5820
      %v5822 = vpop.f32.mrf.mxu0
      %v5823 = vadd.f32 %v5150, %v5822
      %5824 = vmatprep.mubr.bf16.mxu0 0
      %5825 = vmatmul.mubr.bf16.gmra.mxu0 %v920
      %v5826 = vpop.f32.mrf.mxu0
      %v5827 = vadd.f32 %v5154, %v5826
      %v5828 = vpop.f32.mrf.mxu0
      %v5829 = vadd.f32 %v5156, %v5828
      %v5830 = vpop.f32.mrf.mxu0
      %v5831 = vadd.f32 %v5158, %v5830
      %v5832 = vpop.f32.mrf.mxu0
      %v5833 = vadd.f32 %v5160, %v5832
      %5834 = vmatprep.mubr.bf16.mxu0 0
      %5835 = vmatmul.mubr.bf16.gmra.mxu0 %v923
      %v5836 = vpop.f32.mrf.mxu0
      %v5837 = vadd.f32 %v5164, %v5836
      %v5838 = vpop.f32.mrf.mxu0
      %v5839 = vadd.f32 %v5166, %v5838
      %v5840 = vpop.f32.mrf.mxu0
      %v5841 = vadd.f32 %v5168, %v5840
      %v5842 = vpop.f32.mrf.mxu0
      %v5843 = vadd.f32 %v5170, %v5842
      %5844 = vdwg.mxu0
      %v5845 = vmax.f32 %v5207, 0.0
      %v5846 = vmax.f32 %v5209, 0.0
      %v5847 = vmax.f32 %v5211, 0.0
      %v5848 = vmax.f32 %v5213, 0.0
      %v5849 = vmax.f32 %v5217, 0.0
      %v5850 = vmax.f32 %v5219, 0.0
      %v5851 = vmax.f32 %v5221, 0.0
      %v5852 = vmax.f32 %v5223, 0.0
      %v5853 = vmax.f32 %v5227, 0.0
      %v5854 = vmax.f32 %v5229, 0.0
      %v5855 = vmax.f32 %v5231, 0.0
      %v5856 = vmax.f32 %v5233, 0.0
      %v5857 = vmax.f32 %v5237, 0.0
      %v5858 = vmax.f32 %v5239, 0.0
      %v5859 = vmax.f32 %v5241, 0.0
      %v5860 = vmax.f32 %v5243, 0.0
      %v5861 = vmax.f32 %v5247, 0.0
      %v5862 = vmax.f32 %v5249, 0.0
      %v5863 = vmax.f32 %v5251, 0.0
      %v5864 = vmax.f32 %v5253, 0.0
      %v5865 = vmax.f32 %v5257, 0.0
      %v5866 = vmax.f32 %v5259, 0.0
      %v5867 = vmax.f32 %v5261, 0.0
      %v5868 = vmax.f32 %v5263, 0.0
      %v5869 = vmax.f32 %v5267, 0.0
      %v5870 = vmax.f32 %v5269, 0.0
      %v5871 = vmax.f32 %v5271, 0.0
      %v5872 = vmax.f32 %v5273, 0.0
      %v5873 = vmax.f32 %v5277, 0.0
      %v5874 = vmax.f32 %v5279, 0.0
      %v5875 = vmax.f32 %v5281, 0.0
      %v5876 = vmax.f32 %v5283, 0.0
      %v5877 = vmax.f32 %v5287, 0.0
      %v5878 = vmax.f32 %v5289, 0.0
      %v5879 = vmax.f32 %v5291, 0.0
      %v5880 = vmax.f32 %v5293, 0.0
      %v5881 = vmax.f32 %v5297, 0.0
      %v5882 = vmax.f32 %v5299, 0.0
      %v5883 = vmax.f32 %v5301, 0.0
      %v5884 = vmax.f32 %v5303, 0.0
      %v5885 = vmax.f32 %v5307, 0.0
      %v5886 = vmax.f32 %v5309, 0.0
      %v5887 = vmax.f32 %v5311, 0.0
      %v5888 = vmax.f32 %v5313, 0.0
      %v5889 = vmax.f32 %v5317, 0.0
      %v5890 = vmax.f32 %v5319, 0.0
      %v5891 = vmax.f32 %v5321, 0.0
      %v5892 = vmax.f32 %v5323, 0.0
      %v5893 = vmax.f32 %v5327, 0.0
      %v5894 = vmax.f32 %v5329, 0.0
      %v5895 = vmax.f32 %v5331, 0.0
      %v5896 = vmax.f32 %v5333, 0.0
      %v5897 = vmax.f32 %v5337, 0.0
      %v5898 = vmax.f32 %v5339, 0.0
      %v5899 = vmax.f32 %v5341, 0.0
      %v5900 = vmax.f32 %v5343, 0.0
      %v5901 = vmax.f32 %v5347, 0.0
      %v5902 = vmax.f32 %v5349, 0.0
      %v5903 = vmax.f32 %v5351, 0.0
      %v5904 = vmax.f32 %v5353, 0.0
      %v5905 = vmax.f32 %v5357, 0.0
      %v5906 = vmax.f32 %v5359, 0.0
      %v5907 = vmax.f32 %v5361, 0.0
      %v5908 = vmax.f32 %v5363, 0.0
      %v5909 = vmax.f32 %v5367, 0.0
      %v5910 = vmax.f32 %v5369, 0.0
      %v5911 = vmax.f32 %v5371, 0.0
      %v5912 = vmax.f32 %v5373, 0.0
      %v5913 = vmax.f32 %v5377, 0.0
      %v5914 = vmax.f32 %v5379, 0.0
      %v5915 = vmax.f32 %v5381, 0.0
      %v5916 = vmax.f32 %v5383, 0.0
      %v5917 = vmax.f32 %v5387, 0.0
      %v5918 = vmax.f32 %v5389, 0.0
      %v5919 = vmax.f32 %v5391, 0.0
      %v5920 = vmax.f32 %v5393, 0.0
      %v5921 = vmax.f32 %v5397, 0.0
      %v5922 = vmax.f32 %v5399, 0.0
      %v5923 = vmax.f32 %v5401, 0.0
      %v5924 = vmax.f32 %v5403, 0.0
      %v5925 = vmax.f32 %v5407, 0.0
      %v5926 = vmax.f32 %v5409, 0.0
      %v5927 = vmax.f32 %v5411, 0.0
      %v5928 = vmax.f32 %v5413, 0.0
      %v5929 = vmax.f32 %v5417, 0.0
      %v5930 = vmax.f32 %v5419, 0.0
      %v5931 = vmax.f32 %v5421, 0.0
      %v5932 = vmax.f32 %v5423, 0.0
      %v5933 = vmax.f32 %v5427, 0.0
      %v5934 = vmax.f32 %v5429, 0.0
      %v5935 = vmax.f32 %v5431, 0.0
      %v5936 = vmax.f32 %v5433, 0.0
      %v5937 = vmax.f32 %v5437, 0.0
      %v5938 = vmax.f32 %v5439, 0.0
      %v5939 = vmax.f32 %v5441, 0.0
      %v5940 = vmax.f32 %v5443, 0.0
      %v5941 = vmax.f32 %v5447, 0.0
      %v5942 = vmax.f32 %v5449, 0.0
      %v5943 = vmax.f32 %v5451, 0.0
      %v5944 = vmax.f32 %v5453, 0.0
      %v5945 = vmax.f32 %v5457, 0.0
      %v5946 = vmax.f32 %v5459, 0.0
      %v5947 = vmax.f32 %v5461, 0.0
      %v5948 = vmax.f32 %v5463, 0.0
      %v5949 = vmax.f32 %v5467, 0.0
      %v5950 = vmax.f32 %v5469, 0.0
      %v5951 = vmax.f32 %v5471, 0.0
      %v5952 = vmax.f32 %v5473, 0.0
      %v5953 = vmax.f32 %v5477, 0.0
      %v5954 = vmax.f32 %v5479, 0.0
      %v5955 = vmax.f32 %v5481, 0.0
      %v5956 = vmax.f32 %v5483, 0.0
      %v5957 = vmax.f32 %v5487, 0.0
      %v5958 = vmax.f32 %v5489, 0.0
      %v5959 = vmax.f32 %v5491, 0.0
      %v5960 = vmax.f32 %v5493, 0.0
      %v5961 = vmax.f32 %v5497, 0.0
      %v5962 = vmax.f32 %v5499, 0.0
      %v5963 = vmax.f32 %v5501, 0.0
      %v5964 = vmax.f32 %v5503, 0.0
      %v5965 = vmax.f32 %v5507, 0.0
      %v5966 = vmax.f32 %v5509, 0.0
      %v5967 = vmax.f32 %v5511, 0.0
      %v5968 = vmax.f32 %v5513, 0.0
      %v5969 = vmax.f32 %v5517, 0.0
      %v5970 = vmax.f32 %v5519, 0.0
      %v5971 = vmax.f32 %v5521, 0.0
      %v5972 = vmax.f32 %v5523, 0.0
      %v5973 = vmax.f32 %v5527, 0.0
      %v5974 = vmax.f32 %v5529, 0.0
      %v5975 = vmax.f32 %v5531, 0.0
      %v5976 = vmax.f32 %v5533, 0.0
      %v5977 = vmax.f32 %v5537, 0.0
      %v5978 = vmax.f32 %v5539, 0.0
      %v5979 = vmax.f32 %v5541, 0.0
      %v5980 = vmax.f32 %v5543, 0.0
      %v5981 = vmax.f32 %v5547, 0.0
      %v5982 = vmax.f32 %v5549, 0.0
      %v5983 = vmax.f32 %v5551, 0.0
      %v5984 = vmax.f32 %v5553, 0.0
      %v5985 = vmax.f32 %v5557, 0.0
      %v5986 = vmax.f32 %v5559, 0.0
      %v5987 = vmax.f32 %v5561, 0.0
      %v5988 = vmax.f32 %v5563, 0.0
      %v5989 = vmax.f32 %v5567, 0.0
      %v5990 = vmax.f32 %v5569, 0.0
      %v5991 = vmax.f32 %v5571, 0.0
      %v5992 = vmax.f32 %v5573, 0.0
      %v5993 = vmax.f32 %v5577, 0.0
      %v5994 = vmax.f32 %v5579, 0.0
      %v5995 = vmax.f32 %v5581, 0.0
      %v5996 = vmax.f32 %v5583, 0.0
      %v5997 = vmax.f32 %v5587, 0.0
      %v5998 = vmax.f32 %v5589, 0.0
      %v5999 = vmax.f32 %v5591, 0.0
      %v6000 = vmax.f32 %v5593, 0.0
      %v6001 = vmax.f32 %v5597, 0.0
      %v6002 = vmax.f32 %v5599, 0.0
      %v6003 = vmax.f32 %v5601, 0.0
      %v6004 = vmax.f32 %v5603, 0.0
      %v6005 = vmax.f32 %v5607, 0.0
      %v6006 = vmax.f32 %v5609, 0.0
      %v6007 = vmax.f32 %v5611, 0.0
      %v6008 = vmax.f32 %v5613, 0.0
      %v6009 = vmax.f32 %v5617, 0.0
      %v6010 = vmax.f32 %v5619, 0.0
      %v6011 = vmax.f32 %v5621, 0.0
      %v6012 = vmax.f32 %v5623, 0.0
      %v6013 = vmax.f32 %v5627, 0.0
      %v6014 = vmax.f32 %v5629, 0.0
      %v6015 = vmax.f32 %v5631, 0.0
      %v6016 = vmax.f32 %v5633, 0.0
      %v6017 = vmax.f32 %v5637, 0.0
      %v6018 = vmax.f32 %v5639, 0.0
      %v6019 = vmax.f32 %v5641, 0.0
      %v6020 = vmax.f32 %v5643, 0.0
      %v6021 = vmax.f32 %v5647, 0.0
      %v6022 = vmax.f32 %v5649, 0.0
      %v6023 = vmax.f32 %v5651, 0.0
      %v6024 = vmax.f32 %v5653, 0.0
      %v6025 = vmax.f32 %v5657, 0.0
      %v6026 = vmax.f32 %v5659, 0.0
      %v6027 = vmax.f32 %v5661, 0.0
      %v6028 = vmax.f32 %v5663, 0.0
      %v6029 = vmax.f32 %v5667, 0.0
      %v6030 = vmax.f32 %v5669, 0.0
      %v6031 = vmax.f32 %v5671, 0.0
      %v6032 = vmax.f32 %v5673, 0.0
      %v6033 = vmax.f32 %v5677, 0.0
      %v6034 = vmax.f32 %v5679, 0.0
      %v6035 = vmax.f32 %v5681, 0.0
      %v6036 = vmax.f32 %v5683, 0.0
      %v6037 = vmax.f32 %v5687, 0.0
      %v6038 = vmax.f32 %v5689, 0.0
      %v6039 = vmax.f32 %v5691, 0.0
      %v6040 = vmax.f32 %v5693, 0.0
      %v6041 = vmax.f32 %v5697, 0.0
      %v6042 = vmax.f32 %v5699, 0.0
      %v6043 = vmax.f32 %v5701, 0.0
      %v6044 = vmax.f32 %v5703, 0.0
      %v6045 = vmax.f32 %v5707, 0.0
      %v6046 = vmax.f32 %v5709, 0.0
      %v6047 = vmax.f32 %v5711, 0.0
      %v6048 = vmax.f32 %v5713, 0.0
      %v6049 = vmax.f32 %v5717, 0.0
      %v6050 = vmax.f32 %v5719, 0.0
      %v6051 = vmax.f32 %v5721, 0.0
      %v6052 = vmax.f32 %v5723, 0.0
      %v6053 = vmax.f32 %v5727, 0.0
      %v6054 = vmax.f32 %v5729, 0.0
      %v6055 = vmax.f32 %v5731, 0.0
      %v6056 = vmax.f32 %v5733, 0.0
      %v6057 = vmax.f32 %v5737, 0.0
      %v6058 = vmax.f32 %v5739, 0.0
      %v6059 = vmax.f32 %v5741, 0.0
      %v6060 = vmax.f32 %v5743, 0.0
      %v6061 = vmax.f32 %v5747, 0.0
      %v6062 = vmax.f32 %v5749, 0.0
      %v6063 = vmax.f32 %v5751, 0.0
      %v6064 = vmax.f32 %v5753, 0.0
      %v6065 = vmax.f32 %v5757, 0.0
      %v6066 = vmax.f32 %v5759, 0.0
      %v6067 = vmax.f32 %v5761, 0.0
      %v6068 = vmax.f32 %v5763, 0.0
      %v6069 = vmax.f32 %v5767, 0.0
      %v6070 = vmax.f32 %v5769, 0.0
      %v6071 = vmax.f32 %v5771, 0.0
      %v6072 = vmax.f32 %v5773, 0.0
      %v6073 = vmax.f32 %v5777, 0.0
      %v6074 = vmax.f32 %v5779, 0.0
      %v6075 = vmax.f32 %v5781, 0.0
      %v6076 = vmax.f32 %v5783, 0.0
      %v6077 = vmax.f32 %v5787, 0.0
      %v6078 = vmax.f32 %v5789, 0.0
      %v6079 = vmax.f32 %v5791, 0.0
      %v6080 = vmax.f32 %v5793, 0.0
      %v6081 = vmax.f32 %v5797, 0.0
      %v6082 = vmax.f32 %v5799, 0.0
      %v6083 = vmax.f32 %v5801, 0.0
      %v6084 = vmax.f32 %v5803, 0.0
      %v6085 = vmax.f32 %v5807, 0.0
      %v6086 = vmax.f32 %v5809, 0.0
      %v6087 = vmax.f32 %v5811, 0.0
      %v6088 = vmax.f32 %v5813, 0.0
      %v6089 = vmax.f32 %v5817, 0.0
      %v6090 = vmax.f32 %v5819, 0.0
      %v6091 = vmax.f32 %v5821, 0.0
      %v6092 = vmax.f32 %v5823, 0.0
      %v6093 = vmax.f32 %v5827, 0.0
      %v6094 = vmax.f32 %v5829, 0.0
      %v6095 = vmax.f32 %v5831, 0.0
      %v6096 = vmax.f32 %v5833, 0.0
      %v6097 = vmax.f32 %v5837, 0.0
      %v6098 = vmax.f32 %v5839, 0.0
      %v6099 = vmax.f32 %v5841, 0.0
      %v6100 = vmax.f32 %v5843, 0.0
      %v6101 = vpack.c.bf16 %v5847, %v5845
      %v6102 = vpack.c.bf16 %v5848, %v5846
      %v6103 = vpack.c.bf16 %v5851, %v5849
      %v6104 = vpack.c.bf16 %v5852, %v5850
      %v6105 = vpack.c.bf16 %v5855, %v5853
      %v6106 = vpack.c.bf16 %v5856, %v5854
      %v6107 = vpack.c.bf16 %v5859, %v5857
      %v6108 = vpack.c.bf16 %v5860, %v5858
      %v6109 = vpack.c.bf16 %v5863, %v5861
      %v6110 = vpack.c.bf16 %v5864, %v5862
      %v6111 = vpack.c.bf16 %v5867, %v5865
      %v6112 = vpack.c.bf16 %v5868, %v5866
      %v6113 = vpack.c.bf16 %v5871, %v5869
      %v6114 = vpack.c.bf16 %v5872, %v5870
      %v6115 = vpack.c.bf16 %v5875, %v5873
      %v6116 = vpack.c.bf16 %v5876, %v5874
      %v6117 = vpack.c.bf16 %v5879, %v5877
      %v6118 = vpack.c.bf16 %v5880, %v5878
      %v6119 = vpack.c.bf16 %v5883, %v5881
      %v6120 = vpack.c.bf16 %v5884, %v5882
      %v6121 = vpack.c.bf16 %v5887, %v5885
      %v6122 = vpack.c.bf16 %v5888, %v5886
      %v6123 = vpack.c.bf16 %v5891, %v5889
      %v6124 = vpack.c.bf16 %v5892, %v5890
      %v6125 = vpack.c.bf16 %v5895, %v5893
      %v6126 = vpack.c.bf16 %v5896, %v5894
      %v6127 = vpack.c.bf16 %v5899, %v5897
      %v6128 = vpack.c.bf16 %v5900, %v5898
      %v6129 = vpack.c.bf16 %v5903, %v5901
      %v6130 = vpack.c.bf16 %v5904, %v5902
      %v6131 = vpack.c.bf16 %v5907, %v5905
      %v6132 = vpack.c.bf16 %v5908, %v5906
      %v6133 = vpack.c.bf16 %v5911, %v5909
      %v6134 = vpack.c.bf16 %v5912, %v5910
      %v6135 = vpack.c.bf16 %v5915, %v5913
      %v6136 = vpack.c.bf16 %v5916, %v5914
      %v6137 = vpack.c.bf16 %v5919, %v5917
      %v6138 = vpack.c.bf16 %v5920, %v5918
      %v6139 = vpack.c.bf16 %v5923, %v5921
      %v6140 = vpack.c.bf16 %v5924, %v5922
      %v6141 = vpack.c.bf16 %v5927, %v5925
      %v6142 = vpack.c.bf16 %v5928, %v5926
      %v6143 = vpack.c.bf16 %v5931, %v5929
      %v6144 = vpack.c.bf16 %v5932, %v5930
      %v6145 = vpack.c.bf16 %v5935, %v5933
      %v6146 = vpack.c.bf16 %v5936, %v5934
      %v6147 = vpack.c.bf16 %v5939, %v5937
      %v6148 = vpack.c.bf16 %v5940, %v5938
      %v6149 = vpack.c.bf16 %v5943, %v5941
      %v6150 = vpack.c.bf16 %v5944, %v5942
      %v6151 = vpack.c.bf16 %v5947, %v5945
      %v6152 = vpack.c.bf16 %v5948, %v5946
      %v6153 = vpack.c.bf16 %v5951, %v5949
      %v6154 = vpack.c.bf16 %v5952, %v5950
      %v6155 = vpack.c.bf16 %v5955, %v5953
      %v6156 = vpack.c.bf16 %v5956, %v5954
      %v6157 = vpack.c.bf16 %v5959, %v5957
      %v6158 = vpack.c.bf16 %v5960, %v5958
      %v6159 = vpack.c.bf16 %v5963, %v5961
      %v6160 = vpack.c.bf16 %v5964, %v5962
      %v6161 = vpack.c.bf16 %v5967, %v5965
      %v6162 = vpack.c.bf16 %v5968, %v5966
      %v6163 = vpack.c.bf16 %v5971, %v5969
      %v6164 = vpack.c.bf16 %v5972, %v5970
      %v6165 = vpack.c.bf16 %v5975, %v5973
      %v6166 = vpack.c.bf16 %v5976, %v5974
      %v6167 = vpack.c.bf16 %v5979, %v5977
      %v6168 = vpack.c.bf16 %v5980, %v5978
      %v6169 = vpack.c.bf16 %v5983, %v5981
      %v6170 = vpack.c.bf16 %v5984, %v5982
      %v6171 = vpack.c.bf16 %v5987, %v5985
      %v6172 = vpack.c.bf16 %v5988, %v5986
      %v6173 = vpack.c.bf16 %v5991, %v5989
      %v6174 = vpack.c.bf16 %v5992, %v5990
      %v6175 = vpack.c.bf16 %v5995, %v5993
      %v6176 = vpack.c.bf16 %v5996, %v5994
      %v6177 = vpack.c.bf16 %v5999, %v5997
      %v6178 = vpack.c.bf16 %v6000, %v5998
      %v6179 = vpack.c.bf16 %v6003, %v6001
      %v6180 = vpack.c.bf16 %v6004, %v6002
      %v6181 = vpack.c.bf16 %v6007, %v6005
      %v6182 = vpack.c.bf16 %v6008, %v6006
      %v6183 = vpack.c.bf16 %v6011, %v6009
      %v6184 = vpack.c.bf16 %v6012, %v6010
      %v6185 = vpack.c.bf16 %v6015, %v6013
      %v6186 = vpack.c.bf16 %v6016, %v6014
      %v6187 = vpack.c.bf16 %v6019, %v6017
      %v6188 = vpack.c.bf16 %v6020, %v6018
      %v6189 = vpack.c.bf16 %v6023, %v6021
      %v6190 = vpack.c.bf16 %v6024, %v6022
      %v6191 = vpack.c.bf16 %v6027, %v6025
      %v6192 = vpack.c.bf16 %v6028, %v6026
      %v6193 = vpack.c.bf16 %v6031, %v6029
      %v6194 = vpack.c.bf16 %v6032, %v6030
      %v6195 = vpack.c.bf16 %v6035, %v6033
      %v6196 = vpack.c.bf16 %v6036, %v6034
      %v6197 = vpack.c.bf16 %v6039, %v6037
      %v6198 = vpack.c.bf16 %v6040, %v6038
      %v6199 = vpack.c.bf16 %v6043, %v6041
      %v6200 = vpack.c.bf16 %v6044, %v6042
      %v6201 = vpack.c.bf16 %v6047, %v6045
      %v6202 = vpack.c.bf16 %v6048, %v6046
      %v6203 = vpack.c.bf16 %v6051, %v6049
      %v6204 = vpack.c.bf16 %v6052, %v6050
      %v6205 = vpack.c.bf16 %v6055, %v6053
      %v6206 = vpack.c.bf16 %v6056, %v6054
      %v6207 = vpack.c.bf16 %v6059, %v6057
      %v6208 = vpack.c.bf16 %v6060, %v6058
      %v6209 = vpack.c.bf16 %v6063, %v6061
      %v6210 = vpack.c.bf16 %v6064, %v6062
      %v6211 = vpack.c.bf16 %v6067, %v6065
      %v6212 = vpack.c.bf16 %v6068, %v6066
      %v6213 = vpack.c.bf16 %v6071, %v6069
      %v6214 = vpack.c.bf16 %v6072, %v6070
      %v6215 = vpack.c.bf16 %v6075, %v6073
      %v6216 = vpack.c.bf16 %v6076, %v6074
      %v6217 = vpack.c.bf16 %v6079, %v6077
      %v6218 = vpack.c.bf16 %v6080, %v6078
      %v6219 = vpack.c.bf16 %v6083, %v6081
      %v6220 = vpack.c.bf16 %v6084, %v6082
      %v6221 = vpack.c.bf16 %v6087, %v6085
      %v6222 = vpack.c.bf16 %v6088, %v6086
      %v6223 = vpack.c.bf16 %v6091, %v6089
      %v6224 = vpack.c.bf16 %v6092, %v6090
      %v6225 = vpack.c.bf16 %v6095, %v6093
      %v6226 = vpack.c.bf16 %v6096, %v6094
      %v6227 = vpack.c.bf16 %v6099, %v6097
      %v6228 = vpack.c.bf16 %v6100, %v6098
      %v6229 = vld [vmem:[%s11] sm:$0xf]
      %v6230 = vld [vmem:[%s11 + $0x4] sm:$0xf]
      %v6231 = vld [vmem:[%s11 + $0x8] sm:$0xf]
      %v6232 = vld [vmem:[%s11 + $0xc] sm:$0xf]
      %v6233 = vld [vmem:[%s11 + $0x10] sm:$0xf]
      %v6234 = vld [vmem:[%s11 + $0x14] sm:$0xf]
      %v6235 = vld [vmem:[%s11 + $0x18] sm:$0xf]
      %v6236 = vld [vmem:[%s11 + $0x1c] sm:$0xf]
      %v6237 = vld [vmem:[%s11 + $0x20] sm:$0xf]
      %v6238 = vld [vmem:[%s11 + $0x24] sm:$0xf]
      %v6239 = vld [vmem:[%s11 + $0x28] sm:$0xf]
      %v6240 = vld [vmem:[%s11 + $0x2c] sm:$0xf]
      %v6241 = vld [vmem:[%s11 + $0x30] sm:$0xf]
      %v6242 = vld [vmem:[%s11 + $0x34] sm:$0xf]
      %v6243 = vld [vmem:[%s11 + $0x38] sm:$0xf]
      %v6244 = vld [vmem:[%s11 + $0x3c] sm:$0xf]
      %v6245 = vld [vmem:[%s11 + $0x40] sm:$0xf]
      %v6246 = vld [vmem:[%s11 + $0x44] sm:$0xf]
      %v6247 = vld [vmem:[%s11 + $0x48] sm:$0xf]
      %v6248 = vld [vmem:[%s11 + $0x4c] sm:$0xf]
      %v6249 = vld [vmem:[%s11 + $0x50] sm:$0xf]
      %v6250 = vld [vmem:[%s11 + $0x54] sm:$0xf]
      %v6251 = vld [vmem:[%s11 + $0x58] sm:$0xf]
      %v6252 = vld [vmem:[%s11 + $0x5c] sm:$0xf]
      %v6253 = vld [vmem:[%s11 + $0x60] sm:$0xf]
      %v6254 = vld [vmem:[%s11 + $0x64] sm:$0xf]
      %v6255 = vld [vmem:[%s11 + $0x68] sm:$0xf]
      %v6256 = vld [vmem:[%s11 + $0x6c] sm:$0xf]
      %v6257 = vld [vmem:[%s11 + $0x70] sm:$0xf]
      %v6258 = vld [vmem:[%s11 + $0x74] sm:$0xf]
      %v6259 = vld [vmem:[%s11 + $0x78] sm:$0xf]
      %v6260 = vld [vmem:[%s11 + $0x7c] sm:$0xf]
      %v6261 = vld [vmem:[%s10] sm:$0xf]
      %v6262 = vld [vmem:[%s10 + $0x4] sm:$0xf]
      %v6263 = vld [vmem:[%s10 + $0x8] sm:$0xf]
      %v6264 = vld [vmem:[%s10 + $0xc] sm:$0xf]
      %v6265 = vld [vmem:[%s10 + $0x10] sm:$0xf]
      %v6266 = vld [vmem:[%s10 + $0x14] sm:$0xf]
      %v6267 = vld [vmem:[%s10 + $0x18] sm:$0xf]
      %v6268 = vld [vmem:[%s10 + $0x1c] sm:$0xf]
      %v6269 = vld [vmem:[%s10 + $0x20] sm:$0xf]
      %v6270 = vld [vmem:[%s10 + $0x24] sm:$0xf]
      %v6271 = vld [vmem:[%s10 + $0x28] sm:$0xf]
      %v6272 = vld [vmem:[%s10 + $0x2c] sm:$0xf]
      %v6273 = vld [vmem:[%s10 + $0x30] sm:$0xf]
      %v6274 = vld [vmem:[%s10 + $0x34] sm:$0xf]
      %v6275 = vld [vmem:[%s10 + $0x38] sm:$0xf]
      %v6276 = vld [vmem:[%s10 + $0x3c] sm:$0xf]
      %v6277 = vld [vmem:[%s10 + $0x40] sm:$0xf]
      %v6278 = vld [vmem:[%s10 + $0x44] sm:$0xf]
      %v6279 = vld [vmem:[%s10 + $0x48] sm:$0xf]
      %v6280 = vld [vmem:[%s10 + $0x4c] sm:$0xf]
      %v6281 = vld [vmem:[%s10 + $0x50] sm:$0xf]
      %v6282 = vld [vmem:[%s10 + $0x54] sm:$0xf]
      %v6283 = vld [vmem:[%s10 + $0x58] sm:$0xf]
      %v6284 = vld [vmem:[%s10 + $0x5c] sm:$0xf]
      %v6285 = vld [vmem:[%s10 + $0x60] sm:$0xf]
      %v6286 = vld [vmem:[%s10 + $0x64] sm:$0xf]
      %v6287 = vld [vmem:[%s10 + $0x68] sm:$0xf]
      %v6288 = vld [vmem:[%s10 + $0x6c] sm:$0xf]
      %v6289 = vld [vmem:[%s10 + $0x70] sm:$0xf]
      %v6290 = vld [vmem:[%s10 + $0x74] sm:$0xf]
      %v6291 = vld [vmem:[%s10 + $0x78] sm:$0xf]
      %v6292 = vld [vmem:[%s10 + $0x7c] sm:$0xf]
      %v6325 = vunpack.c.l.b16 %v6261
      %v6326 = vunpack.c.l.b16 %v6262
      %v6327 = vunpack.c.l.b16 %v6263
      %v6328 = vunpack.c.l.b16 %v6264
      %v6329 = vunpack.c.l.b16 %v6265
      %v6330 = vunpack.c.l.b16 %v6266
      %v6331 = vunpack.c.l.b16 %v6267
      %v6332 = vunpack.c.l.b16 %v6268
      %v6333 = vunpack.c.l.b16 %v6269
      %v6334 = vunpack.c.l.b16 %v6270
      %v6335 = vunpack.c.l.b16 %v6271
      %v6336 = vunpack.c.l.b16 %v6272
      %v6337 = vunpack.c.l.b16 %v6273
      %v6338 = vunpack.c.l.b16 %v6274
      %v6339 = vunpack.c.l.b16 %v6275
      %v6340 = vunpack.c.l.b16 %v6276
      %v6341 = vunpack.c.l.b16 %v6277
      %v6342 = vunpack.c.l.b16 %v6278
      %v6343 = vunpack.c.l.b16 %v6279
      %v6344 = vunpack.c.l.b16 %v6280
      %v6345 = vunpack.c.l.b16 %v6281
      %v6346 = vunpack.c.l.b16 %v6282
      %v6347 = vunpack.c.l.b16 %v6283
      %v6348 = vunpack.c.l.b16 %v6284
      %v6349 = vunpack.c.l.b16 %v6285
      %v6350 = vunpack.c.l.b16 %v6286
      %v6351 = vunpack.c.l.b16 %v6287
      %v6352 = vunpack.c.l.b16 %v6288
      %v6353 = vunpack.c.l.b16 %v6289
      %v6354 = vunpack.c.l.b16 %v6290
      %v6355 = vunpack.c.l.b16 %v6291
      %v6356 = vunpack.c.l.b16 %v6292
      %v6357 = vpack.c.b16 %v6326, %v6325
      %v6358 = vpack.c.b16 %v6328, %v6327
      %v6359 = vpack.c.b16 %v6330, %v6329
      %v6360 = vpack.c.b16 %v6332, %v6331
      %v6361 = vpack.c.b16 %v6334, %v6333
      %v6362 = vpack.c.b16 %v6336, %v6335
      %v6363 = vpack.c.b16 %v6338, %v6337
      %v6364 = vpack.c.b16 %v6340, %v6339
      %v6365 = vpack.c.b16 %v6342, %v6341
      %v6366 = vpack.c.b16 %v6344, %v6343
      %v6367 = vpack.c.b16 %v6346, %v6345
      %v6368 = vpack.c.b16 %v6348, %v6347
      %v6369 = vpack.c.b16 %v6350, %v6349
      %v6370 = vpack.c.b16 %v6352, %v6351
      %v6371 = vpack.c.b16 %v6354, %v6353
      %v6372 = vpack.c.b16 %v6356, %v6355
      %6389 = vmatprep.subr.bf16.mxu0 0
      %6390 = vmatpush1.bf16.msra.mxu0 %v6364
      %6391 = vmatprep.subr.bf16.mxu0 0
      %6392 = vmatpush1.bf16.msra.mxu0 %v6363
      %6393 = vmatprep.subr.bf16.mxu0 0
      %6394 = vmatpush1.bf16.msra.mxu0 %v6362
      %6395 = vmatprep.subr.bf16.mxu0 0
      %6396 = vmatpush1.bf16.msra.mxu0 %v6361
      %6397 = vmatprep.subr.bf16.mxu0 0
      %6398 = vmatpush1.bf16.msra.mxu0 %v6360
      %6399 = vmatprep.subr.bf16.mxu0 0
      %6400 = vmatpush1.bf16.msra.mxu0 %v6359
      %6401 = vmatprep.subr.bf16.mxu0 0
      %6402 = vmatpush1.bf16.msra.mxu0 %v6358
      %6403 = vmatprep.subr.bf16.mxu0 0
      %6404 = vmatpush1.bf16.msra.mxu0 %v6357
      %6405 = vmatprep.subr.bf16.mxu0 0
      %6406 = vmatpush2.bf16.msra.mxu0 %v6372
      %6407 = vmatprep.subr.bf16.mxu0 0
      %6408 = vmatpush2.bf16.msra.mxu0 %v6371
      %6409 = vmatprep.subr.bf16.mxu0 0
      %6410 = vmatpush2.bf16.msra.mxu0 %v6370
      %6411 = vmatprep.subr.bf16.mxu0 0
      %6412 = vmatpush2.bf16.msra.mxu0 %v6369
      %6413 = vmatprep.subr.bf16.mxu0 0
      %6414 = vmatpush2.bf16.msra.mxu0 %v6368
      %6415 = vmatprep.subr.bf16.mxu0 0
      %6416 = vmatpush2.bf16.msra.mxu0 %v6367
      %6417 = vmatprep.subr.bf16.mxu0 0
      %6418 = vmatpush2.bf16.msra.mxu0 %v6366
      %6419 = vmatprep.subr.bf16.mxu0 0
      %6420 = vmatpush2.bf16.msra.mxu0 %v6365
      %6421 = vmatprep.mubr.bf16.mxu0 %v3123
      %6422 = vmatmul.mubr.bf16.gmra.mxu0 %v3122
      %v6423 = vpop.f32.mrf.mxu0
      %v6424 = vadd.f32 0.0, %v6423
      %v6425 = vpop.f32.mrf.mxu0
      %v6426 = vpop.f32.mrf.mxu0
      %v6427 = vadd.f32 0.0, %v6426
      %v6428 = vpop.f32.mrf.mxu0
      %6429 = vmatprep.mubr.bf16.mxu0 %v3125
      %6430 = vmatmul.mubr.bf16.gmra.mxu0 %v3124
      %v6431 = vpop.f32.mrf.mxu0
      %v6432 = vadd.f32 0.0, %v6431
      %v6433 = vpop.f32.mrf.mxu0
      %v6434 = vpop.f32.mrf.mxu0
      %v6435 = vadd.f32 0.0, %v6434
      %v6436 = vpop.f32.mrf.mxu0
      %6437 = vmatprep.mubr.bf16.mxu0 %v3127
      %6438 = vmatmul.mubr.bf16.gmra.mxu0 %v3126
      %v6439 = vpop.f32.mrf.mxu0
      %v6440 = vadd.f32 0.0, %v6439
      %v6441 = vpop.f32.mrf.mxu0
      %v6442 = vpop.f32.mrf.mxu0
      %v6443 = vadd.f32 0.0, %v6442
      %v6444 = vpop.f32.mrf.mxu0
      %6445 = vmatprep.mubr.bf16.mxu0 %v3129
      %6446 = vmatmul.mubr.bf16.gmra.mxu0 %v3128
      %v6447 = vpop.f32.mrf.mxu0
      %v6448 = vadd.f32 0.0, %v6447
      %v6449 = vpop.f32.mrf.mxu0
      %v6450 = vpop.f32.mrf.mxu0
      %v6451 = vadd.f32 0.0, %v6450
      %v6452 = vpop.f32.mrf.mxu0
      %6453 = vmatprep.mubr.bf16.mxu0 %v3131
      %6454 = vmatmul.mubr.bf16.gmra.mxu0 %v3130
      %v6455 = vpop.f32.mrf.mxu0
      %v6456 = vadd.f32 0.0, %v6455
      %v6457 = vpop.f32.mrf.mxu0
      %v6458 = vpop.f32.mrf.mxu0
      %v6459 = vadd.f32 0.0, %v6458
      %v6460 = vpop.f32.mrf.mxu0
      %6461 = vmatprep.mubr.bf16.mxu0 %v3133
      %6462 = vmatmul.mubr.bf16.gmra.mxu0 %v3132
      %v6463 = vpop.f32.mrf.mxu0
      %v6464 = vadd.f32 0.0, %v6463
      %v6465 = vpop.f32.mrf.mxu0
      %v6466 = vpop.f32.mrf.mxu0
      %v6467 = vadd.f32 0.0, %v6466
      %v6468 = vpop.f32.mrf.mxu0
      %6469 = vmatprep.mubr.bf16.mxu0 %v3135
      %6470 = vmatmul.mubr.bf16.gmra.mxu0 %v3134
      %v6471 = vpop.f32.mrf.mxu0
      %v6472 = vadd.f32 0.0, %v6471
      %v6473 = vpop.f32.mrf.mxu0
      %v6474 = vpop.f32.mrf.mxu0
      %v6475 = vadd.f32 0.0, %v6474
      %v6476 = vpop.f32.mrf.mxu0
      %6477 = vmatprep.mubr.bf16.mxu0 %v3137
      %6478 = vmatmul.mubr.bf16.gmra.mxu0 %v3136
      %v6479 = vpop.f32.mrf.mxu0
      %v6480 = vadd.f32 0.0, %v6479
      %v6481 = vpop.f32.mrf.mxu0
      %v6482 = vpop.f32.mrf.mxu0
      %v6483 = vadd.f32 0.0, %v6482
      %v6484 = vpop.f32.mrf.mxu0
      %6485 = vmatprep.mubr.bf16.mxu0 %v3139
      %6486 = vmatmul.mubr.bf16.gmra.mxu0 %v3138
      %v6487 = vpop.f32.mrf.mxu0
      %v6488 = vadd.f32 0.0, %v6487
      %v6489 = vpop.f32.mrf.mxu0
      %v6490 = vpop.f32.mrf.mxu0
      %v6491 = vadd.f32 0.0, %v6490
      %v6492 = vpop.f32.mrf.mxu0
      %6493 = vmatprep.mubr.bf16.mxu0 %v3141
      %6494 = vmatmul.mubr.bf16.gmra.mxu0 %v3140
      %v6495 = vpop.f32.mrf.mxu0
      %v6496 = vadd.f32 0.0, %v6495
      %v6497 = vpop.f32.mrf.mxu0
      %v6498 = vpop.f32.mrf.mxu0
      %v6499 = vadd.f32 0.0, %v6498
      %v6500 = vpop.f32.mrf.mxu0
      %6501 = vmatprep.mubr.bf16.mxu0 %v3143
      %6502 = vmatmul.mubr.bf16.gmra.mxu0 %v3142
      %v6503 = vpop.f32.mrf.mxu0
      %v6504 = vadd.f32 0.0, %v6503
      %v6505 = vpop.f32.mrf.mxu0
      %v6506 = vpop.f32.mrf.mxu0
      %v6507 = vadd.f32 0.0, %v6506
      %v6508 = vpop.f32.mrf.mxu0
      %6509 = vmatprep.mubr.bf16.mxu0 %v3145
      %6510 = vmatmul.mubr.bf16.gmra.mxu0 %v3144
      %v6511 = vpop.f32.mrf.mxu0
      %v6512 = vadd.f32 0.0, %v6511
      %v6513 = vpop.f32.mrf.mxu0
      %v6514 = vpop.f32.mrf.mxu0
      %v6515 = vadd.f32 0.0, %v6514
      %v6516 = vpop.f32.mrf.mxu0
      %6517 = vmatprep.mubr.bf16.mxu0 %v3147
      %6518 = vmatmul.mubr.bf16.gmra.mxu0 %v3146
      %v6519 = vpop.f32.mrf.mxu0
      %v6520 = vadd.f32 0.0, %v6519
      %v6521 = vpop.f32.mrf.mxu0
      %v6522 = vpop.f32.mrf.mxu0
      %v6523 = vadd.f32 0.0, %v6522
      %v6524 = vpop.f32.mrf.mxu0
      %6525 = vmatprep.mubr.bf16.mxu0 %v3149
      %6526 = vmatmul.mubr.bf16.gmra.mxu0 %v3148
      %v6527 = vpop.f32.mrf.mxu0
      %v6528 = vadd.f32 0.0, %v6527
      %v6529 = vpop.f32.mrf.mxu0
      %v6530 = vpop.f32.mrf.mxu0
      %v6531 = vadd.f32 0.0, %v6530
      %v6532 = vpop.f32.mrf.mxu0
      %6533 = vmatprep.mubr.bf16.mxu0 %v3151
      %6534 = vmatmul.mubr.bf16.gmra.mxu0 %v3150
      %v6535 = vpop.f32.mrf.mxu0
      %v6536 = vadd.f32 0.0, %v6535
      %v6537 = vpop.f32.mrf.mxu0
      %v6538 = vpop.f32.mrf.mxu0
      %v6539 = vadd.f32 0.0, %v6538
      %v6540 = vpop.f32.mrf.mxu0
      %6541 = vmatprep.mubr.bf16.mxu0 %v3153
      %6542 = vmatmul.mubr.bf16.gmra.mxu0 %v3152
      %v6543 = vpop.f32.mrf.mxu0
      %v6544 = vadd.f32 0.0, %v6543
      %v6545 = vpop.f32.mrf.mxu0
      %v6546 = vpop.f32.mrf.mxu0
      %v6547 = vadd.f32 0.0, %v6546
      %v6548 = vpop.f32.mrf.mxu0
      %6549 = vmatprep.mubr.bf16.mxu0 %v3155
      %6550 = vmatmul.mubr.bf16.gmra.mxu0 %v3154
      %v6551 = vpop.f32.mrf.mxu0
      %v6552 = vadd.f32 0.0, %v6551
      %v6553 = vpop.f32.mrf.mxu0
      %v6554 = vpop.f32.mrf.mxu0
      %v6555 = vadd.f32 0.0, %v6554
      %v6556 = vpop.f32.mrf.mxu0
      %6557 = vmatprep.mubr.bf16.mxu0 %v3157
      %6558 = vmatmul.mubr.bf16.gmra.mxu0 %v3156
      %v6559 = vpop.f32.mrf.mxu0
      %v6560 = vadd.f32 0.0, %v6559
      %v6561 = vpop.f32.mrf.mxu0
      %v6562 = vpop.f32.mrf.mxu0
      %v6563 = vadd.f32 0.0, %v6562
      %v6564 = vpop.f32.mrf.mxu0
      %6565 = vmatprep.mubr.bf16.mxu0 %v3159
      %6566 = vmatmul.mubr.bf16.gmra.mxu0 %v3158
      %v6567 = vpop.f32.mrf.mxu0
      %v6568 = vadd.f32 0.0, %v6567
      %v6569 = vpop.f32.mrf.mxu0
      %v6570 = vpop.f32.mrf.mxu0
      %v6571 = vadd.f32 0.0, %v6570
      %v6572 = vpop.f32.mrf.mxu0
      %6573 = vmatprep.mubr.bf16.mxu0 %v3161
      %6574 = vmatmul.mubr.bf16.gmra.mxu0 %v3160
      %v6575 = vpop.f32.mrf.mxu0
      %v6576 = vadd.f32 0.0, %v6575
      %v6577 = vpop.f32.mrf.mxu0
      %v6578 = vpop.f32.mrf.mxu0
      %v6579 = vadd.f32 0.0, %v6578
      %v6580 = vpop.f32.mrf.mxu0
      %6581 = vmatprep.mubr.bf16.mxu0 %v3163
      %6582 = vmatmul.mubr.bf16.gmra.mxu0 %v3162
      %v6583 = vpop.f32.mrf.mxu0
      %v6584 = vadd.f32 0.0, %v6583
      %v6585 = vpop.f32.mrf.mxu0
      %v6586 = vpop.f32.mrf.mxu0
      %v6587 = vadd.f32 0.0, %v6586
      %v6588 = vpop.f32.mrf.mxu0
      %6589 = vmatprep.mubr.bf16.mxu0 %v3165
      %6590 = vmatmul.mubr.bf16.gmra.mxu0 %v3164
      %v6591 = vpop.f32.mrf.mxu0
      %v6592 = vadd.f32 0.0, %v6591
      %v6593 = vpop.f32.mrf.mxu0
      %v6594 = vpop.f32.mrf.mxu0
      %v6595 = vadd.f32 0.0, %v6594
      %v6596 = vpop.f32.mrf.mxu0
      %6597 = vmatprep.mubr.bf16.mxu0 %v3167
      %6598 = vmatmul.mubr.bf16.gmra.mxu0 %v3166
      %v6599 = vpop.f32.mrf.mxu0
      %v6600 = vadd.f32 0.0, %v6599
      %v6601 = vpop.f32.mrf.mxu0
      %v6602 = vpop.f32.mrf.mxu0
      %v6603 = vadd.f32 0.0, %v6602
      %v6604 = vpop.f32.mrf.mxu0
      %6605 = vmatprep.mubr.bf16.mxu0 %v3169
      %6606 = vmatmul.mubr.bf16.gmra.mxu0 %v3168
      %v6607 = vpop.f32.mrf.mxu0
      %v6608 = vadd.f32 0.0, %v6607
      %v6609 = vpop.f32.mrf.mxu0
      %v6610 = vpop.f32.mrf.mxu0
      %v6611 = vadd.f32 0.0, %v6610
      %v6612 = vpop.f32.mrf.mxu0
      %6613 = vmatprep.mubr.bf16.mxu0 %v3171
      %6614 = vmatmul.mubr.bf16.gmra.mxu0 %v3170
      %v6615 = vpop.f32.mrf.mxu0
      %v6616 = vadd.f32 0.0, %v6615
      %v6617 = vpop.f32.mrf.mxu0
      %v6618 = vpop.f32.mrf.mxu0
      %v6619 = vadd.f32 0.0, %v6618
      %v6620 = vpop.f32.mrf.mxu0
      %6621 = vmatprep.mubr.bf16.mxu0 %v3173
      %6622 = vmatmul.mubr.bf16.gmra.mxu0 %v3172
      %v6623 = vpop.f32.mrf.mxu0
      %v6624 = vadd.f32 0.0, %v6623
      %v6625 = vpop.f32.mrf.mxu0
      %v6626 = vpop.f32.mrf.mxu0
      %v6627 = vadd.f32 0.0, %v6626
      %v6628 = vpop.f32.mrf.mxu0
      %6629 = vmatprep.mubr.bf16.mxu0 %v3175
      %6630 = vmatmul.mubr.bf16.gmra.mxu0 %v3174
      %v6631 = vpop.f32.mrf.mxu0
      %v6632 = vadd.f32 0.0, %v6631
      %v6633 = vpop.f32.mrf.mxu0
      %v6634 = vpop.f32.mrf.mxu0
      %v6635 = vadd.f32 0.0, %v6634
      %v6636 = vpop.f32.mrf.mxu0
      %6637 = vmatprep.mubr.bf16.mxu0 %v3177
      %6638 = vmatmul.mubr.bf16.gmra.mxu0 %v3176
      %v6639 = vpop.f32.mrf.mxu0
      %v6640 = vadd.f32 0.0, %v6639
      %v6641 = vpop.f32.mrf.mxu0
      %v6642 = vpop.f32.mrf.mxu0
      %v6643 = vadd.f32 0.0, %v6642
      %v6644 = vpop.f32.mrf.mxu0
      %6645 = vmatprep.mubr.bf16.mxu0 %v3179
      %6646 = vmatmul.mubr.bf16.gmra.mxu0 %v3178
      %v6647 = vpop.f32.mrf.mxu0
      %v6648 = vadd.f32 0.0, %v6647
      %v6649 = vpop.f32.mrf.mxu0
      %v6650 = vpop.f32.mrf.mxu0
      %v6651 = vadd.f32 0.0, %v6650
      %v6652 = vpop.f32.mrf.mxu0
      %6653 = vmatprep.mubr.bf16.mxu0 %v3181
      %6654 = vmatmul.mubr.bf16.gmra.mxu0 %v3180
      %v6655 = vpop.f32.mrf.mxu0
      %v6656 = vadd.f32 0.0, %v6655
      %v6657 = vpop.f32.mrf.mxu0
      %v6658 = vpop.f32.mrf.mxu0
      %v6659 = vadd.f32 0.0, %v6658
      %v6660 = vpop.f32.mrf.mxu0
      %6661 = vmatprep.mubr.bf16.mxu0 %v3183
      %6662 = vmatmul.mubr.bf16.gmra.mxu0 %v3182
      %v6663 = vpop.f32.mrf.mxu0
      %v6664 = vadd.f32 0.0, %v6663
      %v6665 = vpop.f32.mrf.mxu0
      %v6666 = vpop.f32.mrf.mxu0
      %v6667 = vadd.f32 0.0, %v6666
      %v6668 = vpop.f32.mrf.mxu0
      %6669 = vmatprep.mubr.bf16.mxu0 %v3185
      %6670 = vmatmul.mubr.bf16.gmra.mxu0 %v3184
      %v6671 = vpop.f32.mrf.mxu0
      %v6672 = vadd.f32 0.0, %v6671
      %v6673 = vpop.f32.mrf.mxu0
      %v6674 = vpop.f32.mrf.mxu0
      %v6675 = vadd.f32 0.0, %v6674
      %v6676 = vpop.f32.mrf.mxu0
      %6677 = vmatprep.mubr.bf16.mxu0 %v3187
      %6678 = vmatmul.mubr.bf16.gmra.mxu0 %v3186
      %v6679 = vpop.f32.mrf.mxu0
      %v6680 = vadd.f32 0.0, %v6679
      %v6681 = vpop.f32.mrf.mxu0
      %v6682 = vpop.f32.mrf.mxu0
      %v6683 = vadd.f32 0.0, %v6682
      %v6684 = vpop.f32.mrf.mxu0
      %6685 = vmatprep.mubr.bf16.mxu0 %v3189
      %6686 = vmatmul.mubr.bf16.gmra.mxu0 %v3188
      %v6687 = vpop.f32.mrf.mxu0
      %v6688 = vadd.f32 0.0, %v6687
      %v6689 = vpop.f32.mrf.mxu0
      %v6690 = vpop.f32.mrf.mxu0
      %v6691 = vadd.f32 0.0, %v6690
      %v6692 = vpop.f32.mrf.mxu0
      %6693 = vmatprep.mubr.bf16.mxu0 %v3191
      %6694 = vmatmul.mubr.bf16.gmra.mxu0 %v3190
      %v6695 = vpop.f32.mrf.mxu0
      %v6696 = vadd.f32 0.0, %v6695
      %v6697 = vpop.f32.mrf.mxu0
      %v6698 = vpop.f32.mrf.mxu0
      %v6699 = vadd.f32 0.0, %v6698
      %v6700 = vpop.f32.mrf.mxu0
      %6701 = vmatprep.mubr.bf16.mxu0 %v3193
      %6702 = vmatmul.mubr.bf16.gmra.mxu0 %v3192
      %v6703 = vpop.f32.mrf.mxu0
      %v6704 = vadd.f32 0.0, %v6703
      %v6705 = vpop.f32.mrf.mxu0
      %v6706 = vpop.f32.mrf.mxu0
      %v6707 = vadd.f32 0.0, %v6706
      %v6708 = vpop.f32.mrf.mxu0
      %6709 = vmatprep.mubr.bf16.mxu0 %v3195
      %6710 = vmatmul.mubr.bf16.gmra.mxu0 %v3194
      %v6711 = vpop.f32.mrf.mxu0
      %v6712 = vadd.f32 0.0, %v6711
      %v6713 = vpop.f32.mrf.mxu0
      %v6714 = vpop.f32.mrf.mxu0
      %v6715 = vadd.f32 0.0, %v6714
      %v6716 = vpop.f32.mrf.mxu0
      %6717 = vmatprep.mubr.bf16.mxu0 %v3197
      %6718 = vmatmul.mubr.bf16.gmra.mxu0 %v3196
      %v6719 = vpop.f32.mrf.mxu0
      %v6720 = vadd.f32 0.0, %v6719
      %v6721 = vpop.f32.mrf.mxu0
      %v6722 = vpop.f32.mrf.mxu0
      %v6723 = vadd.f32 0.0, %v6722
      %v6724 = vpop.f32.mrf.mxu0
      %6725 = vmatprep.mubr.bf16.mxu0 %v3199
      %6726 = vmatmul.mubr.bf16.gmra.mxu0 %v3198
      %v6727 = vpop.f32.mrf.mxu0
      %v6728 = vadd.f32 0.0, %v6727
      %v6729 = vpop.f32.mrf.mxu0
      %v6730 = vpop.f32.mrf.mxu0
      %v6731 = vadd.f32 0.0, %v6730
      %v6732 = vpop.f32.mrf.mxu0
      %6733 = vmatprep.mubr.bf16.mxu0 %v3201
      %6734 = vmatmul.mubr.bf16.gmra.mxu0 %v3200
      %v6735 = vpop.f32.mrf.mxu0
      %v6736 = vadd.f32 0.0, %v6735
      %v6737 = vpop.f32.mrf.mxu0
      %v6738 = vpop.f32.mrf.mxu0
      %v6739 = vadd.f32 0.0, %v6738
      %v6740 = vpop.f32.mrf.mxu0
      %6741 = vmatprep.mubr.bf16.mxu0 %v3203
      %6742 = vmatmul.mubr.bf16.gmra.mxu0 %v3202
      %v6743 = vpop.f32.mrf.mxu0
      %v6744 = vadd.f32 0.0, %v6743
      %v6745 = vpop.f32.mrf.mxu0
      %v6746 = vpop.f32.mrf.mxu0
      %v6747 = vadd.f32 0.0, %v6746
      %v6748 = vpop.f32.mrf.mxu0
      %6749 = vmatprep.mubr.bf16.mxu0 %v3205
      %6750 = vmatmul.mubr.bf16.gmra.mxu0 %v3204
      %v6751 = vpop.f32.mrf.mxu0
      %v6752 = vadd.f32 0.0, %v6751
      %v6753 = vpop.f32.mrf.mxu0
      %v6754 = vpop.f32.mrf.mxu0
      %v6755 = vadd.f32 0.0, %v6754
      %v6756 = vpop.f32.mrf.mxu0
      %6757 = vmatprep.mubr.bf16.mxu0 %v3207
      %6758 = vmatmul.mubr.bf16.gmra.mxu0 %v3206
      %v6759 = vpop.f32.mrf.mxu0
      %v6760 = vadd.f32 0.0, %v6759
      %v6761 = vpop.f32.mrf.mxu0
      %v6762 = vpop.f32.mrf.mxu0
      %v6763 = vadd.f32 0.0, %v6762
      %v6764 = vpop.f32.mrf.mxu0
      %6765 = vmatprep.mubr.bf16.mxu0 %v3209
      %6766 = vmatmul.mubr.bf16.gmra.mxu0 %v3208
      %v6767 = vpop.f32.mrf.mxu0
      %v6768 = vadd.f32 0.0, %v6767
      %v6769 = vpop.f32.mrf.mxu0
      %v6770 = vpop.f32.mrf.mxu0
      %v6771 = vadd.f32 0.0, %v6770
      %v6772 = vpop.f32.mrf.mxu0
      %6773 = vmatprep.mubr.bf16.mxu0 %v3211
      %6774 = vmatmul.mubr.bf16.gmra.mxu0 %v3210
      %v6775 = vpop.f32.mrf.mxu0
      %v6776 = vadd.f32 0.0, %v6775
      %v6777 = vpop.f32.mrf.mxu0
      %v6778 = vpop.f32.mrf.mxu0
      %v6779 = vadd.f32 0.0, %v6778
      %v6780 = vpop.f32.mrf.mxu0
      %6781 = vmatprep.mubr.bf16.mxu0 %v3213
      %6782 = vmatmul.mubr.bf16.gmra.mxu0 %v3212
      %v6783 = vpop.f32.mrf.mxu0
      %v6784 = vadd.f32 0.0, %v6783
      %v6785 = vpop.f32.mrf.mxu0
      %v6786 = vpop.f32.mrf.mxu0
      %v6787 = vadd.f32 0.0, %v6786
      %v6788 = vpop.f32.mrf.mxu0
      %6789 = vmatprep.mubr.bf16.mxu0 %v3215
      %6790 = vmatmul.mubr.bf16.gmra.mxu0 %v3214
      %v6791 = vpop.f32.mrf.mxu0
      %v6792 = vadd.f32 0.0, %v6791
      %v6793 = vpop.f32.mrf.mxu0
      %v6794 = vpop.f32.mrf.mxu0
      %v6795 = vadd.f32 0.0, %v6794
      %v6796 = vpop.f32.mrf.mxu0
      %6797 = vmatprep.mubr.bf16.mxu0 %v3217
      %6798 = vmatmul.mubr.bf16.gmra.mxu0 %v3216
      %v6799 = vpop.f32.mrf.mxu0
      %v6800 = vadd.f32 0.0, %v6799
      %v6801 = vpop.f32.mrf.mxu0
      %v6802 = vpop.f32.mrf.mxu0
      %v6803 = vadd.f32 0.0, %v6802
      %v6804 = vpop.f32.mrf.mxu0
      %6805 = vmatprep.mubr.bf16.mxu0 %v3219
      %6806 = vmatmul.mubr.bf16.gmra.mxu0 %v3218
      %v6807 = vpop.f32.mrf.mxu0
      %v6808 = vadd.f32 0.0, %v6807
      %v6809 = vpop.f32.mrf.mxu0
      %v6810 = vpop.f32.mrf.mxu0
      %v6811 = vadd.f32 0.0, %v6810
      %v6812 = vpop.f32.mrf.mxu0
      %6813 = vmatprep.mubr.bf16.mxu0 %v3221
      %6814 = vmatmul.mubr.bf16.gmra.mxu0 %v3220
      %v6815 = vpop.f32.mrf.mxu0
      %v6816 = vadd.f32 0.0, %v6815
      %v6817 = vpop.f32.mrf.mxu0
      %v6818 = vpop.f32.mrf.mxu0
      %v6819 = vadd.f32 0.0, %v6818
      %v6820 = vpop.f32.mrf.mxu0
      %6821 = vmatprep.mubr.bf16.mxu0 %v3223
      %6822 = vmatmul.mubr.bf16.gmra.mxu0 %v3222
      %v6823 = vpop.f32.mrf.mxu0
      %v6824 = vadd.f32 0.0, %v6823
      %v6825 = vpop.f32.mrf.mxu0
      %v6826 = vpop.f32.mrf.mxu0
      %v6827 = vadd.f32 0.0, %v6826
      %v6828 = vpop.f32.mrf.mxu0
      %6829 = vmatprep.mubr.bf16.mxu0 %v3225
      %6830 = vmatmul.mubr.bf16.gmra.mxu0 %v3224
      %v6831 = vpop.f32.mrf.mxu0
      %v6832 = vadd.f32 0.0, %v6831
      %v6833 = vpop.f32.mrf.mxu0
      %v6834 = vpop.f32.mrf.mxu0
      %v6835 = vadd.f32 0.0, %v6834
      %v6836 = vpop.f32.mrf.mxu0
      %6837 = vmatprep.mubr.bf16.mxu0 %v3227
      %6838 = vmatmul.mubr.bf16.gmra.mxu0 %v3226
      %v6839 = vpop.f32.mrf.mxu0
      %v6840 = vadd.f32 0.0, %v6839
      %v6841 = vpop.f32.mrf.mxu0
      %v6842 = vpop.f32.mrf.mxu0
      %v6843 = vadd.f32 0.0, %v6842
      %v6844 = vpop.f32.mrf.mxu0
      %6845 = vmatprep.mubr.bf16.mxu0 %v3229
      %6846 = vmatmul.mubr.bf16.gmra.mxu0 %v3228
      %v6847 = vpop.f32.mrf.mxu0
      %v6848 = vadd.f32 0.0, %v6847
      %v6849 = vpop.f32.mrf.mxu0
      %v6850 = vpop.f32.mrf.mxu0
      %v6851 = vadd.f32 0.0, %v6850
      %v6852 = vpop.f32.mrf.mxu0
      %6853 = vmatprep.mubr.bf16.mxu0 %v3231
      %6854 = vmatmul.mubr.bf16.gmra.mxu0 %v3230
      %v6855 = vpop.f32.mrf.mxu0
      %v6856 = vadd.f32 0.0, %v6855
      %v6857 = vpop.f32.mrf.mxu0
      %v6858 = vpop.f32.mrf.mxu0
      %v6859 = vadd.f32 0.0, %v6858
      %v6860 = vpop.f32.mrf.mxu0
      %6861 = vmatprep.mubr.bf16.mxu0 %v3233
      %6862 = vmatmul.mubr.bf16.gmra.mxu0 %v3232
      %v6863 = vpop.f32.mrf.mxu0
      %v6864 = vadd.f32 0.0, %v6863
      %v6865 = vpop.f32.mrf.mxu0
      %v6866 = vpop.f32.mrf.mxu0
      %v6867 = vadd.f32 0.0, %v6866
      %v6868 = vpop.f32.mrf.mxu0
      %6869 = vmatprep.mubr.bf16.mxu0 %v3235
      %6870 = vmatmul.mubr.bf16.gmra.mxu0 %v3234
      %v6871 = vpop.f32.mrf.mxu0
      %v6872 = vadd.f32 0.0, %v6871
      %v6873 = vpop.f32.mrf.mxu0
      %v6874 = vpop.f32.mrf.mxu0
      %v6875 = vadd.f32 0.0, %v6874
      %v6876 = vpop.f32.mrf.mxu0
      %6877 = vmatprep.mubr.bf16.mxu0 %v3237
      %6878 = vmatmul.mubr.bf16.gmra.mxu0 %v3236
      %v6879 = vpop.f32.mrf.mxu0
      %v6880 = vadd.f32 0.0, %v6879
      %v6881 = vpop.f32.mrf.mxu0
      %v6882 = vpop.f32.mrf.mxu0
      %v6883 = vadd.f32 0.0, %v6882
      %v6884 = vpop.f32.mrf.mxu0
      %6885 = vmatprep.mubr.bf16.mxu0 %v3239
      %6886 = vmatmul.mubr.bf16.gmra.mxu0 %v3238
      %v6887 = vpop.f32.mrf.mxu0
      %v6888 = vadd.f32 0.0, %v6887
      %v6889 = vpop.f32.mrf.mxu0
      %v6890 = vpop.f32.mrf.mxu0
      %v6891 = vadd.f32 0.0, %v6890
      %v6892 = vpop.f32.mrf.mxu0
      %6893 = vmatprep.mubr.bf16.mxu0 %v3241
      %6894 = vmatmul.mubr.bf16.gmra.mxu0 %v3240
      %v6895 = vpop.f32.mrf.mxu0
      %v6896 = vadd.f32 0.0, %v6895
      %v6897 = vpop.f32.mrf.mxu0
      %v6898 = vpop.f32.mrf.mxu0
      %v6899 = vadd.f32 0.0, %v6898
      %v6900 = vpop.f32.mrf.mxu0
      %6901 = vmatprep.mubr.bf16.mxu0 %v3243
      %6902 = vmatmul.mubr.bf16.gmra.mxu0 %v3242
      %v6903 = vpop.f32.mrf.mxu0
      %v6904 = vadd.f32 0.0, %v6903
      %v6905 = vpop.f32.mrf.mxu0
      %v6906 = vpop.f32.mrf.mxu0
      %v6907 = vadd.f32 0.0, %v6906
      %v6908 = vpop.f32.mrf.mxu0
      %6909 = vmatprep.mubr.bf16.mxu0 %v3245
      %6910 = vmatmul.mubr.bf16.gmra.mxu0 %v3244
      %v6911 = vpop.f32.mrf.mxu0
      %v6912 = vadd.f32 0.0, %v6911
      %v6913 = vpop.f32.mrf.mxu0
      %v6914 = vpop.f32.mrf.mxu0
      %v6915 = vadd.f32 0.0, %v6914
      %v6916 = vpop.f32.mrf.mxu0
      %6917 = vmatprep.mubr.bf16.mxu0 %v3247
      %6918 = vmatmul.mubr.bf16.gmra.mxu0 %v3246
      %v6919 = vpop.f32.mrf.mxu0
      %v6920 = vadd.f32 0.0, %v6919
      %v6921 = vpop.f32.mrf.mxu0
      %v6922 = vpop.f32.mrf.mxu0
      %v6923 = vadd.f32 0.0, %v6922
      %v6924 = vpop.f32.mrf.mxu0
      %6925 = vmatprep.mubr.bf16.mxu0 %v3249
      %6926 = vmatmul.mubr.bf16.gmra.mxu0 %v3248
      %v6927 = vpop.f32.mrf.mxu0
      %v6928 = vadd.f32 0.0, %v6927
      %v6929 = vpop.f32.mrf.mxu0
      %v6930 = vpop.f32.mrf.mxu0
      %v6931 = vadd.f32 0.0, %v6930
      %v6932 = vpop.f32.mrf.mxu0
      %6933 = vdwg.mxu0
      %v6966 = vunpack.c.l.b16 %v6229
      %v6967 = vunpack.c.l.b16 %v6230
      %v6968 = vunpack.c.l.b16 %v6231
      %v6969 = vunpack.c.l.b16 %v6232
      %v6970 = vunpack.c.l.b16 %v6233
      %v6971 = vunpack.c.l.b16 %v6234
      %v6972 = vunpack.c.l.b16 %v6235
      %v6973 = vunpack.c.l.b16 %v6236
      %v6974 = vunpack.c.l.b16 %v6237
      %v6975 = vunpack.c.l.b16 %v6238
      %v6976 = vunpack.c.l.b16 %v6239
      %v6977 = vunpack.c.l.b16 %v6240
      %v6978 = vunpack.c.l.b16 %v6241
      %v6979 = vunpack.c.l.b16 %v6242
      %v6980 = vunpack.c.l.b16 %v6243
      %v6981 = vunpack.c.l.b16 %v6244
      %v6982 = vunpack.c.l.b16 %v6245
      %v6983 = vunpack.c.l.b16 %v6246
      %v6984 = vunpack.c.l.b16 %v6247
      %v6985 = vunpack.c.l.b16 %v6248
      %v6986 = vunpack.c.l.b16 %v6249
      %v6987 = vunpack.c.l.b16 %v6250
      %v6988 = vunpack.c.l.b16 %v6251
      %v6989 = vunpack.c.l.b16 %v6252
      %v6990 = vunpack.c.l.b16 %v6253
      %v6991 = vunpack.c.l.b16 %v6254
      %v6992 = vunpack.c.l.b16 %v6255
      %v6993 = vunpack.c.l.b16 %v6256
      %v6994 = vunpack.c.l.b16 %v6257
      %v6995 = vunpack.c.l.b16 %v6258
      %v6996 = vunpack.c.l.b16 %v6259
      %v6997 = vunpack.c.l.b16 %v6260
      %v6998 = vpack.c.b16 %v6967, %v6966
      %v6999 = vpack.c.b16 %v6969, %v6968
      %v7000 = vpack.c.b16 %v6971, %v6970
      %v7001 = vpack.c.b16 %v6973, %v6972
      %v7002 = vpack.c.b16 %v6975, %v6974
      %v7003 = vpack.c.b16 %v6977, %v6976
      %v7004 = vpack.c.b16 %v6979, %v6978
      %v7005 = vpack.c.b16 %v6981, %v6980
      %v7006 = vpack.c.b16 %v6983, %v6982
      %v7007 = vpack.c.b16 %v6985, %v6984
      %v7008 = vpack.c.b16 %v6987, %v6986
      %v7009 = vpack.c.b16 %v6989, %v6988
      %v7010 = vpack.c.b16 %v6991, %v6990
      %v7011 = vpack.c.b16 %v6993, %v6992
      %v7012 = vpack.c.b16 %v6995, %v6994
      %v7013 = vpack.c.b16 %v6997, %v6996
      %7030 = vmatprep.subr.bf16.mxu0 0
      %7031 = vmatpush1.bf16.msra.mxu0 %v7005
      %7032 = vmatprep.subr.bf16.mxu0 0
      %7033 = vmatpush1.bf16.msra.mxu0 %v7004
      %7034 = vmatprep.subr.bf16.mxu0 0
      %7035 = vmatpush1.bf16.msra.mxu0 %v7003
      %7036 = vmatprep.subr.bf16.mxu0 0
      %7037 = vmatpush1.bf16.msra.mxu0 %v7002
      %7038 = vmatprep.subr.bf16.mxu0 0
      %7039 = vmatpush1.bf16.msra.mxu0 %v7001
      %7040 = vmatprep.subr.bf16.mxu0 0
      %7041 = vmatpush1.bf16.msra.mxu0 %v7000
      %7042 = vmatprep.subr.bf16.mxu0 0
      %7043 = vmatpush1.bf16.msra.mxu0 %v6999
      %7044 = vmatprep.subr.bf16.mxu0 0
      %7045 = vmatpush1.bf16.msra.mxu0 %v6998
      %7046 = vmatprep.subr.bf16.mxu0 0
      %7047 = vmatpush2.bf16.msra.mxu0 %v7013
      %7048 = vmatprep.subr.bf16.mxu0 0
      %7049 = vmatpush2.bf16.msra.mxu0 %v7012
      %7050 = vmatprep.subr.bf16.mxu0 0
      %7051 = vmatpush2.bf16.msra.mxu0 %v7011
      %7052 = vmatprep.subr.bf16.mxu0 0
      %7053 = vmatpush2.bf16.msra.mxu0 %v7010
      %7054 = vmatprep.subr.bf16.mxu0 0
      %7055 = vmatpush2.bf16.msra.mxu0 %v7009
      %7056 = vmatprep.subr.bf16.mxu0 0
      %7057 = vmatpush2.bf16.msra.mxu0 %v7008
      %7058 = vmatprep.subr.bf16.mxu0 0
      %7059 = vmatpush2.bf16.msra.mxu0 %v7007
      %7060 = vmatprep.subr.bf16.mxu0 0
      %7061 = vmatpush2.bf16.msra.mxu0 %v7006
      %7062 = vmatprep.mubr.bf16.mxu0 %v6102
      %7063 = vmatmul.mubr.bf16.gmra.mxu0 %v6101
      %v7064 = vpop.f32.mrf.mxu0
      %v7065 = vadd.f32 %v6424, %v7064
      %v7066 = vpop.f32.mrf.mxu0
      %v7067 = vpop.f32.mrf.mxu0
      %v7068 = vadd.f32 %v6427, %v7067
      %v7069 = vpop.f32.mrf.mxu0
      %7070 = vmatprep.mubr.bf16.mxu0 %v6104
      %7071 = vmatmul.mubr.bf16.gmra.mxu0 %v6103
      %v7072 = vpop.f32.mrf.mxu0
      %v7073 = vadd.f32 %v6432, %v7072
      %v7074 = vpop.f32.mrf.mxu0
      %v7075 = vpop.f32.mrf.mxu0
      %v7076 = vadd.f32 %v6435, %v7075
      %v7077 = vpop.f32.mrf.mxu0
      %7078 = vmatprep.mubr.bf16.mxu0 %v6106
      %7079 = vmatmul.mubr.bf16.gmra.mxu0 %v6105
      %v7080 = vpop.f32.mrf.mxu0
      %v7081 = vadd.f32 %v6440, %v7080
      %v7082 = vpop.f32.mrf.mxu0
      %v7083 = vpop.f32.mrf.mxu0
      %v7084 = vadd.f32 %v6443, %v7083
      %v7085 = vpop.f32.mrf.mxu0
      %7086 = vmatprep.mubr.bf16.mxu0 %v6108
      %7087 = vmatmul.mubr.bf16.gmra.mxu0 %v6107
      %v7088 = vpop.f32.mrf.mxu0
      %v7089 = vadd.f32 %v6448, %v7088
      %v7090 = vpop.f32.mrf.mxu0
      %v7091 = vpop.f32.mrf.mxu0
      %v7092 = vadd.f32 %v6451, %v7091
      %v7093 = vpop.f32.mrf.mxu0
      %7094 = vmatprep.mubr.bf16.mxu0 %v6110
      %7095 = vmatmul.mubr.bf16.gmra.mxu0 %v6109
      %v7096 = vpop.f32.mrf.mxu0
      %v7097 = vadd.f32 %v6456, %v7096
      %v7098 = vpop.f32.mrf.mxu0
      %v7099 = vpop.f32.mrf.mxu0
      %v7100 = vadd.f32 %v6459, %v7099
      %v7101 = vpop.f32.mrf.mxu0
      %7102 = vmatprep.mubr.bf16.mxu0 %v6112
      %7103 = vmatmul.mubr.bf16.gmra.mxu0 %v6111
      %v7104 = vpop.f32.mrf.mxu0
      %v7105 = vadd.f32 %v6464, %v7104
      %v7106 = vpop.f32.mrf.mxu0
      %v7107 = vpop.f32.mrf.mxu0
      %v7108 = vadd.f32 %v6467, %v7107
      %v7109 = vpop.f32.mrf.mxu0
      %7110 = vmatprep.mubr.bf16.mxu0 %v6114
      %7111 = vmatmul.mubr.bf16.gmra.mxu0 %v6113
      %v7112 = vpop.f32.mrf.mxu0
      %v7113 = vadd.f32 %v6472, %v7112
      %v7114 = vpop.f32.mrf.mxu0
      %v7115 = vpop.f32.mrf.mxu0
      %v7116 = vadd.f32 %v6475, %v7115
      %v7117 = vpop.f32.mrf.mxu0
      %7118 = vmatprep.mubr.bf16.mxu0 %v6116
      %7119 = vmatmul.mubr.bf16.gmra.mxu0 %v6115
      %v7120 = vpop.f32.mrf.mxu0
      %v7121 = vadd.f32 %v6480, %v7120
      %v7122 = vpop.f32.mrf.mxu0
      %v7123 = vpop.f32.mrf.mxu0
      %v7124 = vadd.f32 %v6483, %v7123
      %v7125 = vpop.f32.mrf.mxu0
      %7126 = vmatprep.mubr.bf16.mxu0 %v6118
      %7127 = vmatmul.mubr.bf16.gmra.mxu0 %v6117
      %v7128 = vpop.f32.mrf.mxu0
      %v7129 = vadd.f32 %v6488, %v7128
      %v7130 = vpop.f32.mrf.mxu0
      %v7131 = vpop.f32.mrf.mxu0
      %v7132 = vadd.f32 %v6491, %v7131
      %v7133 = vpop.f32.mrf.mxu0
      %7134 = vmatprep.mubr.bf16.mxu0 %v6120
      %7135 = vmatmul.mubr.bf16.gmra.mxu0 %v6119
      %v7136 = vpop.f32.mrf.mxu0
      %v7137 = vadd.f32 %v6496, %v7136
      %v7138 = vpop.f32.mrf.mxu0
      %v7139 = vpop.f32.mrf.mxu0
      %v7140 = vadd.f32 %v6499, %v7139
      %v7141 = vpop.f32.mrf.mxu0
      %7142 = vmatprep.mubr.bf16.mxu0 %v6122
      %7143 = vmatmul.mubr.bf16.gmra.mxu0 %v6121
      %v7144 = vpop.f32.mrf.mxu0
      %v7145 = vadd.f32 %v6504, %v7144
      %v7146 = vpop.f32.mrf.mxu0
      %v7147 = vpop.f32.mrf.mxu0
      %v7148 = vadd.f32 %v6507, %v7147
      %v7149 = vpop.f32.mrf.mxu0
      %7150 = vmatprep.mubr.bf16.mxu0 %v6124
      %7151 = vmatmul.mubr.bf16.gmra.mxu0 %v6123
      %v7152 = vpop.f32.mrf.mxu0
      %v7153 = vadd.f32 %v6512, %v7152
      %v7154 = vpop.f32.mrf.mxu0
      %v7155 = vpop.f32.mrf.mxu0
      %v7156 = vadd.f32 %v6515, %v7155
      %v7157 = vpop.f32.mrf.mxu0
      %7158 = vmatprep.mubr.bf16.mxu0 %v6126
      %7159 = vmatmul.mubr.bf16.gmra.mxu0 %v6125
      %v7160 = vpop.f32.mrf.mxu0
      %v7161 = vadd.f32 %v6520, %v7160
      %v7162 = vpop.f32.mrf.mxu0
      %v7163 = vpop.f32.mrf.mxu0
      %v7164 = vadd.f32 %v6523, %v7163
      %v7165 = vpop.f32.mrf.mxu0
      %7166 = vmatprep.mubr.bf16.mxu0 %v6128
      %7167 = vmatmul.mubr.bf16.gmra.mxu0 %v6127
      %v7168 = vpop.f32.mrf.mxu0
      %v7169 = vadd.f32 %v6528, %v7168
      %v7170 = vpop.f32.mrf.mxu0
      %v7171 = vpop.f32.mrf.mxu0
      %v7172 = vadd.f32 %v6531, %v7171
      %v7173 = vpop.f32.mrf.mxu0
      %7174 = vmatprep.mubr.bf16.mxu0 %v6130
      %7175 = vmatmul.mubr.bf16.gmra.mxu0 %v6129
      %v7176 = vpop.f32.mrf.mxu0
      %v7177 = vadd.f32 %v6536, %v7176
      %v7178 = vpop.f32.mrf.mxu0
      %v7179 = vpop.f32.mrf.mxu0
      %v7180 = vadd.f32 %v6539, %v7179
      %v7181 = vpop.f32.mrf.mxu0
      %7182 = vmatprep.mubr.bf16.mxu0 %v6132
      %7183 = vmatmul.mubr.bf16.gmra.mxu0 %v6131
      %v7184 = vpop.f32.mrf.mxu0
      %v7185 = vadd.f32 %v6544, %v7184
      %v7186 = vpop.f32.mrf.mxu0
      %v7187 = vpop.f32.mrf.mxu0
      %v7188 = vadd.f32 %v6547, %v7187
      %v7189 = vpop.f32.mrf.mxu0
      %7190 = vmatprep.mubr.bf16.mxu0 %v6134
      %7191 = vmatmul.mubr.bf16.gmra.mxu0 %v6133
      %v7192 = vpop.f32.mrf.mxu0
      %v7193 = vadd.f32 %v6552, %v7192
      %v7194 = vpop.f32.mrf.mxu0
      %v7195 = vpop.f32.mrf.mxu0
      %v7196 = vadd.f32 %v6555, %v7195
      %v7197 = vpop.f32.mrf.mxu0
      %7198 = vmatprep.mubr.bf16.mxu0 %v6136
      %7199 = vmatmul.mubr.bf16.gmra.mxu0 %v6135
      %v7200 = vpop.f32.mrf.mxu0
      %v7201 = vadd.f32 %v6560, %v7200
      %v7202 = vpop.f32.mrf.mxu0
      %v7203 = vpop.f32.mrf.mxu0
      %v7204 = vadd.f32 %v6563, %v7203
      %v7205 = vpop.f32.mrf.mxu0
      %7206 = vmatprep.mubr.bf16.mxu0 %v6138
      %7207 = vmatmul.mubr.bf16.gmra.mxu0 %v6137
      %v7208 = vpop.f32.mrf.mxu0
      %v7209 = vadd.f32 %v6568, %v7208
      %v7210 = vpop.f32.mrf.mxu0
      %v7211 = vpop.f32.mrf.mxu0
      %v7212 = vadd.f32 %v6571, %v7211
      %v7213 = vpop.f32.mrf.mxu0
      %7214 = vmatprep.mubr.bf16.mxu0 %v6140
      %7215 = vmatmul.mubr.bf16.gmra.mxu0 %v6139
      %v7216 = vpop.f32.mrf.mxu0
      %v7217 = vadd.f32 %v6576, %v7216
      %v7218 = vpop.f32.mrf.mxu0
      %v7219 = vpop.f32.mrf.mxu0
      %v7220 = vadd.f32 %v6579, %v7219
      %v7221 = vpop.f32.mrf.mxu0
      %7222 = vmatprep.mubr.bf16.mxu0 %v6142
      %7223 = vmatmul.mubr.bf16.gmra.mxu0 %v6141
      %v7224 = vpop.f32.mrf.mxu0
      %v7225 = vadd.f32 %v6584, %v7224
      %v7226 = vpop.f32.mrf.mxu0
      %v7227 = vpop.f32.mrf.mxu0
      %v7228 = vadd.f32 %v6587, %v7227
      %v7229 = vpop.f32.mrf.mxu0
      %7230 = vmatprep.mubr.bf16.mxu0 %v6144
      %7231 = vmatmul.mubr.bf16.gmra.mxu0 %v6143
      %v7232 = vpop.f32.mrf.mxu0
      %v7233 = vadd.f32 %v6592, %v7232
      %v7234 = vpop.f32.mrf.mxu0
      %v7235 = vpop.f32.mrf.mxu0
      %v7236 = vadd.f32 %v6595, %v7235
      %v7237 = vpop.f32.mrf.mxu0
      %7238 = vmatprep.mubr.bf16.mxu0 %v6146
      %7239 = vmatmul.mubr.bf16.gmra.mxu0 %v6145
      %v7240 = vpop.f32.mrf.mxu0
      %v7241 = vadd.f32 %v6600, %v7240
      %v7242 = vpop.f32.mrf.mxu0
      %v7243 = vpop.f32.mrf.mxu0
      %v7244 = vadd.f32 %v6603, %v7243
      %v7245 = vpop.f32.mrf.mxu0
      %7246 = vmatprep.mubr.bf16.mxu0 %v6148
      %7247 = vmatmul.mubr.bf16.gmra.mxu0 %v6147
      %v7248 = vpop.f32.mrf.mxu0
      %v7249 = vadd.f32 %v6608, %v7248
      %v7250 = vpop.f32.mrf.mxu0
      %v7251 = vpop.f32.mrf.mxu0
      %v7252 = vadd.f32 %v6611, %v7251
      %v7253 = vpop.f32.mrf.mxu0
      %7254 = vmatprep.mubr.bf16.mxu0 %v6150
      %7255 = vmatmul.mubr.bf16.gmra.mxu0 %v6149
      %v7256 = vpop.f32.mrf.mxu0
      %v7257 = vadd.f32 %v6616, %v7256
      %v7258 = vpop.f32.mrf.mxu0
      %v7259 = vpop.f32.mrf.mxu0
      %v7260 = vadd.f32 %v6619, %v7259
      %v7261 = vpop.f32.mrf.mxu0
      %7262 = vmatprep.mubr.bf16.mxu0 %v6152
      %7263 = vmatmul.mubr.bf16.gmra.mxu0 %v6151
      %v7264 = vpop.f32.mrf.mxu0
      %v7265 = vadd.f32 %v6624, %v7264
      %v7266 = vpop.f32.mrf.mxu0
      %v7267 = vpop.f32.mrf.mxu0
      %v7268 = vadd.f32 %v6627, %v7267
      %v7269 = vpop.f32.mrf.mxu0
      %7270 = vmatprep.mubr.bf16.mxu0 %v6154
      %7271 = vmatmul.mubr.bf16.gmra.mxu0 %v6153
      %v7272 = vpop.f32.mrf.mxu0
      %v7273 = vadd.f32 %v6632, %v7272
      %v7274 = vpop.f32.mrf.mxu0
      %v7275 = vpop.f32.mrf.mxu0
      %v7276 = vadd.f32 %v6635, %v7275
      %v7277 = vpop.f32.mrf.mxu0
      %7278 = vmatprep.mubr.bf16.mxu0 %v6156
      %7279 = vmatmul.mubr.bf16.gmra.mxu0 %v6155
      %v7280 = vpop.f32.mrf.mxu0
      %v7281 = vadd.f32 %v6640, %v7280
      %v7282 = vpop.f32.mrf.mxu0
      %v7283 = vpop.f32.mrf.mxu0
      %v7284 = vadd.f32 %v6643, %v7283
      %v7285 = vpop.f32.mrf.mxu0
      %7286 = vmatprep.mubr.bf16.mxu0 %v6158
      %7287 = vmatmul.mubr.bf16.gmra.mxu0 %v6157
      %v7288 = vpop.f32.mrf.mxu0
      %v7289 = vadd.f32 %v6648, %v7288
      %v7290 = vpop.f32.mrf.mxu0
      %v7291 = vpop.f32.mrf.mxu0
      %v7292 = vadd.f32 %v6651, %v7291
      %v7293 = vpop.f32.mrf.mxu0
      %7294 = vmatprep.mubr.bf16.mxu0 %v6160
      %7295 = vmatmul.mubr.bf16.gmra.mxu0 %v6159
      %v7296 = vpop.f32.mrf.mxu0
      %v7297 = vadd.f32 %v6656, %v7296
      %v7298 = vpop.f32.mrf.mxu0
      %v7299 = vpop.f32.mrf.mxu0
      %v7300 = vadd.f32 %v6659, %v7299
      %v7301 = vpop.f32.mrf.mxu0
      %7302 = vmatprep.mubr.bf16.mxu0 %v6162
      %7303 = vmatmul.mubr.bf16.gmra.mxu0 %v6161
      %v7304 = vpop.f32.mrf.mxu0
      %v7305 = vadd.f32 %v6664, %v7304
      %v7306 = vpop.f32.mrf.mxu0
      %v7307 = vpop.f32.mrf.mxu0
      %v7308 = vadd.f32 %v6667, %v7307
      %v7309 = vpop.f32.mrf.mxu0
      %7310 = vmatprep.mubr.bf16.mxu0 %v6164
      %7311 = vmatmul.mubr.bf16.gmra.mxu0 %v6163
      %v7312 = vpop.f32.mrf.mxu0
      %v7313 = vadd.f32 %v6672, %v7312
      %v7314 = vpop.f32.mrf.mxu0
      %v7315 = vpop.f32.mrf.mxu0
      %v7316 = vadd.f32 %v6675, %v7315
      %v7317 = vpop.f32.mrf.mxu0
      %7318 = vmatprep.mubr.bf16.mxu0 %v6166
      %7319 = vmatmul.mubr.bf16.gmra.mxu0 %v6165
      %v7320 = vpop.f32.mrf.mxu0
      %v7321 = vadd.f32 %v6680, %v7320
      %v7322 = vpop.f32.mrf.mxu0
      %v7323 = vpop.f32.mrf.mxu0
      %v7324 = vadd.f32 %v6683, %v7323
      %v7325 = vpop.f32.mrf.mxu0
      %7326 = vmatprep.mubr.bf16.mxu0 %v6168
      %7327 = vmatmul.mubr.bf16.gmra.mxu0 %v6167
      %v7328 = vpop.f32.mrf.mxu0
      %v7329 = vadd.f32 %v6688, %v7328
      %v7330 = vpop.f32.mrf.mxu0
      %v7331 = vpop.f32.mrf.mxu0
      %v7332 = vadd.f32 %v6691, %v7331
      %v7333 = vpop.f32.mrf.mxu0
      %7334 = vmatprep.mubr.bf16.mxu0 %v6170
      %7335 = vmatmul.mubr.bf16.gmra.mxu0 %v6169
      %v7336 = vpop.f32.mrf.mxu0
      %v7337 = vadd.f32 %v6696, %v7336
      %v7338 = vpop.f32.mrf.mxu0
      %v7339 = vpop.f32.mrf.mxu0
      %v7340 = vadd.f32 %v6699, %v7339
      %v7341 = vpop.f32.mrf.mxu0
      %7342 = vmatprep.mubr.bf16.mxu0 %v6172
      %7343 = vmatmul.mubr.bf16.gmra.mxu0 %v6171
      %v7344 = vpop.f32.mrf.mxu0
      %v7345 = vadd.f32 %v6704, %v7344
      %v7346 = vpop.f32.mrf.mxu0
      %v7347 = vpop.f32.mrf.mxu0
      %v7348 = vadd.f32 %v6707, %v7347
      %v7349 = vpop.f32.mrf.mxu0
      %7350 = vmatprep.mubr.bf16.mxu0 %v6174
      %7351 = vmatmul.mubr.bf16.gmra.mxu0 %v6173
      %v7352 = vpop.f32.mrf.mxu0
      %v7353 = vadd.f32 %v6712, %v7352
      %v7354 = vpop.f32.mrf.mxu0
      %v7355 = vpop.f32.mrf.mxu0
      %v7356 = vadd.f32 %v6715, %v7355
      %v7357 = vpop.f32.mrf.mxu0
      %7358 = vmatprep.mubr.bf16.mxu0 %v6176
      %7359 = vmatmul.mubr.bf16.gmra.mxu0 %v6175
      %v7360 = vpop.f32.mrf.mxu0
      %v7361 = vadd.f32 %v6720, %v7360
      %v7362 = vpop.f32.mrf.mxu0
      %v7363 = vpop.f32.mrf.mxu0
      %v7364 = vadd.f32 %v6723, %v7363
      %v7365 = vpop.f32.mrf.mxu0
      %7366 = vmatprep.mubr.bf16.mxu0 %v6178
      %7367 = vmatmul.mubr.bf16.gmra.mxu0 %v6177
      %v7368 = vpop.f32.mrf.mxu0
      %v7369 = vadd.f32 %v6728, %v7368
      %v7370 = vpop.f32.mrf.mxu0
      %v7371 = vpop.f32.mrf.mxu0
      %v7372 = vadd.f32 %v6731, %v7371
      %v7373 = vpop.f32.mrf.mxu0
      %7374 = vmatprep.mubr.bf16.mxu0 %v6180
      %7375 = vmatmul.mubr.bf16.gmra.mxu0 %v6179
      %v7376 = vpop.f32.mrf.mxu0
      %v7377 = vadd.f32 %v6736, %v7376
      %v7378 = vpop.f32.mrf.mxu0
      %v7379 = vpop.f32.mrf.mxu0
      %v7380 = vadd.f32 %v6739, %v7379
      %v7381 = vpop.f32.mrf.mxu0
      %7382 = vmatprep.mubr.bf16.mxu0 %v6182
      %7383 = vmatmul.mubr.bf16.gmra.mxu0 %v6181
      %v7384 = vpop.f32.mrf.mxu0
      %v7385 = vadd.f32 %v6744, %v7384
      %v7386 = vpop.f32.mrf.mxu0
      %v7387 = vpop.f32.mrf.mxu0
      %v7388 = vadd.f32 %v6747, %v7387
      %v7389 = vpop.f32.mrf.mxu0
      %7390 = vmatprep.mubr.bf16.mxu0 %v6184
      %7391 = vmatmul.mubr.bf16.gmra.mxu0 %v6183
      %v7392 = vpop.f32.mrf.mxu0
      %v7393 = vadd.f32 %v6752, %v7392
      %v7394 = vpop.f32.mrf.mxu0
      %v7395 = vpop.f32.mrf.mxu0
      %v7396 = vadd.f32 %v6755, %v7395
      %v7397 = vpop.f32.mrf.mxu0
      %7398 = vmatprep.mubr.bf16.mxu0 %v6186
      %7399 = vmatmul.mubr.bf16.gmra.mxu0 %v6185
      %v7400 = vpop.f32.mrf.mxu0
      %v7401 = vadd.f32 %v6760, %v7400
      %v7402 = vpop.f32.mrf.mxu0
      %v7403 = vpop.f32.mrf.mxu0
      %v7404 = vadd.f32 %v6763, %v7403
      %v7405 = vpop.f32.mrf.mxu0
      %7406 = vmatprep.mubr.bf16.mxu0 %v6188
      %7407 = vmatmul.mubr.bf16.gmra.mxu0 %v6187
      %v7408 = vpop.f32.mrf.mxu0
      %v7409 = vadd.f32 %v6768, %v7408
      %v7410 = vpop.f32.mrf.mxu0
      %v7411 = vpop.f32.mrf.mxu0
      %v7412 = vadd.f32 %v6771, %v7411
      %v7413 = vpop.f32.mrf.mxu0
      %7414 = vmatprep.mubr.bf16.mxu0 %v6190
      %7415 = vmatmul.mubr.bf16.gmra.mxu0 %v6189
      %v7416 = vpop.f32.mrf.mxu0
      %v7417 = vadd.f32 %v6776, %v7416
      %v7418 = vpop.f32.mrf.mxu0
      %v7419 = vpop.f32.mrf.mxu0
      %v7420 = vadd.f32 %v6779, %v7419
      %v7421 = vpop.f32.mrf.mxu0
      %7422 = vmatprep.mubr.bf16.mxu0 %v6192
      %7423 = vmatmul.mubr.bf16.gmra.mxu0 %v6191
      %v7424 = vpop.f32.mrf.mxu0
      %v7425 = vadd.f32 %v6784, %v7424
      %v7426 = vpop.f32.mrf.mxu0
      %v7427 = vpop.f32.mrf.mxu0
      %v7428 = vadd.f32 %v6787, %v7427
      %v7429 = vpop.f32.mrf.mxu0
      %7430 = vmatprep.mubr.bf16.mxu0 %v6194
      %7431 = vmatmul.mubr.bf16.gmra.mxu0 %v6193
      %v7432 = vpop.f32.mrf.mxu0
      %v7433 = vadd.f32 %v6792, %v7432
      %v7434 = vpop.f32.mrf.mxu0
      %v7435 = vpop.f32.mrf.mxu0
      %v7436 = vadd.f32 %v6795, %v7435
      %v7437 = vpop.f32.mrf.mxu0
      %7438 = vmatprep.mubr.bf16.mxu0 %v6196
      %7439 = vmatmul.mubr.bf16.gmra.mxu0 %v6195
      %v7440 = vpop.f32.mrf.mxu0
      %v7441 = vadd.f32 %v6800, %v7440
      %v7442 = vpop.f32.mrf.mxu0
      %v7443 = vpop.f32.mrf.mxu0
      %v7444 = vadd.f32 %v6803, %v7443
      %v7445 = vpop.f32.mrf.mxu0
      %7446 = vmatprep.mubr.bf16.mxu0 %v6198
      %7447 = vmatmul.mubr.bf16.gmra.mxu0 %v6197
      %v7448 = vpop.f32.mrf.mxu0
      %v7449 = vadd.f32 %v6808, %v7448
      %v7450 = vpop.f32.mrf.mxu0
      %v7451 = vpop.f32.mrf.mxu0
      %v7452 = vadd.f32 %v6811, %v7451
      %v7453 = vpop.f32.mrf.mxu0
      %7454 = vmatprep.mubr.bf16.mxu0 %v6200
      %7455 = vmatmul.mubr.bf16.gmra.mxu0 %v6199
      %v7456 = vpop.f32.mrf.mxu0
      %v7457 = vadd.f32 %v6816, %v7456
      %v7458 = vpop.f32.mrf.mxu0
      %v7459 = vpop.f32.mrf.mxu0
      %v7460 = vadd.f32 %v6819, %v7459
      %v7461 = vpop.f32.mrf.mxu0
      %7462 = vmatprep.mubr.bf16.mxu0 %v6202
      %7463 = vmatmul.mubr.bf16.gmra.mxu0 %v6201
      %v7464 = vpop.f32.mrf.mxu0
      %v7465 = vadd.f32 %v6824, %v7464
      %v7466 = vpop.f32.mrf.mxu0
      %v7467 = vpop.f32.mrf.mxu0
      %v7468 = vadd.f32 %v6827, %v7467
      %v7469 = vpop.f32.mrf.mxu0
      %7470 = vmatprep.mubr.bf16.mxu0 %v6204
      %7471 = vmatmul.mubr.bf16.gmra.mxu0 %v6203
      %v7472 = vpop.f32.mrf.mxu0
      %v7473 = vadd.f32 %v6832, %v7472
      %v7474 = vpop.f32.mrf.mxu0
      %v7475 = vpop.f32.mrf.mxu0
      %v7476 = vadd.f32 %v6835, %v7475
      %v7477 = vpop.f32.mrf.mxu0
      %7478 = vmatprep.mubr.bf16.mxu0 %v6206
      %7479 = vmatmul.mubr.bf16.gmra.mxu0 %v6205
      %v7480 = vpop.f32.mrf.mxu0
      %v7481 = vadd.f32 %v6840, %v7480
      %v7482 = vpop.f32.mrf.mxu0
      %v7483 = vpop.f32.mrf.mxu0
      %v7484 = vadd.f32 %v6843, %v7483
      %v7485 = vpop.f32.mrf.mxu0
      %7486 = vmatprep.mubr.bf16.mxu0 %v6208
      %7487 = vmatmul.mubr.bf16.gmra.mxu0 %v6207
      %v7488 = vpop.f32.mrf.mxu0
      %v7489 = vadd.f32 %v6848, %v7488
      %v7490 = vpop.f32.mrf.mxu0
      %v7491 = vpop.f32.mrf.mxu0
      %v7492 = vadd.f32 %v6851, %v7491
      %v7493 = vpop.f32.mrf.mxu0
      %7494 = vmatprep.mubr.bf16.mxu0 %v6210
      %7495 = vmatmul.mubr.bf16.gmra.mxu0 %v6209
      %v7496 = vpop.f32.mrf.mxu0
      %v7497 = vadd.f32 %v6856, %v7496
      %v7498 = vpop.f32.mrf.mxu0
      %v7499 = vpop.f32.mrf.mxu0
      %v7500 = vadd.f32 %v6859, %v7499
      %v7501 = vpop.f32.mrf.mxu0
      %7502 = vmatprep.mubr.bf16.mxu0 %v6212
      %7503 = vmatmul.mubr.bf16.gmra.mxu0 %v6211
      %v7504 = vpop.f32.mrf.mxu0
      %v7505 = vadd.f32 %v6864, %v7504
      %v7506 = vpop.f32.mrf.mxu0
      %v7507 = vpop.f32.mrf.mxu0
      %v7508 = vadd.f32 %v6867, %v7507
      %v7509 = vpop.f32.mrf.mxu0
      %7510 = vmatprep.mubr.bf16.mxu0 %v6214
      %7511 = vmatmul.mubr.bf16.gmra.mxu0 %v6213
      %v7512 = vpop.f32.mrf.mxu0
      %v7513 = vadd.f32 %v6872, %v7512
      %v7514 = vpop.f32.mrf.mxu0
      %v7515 = vpop.f32.mrf.mxu0
      %v7516 = vadd.f32 %v6875, %v7515
      %v7517 = vpop.f32.mrf.mxu0
      %7518 = vmatprep.mubr.bf16.mxu0 %v6216
      %7519 = vmatmul.mubr.bf16.gmra.mxu0 %v6215
      %v7520 = vpop.f32.mrf.mxu0
      %v7521 = vadd.f32 %v6880, %v7520
      %v7522 = vpop.f32.mrf.mxu0
      %v7523 = vpop.f32.mrf.mxu0
      %v7524 = vadd.f32 %v6883, %v7523
      %v7525 = vpop.f32.mrf.mxu0
      %7526 = vmatprep.mubr.bf16.mxu0 %v6218
      %7527 = vmatmul.mubr.bf16.gmra.mxu0 %v6217
      %v7528 = vpop.f32.mrf.mxu0
      %v7529 = vadd.f32 %v6888, %v7528
      %v7530 = vpop.f32.mrf.mxu0
      %v7531 = vpop.f32.mrf.mxu0
      %v7532 = vadd.f32 %v6891, %v7531
      %v7533 = vpop.f32.mrf.mxu0
      %7534 = vmatprep.mubr.bf16.mxu0 %v6220
      %7535 = vmatmul.mubr.bf16.gmra.mxu0 %v6219
      %v7536 = vpop.f32.mrf.mxu0
      %v7537 = vadd.f32 %v6896, %v7536
      %v7538 = vpop.f32.mrf.mxu0
      %v7539 = vpop.f32.mrf.mxu0
      %v7540 = vadd.f32 %v6899, %v7539
      %v7541 = vpop.f32.mrf.mxu0
      %7542 = vmatprep.mubr.bf16.mxu0 %v6222
      %7543 = vmatmul.mubr.bf16.gmra.mxu0 %v6221
      %v7544 = vpop.f32.mrf.mxu0
      %v7545 = vadd.f32 %v6904, %v7544
      %v7546 = vpop.f32.mrf.mxu0
      %v7547 = vpop.f32.mrf.mxu0
      %v7548 = vadd.f32 %v6907, %v7547
      %v7549 = vpop.f32.mrf.mxu0
      %7550 = vmatprep.mubr.bf16.mxu0 %v6224
      %7551 = vmatmul.mubr.bf16.gmra.mxu0 %v6223
      %v7552 = vpop.f32.mrf.mxu0
      %v7553 = vadd.f32 %v6912, %v7552
      %v7554 = vpop.f32.mrf.mxu0
      %v7555 = vpop.f32.mrf.mxu0
      %v7556 = vadd.f32 %v6915, %v7555
      %v7557 = vpop.f32.mrf.mxu0
      %7558 = vmatprep.mubr.bf16.mxu0 %v6226
      %7559 = vmatmul.mubr.bf16.gmra.mxu0 %v6225
      %v7560 = vpop.f32.mrf.mxu0
      %v7561 = vadd.f32 %v6920, %v7560
      %v7562 = vpop.f32.mrf.mxu0
      %v7563 = vpop.f32.mrf.mxu0
      %v7564 = vadd.f32 %v6923, %v7563
      %v7565 = vpop.f32.mrf.mxu0
      %7566 = vmatprep.mubr.bf16.mxu0 %v6228
      %7567 = vmatmul.mubr.bf16.gmra.mxu0 %v6227
      %v7568 = vpop.f32.mrf.mxu0
      %v7569 = vadd.f32 %v6928, %v7568
      %v7570 = vpop.f32.mrf.mxu0
      %v7571 = vpop.f32.mrf.mxu0
      %v7572 = vadd.f32 %v6931, %v7571
      %v7573 = vpop.f32.mrf.mxu0
      %7574 = vdwg.mxu0
      %v7575 = vld [vmem:[%s12] sm:$0x1]
      %v7577 = vlaneseq
      %v7578 = vshrl.u32 %v7577, 7
      %v7579 = vsub.s32 0, %v7578
      %v7580 = vrot.slane %v7575, %v7579
      %v7582 = vadd.f32 %v7065, %v7580
      %v7583 = vadd.f32 %v7068, %v7580
      %v7584 = vadd.f32 %v7073, %v7580
      %v7585 = vadd.f32 %v7076, %v7580
      %v7586 = vadd.f32 %v7081, %v7580
      %v7587 = vadd.f32 %v7084, %v7580
      %v7588 = vadd.f32 %v7089, %v7580
      %v7589 = vadd.f32 %v7092, %v7580
      %v7590 = vadd.f32 %v7097, %v7580
      %v7591 = vadd.f32 %v7100, %v7580
      %v7592 = vadd.f32 %v7105, %v7580
      %v7593 = vadd.f32 %v7108, %v7580
      %v7594 = vadd.f32 %v7113, %v7580
      %v7595 = vadd.f32 %v7116, %v7580
      %v7596 = vadd.f32 %v7121, %v7580
      %v7597 = vadd.f32 %v7124, %v7580
      %v7598 = vadd.f32 %v7129, %v7580
      %v7599 = vadd.f32 %v7132, %v7580
      %v7600 = vadd.f32 %v7137, %v7580
      %v7601 = vadd.f32 %v7140, %v7580
      %v7602 = vadd.f32 %v7145, %v7580
      %v7603 = vadd.f32 %v7148, %v7580
      %v7604 = vadd.f32 %v7153, %v7580
      %v7605 = vadd.f32 %v7156, %v7580
      %v7606 = vadd.f32 %v7161, %v7580
      %v7607 = vadd.f32 %v7164, %v7580
      %v7608 = vadd.f32 %v7169, %v7580
      %v7609 = vadd.f32 %v7172, %v7580
      %v7610 = vadd.f32 %v7177, %v7580
      %v7611 = vadd.f32 %v7180, %v7580
      %v7612 = vadd.f32 %v7185, %v7580
      %v7613 = vadd.f32 %v7188, %v7580
      %v7614 = vadd.f32 %v7193, %v7580
      %v7615 = vadd.f32 %v7196, %v7580
      %v7616 = vadd.f32 %v7201, %v7580
      %v7617 = vadd.f32 %v7204, %v7580
      %v7618 = vadd.f32 %v7209, %v7580
      %v7619 = vadd.f32 %v7212, %v7580
      %v7620 = vadd.f32 %v7217, %v7580
      %v7621 = vadd.f32 %v7220, %v7580
      %v7622 = vadd.f32 %v7225, %v7580
      %v7623 = vadd.f32 %v7228, %v7580
      %v7624 = vadd.f32 %v7233, %v7580
      %v7625 = vadd.f32 %v7236, %v7580
      %v7626 = vadd.f32 %v7241, %v7580
      %v7627 = vadd.f32 %v7244, %v7580
      %v7628 = vadd.f32 %v7249, %v7580
      %v7629 = vadd.f32 %v7252, %v7580
      %v7630 = vadd.f32 %v7257, %v7580
      %v7631 = vadd.f32 %v7260, %v7580
      %v7632 = vadd.f32 %v7265, %v7580
      %v7633 = vadd.f32 %v7268, %v7580
      %v7634 = vadd.f32 %v7273, %v7580
      %v7635 = vadd.f32 %v7276, %v7580
      %v7636 = vadd.f32 %v7281, %v7580
      %v7637 = vadd.f32 %v7284, %v7580
      %v7638 = vadd.f32 %v7289, %v7580
      %v7639 = vadd.f32 %v7292, %v7580
      %v7640 = vadd.f32 %v7297, %v7580
      %v7641 = vadd.f32 %v7300, %v7580
      %v7642 = vadd.f32 %v7305, %v7580
      %v7643 = vadd.f32 %v7308, %v7580
      %v7644 = vadd.f32 %v7313, %v7580
      %v7645 = vadd.f32 %v7316, %v7580
      %v7646 = vadd.f32 %v7321, %v7580
      %v7647 = vadd.f32 %v7324, %v7580
      %v7648 = vadd.f32 %v7329, %v7580
      %v7649 = vadd.f32 %v7332, %v7580
      %v7650 = vadd.f32 %v7337, %v7580
      %v7651 = vadd.f32 %v7340, %v7580
      %v7652 = vadd.f32 %v7345, %v7580
      %v7653 = vadd.f32 %v7348, %v7580
      %v7654 = vadd.f32 %v7353, %v7580
      %v7655 = vadd.f32 %v7356, %v7580
      %v7656 = vadd.f32 %v7361, %v7580
      %v7657 = vadd.f32 %v7364, %v7580
      %v7658 = vadd.f32 %v7369, %v7580
      %v7659 = vadd.f32 %v7372, %v7580
      %v7660 = vadd.f32 %v7377, %v7580
      %v7661 = vadd.f32 %v7380, %v7580
      %v7662 = vadd.f32 %v7385, %v7580
      %v7663 = vadd.f32 %v7388, %v7580
      %v7664 = vadd.f32 %v7393, %v7580
      %v7665 = vadd.f32 %v7396, %v7580
      %v7666 = vadd.f32 %v7401, %v7580
      %v7667 = vadd.f32 %v7404, %v7580
      %v7668 = vadd.f32 %v7409, %v7580
      %v7669 = vadd.f32 %v7412, %v7580
      %v7670 = vadd.f32 %v7417, %v7580
      %v7671 = vadd.f32 %v7420, %v7580
      %v7672 = vadd.f32 %v7425, %v7580
      %v7673 = vadd.f32 %v7428, %v7580
      %v7674 = vadd.f32 %v7433, %v7580
      %v7675 = vadd.f32 %v7436, %v7580
      %v7676 = vadd.f32 %v7441, %v7580
      %v7677 = vadd.f32 %v7444, %v7580
      %v7678 = vadd.f32 %v7449, %v7580
      %v7679 = vadd.f32 %v7452, %v7580
      %v7680 = vadd.f32 %v7457, %v7580
      %v7681 = vadd.f32 %v7460, %v7580
      %v7682 = vadd.f32 %v7465, %v7580
      %v7683 = vadd.f32 %v7468, %v7580
      %v7684 = vadd.f32 %v7473, %v7580
      %v7685 = vadd.f32 %v7476, %v7580
      %v7686 = vadd.f32 %v7481, %v7580
      %v7687 = vadd.f32 %v7484, %v7580
      %v7688 = vadd.f32 %v7489, %v7580
      %v7689 = vadd.f32 %v7492, %v7580
      %v7690 = vadd.f32 %v7497, %v7580
      %v7691 = vadd.f32 %v7500, %v7580
      %v7692 = vadd.f32 %v7505, %v7580
      %v7693 = vadd.f32 %v7508, %v7580
      %v7694 = vadd.f32 %v7513, %v7580
      %v7695 = vadd.f32 %v7516, %v7580
      %v7696 = vadd.f32 %v7521, %v7580
      %v7697 = vadd.f32 %v7524, %v7580
      %v7698 = vadd.f32 %v7529, %v7580
      %v7699 = vadd.f32 %v7532, %v7580
      %v7700 = vadd.f32 %v7537, %v7580
      %v7701 = vadd.f32 %v7540, %v7580
      %v7702 = vadd.f32 %v7545, %v7580
      %v7703 = vadd.f32 %v7548, %v7580
      %v7704 = vadd.f32 %v7553, %v7580
      %v7705 = vadd.f32 %v7556, %v7580
      %v7706 = vadd.f32 %v7561, %v7580
      %v7707 = vadd.f32 %v7564, %v7580
      %v7708 = vadd.f32 %v7569, %v7580
      %v7709 = vadd.f32 %v7572, %v7580
      %v7710 = vld [vmem:[%s485] sm:$0xff]
      %v7711 = vld [vmem:[%s485 + $0x8] sm:$0xff]
      %v7712 = vld [vmem:[%s485 + $0x10] sm:$0xff]
      %v7713 = vld [vmem:[%s485 + $0x18] sm:$0xff]
      %v7714 = vld [vmem:[%s485 + $0x20] sm:$0xff]
      %v7715 = vld [vmem:[%s485 + $0x28] sm:$0xff]
      %v7716 = vld [vmem:[%s485 + $0x30] sm:$0xff]
      %v7717 = vld [vmem:[%s485 + $0x38] sm:$0xff]
      %v7718 = vld [vmem:[%s485 + $0x40] sm:$0xff]
      %v7719 = vld [vmem:[%s485 + $0x48] sm:$0xff]
      %v7720 = vld [vmem:[%s485 + $0x50] sm:$0xff]
      %v7721 = vld [vmem:[%s485 + $0x58] sm:$0xff]
      %v7722 = vld [vmem:[%s485 + $0x60] sm:$0xff]
      %v7723 = vld [vmem:[%s485 + $0x68] sm:$0xff]
      %v7724 = vld [vmem:[%s485 + $0x70] sm:$0xff]
      %v7725 = vld [vmem:[%s485 + $0x78] sm:$0xff]
      %v7726 = vld [vmem:[%s485 + $0x80] sm:$0xff]
      %v7727 = vld [vmem:[%s485 + $0x88] sm:$0xff]
      %v7728 = vld [vmem:[%s485 + $0x90] sm:$0xff]
      %v7729 = vld [vmem:[%s485 + $0x98] sm:$0xff]
      %v7730 = vld [vmem:[%s485 + $0xa0] sm:$0xff]
      %v7731 = vld [vmem:[%s485 + $0xa8] sm:$0xff]
      %v7732 = vld [vmem:[%s485 + $0xb0] sm:$0xff]
      %v7733 = vld [vmem:[%s485 + $0xb8] sm:$0xff]
      %v7734 = vld [vmem:[%s485 + $0xc0] sm:$0xff]
      %v7735 = vld [vmem:[%s485 + $0xc8] sm:$0xff]
      %v7736 = vld [vmem:[%s485 + $0xd0] sm:$0xff]
      %v7737 = vld [vmem:[%s485 + $0xd8] sm:$0xff]
      %v7738 = vld [vmem:[%s485 + $0xe0] sm:$0xff]
      %v7739 = vld [vmem:[%s485 + $0xe8] sm:$0xff]
      %v7740 = vld [vmem:[%s485 + $0xf0] sm:$0xff]
      %v7741 = vld [vmem:[%s485 + $0xf8] sm:$0xff]
      %v7742 = vld [vmem:[%s485 + $0x100] sm:$0xff]
      %v7743 = vld [vmem:[%s485 + $0x108] sm:$0xff]
      %v7744 = vld [vmem:[%s485 + $0x110] sm:$0xff]
      %v7745 = vld [vmem:[%s485 + $0x118] sm:$0xff]
      %v7746 = vld [vmem:[%s485 + $0x120] sm:$0xff]
      %v7747 = vld [vmem:[%s485 + $0x128] sm:$0xff]
      %v7748 = vld [vmem:[%s485 + $0x130] sm:$0xff]
      %v7749 = vld [vmem:[%s485 + $0x138] sm:$0xff]
      %v7750 = vld [vmem:[%s485 + $0x140] sm:$0xff]
      %v7751 = vld [vmem:[%s485 + $0x148] sm:$0xff]
      %v7752 = vld [vmem:[%s485 + $0x150] sm:$0xff]
      %v7753 = vld [vmem:[%s485 + $0x158] sm:$0xff]
      %v7754 = vld [vmem:[%s485 + $0x160] sm:$0xff]
      %v7755 = vld [vmem:[%s485 + $0x168] sm:$0xff]
      %v7756 = vld [vmem:[%s485 + $0x170] sm:$0xff]
      %v7757 = vld [vmem:[%s485 + $0x178] sm:$0xff]
      %v7758 = vld [vmem:[%s485 + $0x180] sm:$0xff]
      %v7759 = vld [vmem:[%s485 + $0x188] sm:$0xff]
      %v7760 = vld [vmem:[%s485 + $0x190] sm:$0xff]
      %v7761 = vld [vmem:[%s485 + $0x198] sm:$0xff]
      %v7762 = vld [vmem:[%s485 + $0x1a0] sm:$0xff]
      %v7763 = vld [vmem:[%s485 + $0x1a8] sm:$0xff]
      %v7764 = vld [vmem:[%s485 + $0x1b0] sm:$0xff]
      %v7765 = vld [vmem:[%s485 + $0x1b8] sm:$0xff]
      %v7766 = vld [vmem:[%s485 + $0x1c0] sm:$0xff]
      %v7767 = vld [vmem:[%s485 + $0x1c8] sm:$0xff]
      %v7768 = vld [vmem:[%s485 + $0x1d0] sm:$0xff]
      %v7769 = vld [vmem:[%s485 + $0x1d8] sm:$0xff]
      %v7770 = vld [vmem:[%s485 + $0x1e0] sm:$0xff]
      %v7771 = vld [vmem:[%s485 + $0x1e8] sm:$0xff]
      %v7772 = vld [vmem:[%s485 + $0x1f0] sm:$0xff]
      %v7773 = vld [vmem:[%s485 + $0x1f8] sm:$0xff]
      %v7774 = vld [vmem:[%s485 + $0x200] sm:$0xff]
      %v7775 = vld [vmem:[%s485 + $0x208] sm:$0xff]
      %v7776 = vld [vmem:[%s485 + $0x210] sm:$0xff]
      %v7777 = vld [vmem:[%s485 + $0x218] sm:$0xff]
      %v7778 = vld [vmem:[%s485 + $0x220] sm:$0xff]
      %v7779 = vld [vmem:[%s485 + $0x228] sm:$0xff]
      %v7780 = vld [vmem:[%s485 + $0x230] sm:$0xff]
      %v7781 = vld [vmem:[%s485 + $0x238] sm:$0xff]
      %v7782 = vld [vmem:[%s485 + $0x240] sm:$0xff]
      %v7783 = vld [vmem:[%s485 + $0x248] sm:$0xff]
      %v7784 = vld [vmem:[%s485 + $0x250] sm:$0xff]
      %v7785 = vld [vmem:[%s485 + $0x258] sm:$0xff]
      %v7786 = vld [vmem:[%s485 + $0x260] sm:$0xff]
      %v7787 = vld [vmem:[%s485 + $0x268] sm:$0xff]
      %v7788 = vld [vmem:[%s485 + $0x270] sm:$0xff]
      %v7789 = vld [vmem:[%s485 + $0x278] sm:$0xff]
      %v7790 = vld [vmem:[%s485 + $0x280] sm:$0xff]
      %v7791 = vld [vmem:[%s485 + $0x288] sm:$0xff]
      %v7792 = vld [vmem:[%s485 + $0x290] sm:$0xff]
      %v7793 = vld [vmem:[%s485 + $0x298] sm:$0xff]
      %v7794 = vld [vmem:[%s485 + $0x2a0] sm:$0xff]
      %v7795 = vld [vmem:[%s485 + $0x2a8] sm:$0xff]
      %v7796 = vld [vmem:[%s485 + $0x2b0] sm:$0xff]
      %v7797 = vld [vmem:[%s485 + $0x2b8] sm:$0xff]
      %v7798 = vld [vmem:[%s485 + $0x2c0] sm:$0xff]
      %v7799 = vld [vmem:[%s485 + $0x2c8] sm:$0xff]
      %v7800 = vld [vmem:[%s485 + $0x2d0] sm:$0xff]
      %v7801 = vld [vmem:[%s485 + $0x2d8] sm:$0xff]
      %v7802 = vld [vmem:[%s485 + $0x2e0] sm:$0xff]
      %v7803 = vld [vmem:[%s485 + $0x2e8] sm:$0xff]
      %v7804 = vld [vmem:[%s485 + $0x2f0] sm:$0xff]
      %v7805 = vld [vmem:[%s485 + $0x2f8] sm:$0xff]
      %v7806 = vld [vmem:[%s485 + $0x300] sm:$0xff]
      %v7807 = vld [vmem:[%s485 + $0x308] sm:$0xff]
      %v7808 = vld [vmem:[%s485 + $0x310] sm:$0xff]
      %v7809 = vld [vmem:[%s485 + $0x318] sm:$0xff]
      %v7810 = vld [vmem:[%s485 + $0x320] sm:$0xff]
      %v7811 = vld [vmem:[%s485 + $0x328] sm:$0xff]
      %v7812 = vld [vmem:[%s485 + $0x330] sm:$0xff]
      %v7813 = vld [vmem:[%s485 + $0x338] sm:$0xff]
      %v7814 = vld [vmem:[%s485 + $0x340] sm:$0xff]
      %v7815 = vld [vmem:[%s485 + $0x348] sm:$0xff]
      %v7816 = vld [vmem:[%s485 + $0x350] sm:$0xff]
      %v7817 = vld [vmem:[%s485 + $0x358] sm:$0xff]
      %v7818 = vld [vmem:[%s485 + $0x360] sm:$0xff]
      %v7819 = vld [vmem:[%s485 + $0x368] sm:$0xff]
      %v7820 = vld [vmem:[%s485 + $0x370] sm:$0xff]
      %v7821 = vld [vmem:[%s485 + $0x378] sm:$0xff]
      %v7822 = vld [vmem:[%s485 + $0x380] sm:$0xff]
      %v7823 = vld [vmem:[%s485 + $0x388] sm:$0xff]
      %v7824 = vld [vmem:[%s485 + $0x390] sm:$0xff]
      %v7825 = vld [vmem:[%s485 + $0x398] sm:$0xff]
      %v7826 = vld [vmem:[%s485 + $0x3a0] sm:$0xff]
      %v7827 = vld [vmem:[%s485 + $0x3a8] sm:$0xff]
      %v7828 = vld [vmem:[%s485 + $0x3b0] sm:$0xff]
      %v7829 = vld [vmem:[%s485 + $0x3b8] sm:$0xff]
      %v7830 = vld [vmem:[%s485 + $0x3c0] sm:$0xff]
      %v7831 = vld [vmem:[%s485 + $0x3c8] sm:$0xff]
      %v7832 = vld [vmem:[%s485 + $0x3d0] sm:$0xff]
      %v7833 = vld [vmem:[%s485 + $0x3d8] sm:$0xff]
      %v7834 = vld [vmem:[%s485 + $0x3e0] sm:$0xff]
      %v7835 = vld [vmem:[%s485 + $0x3e8] sm:$0xff]
      %v7836 = vld [vmem:[%s485 + $0x3f0] sm:$0xff]
      %v7837 = vld [vmem:[%s485 + $0x3f8] sm:$0xff]
      %v7838 = vmul.u32 %v7710, 4
      %v7839 = vmul.u32 %v7711, 4
      %v7840 = vmul.u32 %v7712, 4
      %v7841 = vmul.u32 %v7713, 4
      %v7842 = vmul.u32 %v7714, 4
      %v7843 = vmul.u32 %v7715, 4
      %v7844 = vmul.u32 %v7716, 4
      %v7845 = vmul.u32 %v7717, 4
      %v7846 = vmul.u32 %v7718, 4
      %v7847 = vmul.u32 %v7719, 4
      %v7848 = vmul.u32 %v7720, 4
      %v7849 = vmul.u32 %v7721, 4
      %v7850 = vmul.u32 %v7722, 4
      %v7851 = vmul.u32 %v7723, 4
      %v7852 = vmul.u32 %v7724, 4
      %v7853 = vmul.u32 %v7725, 4
      %v7854 = vmul.u32 %v7726, 4
      %v7855 = vmul.u32 %v7727, 4
      %v7856 = vmul.u32 %v7728, 4
      %v7857 = vmul.u32 %v7729, 4
      %v7858 = vmul.u32 %v7730, 4
      %v7859 = vmul.u32 %v7731, 4
      %v7860 = vmul.u32 %v7732, 4
      %v7861 = vmul.u32 %v7733, 4
      %v7862 = vmul.u32 %v7734, 4
      %v7863 = vmul.u32 %v7735, 4
      %v7864 = vmul.u32 %v7736, 4
      %v7865 = vmul.u32 %v7737, 4
      %v7866 = vmul.u32 %v7738, 4
      %v7867 = vmul.u32 %v7739, 4
      %v7868 = vmul.u32 %v7740, 4
      %v7869 = vmul.u32 %v7741, 4
      %v7870 = vmul.u32 %v7742, 4
      %v7871 = vmul.u32 %v7743, 4
      %v7872 = vmul.u32 %v7744, 4
      %v7873 = vmul.u32 %v7745, 4
      %v7874 = vmul.u32 %v7746, 4
      %v7875 = vmul.u32 %v7747, 4
      %v7876 = vmul.u32 %v7748, 4
      %v7877 = vmul.u32 %v7749, 4
      %v7878 = vmul.u32 %v7750, 4
      %v7879 = vmul.u32 %v7751, 4
      %v7880 = vmul.u32 %v7752, 4
      %v7881 = vmul.u32 %v7753, 4
      %v7882 = vmul.u32 %v7754, 4
      %v7883 = vmul.u32 %v7755, 4
      %v7884 = vmul.u32 %v7756, 4
      %v7885 = vmul.u32 %v7757, 4
      %v7886 = vmul.u32 %v7758, 4
      %v7887 = vmul.u32 %v7759, 4
      %v7888 = vmul.u32 %v7760, 4
      %v7889 = vmul.u32 %v7761, 4
      %v7890 = vmul.u32 %v7762, 4
      %v7891 = vmul.u32 %v7763, 4
      %v7892 = vmul.u32 %v7764, 4
      %v7893 = vmul.u32 %v7765, 4
      %v7894 = vmul.u32 %v7766, 4
      %v7895 = vmul.u32 %v7767, 4
      %v7896 = vmul.u32 %v7768, 4
      %v7897 = vmul.u32 %v7769, 4
      %v7898 = vmul.u32 %v7770, 4
      %v7899 = vmul.u32 %v7771, 4
      %v7900 = vmul.u32 %v7772, 4
      %v7901 = vmul.u32 %v7773, 4
      %v7902 = vmul.u32 %v7774, 4
      %v7903 = vmul.u32 %v7775, 4
      %v7904 = vmul.u32 %v7776, 4
      %v7905 = vmul.u32 %v7777, 4
      %v7906 = vmul.u32 %v7778, 4
      %v7907 = vmul.u32 %v7779, 4
      %v7908 = vmul.u32 %v7780, 4
      %v7909 = vmul.u32 %v7781, 4
      %v7910 = vmul.u32 %v7782, 4
      %v7911 = vmul.u32 %v7783, 4
      %v7912 = vmul.u32 %v7784, 4
      %v7913 = vmul.u32 %v7785, 4
      %v7914 = vmul.u32 %v7786, 4
      %v7915 = vmul.u32 %v7787, 4
      %v7916 = vmul.u32 %v7788, 4
      %v7917 = vmul.u32 %v7789, 4
      %v7918 = vmul.u32 %v7790, 4
      %v7919 = vmul.u32 %v7791, 4
      %v7920 = vmul.u32 %v7792, 4
      %v7921 = vmul.u32 %v7793, 4
      %v7922 = vmul.u32 %v7794, 4
      %v7923 = vmul.u32 %v7795, 4
      %v7924 = vmul.u32 %v7796, 4
      %v7925 = vmul.u32 %v7797, 4
      %v7926 = vmul.u32 %v7798, 4
      %v7927 = vmul.u32 %v7799, 4
      %v7928 = vmul.u32 %v7800, 4
      %v7929 = vmul.u32 %v7801, 4
      %v7930 = vmul.u32 %v7802, 4
      %v7931 = vmul.u32 %v7803, 4
      %v7932 = vmul.u32 %v7804, 4
      %v7933 = vmul.u32 %v7805, 4
      %v7934 = vmul.u32 %v7806, 4
      %v7935 = vmul.u32 %v7807, 4
      %v7936 = vmul.u32 %v7808, 4
      %v7937 = vmul.u32 %v7809, 4
      %v7938 = vmul.u32 %v7810, 4
      %v7939 = vmul.u32 %v7811, 4
      %v7940 = vmul.u32 %v7812, 4
      %v7941 = vmul.u32 %v7813, 4
      %v7942 = vmul.u32 %v7814, 4
      %v7943 = vmul.u32 %v7815, 4
      %v7944 = vmul.u32 %v7816, 4
      %v7945 = vmul.u32 %v7817, 4
      %v7946 = vmul.u32 %v7818, 4
      %v7947 = vmul.u32 %v7819, 4
      %v7948 = vmul.u32 %v7820, 4
      %v7949 = vmul.u32 %v7821, 4
      %v7950 = vmul.u32 %v7822, 4
      %v7951 = vmul.u32 %v7823, 4
      %v7952 = vmul.u32 %v7824, 4
      %v7953 = vmul.u32 %v7825, 4
      %v7954 = vmul.u32 %v7826, 4
      %v7955 = vmul.u32 %v7827, 4
      %v7956 = vmul.u32 %v7828, 4
      %v7957 = vmul.u32 %v7829, 4
      %v7958 = vmul.u32 %v7830, 4
      %v7959 = vmul.u32 %v7831, 4
      %v7960 = vmul.u32 %v7832, 4
      %v7961 = vmul.u32 %v7833, 4
      %v7962 = vmul.u32 %v7834, 4
      %v7963 = vmul.u32 %v7835, 4
      %v7964 = vmul.u32 %v7836, 4
      %v7965 = vmul.u32 %v7837, 4
      %v7966 = vlaneseq
      %v7967 = vand.u32 %v7966, 127
      %7968 = vset.pattern.permute.xlu0 0
      %7969 = vperm.xlu0 %7968, %v7838
      %v7970 = vpop.permute.xlu0 %7969
      %7971 = vset.pattern.permute.xlu0 0
      %7972 = vperm.xlu0 %7971, %v7839
      %v7973 = vpop.permute.xlu0 %7972
      %7974 = vset.pattern.permute.xlu0 0
      %7975 = vperm.xlu0 %7974, %v7840
      %v7976 = vpop.permute.xlu0 %7975
      %7977 = vset.pattern.permute.xlu0 0
      %7978 = vperm.xlu0 %7977, %v7841
      %v7979 = vpop.permute.xlu0 %7978
      %7980 = vset.pattern.permute.xlu0 0
      %7981 = vperm.xlu0 %7980, %v7842
      %v7982 = vpop.permute.xlu0 %7981
      %7983 = vset.pattern.permute.xlu0 0
      %7984 = vperm.xlu0 %7983, %v7843
      %v7985 = vpop.permute.xlu0 %7984
      %7986 = vset.pattern.permute.xlu0 0
      %7987 = vperm.xlu0 %7986, %v7844
      %v7988 = vpop.permute.xlu0 %7987
      %7989 = vset.pattern.permute.xlu0 0
      %7990 = vperm.xlu0 %7989, %v7845
      %v7991 = vpop.permute.xlu0 %7990
      %7992 = vset.pattern.permute.xlu0 0
      %7993 = vperm.xlu0 %7992, %v7846
      %v7994 = vpop.permute.xlu0 %7993
      %7995 = vset.pattern.permute.xlu0 0
      %7996 = vperm.xlu0 %7995, %v7847
      %v7997 = vpop.permute.xlu0 %7996
      %7998 = vset.pattern.permute.xlu0 0
      %7999 = vperm.xlu0 %7998, %v7848
      %v8000 = vpop.permute.xlu0 %7999
      %8001 = vset.pattern.permute.xlu0 0
      %8002 = vperm.xlu0 %8001, %v7849
      %v8003 = vpop.permute.xlu0 %8002
      %8004 = vset.pattern.permute.xlu0 0
      %8005 = vperm.xlu0 %8004, %v7850
      %v8006 = vpop.permute.xlu0 %8005
      %8007 = vset.pattern.permute.xlu0 0
      %8008 = vperm.xlu0 %8007, %v7851
      %v8009 = vpop.permute.xlu0 %8008
      %8010 = vset.pattern.permute.xlu0 0
      %8011 = vperm.xlu0 %8010, %v7852
      %v8012 = vpop.permute.xlu0 %8011
      %8013 = vset.pattern.permute.xlu0 0
      %8014 = vperm.xlu0 %8013, %v7853
      %v8015 = vpop.permute.xlu0 %8014
      %8016 = vset.pattern.permute.xlu0 0
      %8017 = vperm.xlu0 %8016, %v7854
      %v8018 = vpop.permute.xlu0 %8017
      %8019 = vset.pattern.permute.xlu0 0
      %8020 = vperm.xlu0 %8019, %v7855
      %v8021 = vpop.permute.xlu0 %8020
      %8022 = vset.pattern.permute.xlu0 0
      %8023 = vperm.xlu0 %8022, %v7856
      %v8024 = vpop.permute.xlu0 %8023
      %8025 = vset.pattern.permute.xlu0 0
      %8026 = vperm.xlu0 %8025, %v7857
      %v8027 = vpop.permute.xlu0 %8026
      %8028 = vset.pattern.permute.xlu0 0
      %8029 = vperm.xlu0 %8028, %v7858
      %v8030 = vpop.permute.xlu0 %8029
      %8031 = vset.pattern.permute.xlu0 0
      %8032 = vperm.xlu0 %8031, %v7859
      %v8033 = vpop.permute.xlu0 %8032
      %8034 = vset.pattern.permute.xlu0 0
      %8035 = vperm.xlu0 %8034, %v7860
      %v8036 = vpop.permute.xlu0 %8035
      %8037 = vset.pattern.permute.xlu0 0
      %8038 = vperm.xlu0 %8037, %v7861
      %v8039 = vpop.permute.xlu0 %8038
      %8040 = vset.pattern.permute.xlu0 0
      %8041 = vperm.xlu0 %8040, %v7862
      %v8042 = vpop.permute.xlu0 %8041
      %8043 = vset.pattern.permute.xlu0 0
      %8044 = vperm.xlu0 %8043, %v7863
      %v8045 = vpop.permute.xlu0 %8044
      %8046 = vset.pattern.permute.xlu0 0
      %8047 = vperm.xlu0 %8046, %v7864
      %v8048 = vpop.permute.xlu0 %8047
      %8049 = vset.pattern.permute.xlu0 0
      %8050 = vperm.xlu0 %8049, %v7865
      %v8051 = vpop.permute.xlu0 %8050
      %8052 = vset.pattern.permute.xlu0 0
      %8053 = vperm.xlu0 %8052, %v7866
      %v8054 = vpop.permute.xlu0 %8053
      %8055 = vset.pattern.permute.xlu0 0
      %8056 = vperm.xlu0 %8055, %v7867
      %v8057 = vpop.permute.xlu0 %8056
      %8058 = vset.pattern.permute.xlu0 0
      %8059 = vperm.xlu0 %8058, %v7868
      %v8060 = vpop.permute.xlu0 %8059
      %8061 = vset.pattern.permute.xlu0 0
      %8062 = vperm.xlu0 %8061, %v7869
      %v8063 = vpop.permute.xlu0 %8062
      %8064 = vset.pattern.permute.xlu0 0
      %8065 = vperm.xlu0 %8064, %v7870
      %v8066 = vpop.permute.xlu0 %8065
      %8067 = vset.pattern.permute.xlu0 0
      %8068 = vperm.xlu0 %8067, %v7871
      %v8069 = vpop.permute.xlu0 %8068
      %8070 = vset.pattern.permute.xlu0 0
      %8071 = vperm.xlu0 %8070, %v7872
      %v8072 = vpop.permute.xlu0 %8071
      %8073 = vset.pattern.permute.xlu0 0
      %8074 = vperm.xlu0 %8073, %v7873
      %v8075 = vpop.permute.xlu0 %8074
      %8076 = vset.pattern.permute.xlu0 0
      %8077 = vperm.xlu0 %8076, %v7874
      %v8078 = vpop.permute.xlu0 %8077
      %8079 = vset.pattern.permute.xlu0 0
      %8080 = vperm.xlu0 %8079, %v7875
      %v8081 = vpop.permute.xlu0 %8080
      %8082 = vset.pattern.permute.xlu0 0
      %8083 = vperm.xlu0 %8082, %v7876
      %v8084 = vpop.permute.xlu0 %8083
      %8085 = vset.pattern.permute.xlu0 0
      %8086 = vperm.xlu0 %8085, %v7877
      %v8087 = vpop.permute.xlu0 %8086
      %8088 = vset.pattern.permute.xlu0 0
      %8089 = vperm.xlu0 %8088, %v7878
      %v8090 = vpop.permute.xlu0 %8089
      %8091 = vset.pattern.permute.xlu0 0
      %8092 = vperm.xlu0 %8091, %v7879
      %v8093 = vpop.permute.xlu0 %8092
      %8094 = vset.pattern.permute.xlu0 0
      %8095 = vperm.xlu0 %8094, %v7880
      %v8096 = vpop.permute.xlu0 %8095
      %8097 = vset.pattern.permute.xlu0 0
      %8098 = vperm.xlu0 %8097, %v7881
      %v8099 = vpop.permute.xlu0 %8098
      %8100 = vset.pattern.permute.xlu0 0
      %8101 = vperm.xlu0 %8100, %v7882
      %v8102 = vpop.permute.xlu0 %8101
      %8103 = vset.pattern.permute.xlu0 0
      %8104 = vperm.xlu0 %8103, %v7883
      %v8105 = vpop.permute.xlu0 %8104
      %8106 = vset.pattern.permute.xlu0 0
      %8107 = vperm.xlu0 %8106, %v7884
      %v8108 = vpop.permute.xlu0 %8107
      %8109 = vset.pattern.permute.xlu0 0
      %8110 = vperm.xlu0 %8109, %v7885
      %v8111 = vpop.permute.xlu0 %8110
      %8112 = vset.pattern.permute.xlu0 0
      %8113 = vperm.xlu0 %8112, %v7886
      %v8114 = vpop.permute.xlu0 %8113
      %8115 = vset.pattern.permute.xlu0 0
      %8116 = vperm.xlu0 %8115, %v7887
      %v8117 = vpop.permute.xlu0 %8116
      %8118 = vset.pattern.permute.xlu0 0
      %8119 = vperm.xlu0 %8118, %v7888
      %v8120 = vpop.permute.xlu0 %8119
      %8121 = vset.pattern.permute.xlu0 0
      %8122 = vperm.xlu0 %8121, %v7889
      %v8123 = vpop.permute.xlu0 %8122
      %8124 = vset.pattern.permute.xlu0 0
      %8125 = vperm.xlu0 %8124, %v7890
      %v8126 = vpop.permute.xlu0 %8125
      %8127 = vset.pattern.permute.xlu0 0
      %8128 = vperm.xlu0 %8127, %v7891
      %v8129 = vpop.permute.xlu0 %8128
      %8130 = vset.pattern.permute.xlu0 0
      %8131 = vperm.xlu0 %8130, %v7892
      %v8132 = vpop.permute.xlu0 %8131
      %8133 = vset.pattern.permute.xlu0 0
      %8134 = vperm.xlu0 %8133, %v7893
      %v8135 = vpop.permute.xlu0 %8134
      %8136 = vset.pattern.permute.xlu0 0
      %8137 = vperm.xlu0 %8136, %v7894
      %v8138 = vpop.permute.xlu0 %8137
      %8139 = vset.pattern.permute.xlu0 0
      %8140 = vperm.xlu0 %8139, %v7895
      %v8141 = vpop.permute.xlu0 %8140
      %8142 = vset.pattern.permute.xlu0 0
      %8143 = vperm.xlu0 %8142, %v7896
      %v8144 = vpop.permute.xlu0 %8143
      %8145 = vset.pattern.permute.xlu0 0
      %8146 = vperm.xlu0 %8145, %v7897
      %v8147 = vpop.permute.xlu0 %8146
      %8148 = vset.pattern.permute.xlu0 0
      %8149 = vperm.xlu0 %8148, %v7898
      %v8150 = vpop.permute.xlu0 %8149
      %8151 = vset.pattern.permute.xlu0 0
      %8152 = vperm.xlu0 %8151, %v7899
      %v8153 = vpop.permute.xlu0 %8152
      %8154 = vset.pattern.permute.xlu0 0
      %8155 = vperm.xlu0 %8154, %v7900
      %v8156 = vpop.permute.xlu0 %8155
      %8157 = vset.pattern.permute.xlu0 0
      %8158 = vperm.xlu0 %8157, %v7901
      %v8159 = vpop.permute.xlu0 %8158
      %8160 = vset.pattern.permute.xlu0 0
      %8161 = vperm.xlu0 %8160, %v7902
      %v8162 = vpop.permute.xlu0 %8161
      %8163 = vset.pattern.permute.xlu0 0
      %8164 = vperm.xlu0 %8163, %v7903
      %v8165 = vpop.permute.xlu0 %8164
      %8166 = vset.pattern.permute.xlu0 0
      %8167 = vperm.xlu0 %8166, %v7904
      %v8168 = vpop.permute.xlu0 %8167
      %8169 = vset.pattern.permute.xlu0 0
      %8170 = vperm.xlu0 %8169, %v7905
      %v8171 = vpop.permute.xlu0 %8170
      %8172 = vset.pattern.permute.xlu0 0
      %8173 = vperm.xlu0 %8172, %v7906
      %v8174 = vpop.permute.xlu0 %8173
      %8175 = vset.pattern.permute.xlu0 0
      %8176 = vperm.xlu0 %8175, %v7907
      %v8177 = vpop.permute.xlu0 %8176
      %8178 = vset.pattern.permute.xlu0 0
      %8179 = vperm.xlu0 %8178, %v7908
      %v8180 = vpop.permute.xlu0 %8179
      %8181 = vset.pattern.permute.xlu0 0
      %8182 = vperm.xlu0 %8181, %v7909
      %v8183 = vpop.permute.xlu0 %8182
      %8184 = vset.pattern.permute.xlu0 0
      %8185 = vperm.xlu0 %8184, %v7910
      %v8186 = vpop.permute.xlu0 %8185
      %8187 = vset.pattern.permute.xlu0 0
      %8188 = vperm.xlu0 %8187, %v7911
      %v8189 = vpop.permute.xlu0 %8188
      %8190 = vset.pattern.permute.xlu0 0
      %8191 = vperm.xlu0 %8190, %v7912
      %v8192 = vpop.permute.xlu0 %8191
      %8193 = vset.pattern.permute.xlu0 0
      %8194 = vperm.xlu0 %8193, %v7913
      %v8195 = vpop.permute.xlu0 %8194
      %8196 = vset.pattern.permute.xlu0 0
      %8197 = vperm.xlu0 %8196, %v7914
      %v8198 = vpop.permute.xlu0 %8197
      %8199 = vset.pattern.permute.xlu0 0
      %8200 = vperm.xlu0 %8199, %v7915
      %v8201 = vpop.permute.xlu0 %8200
      %8202 = vset.pattern.permute.xlu0 0
      %8203 = vperm.xlu0 %8202, %v7916
      %v8204 = vpop.permute.xlu0 %8203
      %8205 = vset.pattern.permute.xlu0 0
      %8206 = vperm.xlu0 %8205, %v7917
      %v8207 = vpop.permute.xlu0 %8206
      %8208 = vset.pattern.permute.xlu0 0
      %8209 = vperm.xlu0 %8208, %v7918
      %v8210 = vpop.permute.xlu0 %8209
      %8211 = vset.pattern.permute.xlu0 0
      %8212 = vperm.xlu0 %8211, %v7919
      %v8213 = vpop.permute.xlu0 %8212
      %8214 = vset.pattern.permute.xlu0 0
      %8215 = vperm.xlu0 %8214, %v7920
      %v8216 = vpop.permute.xlu0 %8215
      %8217 = vset.pattern.permute.xlu0 0
      %8218 = vperm.xlu0 %8217, %v7921
      %v8219 = vpop.permute.xlu0 %8218
      %8220 = vset.pattern.permute.xlu0 0
      %8221 = vperm.xlu0 %8220, %v7922
      %v8222 = vpop.permute.xlu0 %8221
      %8223 = vset.pattern.permute.xlu0 0
      %8224 = vperm.xlu0 %8223, %v7923
      %v8225 = vpop.permute.xlu0 %8224
      %8226 = vset.pattern.permute.xlu0 0
      %8227 = vperm.xlu0 %8226, %v7924
      %v8228 = vpop.permute.xlu0 %8227
      %8229 = vset.pattern.permute.xlu0 0
      %8230 = vperm.xlu0 %8229, %v7925
      %v8231 = vpop.permute.xlu0 %8230
      %8232 = vset.pattern.permute.xlu0 0
      %8233 = vperm.xlu0 %8232, %v7926
      %v8234 = vpop.permute.xlu0 %8233
      %8235 = vset.pattern.permute.xlu0 0
      %8236 = vperm.xlu0 %8235, %v7927
      %v8237 = vpop.permute.xlu0 %8236
      %8238 = vset.pattern.permute.xlu0 0
      %8239 = vperm.xlu0 %8238, %v7928
      %v8240 = vpop.permute.xlu0 %8239
      %8241 = vset.pattern.permute.xlu0 0
      %8242 = vperm.xlu0 %8241, %v7929
      %v8243 = vpop.permute.xlu0 %8242
      %8244 = vset.pattern.permute.xlu0 0
      %8245 = vperm.xlu0 %8244, %v7930
      %v8246 = vpop.permute.xlu0 %8245
      %8247 = vset.pattern.permute.xlu0 0
      %8248 = vperm.xlu0 %8247, %v7931
      %v8249 = vpop.permute.xlu0 %8248
      %8250 = vset.pattern.permute.xlu0 0
      %8251 = vperm.xlu0 %8250, %v7932
      %v8252 = vpop.permute.xlu0 %8251
      %8253 = vset.pattern.permute.xlu0 0
      %8254 = vperm.xlu0 %8253, %v7933
      %v8255 = vpop.permute.xlu0 %8254
      %8256 = vset.pattern.permute.xlu0 0
      %8257 = vperm.xlu0 %8256, %v7934
      %v8258 = vpop.permute.xlu0 %8257
      %8259 = vset.pattern.permute.xlu0 0
      %8260 = vperm.xlu0 %8259, %v7935
      %v8261 = vpop.permute.xlu0 %8260
      %8262 = vset.pattern.permute.xlu0 0
      %8263 = vperm.xlu0 %8262, %v7936
      %v8264 = vpop.permute.xlu0 %8263
      %8265 = vset.pattern.permute.xlu0 0
      %8266 = vperm.xlu0 %8265, %v7937
      %v8267 = vpop.permute.xlu0 %8266
      %8268 = vset.pattern.permute.xlu0 0
      %8269 = vperm.xlu0 %8268, %v7938
      %v8270 = vpop.permute.xlu0 %8269
      %8271 = vset.pattern.permute.xlu0 0
      %8272 = vperm.xlu0 %8271, %v7939
      %v8273 = vpop.permute.xlu0 %8272
      %8274 = vset.pattern.permute.xlu0 0
      %8275 = vperm.xlu0 %8274, %v7940
      %v8276 = vpop.permute.xlu0 %8275
      %8277 = vset.pattern.permute.xlu0 0
      %8278 = vperm.xlu0 %8277, %v7941
      %v8279 = vpop.permute.xlu0 %8278
      %8280 = vset.pattern.permute.xlu0 0
      %8281 = vperm.xlu0 %8280, %v7942
      %v8282 = vpop.permute.xlu0 %8281
      %8283 = vset.pattern.permute.xlu0 0
      %8284 = vperm.xlu0 %8283, %v7943
      %v8285 = vpop.permute.xlu0 %8284
      %8286 = vset.pattern.permute.xlu0 0
      %8287 = vperm.xlu0 %8286, %v7944
      %v8288 = vpop.permute.xlu0 %8287
      %8289 = vset.pattern.permute.xlu0 0
      %8290 = vperm.xlu0 %8289, %v7945
      %v8291 = vpop.permute.xlu0 %8290
      %8292 = vset.pattern.permute.xlu0 0
      %8293 = vperm.xlu0 %8292, %v7946
      %v8294 = vpop.permute.xlu0 %8293
      %8295 = vset.pattern.permute.xlu0 0
      %8296 = vperm.xlu0 %8295, %v7947
      %v8297 = vpop.permute.xlu0 %8296
      %8298 = vset.pattern.permute.xlu0 0
      %8299 = vperm.xlu0 %8298, %v7948
      %v8300 = vpop.permute.xlu0 %8299
      %8301 = vset.pattern.permute.xlu0 0
      %8302 = vperm.xlu0 %8301, %v7949
      %v8303 = vpop.permute.xlu0 %8302
      %8304 = vset.pattern.permute.xlu0 0
      %8305 = vperm.xlu0 %8304, %v7950
      %v8306 = vpop.permute.xlu0 %8305
      %8307 = vset.pattern.permute.xlu0 0
      %8308 = vperm.xlu0 %8307, %v7951
      %v8309 = vpop.permute.xlu0 %8308
      %8310 = vset.pattern.permute.xlu0 0
      %8311 = vperm.xlu0 %8310, %v7952
      %v8312 = vpop.permute.xlu0 %8311
      %8313 = vset.pattern.permute.xlu0 0
      %8314 = vperm.xlu0 %8313, %v7953
      %v8315 = vpop.permute.xlu0 %8314
      %8316 = vset.pattern.permute.xlu0 0
      %8317 = vperm.xlu0 %8316, %v7954
      %v8318 = vpop.permute.xlu0 %8317
      %8319 = vset.pattern.permute.xlu0 0
      %8320 = vperm.xlu0 %8319, %v7955
      %v8321 = vpop.permute.xlu0 %8320
      %8322 = vset.pattern.permute.xlu0 0
      %8323 = vperm.xlu0 %8322, %v7956
      %v8324 = vpop.permute.xlu0 %8323
      %8325 = vset.pattern.permute.xlu0 0
      %8326 = vperm.xlu0 %8325, %v7957
      %v8327 = vpop.permute.xlu0 %8326
      %8328 = vset.pattern.permute.xlu0 0
      %8329 = vperm.xlu0 %8328, %v7958
      %v8330 = vpop.permute.xlu0 %8329
      %8331 = vset.pattern.permute.xlu0 0
      %8332 = vperm.xlu0 %8331, %v7959
      %v8333 = vpop.permute.xlu0 %8332
      %8334 = vset.pattern.permute.xlu0 0
      %8335 = vperm.xlu0 %8334, %v7960
      %v8336 = vpop.permute.xlu0 %8335
      %8337 = vset.pattern.permute.xlu0 0
      %8338 = vperm.xlu0 %8337, %v7961
      %v8339 = vpop.permute.xlu0 %8338
      %8340 = vset.pattern.permute.xlu0 0
      %8341 = vperm.xlu0 %8340, %v7962
      %v8342 = vpop.permute.xlu0 %8341
      %8343 = vset.pattern.permute.xlu0 0
      %8344 = vperm.xlu0 %8343, %v7963
      %v8345 = vpop.permute.xlu0 %8344
      %8346 = vset.pattern.permute.xlu0 0
      %8347 = vperm.xlu0 %8346, %v7964
      %v8348 = vpop.permute.xlu0 %8347
      %8349 = vset.pattern.permute.xlu0 0
      %8350 = vperm.xlu0 %8349, %v7965
      %v8351 = vpop.permute.xlu0 %8350
      %vm8352 = vcmp.ge.s32.totalorder %v7967, %v7970
      %vm8353 = vcmp.ge.s32.totalorder %v7967, %v7973
      %vm8354 = vcmp.ge.s32.totalorder %v7967, %v7976
      %vm8355 = vcmp.ge.s32.totalorder %v7967, %v7979
      %vm8356 = vcmp.ge.s32.totalorder %v7967, %v7982
      %vm8357 = vcmp.ge.s32.totalorder %v7967, %v7985
      %vm8358 = vcmp.ge.s32.totalorder %v7967, %v7988
      %vm8359 = vcmp.ge.s32.totalorder %v7967, %v7991
      %vm8360 = vcmp.ge.s32.totalorder %v7967, %v7994
      %vm8361 = vcmp.ge.s32.totalorder %v7967, %v7997
      %vm8362 = vcmp.ge.s32.totalorder %v7967, %v8000
      %vm8363 = vcmp.ge.s32.totalorder %v7967, %v8003
      %vm8364 = vcmp.ge.s32.totalorder %v7967, %v8006
      %vm8365 = vcmp.ge.s32.totalorder %v7967, %v8009
      %vm8366 = vcmp.ge.s32.totalorder %v7967, %v8012
      %vm8367 = vcmp.ge.s32.totalorder %v7967, %v8015
      %vm8368 = vcmp.ge.s32.totalorder %v7967, %v8018
      %vm8369 = vcmp.ge.s32.totalorder %v7967, %v8021
      %vm8370 = vcmp.ge.s32.totalorder %v7967, %v8024
      %vm8371 = vcmp.ge.s32.totalorder %v7967, %v8027
      %vm8372 = vcmp.ge.s32.totalorder %v7967, %v8030
      %vm8373 = vcmp.ge.s32.totalorder %v7967, %v8033
      %vm8374 = vcmp.ge.s32.totalorder %v7967, %v8036
      %vm8375 = vcmp.ge.s32.totalorder %v7967, %v8039
      %vm8376 = vcmp.ge.s32.totalorder %v7967, %v8042
      %vm8377 = vcmp.ge.s32.totalorder %v7967, %v8045
      %vm8378 = vcmp.ge.s32.totalorder %v7967, %v8048
      %vm8379 = vcmp.ge.s32.totalorder %v7967, %v8051
      %vm8380 = vcmp.ge.s32.totalorder %v7967, %v8054
      %vm8381 = vcmp.ge.s32.totalorder %v7967, %v8057
      %vm8382 = vcmp.ge.s32.totalorder %v7967, %v8060
      %vm8383 = vcmp.ge.s32.totalorder %v7967, %v8063
      %vm8384 = vcmp.ge.s32.totalorder %v7967, %v8066
      %vm8385 = vcmp.ge.s32.totalorder %v7967, %v8069
      %vm8386 = vcmp.ge.s32.totalorder %v7967, %v8072
      %vm8387 = vcmp.ge.s32.totalorder %v7967, %v8075
      %vm8388 = vcmp.ge.s32.totalorder %v7967, %v8078
      %vm8389 = vcmp.ge.s32.totalorder %v7967, %v8081
      %vm8390 = vcmp.ge.s32.totalorder %v7967, %v8084
      %vm8391 = vcmp.ge.s32.totalorder %v7967, %v8087
      %vm8392 = vcmp.ge.s32.totalorder %v7967, %v8090
      %vm8393 = vcmp.ge.s32.totalorder %v7967, %v8093
      %vm8394 = vcmp.ge.s32.totalorder %v7967, %v8096
      %vm8395 = vcmp.ge.s32.totalorder %v7967, %v8099
      %vm8396 = vcmp.ge.s32.totalorder %v7967, %v8102
      %vm8397 = vcmp.ge.s32.totalorder %v7967, %v8105
      %vm8398 = vcmp.ge.s32.totalorder %v7967, %v8108
      %vm8399 = vcmp.ge.s32.totalorder %v7967, %v8111
      %vm8400 = vcmp.ge.s32.totalorder %v7967, %v8114
      %vm8401 = vcmp.ge.s32.totalorder %v7967, %v8117
      %vm8402 = vcmp.ge.s32.totalorder %v7967, %v8120
      %vm8403 = vcmp.ge.s32.totalorder %v7967, %v8123
      %vm8404 = vcmp.ge.s32.totalorder %v7967, %v8126
      %vm8405 = vcmp.ge.s32.totalorder %v7967, %v8129
      %vm8406 = vcmp.ge.s32.totalorder %v7967, %v8132
      %vm8407 = vcmp.ge.s32.totalorder %v7967, %v8135
      %vm8408 = vcmp.ge.s32.totalorder %v7967, %v8138
      %vm8409 = vcmp.ge.s32.totalorder %v7967, %v8141
      %vm8410 = vcmp.ge.s32.totalorder %v7967, %v8144
      %vm8411 = vcmp.ge.s32.totalorder %v7967, %v8147
      %vm8412 = vcmp.ge.s32.totalorder %v7967, %v8150
      %vm8413 = vcmp.ge.s32.totalorder %v7967, %v8153
      %vm8414 = vcmp.ge.s32.totalorder %v7967, %v8156
      %vm8415 = vcmp.ge.s32.totalorder %v7967, %v8159
      %vm8416 = vcmp.ge.s32.totalorder %v7967, %v8162
      %vm8417 = vcmp.ge.s32.totalorder %v7967, %v8165
      %vm8418 = vcmp.ge.s32.totalorder %v7967, %v8168
      %vm8419 = vcmp.ge.s32.totalorder %v7967, %v8171
      %vm8420 = vcmp.ge.s32.totalorder %v7967, %v8174
      %vm8421 = vcmp.ge.s32.totalorder %v7967, %v8177
      %vm8422 = vcmp.ge.s32.totalorder %v7967, %v8180
      %vm8423 = vcmp.ge.s32.totalorder %v7967, %v8183
      %vm8424 = vcmp.ge.s32.totalorder %v7967, %v8186
      %vm8425 = vcmp.ge.s32.totalorder %v7967, %v8189
      %vm8426 = vcmp.ge.s32.totalorder %v7967, %v8192
      %vm8427 = vcmp.ge.s32.totalorder %v7967, %v8195
      %vm8428 = vcmp.ge.s32.totalorder %v7967, %v8198
      %vm8429 = vcmp.ge.s32.totalorder %v7967, %v8201
      %vm8430 = vcmp.ge.s32.totalorder %v7967, %v8204
      %vm8431 = vcmp.ge.s32.totalorder %v7967, %v8207
      %vm8432 = vcmp.ge.s32.totalorder %v7967, %v8210
      %vm8433 = vcmp.ge.s32.totalorder %v7967, %v8213
      %vm8434 = vcmp.ge.s32.totalorder %v7967, %v8216
      %vm8435 = vcmp.ge.s32.totalorder %v7967, %v8219
      %vm8436 = vcmp.ge.s32.totalorder %v7967, %v8222
      %vm8437 = vcmp.ge.s32.totalorder %v7967, %v8225
      %vm8438 = vcmp.ge.s32.totalorder %v7967, %v8228
      %vm8439 = vcmp.ge.s32.totalorder %v7967, %v8231
      %vm8440 = vcmp.ge.s32.totalorder %v7967, %v8234
      %vm8441 = vcmp.ge.s32.totalorder %v7967, %v8237
      %vm8442 = vcmp.ge.s32.totalorder %v7967, %v8240
      %vm8443 = vcmp.ge.s32.totalorder %v7967, %v8243
      %vm8444 = vcmp.ge.s32.totalorder %v7967, %v8246
      %vm8445 = vcmp.ge.s32.totalorder %v7967, %v8249
      %vm8446 = vcmp.ge.s32.totalorder %v7967, %v8252
      %vm8447 = vcmp.ge.s32.totalorder %v7967, %v8255
      %vm8448 = vcmp.ge.s32.totalorder %v7967, %v8258
      %vm8449 = vcmp.ge.s32.totalorder %v7967, %v8261
      %vm8450 = vcmp.ge.s32.totalorder %v7967, %v8264
      %vm8451 = vcmp.ge.s32.totalorder %v7967, %v8267
      %vm8452 = vcmp.ge.s32.totalorder %v7967, %v8270
      %vm8453 = vcmp.ge.s32.totalorder %v7967, %v8273
      %vm8454 = vcmp.ge.s32.totalorder %v7967, %v8276
      %vm8455 = vcmp.ge.s32.totalorder %v7967, %v8279
      %vm8456 = vcmp.ge.s32.totalorder %v7967, %v8282
      %vm8457 = vcmp.ge.s32.totalorder %v7967, %v8285
      %vm8458 = vcmp.ge.s32.totalorder %v7967, %v8288
      %vm8459 = vcmp.ge.s32.totalorder %v7967, %v8291
      %vm8460 = vcmp.ge.s32.totalorder %v7967, %v8294
      %vm8461 = vcmp.ge.s32.totalorder %v7967, %v8297
      %vm8462 = vcmp.ge.s32.totalorder %v7967, %v8300
      %vm8463 = vcmp.ge.s32.totalorder %v7967, %v8303
      %vm8464 = vcmp.ge.s32.totalorder %v7967, %v8306
      %vm8465 = vcmp.ge.s32.totalorder %v7967, %v8309
      %vm8466 = vcmp.ge.s32.totalorder %v7967, %v8312
      %vm8467 = vcmp.ge.s32.totalorder %v7967, %v8315
      %vm8468 = vcmp.ge.s32.totalorder %v7967, %v8318
      %vm8469 = vcmp.ge.s32.totalorder %v7967, %v8321
      %vm8470 = vcmp.ge.s32.totalorder %v7967, %v8324
      %vm8471 = vcmp.ge.s32.totalorder %v7967, %v8327
      %vm8472 = vcmp.ge.s32.totalorder %v7967, %v8330
      %vm8473 = vcmp.ge.s32.totalorder %v7967, %v8333
      %vm8474 = vcmp.ge.s32.totalorder %v7967, %v8336
      %vm8475 = vcmp.ge.s32.totalorder %v7967, %v8339
      %vm8476 = vcmp.ge.s32.totalorder %v7967, %v8342
      %vm8477 = vcmp.ge.s32.totalorder %v7967, %v8345
      %vm8478 = vcmp.ge.s32.totalorder %v7967, %v8348
      %vm8479 = vcmp.ge.s32.totalorder %v7967, %v8351
      %v8480 = vadd.s32 %v7838, 4
      %v8481 = vadd.s32 %v7839, 4
      %v8482 = vadd.s32 %v7840, 4
      %v8483 = vadd.s32 %v7841, 4
      %v8484 = vadd.s32 %v7842, 4
      %v8485 = vadd.s32 %v7843, 4
      %v8486 = vadd.s32 %v7844, 4
      %v8487 = vadd.s32 %v7845, 4
      %v8488 = vadd.s32 %v7846, 4
      %v8489 = vadd.s32 %v7847, 4
      %v8490 = vadd.s32 %v7848, 4
      %v8491 = vadd.s32 %v7849, 4
      %v8492 = vadd.s32 %v7850, 4
      %v8493 = vadd.s32 %v7851, 4
      %v8494 = vadd.s32 %v7852, 4
      %v8495 = vadd.s32 %v7853, 4
      %v8496 = vadd.s32 %v7854, 4
      %v8497 = vadd.s32 %v7855, 4
      %v8498 = vadd.s32 %v7856, 4
      %v8499 = vadd.s32 %v7857, 4
      %v8500 = vadd.s32 %v7858, 4
      %v8501 = vadd.s32 %v7859, 4
      %v8502 = vadd.s32 %v7860, 4
      %v8503 = vadd.s32 %v7861, 4
      %v8504 = vadd.s32 %v7862, 4
      %v8505 = vadd.s32 %v7863, 4
      %v8506 = vadd.s32 %v7864, 4
      %v8507 = vadd.s32 %v7865, 4
      %v8508 = vadd.s32 %v7866, 4
      %v8509 = vadd.s32 %v7867, 4
      %v8510 = vadd.s32 %v7868, 4
      %v8511 = vadd.s32 %v7869, 4
      %v8512 = vadd.s32 %v7870, 4
      %v8513 = vadd.s32 %v7871, 4
      %v8514 = vadd.s32 %v7872, 4
      %v8515 = vadd.s32 %v7873, 4
      %v8516 = vadd.s32 %v7874, 4
      %v8517 = vadd.s32 %v7875, 4
      %v8518 = vadd.s32 %v7876, 4
      %v8519 = vadd.s32 %v7877, 4
      %v8520 = vadd.s32 %v7878, 4
      %v8521 = vadd.s32 %v7879, 4
      %v8522 = vadd.s32 %v7880, 4
      %v8523 = vadd.s32 %v7881, 4
      %v8524 = vadd.s32 %v7882, 4
      %v8525 = vadd.s32 %v7883, 4
      %v8526 = vadd.s32 %v7884, 4
      %v8527 = vadd.s32 %v7885, 4
      %v8528 = vadd.s32 %v7886, 4
      %v8529 = vadd.s32 %v7887, 4
      %v8530 = vadd.s32 %v7888, 4
      %v8531 = vadd.s32 %v7889, 4
      %v8532 = vadd.s32 %v7890, 4
      %v8533 = vadd.s32 %v7891, 4
      %v8534 = vadd.s32 %v7892, 4
      %v8535 = vadd.s32 %v7893, 4
      %v8536 = vadd.s32 %v7894, 4
      %v8537 = vadd.s32 %v7895, 4
      %v8538 = vadd.s32 %v7896, 4
      %v8539 = vadd.s32 %v7897, 4
      %v8540 = vadd.s32 %v7898, 4
      %v8541 = vadd.s32 %v7899, 4
      %v8542 = vadd.s32 %v7900, 4
      %v8543 = vadd.s32 %v7901, 4
      %v8544 = vadd.s32 %v7902, 4
      %v8545 = vadd.s32 %v7903, 4
      %v8546 = vadd.s32 %v7904, 4
      %v8547 = vadd.s32 %v7905, 4
      %v8548 = vadd.s32 %v7906, 4
      %v8549 = vadd.s32 %v7907, 4
      %v8550 = vadd.s32 %v7908, 4
      %v8551 = vadd.s32 %v7909, 4
      %v8552 = vadd.s32 %v7910, 4
      %v8553 = vadd.s32 %v7911, 4
      %v8554 = vadd.s32 %v7912, 4
      %v8555 = vadd.s32 %v7913, 4
      %v8556 = vadd.s32 %v7914, 4
      %v8557 = vadd.s32 %v7915, 4
      %v8558 = vadd.s32 %v7916, 4
      %v8559 = vadd.s32 %v7917, 4
      %v8560 = vadd.s32 %v7918, 4
      %v8561 = vadd.s32 %v7919, 4
      %v8562 = vadd.s32 %v7920, 4
      %v8563 = vadd.s32 %v7921, 4
      %v8564 = vadd.s32 %v7922, 4
      %v8565 = vadd.s32 %v7923, 4
      %v8566 = vadd.s32 %v7924, 4
      %v8567 = vadd.s32 %v7925, 4
      %v8568 = vadd.s32 %v7926, 4
      %v8569 = vadd.s32 %v7927, 4
      %v8570 = vadd.s32 %v7928, 4
      %v8571 = vadd.s32 %v7929, 4
      %v8572 = vadd.s32 %v7930, 4
      %v8573 = vadd.s32 %v7931, 4
      %v8574 = vadd.s32 %v7932, 4
      %v8575 = vadd.s32 %v7933, 4
      %v8576 = vadd.s32 %v7934, 4
      %v8577 = vadd.s32 %v7935, 4
      %v8578 = vadd.s32 %v7936, 4
      %v8579 = vadd.s32 %v7937, 4
      %v8580 = vadd.s32 %v7938, 4
      %v8581 = vadd.s32 %v7939, 4
      %v8582 = vadd.s32 %v7940, 4
      %v8583 = vadd.s32 %v7941, 4
      %v8584 = vadd.s32 %v7942, 4
      %v8585 = vadd.s32 %v7943, 4
      %v8586 = vadd.s32 %v7944, 4
      %v8587 = vadd.s32 %v7945, 4
      %v8588 = vadd.s32 %v7946, 4
      %v8589 = vadd.s32 %v7947, 4
      %v8590 = vadd.s32 %v7948, 4
      %v8591 = vadd.s32 %v7949, 4
      %v8592 = vadd.s32 %v7950, 4
      %v8593 = vadd.s32 %v7951, 4
      %v8594 = vadd.s32 %v7952, 4
      %v8595 = vadd.s32 %v7953, 4
      %v8596 = vadd.s32 %v7954, 4
      %v8597 = vadd.s32 %v7955, 4
      %v8598 = vadd.s32 %v7956, 4
      %v8599 = vadd.s32 %v7957, 4
      %v8600 = vadd.s32 %v7958, 4
      %v8601 = vadd.s32 %v7959, 4
      %v8602 = vadd.s32 %v7960, 4
      %v8603 = vadd.s32 %v7961, 4
      %v8604 = vadd.s32 %v7962, 4
      %v8605 = vadd.s32 %v7963, 4
      %v8606 = vadd.s32 %v7964, 4
      %v8607 = vadd.s32 %v7965, 4
      %8608 = vset.pattern.permute.xlu0 0
      %8609 = vperm.xlu0 %8608, %v8480
      %v8610 = vpop.permute.xlu0 %8609
      %8611 = vset.pattern.permute.xlu0 0
      %8612 = vperm.xlu0 %8611, %v8481
      %v8613 = vpop.permute.xlu0 %8612
      %8614 = vset.pattern.permute.xlu0 0
      %8615 = vperm.xlu0 %8614, %v8482
      %v8616 = vpop.permute.xlu0 %8615
      %8617 = vset.pattern.permute.xlu0 0
      %8618 = vperm.xlu0 %8617, %v8483
      %v8619 = vpop.permute.xlu0 %8618
      %8620 = vset.pattern.permute.xlu0 0
      %8621 = vperm.xlu0 %8620, %v8484
      %v8622 = vpop.permute.xlu0 %8621
      %8623 = vset.pattern.permute.xlu0 0
      %8624 = vperm.xlu0 %8623, %v8485
      %v8625 = vpop.permute.xlu0 %8624
      %8626 = vset.pattern.permute.xlu0 0
      %8627 = vperm.xlu0 %8626, %v8486
      %v8628 = vpop.permute.xlu0 %8627
      %8629 = vset.pattern.permute.xlu0 0
      %8630 = vperm.xlu0 %8629, %v8487
      %v8631 = vpop.permute.xlu0 %8630
      %8632 = vset.pattern.permute.xlu0 0
      %8633 = vperm.xlu0 %8632, %v8488
      %v8634 = vpop.permute.xlu0 %8633
      %8635 = vset.pattern.permute.xlu0 0
      %8636 = vperm.xlu0 %8635, %v8489
      %v8637 = vpop.permute.xlu0 %8636
      %8638 = vset.pattern.permute.xlu0 0
      %8639 = vperm.xlu0 %8638, %v8490
      %v8640 = vpop.permute.xlu0 %8639
      %8641 = vset.pattern.permute.xlu0 0
      %8642 = vperm.xlu0 %8641, %v8491
      %v8643 = vpop.permute.xlu0 %8642
      %8644 = vset.pattern.permute.xlu0 0
      %8645 = vperm.xlu0 %8644, %v8492
      %v8646 = vpop.permute.xlu0 %8645
      %8647 = vset.pattern.permute.xlu0 0
      %8648 = vperm.xlu0 %8647, %v8493
      %v8649 = vpop.permute.xlu0 %8648
      %8650 = vset.pattern.permute.xlu0 0
      %8651 = vperm.xlu0 %8650, %v8494
      %v8652 = vpop.permute.xlu0 %8651
      %8653 = vset.pattern.permute.xlu0 0
      %8654 = vperm.xlu0 %8653, %v8495
      %v8655 = vpop.permute.xlu0 %8654
      %8656 = vset.pattern.permute.xlu0 0
      %8657 = vperm.xlu0 %8656, %v8496
      %v8658 = vpop.permute.xlu0 %8657
      %8659 = vset.pattern.permute.xlu0 0
      %8660 = vperm.xlu0 %8659, %v8497
      %v8661 = vpop.permute.xlu0 %8660
      %8662 = vset.pattern.permute.xlu0 0
      %8663 = vperm.xlu0 %8662, %v8498
      %v8664 = vpop.permute.xlu0 %8663
      %8665 = vset.pattern.permute.xlu0 0
      %8666 = vperm.xlu0 %8665, %v8499
      %v8667 = vpop.permute.xlu0 %8666
      %8668 = vset.pattern.permute.xlu0 0
      %8669 = vperm.xlu0 %8668, %v8500
      %v8670 = vpop.permute.xlu0 %8669
      %8671 = vset.pattern.permute.xlu0 0
      %8672 = vperm.xlu0 %8671, %v8501
      %v8673 = vpop.permute.xlu0 %8672
      %8674 = vset.pattern.permute.xlu0 0
      %8675 = vperm.xlu0 %8674, %v8502
      %v8676 = vpop.permute.xlu0 %8675
      %8677 = vset.pattern.permute.xlu0 0
      %8678 = vperm.xlu0 %8677, %v8503
      %v8679 = vpop.permute.xlu0 %8678
      %8680 = vset.pattern.permute.xlu0 0
      %8681 = vperm.xlu0 %8680, %v8504
      %v8682 = vpop.permute.xlu0 %8681
      %8683 = vset.pattern.permute.xlu0 0
      %8684 = vperm.xlu0 %8683, %v8505
      %v8685 = vpop.permute.xlu0 %8684
      %8686 = vset.pattern.permute.xlu0 0
      %8687 = vperm.xlu0 %8686, %v8506
      %v8688 = vpop.permute.xlu0 %8687
      %8689 = vset.pattern.permute.xlu0 0
      %8690 = vperm.xlu0 %8689, %v8507
      %v8691 = vpop.permute.xlu0 %8690
      %8692 = vset.pattern.permute.xlu0 0
      %8693 = vperm.xlu0 %8692, %v8508
      %v8694 = vpop.permute.xlu0 %8693
      %8695 = vset.pattern.permute.xlu0 0
      %8696 = vperm.xlu0 %8695, %v8509
      %v8697 = vpop.permute.xlu0 %8696
      %8698 = vset.pattern.permute.xlu0 0
      %8699 = vperm.xlu0 %8698, %v8510
      %v8700 = vpop.permute.xlu0 %8699
      %8701 = vset.pattern.permute.xlu0 0
      %8702 = vperm.xlu0 %8701, %v8511
      %v8703 = vpop.permute.xlu0 %8702
      %8704 = vset.pattern.permute.xlu0 0
      %8705 = vperm.xlu0 %8704, %v8512
      %v8706 = vpop.permute.xlu0 %8705
      %8707 = vset.pattern.permute.xlu0 0
      %8708 = vperm.xlu0 %8707, %v8513
      %v8709 = vpop.permute.xlu0 %8708
      %8710 = vset.pattern.permute.xlu0 0
      %8711 = vperm.xlu0 %8710, %v8514
      %v8712 = vpop.permute.xlu0 %8711
      %8713 = vset.pattern.permute.xlu0 0
      %8714 = vperm.xlu0 %8713, %v8515
      %v8715 = vpop.permute.xlu0 %8714
      %8716 = vset.pattern.permute.xlu0 0
      %8717 = vperm.xlu0 %8716, %v8516
      %v8718 = vpop.permute.xlu0 %8717
      %8719 = vset.pattern.permute.xlu0 0
      %8720 = vperm.xlu0 %8719, %v8517
      %v8721 = vpop.permute.xlu0 %8720
      %8722 = vset.pattern.permute.xlu0 0
      %8723 = vperm.xlu0 %8722, %v8518
      %v8724 = vpop.permute.xlu0 %8723
      %8725 = vset.pattern.permute.xlu0 0
      %8726 = vperm.xlu0 %8725, %v8519
      %v8727 = vpop.permute.xlu0 %8726
      %8728 = vset.pattern.permute.xlu0 0
      %8729 = vperm.xlu0 %8728, %v8520
      %v8730 = vpop.permute.xlu0 %8729
      %8731 = vset.pattern.permute.xlu0 0
      %8732 = vperm.xlu0 %8731, %v8521
      %v8733 = vpop.permute.xlu0 %8732
      %8734 = vset.pattern.permute.xlu0 0
      %8735 = vperm.xlu0 %8734, %v8522
      %v8736 = vpop.permute.xlu0 %8735
      %8737 = vset.pattern.permute.xlu0 0
      %8738 = vperm.xlu0 %8737, %v8523
      %v8739 = vpop.permute.xlu0 %8738
      %8740 = vset.pattern.permute.xlu0 0
      %8741 = vperm.xlu0 %8740, %v8524
      %v8742 = vpop.permute.xlu0 %8741
      %8743 = vset.pattern.permute.xlu0 0
      %8744 = vperm.xlu0 %8743, %v8525
      %v8745 = vpop.permute.xlu0 %8744
      %8746 = vset.pattern.permute.xlu0 0
      %8747 = vperm.xlu0 %8746, %v8526
      %v8748 = vpop.permute.xlu0 %8747
      %8749 = vset.pattern.permute.xlu0 0
      %8750 = vperm.xlu0 %8749, %v8527
      %v8751 = vpop.permute.xlu0 %8750
      %8752 = vset.pattern.permute.xlu0 0
      %8753 = vperm.xlu0 %8752, %v8528
      %v8754 = vpop.permute.xlu0 %8753
      %8755 = vset.pattern.permute.xlu0 0
      %8756 = vperm.xlu0 %8755, %v8529
      %v8757 = vpop.permute.xlu0 %8756
      %8758 = vset.pattern.permute.xlu0 0
      %8759 = vperm.xlu0 %8758, %v8530
      %v8760 = vpop.permute.xlu0 %8759
      %8761 = vset.pattern.permute.xlu0 0
      %8762 = vperm.xlu0 %8761, %v8531
      %v8763 = vpop.permute.xlu0 %8762
      %8764 = vset.pattern.permute.xlu0 0
      %8765 = vperm.xlu0 %8764, %v8532
      %v8766 = vpop.permute.xlu0 %8765
      %8767 = vset.pattern.permute.xlu0 0
      %8768 = vperm.xlu0 %8767, %v8533
      %v8769 = vpop.permute.xlu0 %8768
      %8770 = vset.pattern.permute.xlu0 0
      %8771 = vperm.xlu0 %8770, %v8534
      %v8772 = vpop.permute.xlu0 %8771
      %8773 = vset.pattern.permute.xlu0 0
      %8774 = vperm.xlu0 %8773, %v8535
      %v8775 = vpop.permute.xlu0 %8774
      %8776 = vset.pattern.permute.xlu0 0
      %8777 = vperm.xlu0 %8776, %v8536
      %v8778 = vpop.permute.xlu0 %8777
      %8779 = vset.pattern.permute.xlu0 0
      %8780 = vperm.xlu0 %8779, %v8537
      %v8781 = vpop.permute.xlu0 %8780
      %8782 = vset.pattern.permute.xlu0 0
      %8783 = vperm.xlu0 %8782, %v8538
      %v8784 = vpop.permute.xlu0 %8783
      %8785 = vset.pattern.permute.xlu0 0
      %8786 = vperm.xlu0 %8785, %v8539
      %v8787 = vpop.permute.xlu0 %8786
      %8788 = vset.pattern.permute.xlu0 0
      %8789 = vperm.xlu0 %8788, %v8540
      %v8790 = vpop.permute.xlu0 %8789
      %8791 = vset.pattern.permute.xlu0 0
      %8792 = vperm.xlu0 %8791, %v8541
      %v8793 = vpop.permute.xlu0 %8792
      %8794 = vset.pattern.permute.xlu0 0
      %8795 = vperm.xlu0 %8794, %v8542
      %v8796 = vpop.permute.xlu0 %8795
      %8797 = vset.pattern.permute.xlu0 0
      %8798 = vperm.xlu0 %8797, %v8543
      %v8799 = vpop.permute.xlu0 %8798
      %8800 = vset.pattern.permute.xlu0 0
      %8801 = vperm.xlu0 %8800, %v8544
      %v8802 = vpop.permute.xlu0 %8801
      %8803 = vset.pattern.permute.xlu0 0
      %8804 = vperm.xlu0 %8803, %v8545
      %v8805 = vpop.permute.xlu0 %8804
      %8806 = vset.pattern.permute.xlu0 0
      %8807 = vperm.xlu0 %8806, %v8546
      %v8808 = vpop.permute.xlu0 %8807
      %8809 = vset.pattern.permute.xlu0 0
      %8810 = vperm.xlu0 %8809, %v8547
      %v8811 = vpop.permute.xlu0 %8810
      %8812 = vset.pattern.permute.xlu0 0
      %8813 = vperm.xlu0 %8812, %v8548
      %v8814 = vpop.permute.xlu0 %8813
      %8815 = vset.pattern.permute.xlu0 0
      %8816 = vperm.xlu0 %8815, %v8549
      %v8817 = vpop.permute.xlu0 %8816
      %8818 = vset.pattern.permute.xlu0 0
      %8819 = vperm.xlu0 %8818, %v8550
      %v8820 = vpop.permute.xlu0 %8819
      %8821 = vset.pattern.permute.xlu0 0
      %8822 = vperm.xlu0 %8821, %v8551
      %v8823 = vpop.permute.xlu0 %8822
      %8824 = vset.pattern.permute.xlu0 0
      %8825 = vperm.xlu0 %8824, %v8552
      %v8826 = vpop.permute.xlu0 %8825
      %8827 = vset.pattern.permute.xlu0 0
      %8828 = vperm.xlu0 %8827, %v8553
      %v8829 = vpop.permute.xlu0 %8828
      %8830 = vset.pattern.permute.xlu0 0
      %8831 = vperm.xlu0 %8830, %v8554
      %v8832 = vpop.permute.xlu0 %8831
      %8833 = vset.pattern.permute.xlu0 0
      %8834 = vperm.xlu0 %8833, %v8555
      %v8835 = vpop.permute.xlu0 %8834
      %8836 = vset.pattern.permute.xlu0 0
      %8837 = vperm.xlu0 %8836, %v8556
      %v8838 = vpop.permute.xlu0 %8837
      %8839 = vset.pattern.permute.xlu0 0
      %8840 = vperm.xlu0 %8839, %v8557
      %v8841 = vpop.permute.xlu0 %8840
      %8842 = vset.pattern.permute.xlu0 0
      %8843 = vperm.xlu0 %8842, %v8558
      %v8844 = vpop.permute.xlu0 %8843
      %8845 = vset.pattern.permute.xlu0 0
      %8846 = vperm.xlu0 %8845, %v8559
      %v8847 = vpop.permute.xlu0 %8846
      %8848 = vset.pattern.permute.xlu0 0
      %8849 = vperm.xlu0 %8848, %v8560
      %v8850 = vpop.permute.xlu0 %8849
      %8851 = vset.pattern.permute.xlu0 0
      %8852 = vperm.xlu0 %8851, %v8561
      %v8853 = vpop.permute.xlu0 %8852
      %8854 = vset.pattern.permute.xlu0 0
      %8855 = vperm.xlu0 %8854, %v8562
      %v8856 = vpop.permute.xlu0 %8855
      %8857 = vset.pattern.permute.xlu0 0
      %8858 = vperm.xlu0 %8857, %v8563
      %v8859 = vpop.permute.xlu0 %8858
      %8860 = vset.pattern.permute.xlu0 0
      %8861 = vperm.xlu0 %8860, %v8564
      %v8862 = vpop.permute.xlu0 %8861
      %8863 = vset.pattern.permute.xlu0 0
      %8864 = vperm.xlu0 %8863, %v8565
      %v8865 = vpop.permute.xlu0 %8864
      %8866 = vset.pattern.permute.xlu0 0
      %8867 = vperm.xlu0 %8866, %v8566
      %v8868 = vpop.permute.xlu0 %8867
      %8869 = vset.pattern.permute.xlu0 0
      %8870 = vperm.xlu0 %8869, %v8567
      %v8871 = vpop.permute.xlu0 %8870
      %8872 = vset.pattern.permute.xlu0 0
      %8873 = vperm.xlu0 %8872, %v8568
      %v8874 = vpop.permute.xlu0 %8873
      %8875 = vset.pattern.permute.xlu0 0
      %8876 = vperm.xlu0 %8875, %v8569
      %v8877 = vpop.permute.xlu0 %8876
      %8878 = vset.pattern.permute.xlu0 0
      %8879 = vperm.xlu0 %8878, %v8570
      %v8880 = vpop.permute.xlu0 %8879
      %8881 = vset.pattern.permute.xlu0 0
      %8882 = vperm.xlu0 %8881, %v8571
      %v8883 = vpop.permute.xlu0 %8882
      %8884 = vset.pattern.permute.xlu0 0
      %8885 = vperm.xlu0 %8884, %v8572
      %v8886 = vpop.permute.xlu0 %8885
      %8887 = vset.pattern.permute.xlu0 0
      %8888 = vperm.xlu0 %8887, %v8573
      %v8889 = vpop.permute.xlu0 %8888
      %8890 = vset.pattern.permute.xlu0 0
      %8891 = vperm.xlu0 %8890, %v8574
      %v8892 = vpop.permute.xlu0 %8891
      %8893 = vset.pattern.permute.xlu0 0
      %8894 = vperm.xlu0 %8893, %v8575
      %v8895 = vpop.permute.xlu0 %8894
      %8896 = vset.pattern.permute.xlu0 0
      %8897 = vperm.xlu0 %8896, %v8576
      %v8898 = vpop.permute.xlu0 %8897
      %8899 = vset.pattern.permute.xlu0 0
      %8900 = vperm.xlu0 %8899, %v8577
      %v8901 = vpop.permute.xlu0 %8900
      %8902 = vset.pattern.permute.xlu0 0
      %8903 = vperm.xlu0 %8902, %v8578
      %v8904 = vpop.permute.xlu0 %8903
      %8905 = vset.pattern.permute.xlu0 0
      %8906 = vperm.xlu0 %8905, %v8579
      %v8907 = vpop.permute.xlu0 %8906
      %8908 = vset.pattern.permute.xlu0 0
      %8909 = vperm.xlu0 %8908, %v8580
      %v8910 = vpop.permute.xlu0 %8909
      %8911 = vset.pattern.permute.xlu0 0
      %8912 = vperm.xlu0 %8911, %v8581
      %v8913 = vpop.permute.xlu0 %8912
      %8914 = vset.pattern.permute.xlu0 0
      %8915 = vperm.xlu0 %8914, %v8582
      %v8916 = vpop.permute.xlu0 %8915
      %8917 = vset.pattern.permute.xlu0 0
      %8918 = vperm.xlu0 %8917, %v8583
      %v8919 = vpop.permute.xlu0 %8918
      %8920 = vset.pattern.permute.xlu0 0
      %8921 = vperm.xlu0 %8920, %v8584
      %v8922 = vpop.permute.xlu0 %8921
      %8923 = vset.pattern.permute.xlu0 0
      %8924 = vperm.xlu0 %8923, %v8585
      %v8925 = vpop.permute.xlu0 %8924
      %8926 = vset.pattern.permute.xlu0 0
      %8927 = vperm.xlu0 %8926, %v8586
      %v8928 = vpop.permute.xlu0 %8927
      %8929 = vset.pattern.permute.xlu0 0
      %8930 = vperm.xlu0 %8929, %v8587
      %v8931 = vpop.permute.xlu0 %8930
      %8932 = vset.pattern.permute.xlu0 0
      %8933 = vperm.xlu0 %8932, %v8588
      %v8934 = vpop.permute.xlu0 %8933
      %8935 = vset.pattern.permute.xlu0 0
      %8936 = vperm.xlu0 %8935, %v8589
      %v8937 = vpop.permute.xlu0 %8936
      %8938 = vset.pattern.permute.xlu0 0
      %8939 = vperm.xlu0 %8938, %v8590
      %v8940 = vpop.permute.xlu0 %8939
      %8941 = vset.pattern.permute.xlu0 0
      %8942 = vperm.xlu0 %8941, %v8591
      %v8943 = vpop.permute.xlu0 %8942
      %8944 = vset.pattern.permute.xlu0 0
      %8945 = vperm.xlu0 %8944, %v8592
      %v8946 = vpop.permute.xlu0 %8945
      %8947 = vset.pattern.permute.xlu0 0
      %8948 = vperm.xlu0 %8947, %v8593
      %v8949 = vpop.permute.xlu0 %8948
      %8950 = vset.pattern.permute.xlu0 0
      %8951 = vperm.xlu0 %8950, %v8594
      %v8952 = vpop.permute.xlu0 %8951
      %8953 = vset.pattern.permute.xlu0 0
      %8954 = vperm.xlu0 %8953, %v8595
      %v8955 = vpop.permute.xlu0 %8954
      %8956 = vset.pattern.permute.xlu0 0
      %8957 = vperm.xlu0 %8956, %v8596
      %v8958 = vpop.permute.xlu0 %8957
      %8959 = vset.pattern.permute.xlu0 0
      %8960 = vperm.xlu0 %8959, %v8597
      %v8961 = vpop.permute.xlu0 %8960
      %8962 = vset.pattern.permute.xlu0 0
      %8963 = vperm.xlu0 %8962, %v8598
      %v8964 = vpop.permute.xlu0 %8963
      %8965 = vset.pattern.permute.xlu0 0
      %8966 = vperm.xlu0 %8965, %v8599
      %v8967 = vpop.permute.xlu0 %8966
      %8968 = vset.pattern.permute.xlu0 0
      %8969 = vperm.xlu0 %8968, %v8600
      %v8970 = vpop.permute.xlu0 %8969
      %8971 = vset.pattern.permute.xlu0 0
      %8972 = vperm.xlu0 %8971, %v8601
      %v8973 = vpop.permute.xlu0 %8972
      %8974 = vset.pattern.permute.xlu0 0
      %8975 = vperm.xlu0 %8974, %v8602
      %v8976 = vpop.permute.xlu0 %8975
      %8977 = vset.pattern.permute.xlu0 0
      %8978 = vperm.xlu0 %8977, %v8603
      %v8979 = vpop.permute.xlu0 %8978
      %8980 = vset.pattern.permute.xlu0 0
      %8981 = vperm.xlu0 %8980, %v8604
      %v8982 = vpop.permute.xlu0 %8981
      %8983 = vset.pattern.permute.xlu0 0
      %8984 = vperm.xlu0 %8983, %v8605
      %v8985 = vpop.permute.xlu0 %8984
      %8986 = vset.pattern.permute.xlu0 0
      %8987 = vperm.xlu0 %8986, %v8606
      %v8988 = vpop.permute.xlu0 %8987
      %8989 = vset.pattern.permute.xlu0 0
      %8990 = vperm.xlu0 %8989, %v8607
      %v8991 = vpop.permute.xlu0 %8990
      %vm8992 = vcmp.lt.s32.totalorder %v7967, %v8610
      %vm8993 = vcmp.lt.s32.totalorder %v7967, %v8613
      %vm8994 = vcmp.lt.s32.totalorder %v7967, %v8616
      %vm8995 = vcmp.lt.s32.totalorder %v7967, %v8619
      %vm8996 = vcmp.lt.s32.totalorder %v7967, %v8622
      %vm8997 = vcmp.lt.s32.totalorder %v7967, %v8625
      %vm8998 = vcmp.lt.s32.totalorder %v7967, %v8628
      %vm8999 = vcmp.lt.s32.totalorder %v7967, %v8631
      %vm9000 = vcmp.lt.s32.totalorder %v7967, %v8634
      %vm9001 = vcmp.lt.s32.totalorder %v7967, %v8637
      %vm9002 = vcmp.lt.s32.totalorder %v7967, %v8640
      %vm9003 = vcmp.lt.s32.totalorder %v7967, %v8643
      %vm9004 = vcmp.lt.s32.totalorder %v7967, %v8646
      %vm9005 = vcmp.lt.s32.totalorder %v7967, %v8649
      %vm9006 = vcmp.lt.s32.totalorder %v7967, %v8652
      %vm9007 = vcmp.lt.s32.totalorder %v7967, %v8655
      %vm9008 = vcmp.lt.s32.totalorder %v7967, %v8658
      %vm9009 = vcmp.lt.s32.totalorder %v7967, %v8661
      %vm9010 = vcmp.lt.s32.totalorder %v7967, %v8664
      %vm9011 = vcmp.lt.s32.totalorder %v7967, %v8667
      %vm9012 = vcmp.lt.s32.totalorder %v7967, %v8670
      %vm9013 = vcmp.lt.s32.totalorder %v7967, %v8673
      %vm9014 = vcmp.lt.s32.totalorder %v7967, %v8676
      %vm9015 = vcmp.lt.s32.totalorder %v7967, %v8679
      %vm9016 = vcmp.lt.s32.totalorder %v7967, %v8682
      %vm9017 = vcmp.lt.s32.totalorder %v7967, %v8685
      %vm9018 = vcmp.lt.s32.totalorder %v7967, %v8688
      %vm9019 = vcmp.lt.s32.totalorder %v7967, %v8691
      %vm9020 = vcmp.lt.s32.totalorder %v7967, %v8694
      %vm9021 = vcmp.lt.s32.totalorder %v7967, %v8697
      %vm9022 = vcmp.lt.s32.totalorder %v7967, %v8700
      %vm9023 = vcmp.lt.s32.totalorder %v7967, %v8703
      %vm9024 = vcmp.lt.s32.totalorder %v7967, %v8706
      %vm9025 = vcmp.lt.s32.totalorder %v7967, %v8709
      %vm9026 = vcmp.lt.s32.totalorder %v7967, %v8712
      %vm9027 = vcmp.lt.s32.totalorder %v7967, %v8715
      %vm9028 = vcmp.lt.s32.totalorder %v7967, %v8718
      %vm9029 = vcmp.lt.s32.totalorder %v7967, %v8721
      %vm9030 = vcmp.lt.s32.totalorder %v7967, %v8724
      %vm9031 = vcmp.lt.s32.totalorder %v7967, %v8727
      %vm9032 = vcmp.lt.s32.totalorder %v7967, %v8730
      %vm9033 = vcmp.lt.s32.totalorder %v7967, %v8733
      %vm9034 = vcmp.lt.s32.totalorder %v7967, %v8736
      %vm9035 = vcmp.lt.s32.totalorder %v7967, %v8739
      %vm9036 = vcmp.lt.s32.totalorder %v7967, %v8742
      %vm9037 = vcmp.lt.s32.totalorder %v7967, %v8745
      %vm9038 = vcmp.lt.s32.totalorder %v7967, %v8748
      %vm9039 = vcmp.lt.s32.totalorder %v7967, %v8751
      %vm9040 = vcmp.lt.s32.totalorder %v7967, %v8754
      %vm9041 = vcmp.lt.s32.totalorder %v7967, %v8757
      %vm9042 = vcmp.lt.s32.totalorder %v7967, %v8760
      %vm9043 = vcmp.lt.s32.totalorder %v7967, %v8763
      %vm9044 = vcmp.lt.s32.totalorder %v7967, %v8766
      %vm9045 = vcmp.lt.s32.totalorder %v7967, %v8769
      %vm9046 = vcmp.lt.s32.totalorder %v7967, %v8772
      %vm9047 = vcmp.lt.s32.totalorder %v7967, %v8775
      %vm9048 = vcmp.lt.s32.totalorder %v7967, %v8778
      %vm9049 = vcmp.lt.s32.totalorder %v7967, %v8781
      %vm9050 = vcmp.lt.s32.totalorder %v7967, %v8784
      %vm9051 = vcmp.lt.s32.totalorder %v7967, %v8787
      %vm9052 = vcmp.lt.s32.totalorder %v7967, %v8790
      %vm9053 = vcmp.lt.s32.totalorder %v7967, %v8793
      %vm9054 = vcmp.lt.s32.totalorder %v7967, %v8796
      %vm9055 = vcmp.lt.s32.totalorder %v7967, %v8799
      %vm9056 = vcmp.lt.s32.totalorder %v7967, %v8802
      %vm9057 = vcmp.lt.s32.totalorder %v7967, %v8805
      %vm9058 = vcmp.lt.s32.totalorder %v7967, %v8808
      %vm9059 = vcmp.lt.s32.totalorder %v7967, %v8811
      %vm9060 = vcmp.lt.s32.totalorder %v7967, %v8814
      %vm9061 = vcmp.lt.s32.totalorder %v7967, %v8817
      %vm9062 = vcmp.lt.s32.totalorder %v7967, %v8820
      %vm9063 = vcmp.lt.s32.totalorder %v7967, %v8823
      %vm9064 = vcmp.lt.s32.totalorder %v7967, %v8826
      %vm9065 = vcmp.lt.s32.totalorder %v7967, %v8829
      %vm9066 = vcmp.lt.s32.totalorder %v7967, %v8832
      %vm9067 = vcmp.lt.s32.totalorder %v7967, %v8835
      %vm9068 = vcmp.lt.s32.totalorder %v7967, %v8838
      %vm9069 = vcmp.lt.s32.totalorder %v7967, %v8841
      %vm9070 = vcmp.lt.s32.totalorder %v7967, %v8844
      %vm9071 = vcmp.lt.s32.totalorder %v7967, %v8847
      %vm9072 = vcmp.lt.s32.totalorder %v7967, %v8850
      %vm9073 = vcmp.lt.s32.totalorder %v7967, %v8853
      %vm9074 = vcmp.lt.s32.totalorder %v7967, %v8856
      %vm9075 = vcmp.lt.s32.totalorder %v7967, %v8859
      %vm9076 = vcmp.lt.s32.totalorder %v7967, %v8862
      %vm9077 = vcmp.lt.s32.totalorder %v7967, %v8865
      %vm9078 = vcmp.lt.s32.totalorder %v7967, %v8868
      %vm9079 = vcmp.lt.s32.totalorder %v7967, %v8871
      %vm9080 = vcmp.lt.s32.totalorder %v7967, %v8874
      %vm9081 = vcmp.lt.s32.totalorder %v7967, %v8877
      %vm9082 = vcmp.lt.s32.totalorder %v7967, %v8880
      %vm9083 = vcmp.lt.s32.totalorder %v7967, %v8883
      %vm9084 = vcmp.lt.s32.totalorder %v7967, %v8886
      %vm9085 = vcmp.lt.s32.totalorder %v7967, %v8889
      %vm9086 = vcmp.lt.s32.totalorder %v7967, %v8892
      %vm9087 = vcmp.lt.s32.totalorder %v7967, %v8895
      %vm9088 = vcmp.lt.s32.totalorder %v7967, %v8898
      %vm9089 = vcmp.lt.s32.totalorder %v7967, %v8901
      %vm9090 = vcmp.lt.s32.totalorder %v7967, %v8904
      %vm9091 = vcmp.lt.s32.totalorder %v7967, %v8907
      %vm9092 = vcmp.lt.s32.totalorder %v7967, %v8910
      %vm9093 = vcmp.lt.s32.totalorder %v7967, %v8913
      %vm9094 = vcmp.lt.s32.totalorder %v7967, %v8916
      %vm9095 = vcmp.lt.s32.totalorder %v7967, %v8919
      %vm9096 = vcmp.lt.s32.totalorder %v7967, %v8922
      %vm9097 = vcmp.lt.s32.totalorder %v7967, %v8925
      %vm9098 = vcmp.lt.s32.totalorder %v7967, %v8928
      %vm9099 = vcmp.lt.s32.totalorder %v7967, %v8931
      %vm9100 = vcmp.lt.s32.totalorder %v7967, %v8934
      %vm9101 = vcmp.lt.s32.totalorder %v7967, %v8937
      %vm9102 = vcmp.lt.s32.totalorder %v7967, %v8940
      %vm9103 = vcmp.lt.s32.totalorder %v7967, %v8943
      %vm9104 = vcmp.lt.s32.totalorder %v7967, %v8946
      %vm9105 = vcmp.lt.s32.totalorder %v7967, %v8949
      %vm9106 = vcmp.lt.s32.totalorder %v7967, %v8952
      %vm9107 = vcmp.lt.s32.totalorder %v7967, %v8955
      %vm9108 = vcmp.lt.s32.totalorder %v7967, %v8958
      %vm9109 = vcmp.lt.s32.totalorder %v7967, %v8961
      %vm9110 = vcmp.lt.s32.totalorder %v7967, %v8964
      %vm9111 = vcmp.lt.s32.totalorder %v7967, %v8967
      %vm9112 = vcmp.lt.s32.totalorder %v7967, %v8970
      %vm9113 = vcmp.lt.s32.totalorder %v7967, %v8973
      %vm9114 = vcmp.lt.s32.totalorder %v7967, %v8976
      %vm9115 = vcmp.lt.s32.totalorder %v7967, %v8979
      %vm9116 = vcmp.lt.s32.totalorder %v7967, %v8982
      %vm9117 = vcmp.lt.s32.totalorder %v7967, %v8985
      %vm9118 = vcmp.lt.s32.totalorder %v7967, %v8988
      %vm9119 = vcmp.lt.s32.totalorder %v7967, %v8991
      %vm9120 = vmand %vm8352, %vm8992
      %vm9121 = vmand %vm8353, %vm8993
      %vm9122 = vmand %vm8354, %vm8994
      %vm9123 = vmand %vm8355, %vm8995
      %vm9124 = vmand %vm8356, %vm8996
      %vm9125 = vmand %vm8357, %vm8997
      %vm9126 = vmand %vm8358, %vm8998
      %vm9127 = vmand %vm8359, %vm8999
      %vm9128 = vmand %vm8360, %vm9000
      %vm9129 = vmand %vm8361, %vm9001
      %vm9130 = vmand %vm8362, %vm9002
      %vm9131 = vmand %vm8363, %vm9003
      %vm9132 = vmand %vm8364, %vm9004
      %vm9133 = vmand %vm8365, %vm9005
      %vm9134 = vmand %vm8366, %vm9006
      %vm9135 = vmand %vm8367, %vm9007
      %vm9136 = vmand %vm8368, %vm9008
      %vm9137 = vmand %vm8369, %vm9009
      %vm9138 = vmand %vm8370, %vm9010
      %vm9139 = vmand %vm8371, %vm9011
      %vm9140 = vmand %vm8372, %vm9012
      %vm9141 = vmand %vm8373, %vm9013
      %vm9142 = vmand %vm8374, %vm9014
      %vm9143 = vmand %vm8375, %vm9015
      %vm9144 = vmand %vm8376, %vm9016
      %vm9145 = vmand %vm8377, %vm9017
      %vm9146 = vmand %vm8378, %vm9018
      %vm9147 = vmand %vm8379, %vm9019
      %vm9148 = vmand %vm8380, %vm9020
      %vm9149 = vmand %vm8381, %vm9021
      %vm9150 = vmand %vm8382, %vm9022
      %vm9151 = vmand %vm8383, %vm9023
      %vm9152 = vmand %vm8384, %vm9024
      %vm9153 = vmand %vm8385, %vm9025
      %vm9154 = vmand %vm8386, %vm9026
      %vm9155 = vmand %vm8387, %vm9027
      %vm9156 = vmand %vm8388, %vm9028
      %vm9157 = vmand %vm8389, %vm9029
      %vm9158 = vmand %vm8390, %vm9030
      %vm9159 = vmand %vm8391, %vm9031
      %vm9160 = vmand %vm8392, %vm9032
      %vm9161 = vmand %vm8393, %vm9033
      %vm9162 = vmand %vm8394, %vm9034
      %vm9163 = vmand %vm8395, %vm9035
      %vm9164 = vmand %vm8396, %vm9036
      %vm9165 = vmand %vm8397, %vm9037
      %vm9166 = vmand %vm8398, %vm9038
      %vm9167 = vmand %vm8399, %vm9039
      %vm9168 = vmand %vm8400, %vm9040
      %vm9169 = vmand %vm8401, %vm9041
      %vm9170 = vmand %vm8402, %vm9042
      %vm9171 = vmand %vm8403, %vm9043
      %vm9172 = vmand %vm8404, %vm9044
      %vm9173 = vmand %vm8405, %vm9045
      %vm9174 = vmand %vm8406, %vm9046
      %vm9175 = vmand %vm8407, %vm9047
      %vm9176 = vmand %vm8408, %vm9048
      %vm9177 = vmand %vm8409, %vm9049
      %vm9178 = vmand %vm8410, %vm9050
      %vm9179 = vmand %vm8411, %vm9051
      %vm9180 = vmand %vm8412, %vm9052
      %vm9181 = vmand %vm8413, %vm9053
      %vm9182 = vmand %vm8414, %vm9054
      %vm9183 = vmand %vm8415, %vm9055
      %vm9184 = vmand %vm8416, %vm9056
      %vm9185 = vmand %vm8417, %vm9057
      %vm9186 = vmand %vm8418, %vm9058
      %vm9187 = vmand %vm8419, %vm9059
      %vm9188 = vmand %vm8420, %vm9060
      %vm9189 = vmand %vm8421, %vm9061
      %vm9190 = vmand %vm8422, %vm9062
      %vm9191 = vmand %vm8423, %vm9063
      %vm9192 = vmand %vm8424, %vm9064
      %vm9193 = vmand %vm8425, %vm9065
      %vm9194 = vmand %vm8426, %vm9066
      %vm9195 = vmand %vm8427, %vm9067
      %vm9196 = vmand %vm8428, %vm9068
      %vm9197 = vmand %vm8429, %vm9069
      %vm9198 = vmand %vm8430, %vm9070
      %vm9199 = vmand %vm8431, %vm9071
      %vm9200 = vmand %vm8432, %vm9072
      %vm9201 = vmand %vm8433, %vm9073
      %vm9202 = vmand %vm8434, %vm9074
      %vm9203 = vmand %vm8435, %vm9075
      %vm9204 = vmand %vm8436, %vm9076
      %vm9205 = vmand %vm8437, %vm9077
      %vm9206 = vmand %vm8438, %vm9078
      %vm9207 = vmand %vm8439, %vm9079
      %vm9208 = vmand %vm8440, %vm9080
      %vm9209 = vmand %vm8441, %vm9081
      %vm9210 = vmand %vm8442, %vm9082
      %vm9211 = vmand %vm8443, %vm9083
      %vm9212 = vmand %vm8444, %vm9084
      %vm9213 = vmand %vm8445, %vm9085
      %vm9214 = vmand %vm8446, %vm9086
      %vm9215 = vmand %vm8447, %vm9087
      %vm9216 = vmand %vm8448, %vm9088
      %vm9217 = vmand %vm8449, %vm9089
      %vm9218 = vmand %vm8450, %vm9090
      %vm9219 = vmand %vm8451, %vm9091
      %vm9220 = vmand %vm8452, %vm9092
      %vm9221 = vmand %vm8453, %vm9093
      %vm9222 = vmand %vm8454, %vm9094
      %vm9223 = vmand %vm8455, %vm9095
      %vm9224 = vmand %vm8456, %vm9096
      %vm9225 = vmand %vm8457, %vm9097
      %vm9226 = vmand %vm8458, %vm9098
      %vm9227 = vmand %vm8459, %vm9099
      %vm9228 = vmand %vm8460, %vm9100
      %vm9229 = vmand %vm8461, %vm9101
      %vm9230 = vmand %vm8462, %vm9102
      %vm9231 = vmand %vm8463, %vm9103
      %vm9232 = vmand %vm8464, %vm9104
      %vm9233 = vmand %vm8465, %vm9105
      %vm9234 = vmand %vm8466, %vm9106
      %vm9235 = vmand %vm8467, %vm9107
      %vm9236 = vmand %vm8468, %vm9108
      %vm9237 = vmand %vm8469, %vm9109
      %vm9238 = vmand %vm8470, %vm9110
      %vm9239 = vmand %vm8471, %vm9111
      %vm9240 = vmand %vm8472, %vm9112
      %vm9241 = vmand %vm8473, %vm9113
      %vm9242 = vmand %vm8474, %vm9114
      %vm9243 = vmand %vm8475, %vm9115
      %vm9244 = vmand %vm8476, %vm9116
      %vm9245 = vmand %vm8477, %vm9117
      %vm9246 = vmand %vm8478, %vm9118
      %vm9247 = vmand %vm8479, %vm9119
      %v9248 = vsel %vm9120, 1, 0
      %v9249 = vsel %vm9121, 1, 0
      %v9250 = vsel %vm9122, 1, 0
      %v9251 = vsel %vm9123, 1, 0
      %v9252 = vsel %vm9124, 1, 0
      %v9253 = vsel %vm9125, 1, 0
      %v9254 = vsel %vm9126, 1, 0
      %v9255 = vsel %vm9127, 1, 0
      %v9256 = vsel %vm9128, 1, 0
      %v9257 = vsel %vm9129, 1, 0
      %v9258 = vsel %vm9130, 1, 0
      %v9259 = vsel %vm9131, 1, 0
      %v9260 = vsel %vm9132, 1, 0
      %v9261 = vsel %vm9133, 1, 0
      %v9262 = vsel %vm9134, 1, 0
      %v9263 = vsel %vm9135, 1, 0
      %v9264 = vsel %vm9136, 1, 0
      %v9265 = vsel %vm9137, 1, 0
      %v9266 = vsel %vm9138, 1, 0
      %v9267 = vsel %vm9139, 1, 0
      %v9268 = vsel %vm9140, 1, 0
      %v9269 = vsel %vm9141, 1, 0
      %v9270 = vsel %vm9142, 1, 0
      %v9271 = vsel %vm9143, 1, 0
      %v9272 = vsel %vm9144, 1, 0
      %v9273 = vsel %vm9145, 1, 0
      %v9274 = vsel %vm9146, 1, 0
      %v9275 = vsel %vm9147, 1, 0
      %v9276 = vsel %vm9148, 1, 0
      %v9277 = vsel %vm9149, 1, 0
      %v9278 = vsel %vm9150, 1, 0
      %v9279 = vsel %vm9151, 1, 0
      %v9280 = vsel %vm9152, 1, 0
      %v9281 = vsel %vm9153, 1, 0
      %v9282 = vsel %vm9154, 1, 0
      %v9283 = vsel %vm9155, 1, 0
      %v9284 = vsel %vm9156, 1, 0
      %v9285 = vsel %vm9157, 1, 0
      %v9286 = vsel %vm9158, 1, 0
      %v9287 = vsel %vm9159, 1, 0
      %v9288 = vsel %vm9160, 1, 0
      %v9289 = vsel %vm9161, 1, 0
      %v9290 = vsel %vm9162, 1, 0
      %v9291 = vsel %vm9163, 1, 0
      %v9292 = vsel %vm9164, 1, 0
      %v9293 = vsel %vm9165, 1, 0
      %v9294 = vsel %vm9166, 1, 0
      %v9295 = vsel %vm9167, 1, 0
      %v9296 = vsel %vm9168, 1, 0
      %v9297 = vsel %vm9169, 1, 0
      %v9298 = vsel %vm9170, 1, 0
      %v9299 = vsel %vm9171, 1, 0
      %v9300 = vsel %vm9172, 1, 0
      %v9301 = vsel %vm9173, 1, 0
      %v9302 = vsel %vm9174, 1, 0
      %v9303 = vsel %vm9175, 1, 0
      %v9304 = vsel %vm9176, 1, 0
      %v9305 = vsel %vm9177, 1, 0
      %v9306 = vsel %vm9178, 1, 0
      %v9307 = vsel %vm9179, 1, 0
      %v9308 = vsel %vm9180, 1, 0
      %v9309 = vsel %vm9181, 1, 0
      %v9310 = vsel %vm9182, 1, 0
      %v9311 = vsel %vm9183, 1, 0
      %v9312 = vsel %vm9184, 1, 0
      %v9313 = vsel %vm9185, 1, 0
      %v9314 = vsel %vm9186, 1, 0
      %v9315 = vsel %vm9187, 1, 0
      %v9316 = vsel %vm9188, 1, 0
      %v9317 = vsel %vm9189, 1, 0
      %v9318 = vsel %vm9190, 1, 0
      %v9319 = vsel %vm9191, 1, 0
      %v9320 = vsel %vm9192, 1, 0
      %v9321 = vsel %vm9193, 1, 0
      %v9322 = vsel %vm9194, 1, 0
      %v9323 = vsel %vm9195, 1, 0
      %v9324 = vsel %vm9196, 1, 0
      %v9325 = vsel %vm9197, 1, 0
      %v9326 = vsel %vm9198, 1, 0
      %v9327 = vsel %vm9199, 1, 0
      %v9328 = vsel %vm9200, 1, 0
      %v9329 = vsel %vm9201, 1, 0
      %v9330 = vsel %vm9202, 1, 0
      %v9331 = vsel %vm9203, 1, 0
      %v9332 = vsel %vm9204, 1, 0
      %v9333 = vsel %vm9205, 1, 0
      %v9334 = vsel %vm9206, 1, 0
      %v9335 = vsel %vm9207, 1, 0
      %v9336 = vsel %vm9208, 1, 0
      %v9337 = vsel %vm9209, 1, 0
      %v9338 = vsel %vm9210, 1, 0
      %v9339 = vsel %vm9211, 1, 0
      %v9340 = vsel %vm9212, 1, 0
      %v9341 = vsel %vm9213, 1, 0
      %v9342 = vsel %vm9214, 1, 0
      %v9343 = vsel %vm9215, 1, 0
      %v9344 = vsel %vm9216, 1, 0
      %v9345 = vsel %vm9217, 1, 0
      %v9346 = vsel %vm9218, 1, 0
      %v9347 = vsel %vm9219, 1, 0
      %v9348 = vsel %vm9220, 1, 0
      %v9349 = vsel %vm9221, 1, 0
      %v9350 = vsel %vm9222, 1, 0
      %v9351 = vsel %vm9223, 1, 0
      %v9352 = vsel %vm9224, 1, 0
      %v9353 = vsel %vm9225, 1, 0
      %v9354 = vsel %vm9226, 1, 0
      %v9355 = vsel %vm9227, 1, 0
      %v9356 = vsel %vm9228, 1, 0
      %v9357 = vsel %vm9229, 1, 0
      %v9358 = vsel %vm9230, 1, 0
      %v9359 = vsel %vm9231, 1, 0
      %v9360 = vsel %vm9232, 1, 0
      %v9361 = vsel %vm9233, 1, 0
      %v9362 = vsel %vm9234, 1, 0
      %v9363 = vsel %vm9235, 1, 0
      %v9364 = vsel %vm9236, 1, 0
      %v9365 = vsel %vm9237, 1, 0
      %v9366 = vsel %vm9238, 1, 0
      %v9367 = vsel %vm9239, 1, 0
      %v9368 = vsel %vm9240, 1, 0
      %v9369 = vsel %vm9241, 1, 0
      %v9370 = vsel %vm9242, 1, 0
      %v9371 = vsel %vm9243, 1, 0
      %v9372 = vsel %vm9244, 1, 0
      %v9373 = vsel %vm9245, 1, 0
      %v9374 = vsel %vm9246, 1, 0
      %v9375 = vsel %vm9247, 1, 0
      %v9376 = vcvt.s32.f32 %v9248
      %v9377 = vcvt.s32.f32 %v9249
      %v9378 = vcvt.s32.f32 %v9250
      %v9379 = vcvt.s32.f32 %v9251
      %v9380 = vcvt.s32.f32 %v9252
      %v9381 = vcvt.s32.f32 %v9253
      %v9382 = vcvt.s32.f32 %v9254
      %v9383 = vcvt.s32.f32 %v9255
      %v9384 = vcvt.s32.f32 %v9256
      %v9385 = vcvt.s32.f32 %v9257
      %v9386 = vcvt.s32.f32 %v9258
      %v9387 = vcvt.s32.f32 %v9259
      %v9388 = vcvt.s32.f32 %v9260
      %v9389 = vcvt.s32.f32 %v9261
      %v9390 = vcvt.s32.f32 %v9262
      %v9391 = vcvt.s32.f32 %v9263
      %v9392 = vcvt.s32.f32 %v9264
      %v9393 = vcvt.s32.f32 %v9265
      %v9394 = vcvt.s32.f32 %v9266
      %v9395 = vcvt.s32.f32 %v9267
      %v9396 = vcvt.s32.f32 %v9268
      %v9397 = vcvt.s32.f32 %v9269
      %v9398 = vcvt.s32.f32 %v9270
      %v9399 = vcvt.s32.f32 %v9271
      %v9400 = vcvt.s32.f32 %v9272
      %v9401 = vcvt.s32.f32 %v9273
      %v9402 = vcvt.s32.f32 %v9274
      %v9403 = vcvt.s32.f32 %v9275
      %v9404 = vcvt.s32.f32 %v9276
      %v9405 = vcvt.s32.f32 %v9277
      %v9406 = vcvt.s32.f32 %v9278
      %v9407 = vcvt.s32.f32 %v9279
      %v9408 = vcvt.s32.f32 %v9280
      %v9409 = vcvt.s32.f32 %v9281
      %v9410 = vcvt.s32.f32 %v9282
      %v9411 = vcvt.s32.f32 %v9283
      %v9412 = vcvt.s32.f32 %v9284
      %v9413 = vcvt.s32.f32 %v9285
      %v9414 = vcvt.s32.f32 %v9286
      %v9415 = vcvt.s32.f32 %v9287
      %v9416 = vcvt.s32.f32 %v9288
      %v9417 = vcvt.s32.f32 %v9289
      %v9418 = vcvt.s32.f32 %v9290
      %v9419 = vcvt.s32.f32 %v9291
      %v9420 = vcvt.s32.f32 %v9292
      %v9421 = vcvt.s32.f32 %v9293
      %v9422 = vcvt.s32.f32 %v9294
      %v9423 = vcvt.s32.f32 %v9295
      %v9424 = vcvt.s32.f32 %v9296
      %v9425 = vcvt.s32.f32 %v9297
      %v9426 = vcvt.s32.f32 %v9298
      %v9427 = vcvt.s32.f32 %v9299
      %v9428 = vcvt.s32.f32 %v9300
      %v9429 = vcvt.s32.f32 %v9301
      %v9430 = vcvt.s32.f32 %v9302
      %v9431 = vcvt.s32.f32 %v9303
      %v9432 = vcvt.s32.f32 %v9304
      %v9433 = vcvt.s32.f32 %v9305
      %v9434 = vcvt.s32.f32 %v9306
      %v9435 = vcvt.s32.f32 %v9307
      %v9436 = vcvt.s32.f32 %v9308
      %v9437 = vcvt.s32.f32 %v9309
      %v9438 = vcvt.s32.f32 %v9310
      %v9439 = vcvt.s32.f32 %v9311
      %v9440 = vcvt.s32.f32 %v9312
      %v9441 = vcvt.s32.f32 %v9313
      %v9442 = vcvt.s32.f32 %v9314
      %v9443 = vcvt.s32.f32 %v9315
      %v9444 = vcvt.s32.f32 %v9316
      %v9445 = vcvt.s32.f32 %v9317
      %v9446 = vcvt.s32.f32 %v9318
      %v9447 = vcvt.s32.f32 %v9319
      %v9448 = vcvt.s32.f32 %v9320
      %v9449 = vcvt.s32.f32 %v9321
      %v9450 = vcvt.s32.f32 %v9322
      %v9451 = vcvt.s32.f32 %v9323
      %v9452 = vcvt.s32.f32 %v9324
      %v9453 = vcvt.s32.f32 %v9325
      %v9454 = vcvt.s32.f32 %v9326
      %v9455 = vcvt.s32.f32 %v9327
      %v9456 = vcvt.s32.f32 %v9328
      %v9457 = vcvt.s32.f32 %v9329
      %v9458 = vcvt.s32.f32 %v9330
      %v9459 = vcvt.s32.f32 %v9331
      %v9460 = vcvt.s32.f32 %v9332
      %v9461 = vcvt.s32.f32 %v9333
      %v9462 = vcvt.s32.f32 %v9334
      %v9463 = vcvt.s32.f32 %v9335
      %v9464 = vcvt.s32.f32 %v9336
      %v9465 = vcvt.s32.f32 %v9337
      %v9466 = vcvt.s32.f32 %v9338
      %v9467 = vcvt.s32.f32 %v9339
      %v9468 = vcvt.s32.f32 %v9340
      %v9469 = vcvt.s32.f32 %v9341
      %v9470 = vcvt.s32.f32 %v9342
      %v9471 = vcvt.s32.f32 %v9343
      %v9472 = vcvt.s32.f32 %v9344
      %v9473 = vcvt.s32.f32 %v9345
      %v9474 = vcvt.s32.f32 %v9346
      %v9475 = vcvt.s32.f32 %v9347
      %v9476 = vcvt.s32.f32 %v9348
      %v9477 = vcvt.s32.f32 %v9349
      %v9478 = vcvt.s32.f32 %v9350
      %v9479 = vcvt.s32.f32 %v9351
      %v9480 = vcvt.s32.f32 %v9352
      %v9481 = vcvt.s32.f32 %v9353
      %v9482 = vcvt.s32.f32 %v9354
      %v9483 = vcvt.s32.f32 %v9355
      %v9484 = vcvt.s32.f32 %v9356
      %v9485 = vcvt.s32.f32 %v9357
      %v9486 = vcvt.s32.f32 %v9358
      %v9487 = vcvt.s32.f32 %v9359
      %v9488 = vcvt.s32.f32 %v9360
      %v9489 = vcvt.s32.f32 %v9361
      %v9490 = vcvt.s32.f32 %v9362
      %v9491 = vcvt.s32.f32 %v9363
      %v9492 = vcvt.s32.f32 %v9364
      %v9493 = vcvt.s32.f32 %v9365
      %v9494 = vcvt.s32.f32 %v9366
      %v9495 = vcvt.s32.f32 %v9367
      %v9496 = vcvt.s32.f32 %v9368
      %v9497 = vcvt.s32.f32 %v9369
      %v9498 = vcvt.s32.f32 %v9370
      %v9499 = vcvt.s32.f32 %v9371
      %v9500 = vcvt.s32.f32 %v9372
      %v9501 = vcvt.s32.f32 %v9373
      %v9502 = vcvt.s32.f32 %v9374
      %v9503 = vcvt.s32.f32 %v9375
      %v9504 = vmul.f32 %v7582, %v9376
      %v9505 = vmul.f32 %v7583, %v9377
      %v9506 = vmul.f32 %v7584, %v9378
      %v9507 = vmul.f32 %v7585, %v9379
      %v9508 = vmul.f32 %v7586, %v9380
      %v9509 = vmul.f32 %v7587, %v9381
      %v9510 = vmul.f32 %v7588, %v9382
      %v9511 = vmul.f32 %v7589, %v9383
      %v9512 = vmul.f32 %v7590, %v9384
      %v9513 = vmul.f32 %v7591, %v9385
      %v9514 = vmul.f32 %v7592, %v9386
      %v9515 = vmul.f32 %v7593, %v9387
      %v9516 = vmul.f32 %v7594, %v9388
      %v9517 = vmul.f32 %v7595, %v9389
      %v9518 = vmul.f32 %v7596, %v9390
      %v9519 = vmul.f32 %v7597, %v9391
      %v9520 = vmul.f32 %v7598, %v9392
      %v9521 = vmul.f32 %v7599, %v9393
      %v9522 = vmul.f32 %v7600, %v9394
      %v9523 = vmul.f32 %v7601, %v9395
      %v9524 = vmul.f32 %v7602, %v9396
      %v9525 = vmul.f32 %v7603, %v9397
      %v9526 = vmul.f32 %v7604, %v9398
      %v9527 = vmul.f32 %v7605, %v9399
      %v9528 = vmul.f32 %v7606, %v9400
      %v9529 = vmul.f32 %v7607, %v9401
      %v9530 = vmul.f32 %v7608, %v9402
      %v9531 = vmul.f32 %v7609, %v9403
      %v9532 = vmul.f32 %v7610, %v9404
      %v9533 = vmul.f32 %v7611, %v9405
      %v9534 = vmul.f32 %v7612, %v9406
      %v9535 = vmul.f32 %v7613, %v9407
      %v9536 = vmul.f32 %v7614, %v9408
      %v9537 = vmul.f32 %v7615, %v9409
      %v9538 = vmul.f32 %v7616, %v9410
      %v9539 = vmul.f32 %v7617, %v9411
      %v9540 = vmul.f32 %v7618, %v9412
      %v9541 = vmul.f32 %v7619, %v9413
      %v9542 = vmul.f32 %v7620, %v9414
      %v9543 = vmul.f32 %v7621, %v9415
      %v9544 = vmul.f32 %v7622, %v9416
      %v9545 = vmul.f32 %v7623, %v9417
      %v9546 = vmul.f32 %v7624, %v9418
      %v9547 = vmul.f32 %v7625, %v9419
      %v9548 = vmul.f32 %v7626, %v9420
      %v9549 = vmul.f32 %v7627, %v9421
      %v9550 = vmul.f32 %v7628, %v9422
      %v9551 = vmul.f32 %v7629, %v9423
      %v9552 = vmul.f32 %v7630, %v9424
      %v9553 = vmul.f32 %v7631, %v9425
      %v9554 = vmul.f32 %v7632, %v9426
      %v9555 = vmul.f32 %v7633, %v9427
      %v9556 = vmul.f32 %v7634, %v9428
      %v9557 = vmul.f32 %v7635, %v9429
      %v9558 = vmul.f32 %v7636, %v9430
      %v9559 = vmul.f32 %v7637, %v9431
      %v9560 = vmul.f32 %v7638, %v9432
      %v9561 = vmul.f32 %v7639, %v9433
      %v9562 = vmul.f32 %v7640, %v9434
      %v9563 = vmul.f32 %v7641, %v9435
      %v9564 = vmul.f32 %v7642, %v9436
      %v9565 = vmul.f32 %v7643, %v9437
      %v9566 = vmul.f32 %v7644, %v9438
      %v9567 = vmul.f32 %v7645, %v9439
      %v9568 = vmul.f32 %v7646, %v9440
      %v9569 = vmul.f32 %v7647, %v9441
      %v9570 = vmul.f32 %v7648, %v9442
      %v9571 = vmul.f32 %v7649, %v9443
      %v9572 = vmul.f32 %v7650, %v9444
      %v9573 = vmul.f32 %v7651, %v9445
      %v9574 = vmul.f32 %v7652, %v9446
      %v9575 = vmul.f32 %v7653, %v9447
      %v9576 = vmul.f32 %v7654, %v9448
      %v9577 = vmul.f32 %v7655, %v9449
      %v9578 = vmul.f32 %v7656, %v9450
      %v9579 = vmul.f32 %v7657, %v9451
      %v9580 = vmul.f32 %v7658, %v9452
      %v9581 = vmul.f32 %v7659, %v9453
      %v9582 = vmul.f32 %v7660, %v9454
      %v9583 = vmul.f32 %v7661, %v9455
      %v9584 = vmul.f32 %v7662, %v9456
      %v9585 = vmul.f32 %v7663, %v9457
      %v9586 = vmul.f32 %v7664, %v9458
      %v9587 = vmul.f32 %v7665, %v9459
      %v9588 = vmul.f32 %v7666, %v9460
      %v9589 = vmul.f32 %v7667, %v9461
      %v9590 = vmul.f32 %v7668, %v9462
      %v9591 = vmul.f32 %v7669, %v9463
      %v9592 = vmul.f32 %v7670, %v9464
      %v9593 = vmul.f32 %v7671, %v9465
      %v9594 = vmul.f32 %v7672, %v9466
      %v9595 = vmul.f32 %v7673, %v9467
      %v9596 = vmul.f32 %v7674, %v9468
      %v9597 = vmul.f32 %v7675, %v9469
      %v9598 = vmul.f32 %v7676, %v9470
      %v9599 = vmul.f32 %v7677, %v9471
      %v9600 = vmul.f32 %v7678, %v9472
      %v9601 = vmul.f32 %v7679, %v9473
      %v9602 = vmul.f32 %v7680, %v9474
      %v9603 = vmul.f32 %v7681, %v9475
      %v9604 = vmul.f32 %v7682, %v9476
      %v9605 = vmul.f32 %v7683, %v9477
      %v9606 = vmul.f32 %v7684, %v9478
      %v9607 = vmul.f32 %v7685, %v9479
      %v9608 = vmul.f32 %v7686, %v9480
      %v9609 = vmul.f32 %v7687, %v9481
      %v9610 = vmul.f32 %v7688, %v9482
      %v9611 = vmul.f32 %v7689, %v9483
      %v9612 = vmul.f32 %v7690, %v9484
      %v9613 = vmul.f32 %v7691, %v9485
      %v9614 = vmul.f32 %v7692, %v9486
      %v9615 = vmul.f32 %v7693, %v9487
      %v9616 = vmul.f32 %v7694, %v9488
      %v9617 = vmul.f32 %v7695, %v9489
      %v9618 = vmul.f32 %v7696, %v9490
      %v9619 = vmul.f32 %v7697, %v9491
      %v9620 = vmul.f32 %v7698, %v9492
      %v9621 = vmul.f32 %v7699, %v9493
      %v9622 = vmul.f32 %v7700, %v9494
      %v9623 = vmul.f32 %v7701, %v9495
      %v9624 = vmul.f32 %v7702, %v9496
      %v9625 = vmul.f32 %v7703, %v9497
      %v9626 = vmul.f32 %v7704, %v9498
      %v9627 = vmul.f32 %v7705, %v9499
      %v9628 = vmul.f32 %v7706, %v9500
      %v9629 = vmul.f32 %v7707, %v9501
      %v9630 = vmul.f32 %v7708, %v9502
      %v9631 = vmul.f32 %v7709, %v9503
      %v9632 = vpack.c.bf16 %v9505, %v9504
      %v9633 = vpack.c.bf16 %v9507, %v9506
      %v9634 = vpack.c.bf16 %v9509, %v9508
      %v9635 = vpack.c.bf16 %v9511, %v9510
      %v9636 = vpack.c.bf16 %v9513, %v9512
      %v9637 = vpack.c.bf16 %v9515, %v9514
      %v9638 = vpack.c.bf16 %v9517, %v9516
      %v9639 = vpack.c.bf16 %v9519, %v9518
      %v9640 = vpack.c.bf16 %v9521, %v9520
      %v9641 = vpack.c.bf16 %v9523, %v9522
      %v9642 = vpack.c.bf16 %v9525, %v9524
      %v9643 = vpack.c.bf16 %v9527, %v9526
      %v9644 = vpack.c.bf16 %v9529, %v9528
      %v9645 = vpack.c.bf16 %v9531, %v9530
      %v9646 = vpack.c.bf16 %v9533, %v9532
      %v9647 = vpack.c.bf16 %v9535, %v9534
      %v9648 = vpack.c.bf16 %v9537, %v9536
      %v9649 = vpack.c.bf16 %v9539, %v9538
      %v9650 = vpack.c.bf16 %v9541, %v9540
      %v9651 = vpack.c.bf16 %v9543, %v9542
      %v9652 = vpack.c.bf16 %v9545, %v9544
      %v9653 = vpack.c.bf16 %v9547, %v9546
      %v9654 = vpack.c.bf16 %v9549, %v9548
      %v9655 = vpack.c.bf16 %v9551, %v9550
      %v9656 = vpack.c.bf16 %v9553, %v9552
      %v9657 = vpack.c.bf16 %v9555, %v9554
      %v9658 = vpack.c.bf16 %v9557, %v9556
      %v9659 = vpack.c.bf16 %v9559, %v9558
      %v9660 = vpack.c.bf16 %v9561, %v9560
      %v9661 = vpack.c.bf16 %v9563, %v9562
      %v9662 = vpack.c.bf16 %v9565, %v9564
      %v9663 = vpack.c.bf16 %v9567, %v9566
      %v9664 = vpack.c.bf16 %v9569, %v9568
      %v9665 = vpack.c.bf16 %v9571, %v9570
      %v9666 = vpack.c.bf16 %v9573, %v9572
      %v9667 = vpack.c.bf16 %v9575, %v9574
      %v9668 = vpack.c.bf16 %v9577, %v9576
      %v9669 = vpack.c.bf16 %v9579, %v9578
      %v9670 = vpack.c.bf16 %v9581, %v9580
      %v9671 = vpack.c.bf16 %v9583, %v9582
      %v9672 = vpack.c.bf16 %v9585, %v9584
      %v9673 = vpack.c.bf16 %v9587, %v9586
      %v9674 = vpack.c.bf16 %v9589, %v9588
      %v9675 = vpack.c.bf16 %v9591, %v9590
      %v9676 = vpack.c.bf16 %v9593, %v9592
      %v9677 = vpack.c.bf16 %v9595, %v9594
      %v9678 = vpack.c.bf16 %v9597, %v9596
      %v9679 = vpack.c.bf16 %v9599, %v9598
      %v9680 = vpack.c.bf16 %v9601, %v9600
      %v9681 = vpack.c.bf16 %v9603, %v9602
      %v9682 = vpack.c.bf16 %v9605, %v9604
      %v9683 = vpack.c.bf16 %v9607, %v9606
      %v9684 = vpack.c.bf16 %v9609, %v9608
      %v9685 = vpack.c.bf16 %v9611, %v9610
      %v9686 = vpack.c.bf16 %v9613, %v9612
      %v9687 = vpack.c.bf16 %v9615, %v9614
      %v9688 = vpack.c.bf16 %v9617, %v9616
      %v9689 = vpack.c.bf16 %v9619, %v9618
      %v9690 = vpack.c.bf16 %v9621, %v9620
      %v9691 = vpack.c.bf16 %v9623, %v9622
      %v9692 = vpack.c.bf16 %v9625, %v9624
      %v9693 = vpack.c.bf16 %v9627, %v9626
      %v9694 = vpack.c.bf16 %v9629, %v9628
      %v9695 = vpack.c.bf16 %v9631, %v9630
      %v9696 = vld [vmem:[%s13] sm:$0x3]
      %vm9697 = vcmask 261120
      %v9699 = vsel %vm9697, %v9696, 0
      %v9702 = vsel %vm9697, %v9632, 0
      %v9705 = vsel %vm9697, %v9633, 0
      %v9708 = vsel %vm9697, %v9634, 0
      %v9711 = vsel %vm9697, %v9635, 0
      %v9714 = vsel %vm9697, %v9636, 0
      %v9717 = vsel %vm9697, %v9637, 0
      %v9720 = vsel %vm9697, %v9638, 0
      %v9723 = vsel %vm9697, %v9639, 0
      %v9726 = vsel %vm9697, %v9640, 0
      %v9729 = vsel %vm9697, %v9641, 0
      %v9732 = vsel %vm9697, %v9642, 0
      %v9735 = vsel %vm9697, %v9643, 0
      %v9738 = vsel %vm9697, %v9644, 0
      %v9741 = vsel %vm9697, %v9645, 0
      %v9744 = vsel %vm9697, %v9646, 0
      %v9747 = vsel %vm9697, %v9647, 0
      %v9750 = vsel %vm9697, %v9648, 0
      %v9753 = vsel %vm9697, %v9649, 0
      %v9756 = vsel %vm9697, %v9650, 0
      %v9759 = vsel %vm9697, %v9651, 0
      %v9762 = vsel %vm9697, %v9652, 0
      %v9765 = vsel %vm9697, %v9653, 0
      %v9768 = vsel %vm9697, %v9654, 0
      %v9771 = vsel %vm9697, %v9655, 0
      %v9774 = vsel %vm9697, %v9656, 0
      %v9777 = vsel %vm9697, %v9657, 0
      %v9780 = vsel %vm9697, %v9658, 0
      %v9783 = vsel %vm9697, %v9659, 0
      %v9786 = vsel %vm9697, %v9660, 0
      %v9789 = vsel %vm9697, %v9661, 0
      %v9792 = vsel %vm9697, %v9662, 0
      %v9795 = vsel %vm9697, %v9663, 0
      %v9798 = vsel %vm9697, %v9664, 0
      %v9801 = vsel %vm9697, %v9665, 0
      %v9804 = vsel %vm9697, %v9666, 0
      %v9807 = vsel %vm9697, %v9667, 0
      %v9810 = vsel %vm9697, %v9668, 0
      %v9813 = vsel %vm9697, %v9669, 0
      %v9816 = vsel %vm9697, %v9670, 0
      %v9819 = vsel %vm9697, %v9671, 0
      %v9822 = vsel %vm9697, %v9672, 0
      %v9825 = vsel %vm9697, %v9673, 0
      %v9828 = vsel %vm9697, %v9674, 0
      %v9831 = vsel %vm9697, %v9675, 0
      %v9834 = vsel %vm9697, %v9676, 0
      %v9837 = vsel %vm9697, %v9677, 0
      %v9840 = vsel %vm9697, %v9678, 0
      %v9843 = vsel %vm9697, %v9679, 0
      %v9846 = vsel %vm9697, %v9680, 0
      %v9849 = vsel %vm9697, %v9681, 0
      %v9852 = vsel %vm9697, %v9682, 0
      %v9855 = vsel %vm9697, %v9683, 0
      %v9858 = vsel %vm9697, %v9684, 0
      %v9861 = vsel %vm9697, %v9685, 0
      %v9864 = vsel %vm9697, %v9686, 0
      %v9867 = vsel %vm9697, %v9687, 0
      %v9870 = vsel %vm9697, %v9688, 0
      %v9873 = vsel %vm9697, %v9689, 0
      %v9876 = vsel %vm9697, %v9690, 0
      %v9879 = vsel %vm9697, %v9691, 0
      %v9882 = vsel %vm9697, %v9692, 0
      %v9885 = vsel %vm9697, %v9693, 0
      %v9888 = vsel %vm9697, %v9694, 0
      %v9891 = vsel %vm9697, %v9695, 0
      %9893 = vmatprep.subr.bf16.mxu0 0
      %9894 = vmatpush1.bf16.xpose.msra.mxu0 %v9723
      %9895 = vmatprep.subr.bf16.mxu0 0
      %9896 = vmatpush1.bf16.xpose.msra.mxu0 %v9720
      %9897 = vmatprep.subr.bf16.mxu0 0
      %9898 = vmatpush1.bf16.xpose.msra.mxu0 %v9717
      %9899 = vmatprep.subr.bf16.mxu0 0
      %9900 = vmatpush1.bf16.xpose.msra.mxu0 %v9714
      %9901 = vmatprep.subr.bf16.mxu0 0
      %9902 = vmatpush1.bf16.xpose.msra.mxu0 %v9711
      %9903 = vmatprep.subr.bf16.mxu0 0
      %9904 = vmatpush1.bf16.xpose.msra.mxu0 %v9708
      %9905 = vmatprep.subr.bf16.mxu0 0
      %9906 = vmatpush1.bf16.xpose.msra.mxu0 %v9705
      %9907 = vmatprep.subr.bf16.mxu0 0
      %9908 = vmatpush1.bf16.xpose.msra.mxu0 %v9702
      %9909 = vmatprep.subr.bf16.mxu0 0
      %9910 = vmatpush2.bf16.xpose.msra.mxu0 %v9747
      %9911 = vmatprep.subr.bf16.mxu0 0
      %9912 = vmatpush2.bf16.xpose.msra.mxu0 %v9744
      %9913 = vmatprep.subr.bf16.mxu0 0
      %9914 = vmatpush2.bf16.xpose.msra.mxu0 %v9741
      %9915 = vmatprep.subr.bf16.mxu0 0
      %9916 = vmatpush2.bf16.xpose.msra.mxu0 %v9738
      %9917 = vmatprep.subr.bf16.mxu0 0
      %9918 = vmatpush2.bf16.xpose.msra.mxu0 %v9735
      %9919 = vmatprep.subr.bf16.mxu0 0
      %9920 = vmatpush2.bf16.xpose.msra.mxu0 %v9732
      %9921 = vmatprep.subr.bf16.mxu0 0
      %9922 = vmatpush2.bf16.xpose.msra.mxu0 %v9729
      %9923 = vmatprep.subr.bf16.mxu0 0
      %9924 = vmatpush2.bf16.xpose.msra.mxu0 %v9726
      %9925 = vmatprep.mubr.bf16.mxu0 0
      %9926 = vmatmul.mubr.bf16.gmra.mxu0 %v9699
      %v9927 = vpop.f32.mrf.mxu0
      %v9928 = vadd.f32 0.0, %v9927
      %v9929 = vpop.f32.mrf.mxu0
      %v9930 = vadd.f32 0.0, %v9929
      %v9931 = vpop.f32.mrf.mxu0
      %v9932 = vpop.f32.mrf.mxu0
      %9933 = vdwg.mxu0
      %9934 = vmatprep.subr.bf16.mxu0 0
      %9935 = vmatpush1.bf16.xpose.msra.mxu0 %v9771
      %9936 = vmatprep.subr.bf16.mxu0 0
      %9937 = vmatpush1.bf16.xpose.msra.mxu0 %v9768
      %9938 = vmatprep.subr.bf16.mxu0 0
      %9939 = vmatpush1.bf16.xpose.msra.mxu0 %v9765
      %9940 = vmatprep.subr.bf16.mxu0 0
      %9941 = vmatpush1.bf16.xpose.msra.mxu0 %v9762
      %9942 = vmatprep.subr.bf16.mxu0 0
      %9943 = vmatpush1.bf16.xpose.msra.mxu0 %v9759
      %9944 = vmatprep.subr.bf16.mxu0 0
      %9945 = vmatpush1.bf16.xpose.msra.mxu0 %v9756
      %9946 = vmatprep.subr.bf16.mxu0 0
      %9947 = vmatpush1.bf16.xpose.msra.mxu0 %v9753
      %9948 = vmatprep.subr.bf16.mxu0 0
      %9949 = vmatpush1.bf16.xpose.msra.mxu0 %v9750
      %9950 = vmatprep.subr.bf16.mxu0 0
      %9951 = vmatpush2.bf16.xpose.msra.mxu0 %v9795
      %9952 = vmatprep.subr.bf16.mxu0 0
      %9953 = vmatpush2.bf16.xpose.msra.mxu0 %v9792
      %9954 = vmatprep.subr.bf16.mxu0 0
      %9955 = vmatpush2.bf16.xpose.msra.mxu0 %v9789
      %9956 = vmatprep.subr.bf16.mxu0 0
      %9957 = vmatpush2.bf16.xpose.msra.mxu0 %v9786
      %9958 = vmatprep.subr.bf16.mxu0 0
      %9959 = vmatpush2.bf16.xpose.msra.mxu0 %v9783
      %9960 = vmatprep.subr.bf16.mxu0 0
      %9961 = vmatpush2.bf16.xpose.msra.mxu0 %v9780
      %9962 = vmatprep.subr.bf16.mxu0 0
      %9963 = vmatpush2.bf16.xpose.msra.mxu0 %v9777
      %9964 = vmatprep.subr.bf16.mxu0 0
      %9965 = vmatpush2.bf16.xpose.msra.mxu0 %v9774
      %9966 = vmatprep.mubr.bf16.mxu0 0
      %9967 = vmatmul.mubr.bf16.gmra.mxu0 %v9699
      %v9968 = vpop.f32.mrf.mxu0
      %v9969 = vadd.f32 0.0, %v9968
      %v9970 = vpop.f32.mrf.mxu0
      %v9971 = vadd.f32 0.0, %v9970
      %v9972 = vpop.f32.mrf.mxu0
      %v9973 = vpop.f32.mrf.mxu0
      %9974 = vdwg.mxu0
      %9975 = vmatprep.subr.bf16.mxu0 0
      %9976 = vmatpush1.bf16.xpose.msra.mxu0 %v9819
      %9977 = vmatprep.subr.bf16.mxu0 0
      %9978 = vmatpush1.bf16.xpose.msra.mxu0 %v9816
      %9979 = vmatprep.subr.bf16.mxu0 0
      %9980 = vmatpush1.bf16.xpose.msra.mxu0 %v9813
      %9981 = vmatprep.subr.bf16.mxu0 0
      %9982 = vmatpush1.bf16.xpose.msra.mxu0 %v9810
      %9983 = vmatprep.subr.bf16.mxu0 0
      %9984 = vmatpush1.bf16.xpose.msra.mxu0 %v9807
      %9985 = vmatprep.subr.bf16.mxu0 0
      %9986 = vmatpush1.bf16.xpose.msra.mxu0 %v9804
      %9987 = vmatprep.subr.bf16.mxu0 0
      %9988 = vmatpush1.bf16.xpose.msra.mxu0 %v9801
      %9989 = vmatprep.subr.bf16.mxu0 0
      %9990 = vmatpush1.bf16.xpose.msra.mxu0 %v9798
      %9991 = vmatprep.subr.bf16.mxu0 0
      %9992 = vmatpush2.bf16.xpose.msra.mxu0 %v9843
      %9993 = vmatprep.subr.bf16.mxu0 0
      %9994 = vmatpush2.bf16.xpose.msra.mxu0 %v9840
      %9995 = vmatprep.subr.bf16.mxu0 0
      %9996 = vmatpush2.bf16.xpose.msra.mxu0 %v9837
      %9997 = vmatprep.subr.bf16.mxu0 0
      %9998 = vmatpush2.bf16.xpose.msra.mxu0 %v9834
      %9999 = vmatprep.subr.bf16.mxu0 0
      %10000 = vmatpush2.bf16.xpose.msra.mxu0 %v9831
      %10001 = vmatprep.subr.bf16.mxu0 0
      %10002 = vmatpush2.bf16.xpose.msra.mxu0 %v9828
      %10003 = vmatprep.subr.bf16.mxu0 0
      %10004 = vmatpush2.bf16.xpose.msra.mxu0 %v9825
      %10005 = vmatprep.subr.bf16.mxu0 0
      %10006 = vmatpush2.bf16.xpose.msra.mxu0 %v9822
      %10007 = vmatprep.mubr.bf16.mxu0 0
      %10008 = vmatmul.mubr.bf16.gmra.mxu0 %v9699
      %v10009 = vpop.f32.mrf.mxu0
      %v10010 = vadd.f32 0.0, %v10009
      %v10011 = vpop.f32.mrf.mxu0
      %v10012 = vadd.f32 0.0, %v10011
      %v10013 = vpop.f32.mrf.mxu0
      %v10014 = vpop.f32.mrf.mxu0
      %10015 = vdwg.mxu0
      %10016 = vmatprep.subr.bf16.mxu0 0
      %10017 = vmatpush1.bf16.xpose.msra.mxu0 %v9867
      %10018 = vmatprep.subr.bf16.mxu0 0
      %10019 = vmatpush1.bf16.xpose.msra.mxu0 %v9864
      %10020 = vmatprep.subr.bf16.mxu0 0
      %10021 = vmatpush1.bf16.xpose.msra.mxu0 %v9861
      %10022 = vmatprep.subr.bf16.mxu0 0
      %10023 = vmatpush1.bf16.xpose.msra.mxu0 %v9858
      %10024 = vmatprep.subr.bf16.mxu0 0
      %10025 = vmatpush1.bf16.xpose.msra.mxu0 %v9855
      %10026 = vmatprep.subr.bf16.mxu0 0
      %10027 = vmatpush1.bf16.xpose.msra.mxu0 %v9852
      %10028 = vmatprep.subr.bf16.mxu0 0
      %10029 = vmatpush1.bf16.xpose.msra.mxu0 %v9849
      %10030 = vmatprep.subr.bf16.mxu0 0
      %10031 = vmatpush1.bf16.xpose.msra.mxu0 %v9846
      %10032 = vmatprep.subr.bf16.mxu0 0
      %10033 = vmatpush2.bf16.xpose.msra.mxu0 %v9891
      %10034 = vmatprep.subr.bf16.mxu0 0
      %10035 = vmatpush2.bf16.xpose.msra.mxu0 %v9888
      %10036 = vmatprep.subr.bf16.mxu0 0
      %10037 = vmatpush2.bf16.xpose.msra.mxu0 %v9885
      %10038 = vmatprep.subr.bf16.mxu0 0
      %10039 = vmatpush2.bf16.xpose.msra.mxu0 %v9882
      %10040 = vmatprep.subr.bf16.mxu0 0
      %10041 = vmatpush2.bf16.xpose.msra.mxu0 %v9879
      %10042 = vmatprep.subr.bf16.mxu0 0
      %10043 = vmatpush2.bf16.xpose.msra.mxu0 %v9876
      %10044 = vmatprep.subr.bf16.mxu0 0
      %10045 = vmatpush2.bf16.xpose.msra.mxu0 %v9873
      %10046 = vmatprep.subr.bf16.mxu0 0
      %10047 = vmatpush2.bf16.xpose.msra.mxu0 %v9870
      %10048 = vmatprep.mubr.bf16.mxu0 0
      %10049 = vmatmul.mubr.bf16.gmra.mxu0 %v9699
      %v10050 = vpop.f32.mrf.mxu0
      %v10051 = vadd.f32 0.0, %v10050
      %v10052 = vpop.f32.mrf.mxu0
      %v10053 = vadd.f32 0.0, %v10052
      %v10054 = vpop.f32.mrf.mxu0
      %v10055 = vpop.f32.mrf.mxu0
      %10056 = vdwg.mxu0
      %v10065 = vcombine.low %v9928, %v9930
      %v10066 = vcombine.low %v9969, %v9971
      %v10067 = vcombine.low %v10010, %v10012
      %v10068 = vcombine.low %v10051, %v10053
      %10073 = vst [vmem:[%s491] sm:$0xff] %v10065
      %10074 = vst [vmem:[%s491 + $0x8] sm:$0xff] %v10066
      %10075 = vst [vmem:[%s491 + $0x10] sm:$0xff] %v10067
      %10076 = vst [vmem:[%s491 + $0x18] sm:$0xff] %v10068
      %s10077 = smul.u32 8, %s25
      %p10078 = scmp.lt.s32.totalorder %s10077, 15
      %s10079 = scalar_select %p10078, %s10077, 15
      %s10080 = smul.addr %s10079, 4
      %s10081 = scalar_lea.vmem %s14, %s10080
      // Predicated region
      $region77: #{network_forward.1} parent=75 // pred_check
        %p10082 = pneg %p347
      $region78: #{network_forward.1} parent=75 // pred_check_branch
        %10084 = sbr.rel (%p10082) target = $region80
      $region79: #{network_forward.1} parent=75 // pred_region
        %s10085 = smul.u32 8, %s25
      $region80: #{network_forward.1} parent=75 // pred_fallthru
        _
    $region76: #{network_forward.1} parent=5 // pred_fallthru
      _
    %p10086 = scmp.le.s32.totalorder 2, %s20
    // Predicated region
    $region81: #{network_forward.1} parent=5 // pred_check
      %p10087 = pneg %p10086
    $region82: #{network_forward.1} parent=5 // pred_check_branch
      %10089 = sbr.rel (%p10087) target = $region84
    $region83: #{network_forward.1} parent=5 // pred_region
      %s10090 = ssub.s32 %s20, 2
      // Predicated region
      $region85: #{network_forward.1} parent=83 // pred_check
        %p10091 = pneg %p353
      $region86: #{network_forward.1} parent=83 // pred_check_branch
        %10093 = sbr.rel (%p10091) target = $region88
      $region87: #{network_forward.1} parent=83 // pred_region
        %s10094 = smul.u32 8, %s26
        %p10095 = scmp.lt.s32.totalorder %s10094, 15
        %s10096 = scalar_select %p10095, %s10094, 15
        %s10097 = smul.addr %s10096, 4
        %s10098 = scalar_lea.vmem %s14, %s10097
      $region88: #{network_forward.1} parent=83 // pred_fallthru
        _
    $region84: #{network_forward.1} parent=5 // pred_fallthru
      _
  $region6: #{network_forward.1} parent=0 // loop_footer
    %s24 = sadd.s32 1, %s20
  $region7: #{network_forward.1} parent=0 // loop_footer_branch
    %19 = sbr.rel target = $region3
  $region8: #{network_forward.1} parent=0 // loop_exit
    _

</llo_original>
